<compile_context>
chip_gen: v7x
topology: tpu7x:2x2x1
jax: 0.10.0
libtpu: 0.0.40
codegen_flags: <defaults>
</compile_context>

<pallas_src>
import functools

import jax
import jax.numpy as jnp
from jax.experimental import pallas as pl
from jax.experimental.pallas import tpu as pltpu


# ----------------------------------------------------------------------------
# tiling helper: largest divisor of `n` that is <= cap and a multiple of align
# (falls back to the full axis, which is always a legal block size).
# ----------------------------------------------------------------------------
def _pick_tile(n, cap, align=1):
    if n <= cap:
        return n
    best = None
    for t in range(align, cap + 1, align):
        if n % t == 0:
            best = t
    return n if best is None else best


# ----------------------------------------------------------------------------
# Kernel 1/3: fused Linear + BatchNorm1d(eval) affine + multi-step LIF scan.
#   y_t   = (x_t @ W) * scale + shift
#   v_t   = v_{t-1} + (y_t - v_{t-1}) / tau
#   s_t   = (v_t >= thr) ; hard reset v_t <- v_t * (1 - s_t)
# One grid step owns a (T, tr, Cin) slab of rows and keeps the membrane state
# in VMEM across the (unrolled) T loop; only the spikes go back to HBM.
# ----------------------------------------------------------------------------
def _linear_bn_lif_kernel(x_ref, w_ref, scale_ref, shift_ref, o_ref, *,
                          tau, v_threshold):
    T = x_ref.shape[0]
    w = w_ref[...]
    scale = scale_ref[...]
    shift = shift_ref[...]
    inv_tau = 1.0 / tau
    v = jnp.zeros((x_ref.shape[1], w_ref.shape[1]), jnp.float32)
    for t in range(T):                       # static T -> fully unrolled
        y = jnp.dot(x_ref[t], w, preferred_element_type=jnp.float32)
        y = y * scale + shift
        v = v + (y - v) * inv_tau
        spike = (v >= v_threshold).astype(jnp.float32)
        o_ref[t] = spike.astype(o_ref.dtype)
        v = v * (1.0 - spike)


def fused_linear_bn_lif(x, w_t, scale, shift, *, tau=2.0, v_threshold=1.0,
                        out_dtype=jnp.float32, row_tile=256):
    T, R, Cin = x.shape
    Cout = w_t.shape[1]
    tr = _pick_tile(R, row_tile, align=8)
    kern = functools.partial(_linear_bn_lif_kernel, tau=tau,
                             v_threshold=v_threshold)
    return pl.pallas_call(
        kern,
        out_shape=jax.ShapeDtypeStruct((T, R, Cout), out_dtype),
        grid=(R // tr,),
        in_specs=[
            pl.BlockSpec((T, tr, Cin), lambda i: (0, i, 0)),
            pl.BlockSpec((Cin, Cout), lambda i: (0, 0)),    # weight resident
            pl.BlockSpec((1, Cout), lambda i: (0, 0)),
            pl.BlockSpec((1, Cout), lambda i: (0, 0)),
        ],
        out_specs=pl.BlockSpec((T, tr, Cout), lambda i: (0, i, 0)),
        compiler_params=pltpu.CompilerParams(
            dimension_semantics=("parallel",)),
    )(x, w_t, scale.reshape(1, Cout), shift.reshape(1, Cout))


# ----------------------------------------------------------------------------
# Kernel 2: batched-group attention + fused attn_lif.
#   per group g (= one batch*head), per time step t:
#     attn_t = q_t @ k_t^T * 0.125      (bf16 spikes in, f32 accumulate)
#     out_t  = attn_t @ v_t             (f32)
#     LIF scan over t on out (threshold 0.5), only spikes + attn leave VMEM.
# ----------------------------------------------------------------------------
def _attn_lif_kernel(q_ref, k_ref, v_ref, attn_ref, o_ref, *,
                     scale, tau, v_threshold):
    T = q_ref.shape[0]
    GB, N, D = q_ref.shape[1], q_ref.shape[2], q_ref.shape[3]
    inv_tau = 1.0 / tau
    vm = jnp.zeros((GB, N, D), jnp.float32)
    for t in range(T):                       # static T -> fully unrolled
        q_t = q_ref[t]                       # (GB, N, D) bf16 spikes
        k_t = k_ref[t]
        v_t = v_ref[t].astype(jnp.float32)
        # contraction on the last dims -> no explicit transpose of k
        attn_t = jnp.einsum('gnd,gmd->gnm', q_t, k_t,
                            preferred_element_type=jnp.float32) * scale
        out_t = jnp.einsum('gnm,gmd->gnd', attn_t, v_t,
                           preferred_element_type=jnp.float32)
        attn_ref[t] = attn_t
        vm = vm + (out_t - vm) * inv_tau
        spike = (vm >= v_threshold).astype(jnp.float32)
        o_ref[t] = spike
        vm = vm * (1.0 - spike)


def fused_attention_lif(qh, kh, vh, *, scale=0.125, tau=2.0, v_threshold=0.5,
                        group_tile=8):
    T, G, N, D = qh.shape
    gb = _pick_tile(G, group_tile, align=1)
    attn, spikes = pl.pallas_call(
        functools.partial(_attn_lif_kernel, scale=scale, tau=tau,
                          v_threshold=v_threshold),
        out_shape=(
            jax.ShapeDtypeStruct((T, G, N, N), jnp.float32),
            jax.ShapeDtypeStruct((T, G, N, D), jnp.float32),
        ),
        grid=(G // gb,),
        in_specs=[pl.BlockSpec((T, gb, N, D), lambda g: (0, g, 0, 0))] * 3,
        out_specs=(
            pl.BlockSpec((T, gb, N, N), lambda g: (0, g, 0, 0)),
            pl.BlockSpec((T, gb, N, D), lambda g: (0, g, 0, 0)),
        ),
        compiler_params=pltpu.CompilerParams(
            dimension_semantics=("parallel",)),
    )(qh, kh, vh)
    return attn, spikes


# ----------------------------------------------------------------------------
# SSA forward
# ----------------------------------------------------------------------------
def ssa_forward(x, params, *, num_heads=8):
    T, B, N, C = x.shape
    H = num_heads
    D = C // H
    R = B * N

    # fuse q/k/v into a single (C, 3C) linear + folded-BN affine
    w_qkv = jnp.concatenate(
        [params["q"]["w_t"], params["k"]["w_t"], params["v"]["w_t"]], axis=1)
    sc_qkv = jnp.concatenate(
        [params["q"]["scale"], params["k"]["scale"], params["v"]["scale"]])
    sh_qkv = jnp.concatenate(
        [params["q"]["shift"], params["k"]["shift"], params["v"]["shift"]])

    x3 = x.reshape(T, R, C)
    # (T, R, 3C) spikes in bf16 (spikes are exactly {0,1} -> lossless)
    qkv = fused_linear_bn_lif(x3, w_qkv, sc_qkv, sh_qkv,
                              tau=2.0, v_threshold=1.0,
                              out_dtype=jnp.bfloat16)

    qkv = qkv.reshape(T, B, N, 3, H, D)

    def to_heads(i):
        # (T,B,N,H,D) -> (T,B,H,N,D) -> (T, B*H, N, D)
        return (qkv[:, :, :, i]
                .transpose(0, 1, 3, 2, 4)
                .reshape(T, B * H, N, D))

    qh, kh, vh = to_heads(0), to_heads(1), to_heads(2)

    attn_flat, s_flat = fused_attention_lif(qh, kh, vh, scale=0.125,
                                            tau=2.0, v_threshold=0.5)
    attn = attn_flat.reshape(T, B, H, N, N)          # matches module's attn

    xo = (s_flat.reshape(T, B, H, N, D)
                .transpose(0, 1, 3, 2, 4)
                .reshape(T, R, C))

    pf = params["proj"]
    y = fused_linear_bn_lif(xo, pf["w_t"], pf["scale"], pf["shift"],
                            tau=2.0, v_threshold=1.0,
                            out_dtype=jnp.float32)   # proj_lif output
    return y.reshape(T, B, N, C), attn


# ----------------------------------------------------------------------------
# Deterministic parameter construction (Linear + folded BatchNorm1d eval stats)
# ----------------------------------------------------------------------------
def make_linear_bn_params(key, C):
    kw, kb, kg, kbe, km, kv = jax.random.split(key, 6)
    w = jax.random.normal(kw, (C, C), jnp.float32) / jnp.sqrt(jnp.float32(C))
    b = 0.02 * jax.random.normal(kb, (C,), jnp.float32)
    gamma = 1.0 + 0.1 * jax.random.normal(kg, (C,), jnp.float32)
    beta = 0.05 * jax.random.normal(kbe, (C,), jnp.float32)
    run_mean = 0.05 * jax.random.normal(km, (C,), jnp.float32)
    run_var = 1.0 + 0.1 * jax.random.uniform(kv, (C,), jnp.float32)
    eps = 1e-5
    scale = gamma / jnp.sqrt(run_var + eps)
    shift = (b - run_mean) * scale + beta
    return {"w_t": w.T, "scale": scale, "shift": shift}


if __name__ == "__main__":
    T, B, N, C, H = 4, 2, 16, 32, 8

    key = jax.random.PRNGKey(0)
    kx, kq, kk, kv, kp = jax.random.split(key, 5)
    x = jax.random.normal(kx, (T, B, N, C), jnp.float32)

    params = {
        "q": make_linear_bn_params(kq, C),
        "k": make_linear_bn_params(kk, C),
        "v": make_linear_bn_params(kv, C),
        "proj": make_linear_bn_params(kp, C),
    }

    out, attn = jax.jit(functools.partial(ssa_forward, num_heads=H))(x, params)
    jax.block_until_ready((out, attn))
    assert out.shape == (T, B, N, C)
    assert attn.shape == (T, B, H, N, N)
    print("KERNEL_OK")
</pallas_src>

<mosaic_0001>
module attributes {stable_mosaic.version = 11 : i64} {
  func.func @_linear_bn_lif_kernel(%arg0: i32, %arg1: memref<4x32x32xf32, #tpu.memory_space<vmem>>, %arg2: memref<32x96xf32, #tpu.memory_space<vmem>>, %arg3: memref<1x96xf32, #tpu.memory_space<vmem>>, %arg4: memref<1x96xf32, #tpu.memory_space<vmem>>, %arg5: memref<4x32x96xbf16, #tpu.memory_space<vmem>>) attributes {dimension_semantics = [#tpu.dimension_semantics<parallel>], iteration_bounds = array<i64: 1>, scalar_prefetch = 0 : i64, scratch_operands = 0 : i64, tpu.core_type = #tpu.core_type<tc>, window_params = [{transform_indices = @transform_0, window_bounds = array<i64: 4, 32, 32>}, {pipeline_mode = #tpu.pipeline_mode<synchronous>, transform_indices = @transform_1, window_bounds = array<i64: 32, 96>}, {pipeline_mode = #tpu.pipeline_mode<synchronous>, transform_indices = @transform_2, window_bounds = array<i64: 1, 96>}, {pipeline_mode = #tpu.pipeline_mode<synchronous>, transform_indices = @transform_3, window_bounds = array<i64: 1, 96>}, {transform_indices = @transform_4, window_bounds = array<i64: 4, 32, 96>}]} {
    %c0 = arith.constant 0 : index
    %c0_0 = arith.constant 0 : index
    %0 = vector.load %arg2[%c0, %c0_0] : memref<32x96xf32, #tpu.memory_space<vmem>>, vector<32x96xf32>
    %c0_1 = arith.constant 0 : index
    %c0_2 = arith.constant 0 : index
    %1 = vector.load %arg3[%c0_1, %c0_2] : memref<1x96xf32, #tpu.memory_space<vmem>>, vector<1x96xf32>
    %c0_3 = arith.constant 0 : index
    %c0_4 = arith.constant 0 : index
    %2 = vector.load %arg4[%c0_3, %c0_4] : memref<1x96xf32, #tpu.memory_space<vmem>>, vector<1x96xf32>
    %cst = arith.constant 0.000000e+00 : f32
    %3 = vector.broadcast %cst : f32 to vector<32x96xf32>
    %c0_5 = arith.constant 0 : index
    %c0_6 = arith.constant 0 : index
    %c0_7 = arith.constant 0 : index
    %4 = vector.load %arg1[%c0_5, %c0_6, %c0_7] : memref<4x32x32xf32, #tpu.memory_space<vmem>>, vector<1x32x32xf32>
    %5 = vector.shape_cast %4 : vector<1x32x32xf32> to vector<32x32xf32>
    %cst_8 = arith.constant dense<0.000000e+00> : vector<32x96xf32>
    %6 = tpu.matmul %5, %0, %cst_8 {dimension_numbers = #tpu.dot_dimension_numbers<[1], [0], [0], [1], [0, 0, 1, 1], [], []>} : vector<32x32xf32>, vector<32x96xf32>, vector<32x96xf32> -> vector<32x96xf32>
    %7 = vector.broadcast %1 : vector<1x96xf32> to vector<32x96xf32>
    %8 = arith.mulf %6, %7 : vector<32x96xf32>
    %9 = vector.broadcast %2 : vector<1x96xf32> to vector<32x96xf32>
    %10 = arith.addf %8, %9 : vector<32x96xf32>
    %11 = arith.subf %10, %3 : vector<32x96xf32>
    %cst_9 = arith.constant 5.000000e-01 : f32
    %12 = vector.broadcast %cst_9 : f32 to vector<32x96xf32>
    %13 = arith.mulf %11, %12 : vector<32x96xf32>
    %14 = arith.addf %3, %13 : vector<32x96xf32>
    %cst_10 = arith.constant 1.000000e+00 : f32
    %15 = vector.broadcast %cst_10 : f32 to vector<32x96xf32>
    %16 = arith.cmpf oge, %14, %15 : vector<32x96xf32>
    %17 = arith.extui %16 : vector<32x96xi1> to vector<32x96xi32>
    %18 = arith.sitofp %17 : vector<32x96xi32> to vector<32x96xf32>
    %19 = arith.truncf %18 : vector<32x96xf32> to vector<32x96xbf16>
    %c0_11 = arith.constant 0 : index
    %c0_12 = arith.constant 0 : index
    %c0_13 = arith.constant 0 : index
    %20 = vector.load %arg5[%c0_11, %c0_12, %c0_13] : memref<4x32x96xbf16, #tpu.memory_space<vmem>>, vector<1x32x96xbf16>
    %21 = vector.shape_cast %20 : vector<1x32x96xbf16> to vector<32x96xbf16>
    %22 = vector.shape_cast %19 : vector<32x96xbf16> to vector<1x32x96xbf16>
    tpu.vector_store %arg5[%c0_11, %c0_12, %c0_13], %22 {strides = array<i32>} : memref<4x32x96xbf16, #tpu.memory_space<vmem>>, vector<1x32x96xbf16>,
    %cst_14 = arith.constant 1.000000e+00 : f32
    %23 = vector.broadcast %cst_14 : f32 to vector<32x96xf32>
    %24 = arith.subf %23, %18 : vector<32x96xf32>
    %25 = arith.mulf %14, %24 : vector<32x96xf32>
    %c1 = arith.constant 1 : index
    %c0_15 = arith.constant 0 : index
    %c0_16 = arith.constant 0 : index
    %26 = vector.load %arg1[%c1, %c0_15, %c0_16] : memref<4x32x32xf32, #tpu.memory_space<vmem>>, vector<1x32x32xf32>
    %27 = vector.shape_cast %26 : vector<1x32x32xf32> to vector<32x32xf32>
    %cst_17 = arith.constant dense<0.000000e+00> : vector<32x96xf32>
    %28 = tpu.matmul %27, %0, %cst_17 {dimension_numbers = #tpu.dot_dimension_numbers<[1], [0], [0], [1], [0, 0, 1, 1], [], []>} : vector<32x32xf32>, vector<32x96xf32>, vector<32x96xf32> -> vector<32x96xf32>
    %29 = vector.broadcast %1 : vector<1x96xf32> to vector<32x96xf32>
    %30 = arith.mulf %28, %29 : vector<32x96xf32>
    %31 = vector.broadcast %2 : vector<1x96xf32> to vector<32x96xf32>
    %32 = arith.addf %30, %31 : vector<32x96xf32>
    %33 = arith.subf %32, %25 : vector<32x96xf32>
    %cst_18 = arith.constant 5.000000e-01 : f32
    %34 = vector.broadcast %cst_18 : f32 to vector<32x96xf32>
    %35 = arith.mulf %33, %34 : vector<32x96xf32>
    %36 = arith.addf %25, %35 : vector<32x96xf32>
    %cst_19 = arith.constant 1.000000e+00 : f32
    %37 = vector.broadcast %cst_19 : f32 to vector<32x96xf32>
    %38 = arith.cmpf oge, %36, %37 : vector<32x96xf32>
    %39 = arith.extui %38 : vector<32x96xi1> to vector<32x96xi32>
    %40 = arith.sitofp %39 : vector<32x96xi32> to vector<32x96xf32>
    %41 = arith.truncf %40 : vector<32x96xf32> to vector<32x96xbf16>
    %c1_20 = arith.constant 1 : index
    %c0_21 = arith.constant 0 : index
    %c0_22 = arith.constant 0 : index
    %42 = vector.load %arg5[%c1_20, %c0_21, %c0_22] : memref<4x32x96xbf16, #tpu.memory_space<vmem>>, vector<1x32x96xbf16>
    %43 = vector.shape_cast %42 : vector<1x32x96xbf16> to vector<32x96xbf16>
    %44 = vector.shape_cast %41 : vector<32x96xbf16> to vector<1x32x96xbf16>
    tpu.vector_store %arg5[%c1_20, %c0_21, %c0_22], %44 {strides = array<i32>} : memref<4x32x96xbf16, #tpu.memory_space<vmem>>, vector<1x32x96xbf16>,
    %cst_23 = arith.constant 1.000000e+00 : f32
    %45 = vector.broadcast %cst_23 : f32 to vector<32x96xf32>
    %46 = arith.subf %45, %40 : vector<32x96xf32>
    %47 = arith.mulf %36, %46 : vector<32x96xf32>
    %c2 = arith.constant 2 : index
    %c0_24 = arith.constant 0 : index
    %c0_25 = arith.constant 0 : index
    %48 = vector.load %arg1[%c2, %c0_24, %c0_25] : memref<4x32x32xf32, #tpu.memory_space<vmem>>, vector<1x32x32xf32>
    %49 = vector.shape_cast %48 : vector<1x32x32xf32> to vector<32x32xf32>
    %cst_26 = arith.constant dense<0.000000e+00> : vector<32x96xf32>
    %50 = tpu.matmul %49, %0, %cst_26 {dimension_numbers = #tpu.dot_dimension_numbers<[1], [0], [0], [1], [0, 0, 1, 1], [], []>} : vector<32x32xf32>, vector<32x96xf32>, vector<32x96xf32> -> vector<32x96xf32>
    %51 = vector.broadcast %1 : vector<1x96xf32> to vector<32x96xf32>
    %52 = arith.mulf %50, %51 : vector<32x96xf32>
    %53 = vector.broadcast %2 : vector<1x96xf32> to vector<32x96xf32>
    %54 = arith.addf %52, %53 : vector<32x96xf32>
    %55 = arith.subf %54, %47 : vector<32x96xf32>
    %cst_27 = arith.constant 5.000000e-01 : f32
    %56 = vector.broadcast %cst_27 : f32 to vector<32x96xf32>
    %57 = arith.mulf %55, %56 : vector<32x96xf32>
    %58 = arith.addf %47, %57 : vector<32x96xf32>
    %cst_28 = arith.constant 1.000000e+00 : f32
    %59 = vector.broadcast %cst_28 : f32 to vector<32x96xf32>
    %60 = arith.cmpf oge, %58, %59 : vector<32x96xf32>
    %61 = arith.extui %60 : vector<32x96xi1> to vector<32x96xi32>
    %62 = arith.sitofp %61 : vector<32x96xi32> to vector<32x96xf32>
    %63 = arith.truncf %62 : vector<32x96xf32> to vector<32x96xbf16>
    %c2_29 = arith.constant 2 : index
    %c0_30 = arith.constant 0 : index
    %c0_31 = arith.constant 0 : index
    %64 = vector.load %arg5[%c2_29, %c0_30, %c0_31] : memref<4x32x96xbf16, #tpu.memory_space<vmem>>, vector<1x32x96xbf16>
    %65 = vector.shape_cast %64 : vector<1x32x96xbf16> to vector<32x96xbf16>
    %66 = vector.shape_cast %63 : vector<32x96xbf16> to vector<1x32x96xbf16>
    tpu.vector_store %arg5[%c2_29, %c0_30, %c0_31], %66 {strides = array<i32>} : memref<4x32x96xbf16, #tpu.memory_space<vmem>>, vector<1x32x96xbf16>,
    %cst_32 = arith.constant 1.000000e+00 : f32
    %67 = vector.broadcast %cst_32 : f32 to vector<32x96xf32>
    %68 = arith.subf %67, %62 : vector<32x96xf32>
    %69 = arith.mulf %58, %68 : vector<32x96xf32>
    %c3 = arith.constant 3 : index
    %c0_33 = arith.constant 0 : index
    %c0_34 = arith.constant 0 : index
    %70 = vector.load %arg1[%c3, %c0_33, %c0_34] : memref<4x32x32xf32, #tpu.memory_space<vmem>>, vector<1x32x32xf32>
    %71 = vector.shape_cast %70 : vector<1x32x32xf32> to vector<32x32xf32>
    %cst_35 = arith.constant dense<0.000000e+00> : vector<32x96xf32>
    %72 = tpu.matmul %71, %0, %cst_35 {dimension_numbers = #tpu.dot_dimension_numbers<[1], [0], [0], [1], [0, 0, 1, 1], [], []>} : vector<32x32xf32>, vector<32x96xf32>, vector<32x96xf32> -> vector<32x96xf32>
    %73 = vector.broadcast %1 : vector<1x96xf32> to vector<32x96xf32>
    %74 = arith.mulf %72, %73 : vector<32x96xf32>
    %75 = vector.broadcast %2 : vector<1x96xf32> to vector<32x96xf32>
    %76 = arith.addf %74, %75 : vector<32x96xf32>
    %77 = arith.subf %76, %69 : vector<32x96xf32>
    %cst_36 = arith.constant 5.000000e-01 : f32
    %78 = vector.broadcast %cst_36 : f32 to vector<32x96xf32>
    %79 = arith.mulf %77, %78 : vector<32x96xf32>
    %80 = arith.addf %69, %79 : vector<32x96xf32>
    %cst_37 = arith.constant 1.000000e+00 : f32
    %81 = vector.broadcast %cst_37 : f32 to vector<32x96xf32>
    %82 = arith.cmpf oge, %80, %81 : vector<32x96xf32>
    %83 = arith.extui %82 : vector<32x96xi1> to vector<32x96xi32>
    %84 = arith.sitofp %83 : vector<32x96xi32> to vector<32x96xf32>
    %85 = arith.truncf %84 : vector<32x96xf32> to vector<32x96xbf16>
    %c3_38 = arith.constant 3 : index
    %c0_39 = arith.constant 0 : index
    %c0_40 = arith.constant 0 : index
    %86 = vector.load %arg5[%c3_38, %c0_39, %c0_40] : memref<4x32x96xbf16, #tpu.memory_space<vmem>>, vector<1x32x96xbf16>
    %87 = vector.shape_cast %86 : vector<1x32x96xbf16> to vector<32x96xbf16>
    %88 = vector.shape_cast %85 : vector<32x96xbf16> to vector<1x32x96xbf16>
    tpu.vector_store %arg5[%c3_38, %c0_39, %c0_40], %88 {strides = array<i32>} : memref<4x32x96xbf16, #tpu.memory_space<vmem>>, vector<1x32x96xbf16>,
    return
  }
  func.func @transform_0(%arg0: i32) -> (i32, i32, i32) {
    %c0_i32 = arith.constant 0 : i32
    %c0_i32_0 = arith.constant 0 : i32
    %c0_i32_1 = arith.constant 0 : i32
    return %c0_i32, %arg0, %c0_i32_0 : i32, i32, i32
  }
  func.func @transform_1(%arg0: i32) -> (i32, i32) {
    %c0_i32 = arith.constant 0 : i32
    %c0_i32_0 = arith.constant 0 : i32
    %c0_i32_1 = arith.constant 0 : i32
    return %c0_i32, %c0_i32_0 : i32, i32
  }
  func.func @transform_2(%arg0: i32) -> (i32, i32) {
    %c0_i32 = arith.constant 0 : i32
    %c0_i32_0 = arith.constant 0 : i32
    %c0_i32_1 = arith.constant 0 : i32
    return %c0_i32, %c0_i32_0 : i32, i32
  }
  func.func @transform_3(%arg0: i32) -> (i32, i32) {
    %c0_i32 = arith.constant 0 : i32
    %c0_i32_0 = arith.constant 0 : i32
    %c0_i32_1 = arith.constant 0 : i32
    return %c0_i32, %c0_i32_0 : i32, i32
  }
  func.func @transform_4(%arg0: i32) -> (i32, i32, i32) {
    %c0_i32 = arith.constant 0 : i32
    %c0_i32_0 = arith.constant 0 : i32
    %c0_i32_1 = arith.constant 0 : i32
    return %c0_i32, %arg0, %c0_i32_0 : i32, i32, i32
  }
}

module attributes {stable_mosaic.version = 11 : i64} {
  func.func @_attn_lif_kernel(%arg0: i32, %arg1: memref<4x8x16x4xbf16, #tpu.memory_space<vmem>>, %arg2: memref<4x8x16x4xbf16, #tpu.memory_space<vmem>>, %arg3: memref<4x8x16x4xbf16, #tpu.memory_space<vmem>>, %arg4: memref<4x8x16x16xf32, #tpu.memory_space<vmem>>, %arg5: memref<4x8x16x4xf32, #tpu.memory_space<vmem>>) attributes {dimension_semantics = [#tpu.dimension_semantics<parallel>], iteration_bounds = array<i64: 2>, scalar_prefetch = 0 : i64, scratch_operands = 0 : i64, tpu.core_type = #tpu.core_type<tc>, window_params = [{transform_indices = @transform_0, window_bounds = array<i64: 4, 8, 16, 4>}, {transform_indices = @transform_1, window_bounds = array<i64: 4, 8, 16, 4>}, {transform_indices = @transform_2, window_bounds = array<i64: 4, 8, 16, 4>}, {transform_indices = @transform_3, window_bounds = array<i64: 4, 8, 16, 16>}, {transform_indices = @transform_4, window_bounds = array<i64: 4, 8, 16, 4>}]} {
    %cst = arith.constant 0.000000e+00 : f32
    %0 = vector.broadcast %cst : f32 to vector<8x16x4xf32>
    %c0 = arith.constant 0 : index
    %c0_0 = arith.constant 0 : index
    %c0_1 = arith.constant 0 : index
    %c0_2 = arith.constant 0 : index
    %1 = vector.load %arg1[%c0, %c0_0, %c0_1, %c0_2] : memref<4x8x16x4xbf16, #tpu.memory_space<vmem>>, vector<1x8x16x4xbf16>
    %2 = vector.shape_cast %1 : vector<1x8x16x4xbf16> to vector<8x16x4xbf16>
    %c0_3 = arith.constant 0 : index
    %c0_4 = arith.constant 0 : index
    %c0_5 = arith.constant 0 : index
    %c0_6 = arith.constant 0 : index
    %3 = vector.load %arg2[%c0_3, %c0_4, %c0_5, %c0_6] : memref<4x8x16x4xbf16, #tpu.memory_space<vmem>>, vector<1x8x16x4xbf16>
    %4 = vector.shape_cast %3 : vector<1x8x16x4xbf16> to vector<8x16x4xbf16>
    %c0_7 = arith.constant 0 : index
    %c0_8 = arith.constant 0 : index
    %c0_9 = arith.constant 0 : index
    %c0_10 = arith.constant 0 : index
    %5 = vector.load %arg3[%c0_7, %c0_8, %c0_9, %c0_10] : memref<4x8x16x4xbf16, #tpu.memory_space<vmem>>, vector<1x8x16x4xbf16>
    %6 = vector.shape_cast %5 : vector<1x8x16x4xbf16> to vector<8x16x4xbf16>
    %7 = arith.extf %6 : vector<8x16x4xbf16> to vector<8x16x4xf32>
    "tpu.trace_start"() <{level = 10 : i32, message = "gnd,gmd->gnm"}> : () -> ()
    %cst_11 = arith.constant dense<0.000000e+00> : vector<8x16x16xf32>
    %8 = tpu.matmul %2, %4, %cst_11 {dimension_numbers = #tpu.dot_dimension_numbers<[2], [2], [1], [1], [0, 0, 0, 1, 1, 1], [0], [0]>} : vector<8x16x4xbf16>, vector<8x16x4xbf16>, vector<8x16x16xf32> -> vector<8x16x16xf32>
    "tpu.trace_stop"() : () -> ()
    %cst_12 = arith.constant 1.250000e-01 : f32
    %9 = vector.broadcast %cst_12 : f32 to vector<8x16x16xf32>
    %10 = arith.mulf %8, %9 : vector<8x16x16xf32>
    "tpu.trace_start"() <{level = 10 : i32, message = "gnm,gmd->gnd"}> : () -> ()
    %cst_13 = arith.constant dense<0.000000e+00> : vector<8x16x4xf32>
    %11 = tpu.matmul %10, %7, %cst_13 {dimension_numbers = #tpu.dot_dimension_numbers<[2], [1], [1], [2], [0, 0, 0, 1, 1, 2], [0], [0]>} : vector<8x16x16xf32>, vector<8x16x4xf32>, vector<8x16x4xf32> -> vector<8x16x4xf32>
    "tpu.trace_stop"() : () -> ()
    %c0_14 = arith.constant 0 : index
    %c0_15 = arith.constant 0 : index
    %c0_16 = arith.constant 0 : index
    %c0_17 = arith.constant 0 : index
    %12 = vector.load %arg4[%c0_14, %c0_15, %c0_16, %c0_17] : memref<4x8x16x16xf32, #tpu.memory_space<vmem>>, vector<1x8x16x16xf32>
    %13 = vector.shape_cast %12 : vector<1x8x16x16xf32> to vector<8x16x16xf32>
    %14 = vector.shape_cast %10 : vector<8x16x16xf32> to vector<1x8x16x16xf32>
    tpu.vector_store %arg4[%c0_14, %c0_15, %c0_16, %c0_17], %14 {strides = array<i32>} : memref<4x8x16x16xf32, #tpu.memory_space<vmem>>, vector<1x8x16x16xf32>,
    %15 = arith.subf %11, %0 : vector<8x16x4xf32>
    %cst_18 = arith.constant 5.000000e-01 : f32
    %16 = vector.broadcast %cst_18 : f32 to vector<8x16x4xf32>
    %17 = arith.mulf %15, %16 : vector<8x16x4xf32>
    %18 = arith.addf %0, %17 : vector<8x16x4xf32>
    %cst_19 = arith.constant 5.000000e-01 : f32
    %19 = vector.broadcast %cst_19 : f32 to vector<8x16x4xf32>
    %20 = arith.cmpf oge, %18, %19 : vector<8x16x4xf32>
    %21 = arith.extui %20 : vector<8x16x4xi1> to vector<8x16x4xi32>
    %22 = arith.sitofp %21 : vector<8x16x4xi32> to vector<8x16x4xf32>
    %c0_20 = arith.constant 0 : index
    %c0_21 = arith.constant 0 : index
    %c0_22 = arith.constant 0 : index
    %c0_23 = arith.constant 0 : index
    %23 = vector.load %arg5[%c0_20, %c0_21, %c0_22, %c0_23] : memref<4x8x16x4xf32, #tpu.memory_space<vmem>>, vector<1x8x16x4xf32>
    %24 = vector.shape_cast %23 : vector<1x8x16x4xf32> to vector<8x16x4xf32>
    %25 = vector.shape_cast %22 : vector<8x16x4xf32> to vector<1x8x16x4xf32>
    tpu.vector_store %arg5[%c0_20, %c0_21, %c0_22, %c0_23], %25 {strides = array<i32>} : memref<4x8x16x4xf32, #tpu.memory_space<vmem>>, vector<1x8x16x4xf32>,
    %cst_24 = arith.constant 1.000000e+00 : f32
    %26 = vector.broadcast %cst_24 : f32 to vector<8x16x4xf32>
    %27 = arith.subf %26, %22 : vector<8x16x4xf32>
    %28 = arith.mulf %18, %27 : vector<8x16x4xf32>
    %c1 = arith.constant 1 : index
    %c0_25 = arith.constant 0 : index
    %c0_26 = arith.constant 0 : index
    %c0_27 = arith.constant 0 : index
    %29 = vector.load %arg1[%c1, %c0_25, %c0_26, %c0_27] : memref<4x8x16x4xbf16, #tpu.memory_space<vmem>>, vector<1x8x16x4xbf16>
    %30 = vector.shape_cast %29 : vector<1x8x16x4xbf16> to vector<8x16x4xbf16>
    %c1_28 = arith.constant 1 : index
    %c0_29 = arith.constant 0 : index
    %c0_30 = arith.constant 0 : index
    %c0_31 = arith.constant 0 : index
    %31 = vector.load %arg2[%c1_28, %c0_29, %c0_30, %c0_31] : memref<4x8x16x4xbf16, #tpu.memory_space<vmem>>, vector<1x8x16x4xbf16>
    %32 = vector.shape_cast %31 : vector<1x8x16x4xbf16> to vector<8x16x4xbf16>
    %c1_32 = arith.constant 1 : index
    %c0_33 = arith.constant 0 : index
    %c0_34 = arith.constant 0 : index
    %c0_35 = arith.constant 0 : index
    %33 = vector.load %arg3[%c1_32, %c0_33, %c0_34, %c0_35] : memref<4x8x16x4xbf16, #tpu.memory_space<vmem>>, vector<1x8x16x4xbf16>
    %34 = vector.shape_cast %33 : vector<1x8x16x4xbf16> to vector<8x16x4xbf16>
    %35 = arith.extf %34 : vector<8x16x4xbf16> to vector<8x16x4xf32>
    "tpu.trace_start"() <{level = 10 : i32, message = "gnd,gmd->gnm"}> : () -> ()
    %cst_36 = arith.constant dense<0.000000e+00> : vector<8x16x16xf32>
    %36 = tpu.matmul %30, %32, %cst_36 {dimension_numbers = #tpu.dot_dimension_numbers<[2], [2], [1], [1], [0, 0, 0, 1, 1, 1], [0], [0]>} : vector<8x16x4xbf16>, vector<8x16x4xbf16>, vector<8x16x16xf32> -> vector<8x16x16xf32>
    "tpu.trace_stop"() : () -> ()
    %cst_37 = arith.constant 1.250000e-01 : f32
    %37 = vector.broadcast %cst_37 : f32 to vector<8x16x16xf32>
    %38 = arith.mulf %36, %37 : vector<8x16x16xf32>
    "tpu.trace_start"() <{level = 10 : i32, message = "gnm,gmd->gnd"}> : () -> ()
    %cst_38 = arith.constant dense<0.000000e+00> : vector<8x16x4xf32>
    %39 = tpu.matmul %38, %35, %cst_38 {dimension_numbers = #tpu.dot_dimension_numbers<[2], [1], [1], [2], [0, 0, 0, 1, 1, 2], [0], [0]>} : vector<8x16x16xf32>, vector<8x16x4xf32>, vector<8x16x4xf32> -> vector<8x16x4xf32>
    "tpu.trace_stop"() : () -> ()
    %c1_39 = arith.constant 1 : index
    %c0_40 = arith.constant 0 : index
    %c0_41 = arith.constant 0 : index
    %c0_42 = arith.constant 0 : index
    %40 = vector.load %arg4[%c1_39, %c0_40, %c0_41, %c0_42] : memref<4x8x16x16xf32, #tpu.memory_space<vmem>>, vector<1x8x16x16xf32>
    %41 = vector.shape_cast %40 : vector<1x8x16x16xf32> to vector<8x16x16xf32>
    %42 = vector.shape_cast %38 : vector<8x16x16xf32> to vector<1x8x16x16xf32>
    tpu.vector_store %arg4[%c1_39, %c0_40, %c0_41, %c0_42], %42 {strides = array<i32>} : memref<4x8x16x16xf32, #tpu.memory_space<vmem>>, vector<1x8x16x16xf32>,
    %43 = arith.subf %39, %28 : vector<8x16x4xf32>
    %cst_43 = arith.constant 5.000000e-01 : f32
    %44 = vector.broadcast %cst_43 : f32 to vector<8x16x4xf32>
    %45 = arith.mulf %43, %44 : vector<8x16x4xf32>
    %46 = arith.addf %28, %45 : vector<8x16x4xf32>
    %cst_44 = arith.constant 5.000000e-01 : f32
    %47 = vector.broadcast %cst_44 : f32 to vector<8x16x4xf32>
    %48 = arith.cmpf oge, %46, %47 : vector<8x16x4xf32>
    %49 = arith.extui %48 : vector<8x16x4xi1> to vector<8x16x4xi32>
    %50 = arith.sitofp %49 : vector<8x16x4xi32> to vector<8x16x4xf32>
    %c1_45 = arith.constant 1 : index
    %c0_46 = arith.constant 0 : index
    %c0_47 = arith.constant 0 : index
    %c0_48 = arith.constant 0 : index
    %51 = vector.load %arg5[%c1_45, %c0_46, %c0_47, %c0_48] : memref<4x8x16x4xf32, #tpu.memory_space<vmem>>, vector<1x8x16x4xf32>
    %52 = vector.shape_cast %51 : vector<1x8x16x4xf32> to vector<8x16x4xf32>
    %53 = vector.shape_cast %50 : vector<8x16x4xf32> to vector<1x8x16x4xf32>
    tpu.vector_store %arg5[%c1_45, %c0_46, %c0_47, %c0_48], %53 {strides = array<i32>} : memref<4x8x16x4xf32, #tpu.memory_space<vmem>>, vector<1x8x16x4xf32>,
    %cst_49 = arith.constant 1.000000e+00 : f32
    %54 = vector.broadcast %cst_49 : f32 to vector<8x16x4xf32>
    %55 = arith.subf %54, %50 : vector<8x16x4xf32>
    %56 = arith.mulf %46, %55 : vector<8x16x4xf32>
    %c2 = arith.constant 2 : index
    %c0_50 = arith.constant 0 : index
    %c0_51 = arith.constant 0 : index
    %c0_52 = arith.constant 0 : index
    %57 = vector.load %arg1[%c2, %c0_50, %c0_51, %c0_52] : memref<4x8x16x4xbf16, #tpu.memory_space<vmem>>, vector<1x8x16x4xbf16>
    %58 = vector.shape_cast %57 : vector<1x8x16x4xbf16> to vector<8x16x4xbf16>
    %c2_53 = arith.constant 2 : index
    %c0_54 = arith.constant 0 : index
    %c0_55 = arith.constant 0 : index
    %c0_56 = arith.constant 0 : index
    %59 = vector.load %arg2[%c2_53, %c0_54, %c0_55, %c0_56] : memref<4x8x16x4xbf16, #tpu.memory_space<vmem>>, vector<1x8x16x4xbf16>
    %60 = vector.shape_cast %59 : vector<1x8x16x4xbf16> to vector<8x16x4xbf16>
    %c2_57 = arith.constant 2 : index
    %c0_58 = arith.constant 0 : index
    %c0_59 = arith.constant 0 : index
    %c0_60 = arith.constant 0 : index
    %61 = vector.load %arg3[%c2_57, %c0_58, %c0_59, %c0_60] : memref<4x8x16x4xbf16, #tpu.memory_space<vmem>>, vector<1x8x16x4xbf16>
    %62 = vector.shape_cast %61 : vector<1x8x16x4xbf16> to vector<8x16x4xbf16>
    %63 = arith.extf %62 : vector<8x16x4xbf16> to vector<8x16x4xf32>
    "tpu.trace_start"() <{level = 10 : i32, message = "gnd,gmd->gnm"}> : () -> ()
    %cst_61 = arith.constant dense<0.000000e+00> : vector<8x16x16xf32>
    %64 = tpu.matmul %58, %60, %cst_61 {dimension_numbers = #tpu.dot_dimension_numbers<[2], [2], [1], [1], [0, 0, 0, 1, 1, 1], [0], [0]>} : vector<8x16x4xbf16>, vector<8x16x4xbf16>, vector<8x16x16xf32> -> vector<8x16x16xf32>
    "tpu.trace_stop"() : () -> ()
    %cst_62 = arith.constant 1.250000e-01 : f32
    %65 = vector.broadcast %cst_62 : f32 to vector<8x16x16xf32>
    %66 = arith.mulf %64, %65 : vector<8x16x16xf32>
    "tpu.trace_start"() <{level = 10 : i32, message = "gnm,gmd->gnd"}> : () -> ()
    %cst_63 = arith.constant dense<0.000000e+00> : vector<8x16x4xf32>
    %67 = tpu.matmul %66, %63, %cst_63 {dimension_numbers = #tpu.dot_dimension_numbers<[2], [1], [1], [2], [0, 0, 0, 1, 1, 2], [0], [0]>} : vector<8x16x16xf32>, vector<8x16x4xf32>, vector<8x16x4xf32> -> vector<8x16x4xf32>
    "tpu.trace_stop"() : () -> ()
    %c2_64 = arith.constant 2 : index
    %c0_65 = arith.constant 0 : index
    %c0_66 = arith.constant 0 : index
    %c0_67 = arith.constant 0 : index
    %68 = vector.load %arg4[%c2_64, %c0_65, %c0_66, %c0_67] : memref<4x8x16x16xf32, #tpu.memory_space<vmem>>, vector<1x8x16x16xf32>
    %69 = vector.shape_cast %68 : vector<1x8x16x16xf32> to vector<8x16x16xf32>
    %70 = vector.shape_cast %66 : vector<8x16x16xf32> to vector<1x8x16x16xf32>
    tpu.vector_store %arg4[%c2_64, %c0_65, %c0_66, %c0_67], %70 {strides = array<i32>} : memref<4x8x16x16xf32, #tpu.memory_space<vmem>>, vector<1x8x16x16xf32>,
    %71 = arith.subf %67, %56 : vector<8x16x4xf32>
    %cst_68 = arith.constant 5.000000e-01 : f32
    %72 = vector.broadcast %cst_68 : f32 to vector<8x16x4xf32>
    %73 = arith.mulf %71, %72 : vector<8x16x4xf32>
    %74 = arith.addf %56, %73 : vector<8x16x4xf32>
    %cst_69 = arith.constant 5.000000e-01 : f32
    %75 = vector.broadcast %cst_69 : f32 to vector<8x16x4xf32>
    %76 = arith.cmpf oge, %74, %75 : vector<8x16x4xf32>
    %77 = arith.extui %76 : vector<8x16x4xi1> to vector<8x16x4xi32>
    %78 = arith.sitofp %77 : vector<8x16x4xi32> to vector<8x16x4xf32>
    %c2_70 = arith.constant 2 : index
    %c0_71 = arith.constant 0 : index
    %c0_72 = arith.constant 0 : index
    %c0_73 = arith.constant 0 : index
    %79 = vector.load %arg5[%c2_70, %c0_71, %c0_72, %c0_73] : memref<4x8x16x4xf32, #tpu.memory_space<vmem>>, vector<1x8x16x4xf32>
    %80 = vector.shape_cast %79 : vector<1x8x16x4xf32> to vector<8x16x4xf32>
    %81 = vector.shape_cast %78 : vector<8x16x4xf32> to vector<1x8x16x4xf32>
    tpu.vector_store %arg5[%c2_70, %c0_71, %c0_72, %c0_73], %81 {strides = array<i32>} : memref<4x8x16x4xf32, #tpu.memory_space<vmem>>, vector<1x8x16x4xf32>,
    %cst_74 = arith.constant 1.000000e+00 : f32
    %82 = vector.broadcast %cst_74 : f32 to vector<8x16x4xf32>
    %83 = arith.subf %82, %78 : vector<8x16x4xf32>
    %84 = arith.mulf %74, %83 : vector<8x16x4xf32>
    %c3 = arith.constant 3 : index
    %c0_75 = arith.constant 0 : index
    %c0_76 = arith.constant 0 : index
    %c0_77 = arith.constant 0 : index
    %85 = vector.load %arg1[%c3, %c0_75, %c0_76, %c0_77] : memref<4x8x16x4xbf16, #tpu.memory_space<vmem>>, vector<1x8x16x4xbf16>
    %86 = vector.shape_cast %85 : vector<1x8x16x4xbf16> to vector<8x16x4xbf16>
    %c3_78 = arith.constant 3 : index
    %c0_79 = arith.constant 0 : index
    %c0_80 = arith.constant 0 : index
    %c0_81 = arith.constant 0 : index
    %87 = vector.load %arg2[%c3_78, %c0_79, %c0_80, %c0_81] : memref<4x8x16x4xbf16, #tpu.memory_space<vmem>>, vector<1x8x16x4xbf16>
    %88 = vector.shape_cast %87 : vector<1x8x16x4xbf16> to vector<8x16x4xbf16>
    %c3_82 = arith.constant 3 : index
    %c0_83 = arith.constant 0 : index
    %c0_84 = arith.constant 0 : index
    %c0_85 = arith.constant 0 : index
    %89 = vector.load %arg3[%c3_82, %c0_83, %c0_84, %c0_85] : memref<4x8x16x4xbf16, #tpu.memory_space<vmem>>, vector<1x8x16x4xbf16>
    %90 = vector.shape_cast %89 : vector<1x8x16x4xbf16> to vector<8x16x4xbf16>
    %91 = arith.extf %90 : vector<8x16x4xbf16> to vector<8x16x4xf32>
    "tpu.trace_start"() <{level = 10 : i32, message = "gnd,gmd->gnm"}> : () -> ()
    %cst_86 = arith.constant dense<0.000000e+00> : vector<8x16x16xf32>
    %92 = tpu.matmul %86, %88, %cst_86 {dimension_numbers = #tpu.dot_dimension_numbers<[2], [2], [1], [1], [0, 0, 0, 1, 1, 1], [0], [0]>} : vector<8x16x4xbf16>, vector<8x16x4xbf16>, vector<8x16x16xf32> -> vector<8x16x16xf32>
    "tpu.trace_stop"() : () -> ()
    %cst_87 = arith.constant 1.250000e-01 : f32
    %93 = vector.broadcast %cst_87 : f32 to vector<8x16x16xf32>
    %94 = arith.mulf %92, %93 : vector<8x16x16xf32>
    "tpu.trace_start"() <{level = 10 : i32, message = "gnm,gmd->gnd"}> : () -> ()
    %cst_88 = arith.constant dense<0.000000e+00> : vector<8x16x4xf32>
    %95 = tpu.matmul %94, %91, %cst_88 {dimension_numbers = #tpu.dot_dimension_numbers<[2], [1], [1], [2], [0, 0, 0, 1, 1, 2], [0], [0]>} : vector<8x16x16xf32>, vector<8x16x4xf32>, vector<8x16x4xf32> -> vector<8x16x4xf32>
    "tpu.trace_stop"() : () -> ()
    %c3_89 = arith.constant 3 : index
    %c0_90 = arith.constant 0 : index
    %c0_91 = arith.constant 0 : index
    %c0_92 = arith.constant 0 : index
    %96 = vector.load %arg4[%c3_89, %c0_90, %c0_91, %c0_92] : memref<4x8x16x16xf32, #tpu.memory_space<vmem>>, vector<1x8x16x16xf32>
    %97 = vector.shape_cast %96 : vector<1x8x16x16xf32> to vector<8x16x16xf32>
    %98 = vector.shape_cast %94 : vector<8x16x16xf32> to vector<1x8x16x16xf32>
    tpu.vector_store %arg4[%c3_89, %c0_90, %c0_91, %c0_92], %98 {strides = array<i32>} : memref<4x8x16x16xf32, #tpu.memory_space<vmem>>, vector<1x8x16x16xf32>,
    %99 = arith.subf %95, %84 : vector<8x16x4xf32>
    %cst_93 = arith.constant 5.000000e-01 : f32
    %100 = vector.broadcast %cst_93 : f32 to vector<8x16x4xf32>
    %101 = arith.mulf %99, %100 : vector<8x16x4xf32>
    %102 = arith.addf %84, %101 : vector<8x16x4xf32>
    %cst_94 = arith.constant 5.000000e-01 : f32
    %103 = vector.broadcast %cst_94 : f32 to vector<8x16x4xf32>
    %104 = arith.cmpf oge, %102, %103 : vector<8x16x4xf32>
    %105 = arith.extui %104 : vector<8x16x4xi1> to vector<8x16x4xi32>
    %106 = arith.sitofp %105 : vector<8x16x4xi32> to vector<8x16x4xf32>
    %c3_95 = arith.constant 3 : index
    %c0_96 = arith.constant 0 : index
    %c0_97 = arith.constant 0 : index
    %c0_98 = arith.constant 0 : index
    %107 = vector.load %arg5[%c3_95, %c0_96, %c0_97, %c0_98] : memref<4x8x16x4xf32, #tpu.memory_space<vmem>>, vector<1x8x16x4xf32>
    %108 = vector.shape_cast %107 : vector<1x8x16x4xf32> to vector<8x16x4xf32>
    %109 = vector.shape_cast %106 : vector<8x16x4xf32> to vector<1x8x16x4xf32>
    tpu.vector_store %arg5[%c3_95, %c0_96, %c0_97, %c0_98], %109 {strides = array<i32>} : memref<4x8x16x4xf32, #tpu.memory_space<vmem>>, vector<1x8x16x4xf32>,
    return
  }
  func.func @transform_0(%arg0: i32) -> (i32, i32, i32, i32) {
    %c0_i32 = arith.constant 0 : i32
    %c0_i32_0 = arith.constant 0 : i32
    %c0_i32_1 = arith.constant 0 : i32
    %c0_i32_2 = arith.constant 0 : i32
    return %c0_i32, %arg0, %c0_i32_0, %c0_i32_1 : i32, i32, i32, i32
  }
  func.func @transform_1(%arg0: i32) -> (i32, i32, i32, i32) {
    %c0_i32 = arith.constant 0 : i32
    %c0_i32_0 = arith.constant 0 : i32
    %c0_i32_1 = arith.constant 0 : i32
    %c0_i32_2 = arith.constant 0 : i32
    return %c0_i32, %arg0, %c0_i32_0, %c0_i32_1 : i32, i32, i32, i32
  }
  func.func @transform_2(%arg0: i32) -> (i32, i32, i32, i32) {
    %c0_i32 = arith.constant 0 : i32
    %c0_i32_0 = arith.constant 0 : i32
    %c0_i32_1 = arith.constant 0 : i32
    %c0_i32_2 = arith.constant 0 : i32
    return %c0_i32, %arg0, %c0_i32_0, %c0_i32_1 : i32, i32, i32, i32
  }
  func.func @transform_3(%arg0: i32) -> (i32, i32, i32, i32) {
    %c0_i32 = arith.constant 0 : i32
    %c0_i32_0 = arith.constant 0 : i32
    %c0_i32_1 = arith.constant 0 : i32
    %c0_i32_2 = arith.constant 0 : i32
    return %c0_i32, %arg0, %c0_i32_0, %c0_i32_1 : i32, i32, i32, i32
  }
  func.func @transform_4(%arg0: i32) -> (i32, i32, i32, i32) {
    %c0_i32 = arith.constant 0 : i32
    %c0_i32_0 = arith.constant 0 : i32
    %c0_i32_1 = arith.constant 0 : i32
    %c0_i32_2 = arith.constant 0 : i32
    return %c0_i32, %arg0, %c0_i32_0, %c0_i32_1 : i32, i32, i32, i32
  }
}

module attributes {stable_mosaic.version = 11 : i64} {
  func.func @_linear_bn_lif_kernel(%arg0: i32, %arg1: memref<4x32x32xf32, #tpu.memory_space<vmem>>, %arg2: memref<32x32xf32, #tpu.memory_space<vmem>>, %arg3: memref<1x32xf32, #tpu.memory_space<vmem>>, %arg4: memref<1x32xf32, #tpu.memory_space<vmem>>, %arg5: memref<4x32x32xf32, #tpu.memory_space<vmem>>) attributes {dimension_semantics = [#tpu.dimension_semantics<parallel>], iteration_bounds = array<i64: 1>, scalar_prefetch = 0 : i64, scratch_operands = 0 : i64, tpu.core_type = #tpu.core_type<tc>, window_params = [{transform_indices = @transform_0, window_bounds = array<i64: 4, 32, 32>}, {pipeline_mode = #tpu.pipeline_mode<synchronous>, transform_indices = @transform_1, window_bounds = array<i64: 32, 32>}, {pipeline_mode = #tpu.pipeline_mode<synchronous>, transform_indices = @transform_2, window_bounds = array<i64: 1, 32>}, {pipeline_mode = #tpu.pipeline_mode<synchronous>, transform_indices = @transform_3, window_bounds = array<i64: 1, 32>}, {transform_indices = @transform_4, window_bounds = array<i64: 4, 32, 32>}]} {
    %c0 = arith.constant 0 : index
    %c0_0 = arith.constant 0 : index
    %0 = vector.load %arg2[%c0, %c0_0] : memref<32x32xf32, #tpu.memory_space<vmem>>, vector<32x32xf32>
    %c0_1 = arith.constant 0 : index
    %c0_2 = arith.constant 0 : index
    %1 = vector.load %arg3[%c0_1, %c0_2] : memref<1x32xf32, #tpu.memory_space<vmem>>, vector<1x32xf32>
    %c0_3 = arith.constant 0 : index
    %c0_4 = arith.constant 0 : index
    %2 = vector.load %arg4[%c0_3, %c0_4] : memref<1x32xf32, #tpu.memory_space<vmem>>, vector<1x32xf32>
    %cst = arith.constant 0.000000e+00 : f32
    %3 = vector.broadcast %cst : f32 to vector<32x32xf32>
    %c0_5 = arith.constant 0 : index
    %c0_6 = arith.constant 0 : index
    %c0_7 = arith.constant 0 : index
    %4 = vector.load %arg1[%c0_5, %c0_6, %c0_7] : memref<4x32x32xf32, #tpu.memory_space<vmem>>, vector<1x32x32xf32>
    %5 = vector.shape_cast %4 : vector<1x32x32xf32> to vector<32x32xf32>
    %cst_8 = arith.constant dense<0.000000e+00> : vector<32x32xf32>
    %6 = tpu.matmul %5, %0, %cst_8 {dimension_numbers = #tpu.dot_dimension_numbers<[1], [0], [0], [1], [0, 0, 1, 1], [], []>} : vector<32x32xf32>, vector<32x32xf32>, vector<32x32xf32> -> vector<32x32xf32>
    %7 = vector.broadcast %1 : vector<1x32xf32> to vector<32x32xf32>
    %8 = arith.mulf %6, %7 : vector<32x32xf32>
    %9 = vector.broadcast %2 : vector<1x32xf32> to vector<32x32xf32>
    %10 = arith.addf %8, %9 : vector<32x32xf32>
    %11 = arith.subf %10, %3 : vector<32x32xf32>
    %cst_9 = arith.constant 5.000000e-01 : f32
    %12 = vector.broadcast %cst_9 : f32 to vector<32x32xf32>
    %13 = arith.mulf %11, %12 : vector<32x32xf32>
    %14 = arith.addf %3, %13 : vector<32x32xf32>
    %cst_10 = arith.constant 1.000000e+00 : f32
    %15 = vector.broadcast %cst_10 : f32 to vector<32x32xf32>
    %16 = arith.cmpf oge, %14, %15 : vector<32x32xf32>
    %17 = arith.extui %16 : vector<32x32xi1> to vector<32x32xi32>
    %18 = arith.sitofp %17 : vector<32x32xi32> to vector<32x32xf32>
    %c0_11 = arith.constant 0 : index
    %c0_12 = arith.constant 0 : index
    %c0_13 = arith.constant 0 : index
    %19 = vector.load %arg5[%c0_11, %c0_12, %c0_13] : memref<4x32x32xf32, #tpu.memory_space<vmem>>, vector<1x32x32xf32>
    %20 = vector.shape_cast %19 : vector<1x32x32xf32> to vector<32x32xf32>
    %21 = vector.shape_cast %18 : vector<32x32xf32> to vector<1x32x32xf32>
    tpu.vector_store %arg5[%c0_11, %c0_12, %c0_13], %21 {strides = array<i32>} : memref<4x32x32xf32, #tpu.memory_space<vmem>>, vector<1x32x32xf32>,
    %cst_14 = arith.constant 1.000000e+00 : f32
    %22 = vector.broadcast %cst_14 : f32 to vector<32x32xf32>
    %23 = arith.subf %22, %18 : vector<32x32xf32>
    %24 = arith.mulf %14, %23 : vector<32x32xf32>
    %c1 = arith.constant 1 : index
    %c0_15 = arith.constant 0 : index
    %c0_16 = arith.constant 0 : index
    %25 = vector.load %arg1[%c1, %c0_15, %c0_16] : memref<4x32x32xf32, #tpu.memory_space<vmem>>, vector<1x32x32xf32>
    %26 = vector.shape_cast %25 : vector<1x32x32xf32> to vector<32x32xf32>
    %cst_17 = arith.constant dense<0.000000e+00> : vector<32x32xf32>
    %27 = tpu.matmul %26, %0, %cst_17 {dimension_numbers = #tpu.dot_dimension_numbers<[1], [0], [0], [1], [0, 0, 1, 1], [], []>} : vector<32x32xf32>, vector<32x32xf32>, vector<32x32xf32> -> vector<32x32xf32>
    %28 = vector.broadcast %1 : vector<1x32xf32> to vector<32x32xf32>
    %29 = arith.mulf %27, %28 : vector<32x32xf32>
    %30 = vector.broadcast %2 : vector<1x32xf32> to vector<32x32xf32>
    %31 = arith.addf %29, %30 : vector<32x32xf32>
    %32 = arith.subf %31, %24 : vector<32x32xf32>
    %cst_18 = arith.constant 5.000000e-01 : f32
    %33 = vector.broadcast %cst_18 : f32 to vector<32x32xf32>
    %34 = arith.mulf %32, %33 : vector<32x32xf32>
    %35 = arith.addf %24, %34 : vector<32x32xf32>
    %cst_19 = arith.constant 1.000000e+00 : f32
    %36 = vector.broadcast %cst_19 : f32 to vector<32x32xf32>
    %37 = arith.cmpf oge, %35, %36 : vector<32x32xf32>
    %38 = arith.extui %37 : vector<32x32xi1> to vector<32x32xi32>
    %39 = arith.sitofp %38 : vector<32x32xi32> to vector<32x32xf32>
    %c1_20 = arith.constant 1 : index
    %c0_21 = arith.constant 0 : index
    %c0_22 = arith.constant 0 : index
    %40 = vector.load %arg5[%c1_20, %c0_21, %c0_22] : memref<4x32x32xf32, #tpu.memory_space<vmem>>, vector<1x32x32xf32>
    %41 = vector.shape_cast %40 : vector<1x32x32xf32> to vector<32x32xf32>
    %42 = vector.shape_cast %39 : vector<32x32xf32> to vector<1x32x32xf32>
    tpu.vector_store %arg5[%c1_20, %c0_21, %c0_22], %42 {strides = array<i32>} : memref<4x32x32xf32, #tpu.memory_space<vmem>>, vector<1x32x32xf32>,
    %cst_23 = arith.constant 1.000000e+00 : f32
    %43 = vector.broadcast %cst_23 : f32 to vector<32x32xf32>
    %44 = arith.subf %43, %39 : vector<32x32xf32>
    %45 = arith.mulf %35, %44 : vector<32x32xf32>
    %c2 = arith.constant 2 : index
    %c0_24 = arith.constant 0 : index
    %c0_25 = arith.constant 0 : index
    %46 = vector.load %arg1[%c2, %c0_24, %c0_25] : memref<4x32x32xf32, #tpu.memory_space<vmem>>, vector<1x32x32xf32>
    %47 = vector.shape_cast %46 : vector<1x32x32xf32> to vector<32x32xf32>
    %cst_26 = arith.constant dense<0.000000e+00> : vector<32x32xf32>
    %48 = tpu.matmul %47, %0, %cst_26 {dimension_numbers = #tpu.dot_dimension_numbers<[1], [0], [0], [1], [0, 0, 1, 1], [], []>} : vector<32x32xf32>, vector<32x32xf32>, vector<32x32xf32> -> vector<32x32xf32>
    %49 = vector.broadcast %1 : vector<1x32xf32> to vector<32x32xf32>
    %50 = arith.mulf %48, %49 : vector<32x32xf32>
    %51 = vector.broadcast %2 : vector<1x32xf32> to vector<32x32xf32>
    %52 = arith.addf %50, %51 : vector<32x32xf32>
    %53 = arith.subf %52, %45 : vector<32x32xf32>
    %cst_27 = arith.constant 5.000000e-01 : f32
    %54 = vector.broadcast %cst_27 : f32 to vector<32x32xf32>
    %55 = arith.mulf %53, %54 : vector<32x32xf32>
    %56 = arith.addf %45, %55 : vector<32x32xf32>
    %cst_28 = arith.constant 1.000000e+00 : f32
    %57 = vector.broadcast %cst_28 : f32 to vector<32x32xf32>
    %58 = arith.cmpf oge, %56, %57 : vector<32x32xf32>
    %59 = arith.extui %58 : vector<32x32xi1> to vector<32x32xi32>
    %60 = arith.sitofp %59 : vector<32x32xi32> to vector<32x32xf32>
    %c2_29 = arith.constant 2 : index
    %c0_30 = arith.constant 0 : index
    %c0_31 = arith.constant 0 : index
    %61 = vector.load %arg5[%c2_29, %c0_30, %c0_31] : memref<4x32x32xf32, #tpu.memory_space<vmem>>, vector<1x32x32xf32>
    %62 = vector.shape_cast %61 : vector<1x32x32xf32> to vector<32x32xf32>
    %63 = vector.shape_cast %60 : vector<32x32xf32> to vector<1x32x32xf32>
    tpu.vector_store %arg5[%c2_29, %c0_30, %c0_31], %63 {strides = array<i32>} : memref<4x32x32xf32, #tpu.memory_space<vmem>>, vector<1x32x32xf32>,
    %cst_32 = arith.constant 1.000000e+00 : f32
    %64 = vector.broadcast %cst_32 : f32 to vector<32x32xf32>
    %65 = arith.subf %64, %60 : vector<32x32xf32>
    %66 = arith.mulf %56, %65 : vector<32x32xf32>
    %c3 = arith.constant 3 : index
    %c0_33 = arith.constant 0 : index
    %c0_34 = arith.constant 0 : index
    %67 = vector.load %arg1[%c3, %c0_33, %c0_34] : memref<4x32x32xf32, #tpu.memory_space<vmem>>, vector<1x32x32xf32>
    %68 = vector.shape_cast %67 : vector<1x32x32xf32> to vector<32x32xf32>
    %cst_35 = arith.constant dense<0.000000e+00> : vector<32x32xf32>
    %69 = tpu.matmul %68, %0, %cst_35 {dimension_numbers = #tpu.dot_dimension_numbers<[1], [0], [0], [1], [0, 0, 1, 1], [], []>} : vector<32x32xf32>, vector<32x32xf32>, vector<32x32xf32> -> vector<32x32xf32>
    %70 = vector.broadcast %1 : vector<1x32xf32> to vector<32x32xf32>
    %71 = arith.mulf %69, %70 : vector<32x32xf32>
    %72 = vector.broadcast %2 : vector<1x32xf32> to vector<32x32xf32>
    %73 = arith.addf %71, %72 : vector<32x32xf32>
    %74 = arith.subf %73, %66 : vector<32x32xf32>
    %cst_36 = arith.constant 5.000000e-01 : f32
    %75 = vector.broadcast %cst_36 : f32 to vector<32x32xf32>
    %76 = arith.mulf %74, %75 : vector<32x32xf32>
    %77 = arith.addf %66, %76 : vector<32x32xf32>
    %cst_37 = arith.constant 1.000000e+00 : f32
    %78 = vector.broadcast %cst_37 : f32 to vector<32x32xf32>
    %79 = arith.cmpf oge, %77, %78 : vector<32x32xf32>
    %80 = arith.extui %79 : vector<32x32xi1> to vector<32x32xi32>
    %81 = arith.sitofp %80 : vector<32x32xi32> to vector<32x32xf32>
    %c3_38 = arith.constant 3 : index
    %c0_39 = arith.constant 0 : index
    %c0_40 = arith.constant 0 : index
    %82 = vector.load %arg5[%c3_38, %c0_39, %c0_40] : memref<4x32x32xf32, #tpu.memory_space<vmem>>, vector<1x32x32xf32>
    %83 = vector.shape_cast %82 : vector<1x32x32xf32> to vector<32x32xf32>
    %84 = vector.shape_cast %81 : vector<32x32xf32> to vector<1x32x32xf32>
    tpu.vector_store %arg5[%c3_38, %c0_39, %c0_40], %84 {strides = array<i32>} : memref<4x32x32xf32, #tpu.memory_space<vmem>>, vector<1x32x32xf32>,
    return
  }
  func.func @transform_0(%arg0: i32) -> (i32, i32, i32) {
    %c0_i32 = arith.constant 0 : i32
    %c0_i32_0 = arith.constant 0 : i32
    %c0_i32_1 = arith.constant 0 : i32
    return %c0_i32, %arg0, %c0_i32_0 : i32, i32, i32
  }
  func.func @transform_1(%arg0: i32) -> (i32, i32) {
    %c0_i32 = arith.constant 0 : i32
    %c0_i32_0 = arith.constant 0 : i32
    %c0_i32_1 = arith.constant 0 : i32
    return %c0_i32, %c0_i32_0 : i32, i32
  }
  func.func @transform_2(%arg0: i32) -> (i32, i32) {
    %c0_i32 = arith.constant 0 : i32
    %c0_i32_0 = arith.constant 0 : i32
    %c0_i32_1 = arith.constant 0 : i32
    return %c0_i32, %c0_i32_0 : i32, i32
  }
  func.func @transform_3(%arg0: i32) -> (i32, i32) {
    %c0_i32 = arith.constant 0 : i32
    %c0_i32_0 = arith.constant 0 : i32
    %c0_i32_1 = arith.constant 0 : i32
    return %c0_i32, %c0_i32_0 : i32, i32
  }
  func.func @transform_4(%arg0: i32) -> (i32, i32, i32) {
    %c0_i32 = arith.constant 0 : i32
    %c0_i32_0 = arith.constant 0 : i32
    %c0_i32_1 = arith.constant 0 : i32
    return %c0_i32, %arg0, %c0_i32_0 : i32, i32, i32
  }
}

</mosaic_0001>

<llo_original>
// kernel: ssa_forward.3
$region0: #{ssa_forward.3}
  #allocation0 [shape = 'u32[]', space=smem, size = 0x4, offset = 0x4, fixed_abs, tag = 'smem constant byte address 0x4 - core index']
  #allocation1 [shape = 'u32[144,128]{1,0:T(1,128)}', space=vmem, size = 0x12000, scoped, tag = 'internal scratch']
  %s0 = inlined_call_operand.vmem [shape: f32[4,32,32], index: 0, kind: input, shape index: {}]
  %s1 = inlined_call_operand.vmem [shape: f32[32,96], index: 1, kind: input, shape index: {}]
  %s2 = inlined_call_operand.vmem [shape: f32[1,96], index: 2, kind: input, shape index: {}]
  %s3 = inlined_call_operand.vmem [shape: f32[1,96], index: 3, kind: input, shape index: {}]
  %s4 = inlined_call_operand.vmem [shape: bf16[4,32,96], index: 4, kind: output, shape index: {}]
  %s5 = sld [smem:[#allocation0]]
  $region26: #{ssa_forward.3} parent=0
    _
  %s7 = ssub.s32 1, %s5
  %s8 = scalar_select 0, %s7, %s5
  // Predicated region
  $region2: #{ssa_forward.3} parent=0 // pred_check
    _
  $region3: #{ssa_forward.3} parent=0 // pred_check_branch
    %10 = sbr.rel (0) target = $region5
  $region4: #{ssa_forward.3} parent=0 // pred_region
    _
  $region5: #{ssa_forward.3} parent=0 // pred_fallthru
    _
  // Predicated region
  $region6: #{ssa_forward.3} parent=0 // pred_check
    _
  $region7: #{ssa_forward.3} parent=0 // pred_check_branch
    %12 = sbr.rel (0) target = $region9
  $region8: #{ssa_forward.3} parent=0 // pred_region
    _
  $region9: #{ssa_forward.3} parent=0 // pred_fallthru
    _
  // Predicated region
  $region10: #{ssa_forward.3} parent=0 // pred_check
    _
  $region11: #{ssa_forward.3} parent=0 // pred_check_branch
    %14 = sbr.rel (0) target = $region13
  $region12: #{ssa_forward.3} parent=0 // pred_region
    _
  $region13: #{ssa_forward.3} parent=0 // pred_fallthru
    _
  // Predicated region
  $region14: #{ssa_forward.3} parent=0 // pred_check
    _
  $region15: #{ssa_forward.3} parent=0 // pred_check_branch
    %16 = sbr.rel (0) target = $region17
  $region16: #{ssa_forward.3} parent=0 // pred_region
    _
  $region17: #{ssa_forward.3} parent=0 // pred_fallthru
    _
  %v17 = vld [vmem:[%s1] sm:$0xff]
  %v18 = vld [vmem:[%s1 + $0x8] sm:$0xff]
  %v19 = vld [vmem:[%s1 + $0x10] sm:$0xff]
  %v20 = vld [vmem:[%s1 + $0x18] sm:$0xff]
  %v21 = vld [vmem:[%s2] sm:$0x1]
  %v22 = vld [vmem:[%s3] sm:$0x1]
  %v23 = vld [vmem:[%s0] sm:$0xff]
  %v24 = vld [vmem:[%s0 + $0x8] sm:$0xff]
  %v25 = vld [vmem:[%s0 + $0x10] sm:$0xff]
  %v26 = vld [vmem:[%s0 + $0x18] sm:$0xff]
  %vm27 = vcmask 261120
  %v29 = vsel %vm27, %v23, 0
  %v32 = vsel %vm27, %v24, 0
  %v35 = vsel %vm27, %v25, 0
  %v38 = vsel %vm27, %v26, 0
  %40 = vmatprep.subr.mxu0 0.0
  %41 = vmatpush1.msra.mxu0 %v17
  %42 = vmatprep.subr.mxu0 0.0
  %43 = vmatpush1.msra.mxu0 %v18
  %44 = vmatprep.subr.mxu0 0.0
  %45 = vmatpush1.msra.mxu0 %v19
  %46 = vmatprep.subr.mxu0 0.0
  %47 = vmatpush1.msra.mxu0 %v20
  %48 = vmatprep.subr.mxu0 0.0
  %49 = vmatpush1.msra.mxu0 0.0
  %50 = vmatprep.subr.mxu0 0.0
  %51 = vmatpush1.msra.mxu0 0.0
  %52 = vmatprep.subr.mxu0 0.0
  %53 = vmatpush1.msra.mxu0 0.0
  %54 = vmatprep.subr.mxu0 0.0
  %55 = vmatpush1.msra.mxu0 0.0
  %56 = vmatprep.subr.mxu0 0.0
  %57 = vmatpush1.msra.mxu0 0.0
  %58 = vmatprep.subr.mxu0 0.0
  %59 = vmatpush1.msra.mxu0 0.0
  %60 = vmatprep.subr.mxu0 0.0
  %61 = vmatpush1.msra.mxu0 0.0
  %62 = vmatprep.subr.mxu0 0.0
  %63 = vmatpush1.msra.mxu0 0.0
  %64 = vmatprep.subr.mxu0 0.0
  %65 = vmatpush1.msra.mxu0 0.0
  %66 = vmatprep.subr.mxu0 0.0
  %67 = vmatpush1.msra.mxu0 0.0
  %68 = vmatprep.subr.mxu0 0.0
  %69 = vmatpush1.msra.mxu0 0.0
  %70 = vmatprep.subr.mxu0 0.0
  %71 = vmatpush1.msra.mxu0 0.0
  %72 = vmatprep.subr.mxu0 0.0
  %73 = vmatpush1.msra.mxu0 0.0
  %74 = vmatprep.subr.mxu0 0.0
  %75 = vmatpush1.msra.mxu0 0.0
  %76 = vmatprep.subr.mxu0 0.0
  %77 = vmatpush1.msra.mxu0 0.0
  %78 = vmatprep.subr.mxu0 0.0
  %79 = vmatpush1.msra.mxu0 0.0
  %80 = vmatprep.subr.mxu0 0.0
  %81 = vmatpush1.msra.mxu0 0.0
  %82 = vmatprep.subr.mxu0 0.0
  %83 = vmatpush1.msra.mxu0 0.0
  %84 = vmatprep.subr.mxu0 0.0
  %85 = vmatpush1.msra.mxu0 0.0
  %86 = vmatprep.subr.mxu0 0.0
  %87 = vmatpush1.msra.mxu0 0.0
  %88 = vmatprep.subr.mxu0 0.0
  %89 = vmatpush1.msra.mxu0 0.0
  %90 = vmatprep.subr.mxu0 0.0
  %91 = vmatpush1.msra.mxu0 0.0
  %92 = vmatprep.subr.mxu0 0.0
  %93 = vmatpush1.msra.mxu0 0.0
  %94 = vmatprep.subr.mxu0 0.0
  %95 = vmatpush1.msra.mxu0 0.0
  %96 = vmatprep.subr.mxu0 0.0
  %97 = vmatpush1.msra.mxu0 0.0
  %98 = vmatprep.subr.mxu0 0.0
  %99 = vmatpush1.msra.mxu0 0.0
  %100 = vmatprep.subr.mxu0 0.0
  %101 = vmatpush1.msra.mxu0 0.0
  %102 = vmatprep.subr.mxu0 0.0
  %103 = vmatpush1.msra.mxu0 0.0
  %104 = vmatprep.mubr.f32.mxu0 0.0
  %105 = vmatmul.mubr.f32.gmra.mrb[0].mxu0 %v29
  %v106 = vpop.f32.mrb[0].mxu0
  %v107 = vadd.f32 0.0, %v106
  %v108 = vpop.f32.mrb[0].mxu0
  %109 = vmatprep.mubr.f32.mxu0 0.0
  %110 = vmatmul.mubr.f32.gmra.mrb[0].mxu0 %v32
  %v111 = vpop.f32.mrb[0].mxu0
  %v112 = vadd.f32 0.0, %v111
  %v113 = vpop.f32.mrb[0].mxu0
  %114 = vmatprep.mubr.f32.mxu0 0.0
  %115 = vmatmul.mubr.f32.gmra.mrb[0].mxu0 %v35
  %v116 = vpop.f32.mrb[0].mxu0
  %v117 = vadd.f32 0.0, %v116
  %v118 = vpop.f32.mrb[0].mxu0
  %119 = vmatprep.mubr.f32.mxu0 0.0
  %120 = vmatmul.mubr.f32.gmra.mrb[0].mxu0 %v38
  %v121 = vpop.f32.mrb[0].mxu0
  %v122 = vadd.f32 0.0, %v121
  %v123 = vpop.f32.mrb[0].mxu0
  %124 = vdwg.mxu0
  %v126 = vlaneseq
  %v127 = vshrl.u32 %v126, 7
  %v128 = vsub.s32 0, %v127
  %v129 = vrot.slane %v21, %v128
  %v131 = vmul.f32 %v107, %v129
  %v132 = vmul.f32 %v112, %v129
  %v133 = vmul.f32 %v117, %v129
  %v134 = vmul.f32 %v122, %v129
  %v136 = vlaneseq
  %v137 = vshrl.u32 %v136, 7
  %v138 = vsub.s32 0, %v137
  %v139 = vrot.slane %v22, %v138
  %v141 = vadd.f32 %v131, %v139
  %v142 = vadd.f32 %v132, %v139
  %v143 = vadd.f32 %v133, %v139
  %v144 = vadd.f32 %v134, %v139
  %v145 = vmul.f32 %v141, 0.5
  %v146 = vmul.f32 %v142, 0.5
  %v147 = vmul.f32 %v143, 0.5
  %v148 = vmul.f32 %v144, 0.5
  %v149 = vadd.f32 %v145, 0.0
  %v150 = vadd.f32 %v146, 0.0
  %v151 = vadd.f32 %v147, 0.0
  %v152 = vadd.f32 %v148, 0.0
  %vm153 = vcmp.ge.f32.partialorder %v149, 1.0
  %vm154 = vcmp.ge.f32.partialorder %v150, 1.0
  %vm155 = vcmp.ge.f32.partialorder %v151, 1.0
  %vm156 = vcmp.ge.f32.partialorder %v152, 1.0
  %v157 = vsel %vm153, 1, 0
  %v158 = vsel %vm154, 1, 0
  %v159 = vsel %vm155, 1, 0
  %v160 = vsel %vm156, 1, 0
  %v161 = vcvt.s32.f32 %v157
  %v162 = vcvt.s32.f32 %v158
  %v163 = vcvt.s32.f32 %v159
  %v164 = vcvt.s32.f32 %v160
  %v165 = vpack.c.bf16 %v162, %v161
  %v166 = vpack.c.bf16 %v164, %v163
  %v169 = vunpack.c.l.b16 %v165
  %v170 = vunpack.c.h.b16 %v165
  %v171 = vunpack.c.l.b16 %v166
  %v172 = vunpack.c.h.b16 %v166
  %v173 = vpack.c.b16 %v169, %v169
  %v174 = vpack.c.b16 %v170, %v170
  %v175 = vpack.c.b16 %v171, %v171
  %v176 = vpack.c.b16 %v172, %v172
  %vm181 = vcmask 781312
  %182 = vst.msk [vmem:[%s4] sm:$0xf] %vm181, %v173
  %183 = vst.msk [vmem:[%s4 + $0x4] sm:$0xf] %vm181, %v174
  %184 = vst.msk [vmem:[%s4 + $0x8] sm:$0xf] %vm181, %v175
  %185 = vst.msk [vmem:[%s4 + $0xc] sm:$0xf] %vm181, %v176
  %v186 = vsub.f32 1.0, %v161
  %v187 = vsub.f32 1.0, %v162
  %v188 = vsub.f32 1.0, %v163
  %v189 = vsub.f32 1.0, %v164
  %v190 = vmul.f32 %v149, %v186
  %v191 = vmul.f32 %v150, %v187
  %v192 = vmul.f32 %v151, %v188
  %v193 = vmul.f32 %v152, %v189
  %s194 = scalar_lea.vmem %s0, 32
  %v195 = vld [vmem:[%s194] sm:$0xff]
  %v196 = vld [vmem:[%s194 + $0x8] sm:$0xff]
  %v197 = vld [vmem:[%s194 + $0x10] sm:$0xff]
  %v198 = vld [vmem:[%s194 + $0x18] sm:$0xff]
  %v200 = vsel %vm27, %v195, 0
  %v203 = vsel %vm27, %v196, 0
  %v206 = vsel %vm27, %v197, 0
  %v209 = vsel %vm27, %v198, 0
  %211 = vmatprep.subr.mxu0 0.0
  %212 = vmatpush1.msra.mxu0 %v17
  %213 = vmatprep.subr.mxu0 0.0
  %214 = vmatpush1.msra.mxu0 %v18
  %215 = vmatprep.subr.mxu0 0.0
  %216 = vmatpush1.msra.mxu0 %v19
  %217 = vmatprep.subr.mxu0 0.0
  %218 = vmatpush1.msra.mxu0 %v20
  %219 = vmatprep.subr.mxu0 0.0
  %220 = vmatpush1.msra.mxu0 0.0
  %221 = vmatprep.subr.mxu0 0.0
  %222 = vmatpush1.msra.mxu0 0.0
  %223 = vmatprep.subr.mxu0 0.0
  %224 = vmatpush1.msra.mxu0 0.0
  %225 = vmatprep.subr.mxu0 0.0
  %226 = vmatpush1.msra.mxu0 0.0
  %227 = vmatprep.subr.mxu0 0.0
  %228 = vmatpush1.msra.mxu0 0.0
  %229 = vmatprep.subr.mxu0 0.0
  %230 = vmatpush1.msra.mxu0 0.0
  %231 = vmatprep.subr.mxu0 0.0
  %232 = vmatpush1.msra.mxu0 0.0
  %233 = vmatprep.subr.mxu0 0.0
  %234 = vmatpush1.msra.mxu0 0.0
  %235 = vmatprep.subr.mxu0 0.0
  %236 = vmatpush1.msra.mxu0 0.0
  %237 = vmatprep.subr.mxu0 0.0
  %238 = vmatpush1.msra.mxu0 0.0
  %239 = vmatprep.subr.mxu0 0.0
  %240 = vmatpush1.msra.mxu0 0.0
  %241 = vmatprep.subr.mxu0 0.0
  %242 = vmatpush1.msra.mxu0 0.0
  %243 = vmatprep.subr.mxu0 0.0
  %244 = vmatpush1.msra.mxu0 0.0
  %245 = vmatprep.subr.mxu0 0.0
  %246 = vmatpush1.msra.mxu0 0.0
  %247 = vmatprep.subr.mxu0 0.0
  %248 = vmatpush1.msra.mxu0 0.0
  %249 = vmatprep.subr.mxu0 0.0
  %250 = vmatpush1.msra.mxu0 0.0
  %251 = vmatprep.subr.mxu0 0.0
  %252 = vmatpush1.msra.mxu0 0.0
  %253 = vmatprep.subr.mxu0 0.0
  %254 = vmatpush1.msra.mxu0 0.0
  %255 = vmatprep.subr.mxu0 0.0
  %256 = vmatpush1.msra.mxu0 0.0
  %257 = vmatprep.subr.mxu0 0.0
  %258 = vmatpush1.msra.mxu0 0.0
  %259 = vmatprep.subr.mxu0 0.0
  %260 = vmatpush1.msra.mxu0 0.0
  %261 = vmatprep.subr.mxu0 0.0
  %262 = vmatpush1.msra.mxu0 0.0
  %263 = vmatprep.subr.mxu0 0.0
  %264 = vmatpush1.msra.mxu0 0.0
  %265 = vmatprep.subr.mxu0 0.0
  %266 = vmatpush1.msra.mxu0 0.0
  %267 = vmatprep.subr.mxu0 0.0
  %268 = vmatpush1.msra.mxu0 0.0
  %269 = vmatprep.subr.mxu0 0.0
  %270 = vmatpush1.msra.mxu0 0.0
  %271 = vmatprep.subr.mxu0 0.0
  %272 = vmatpush1.msra.mxu0 0.0
  %273 = vmatprep.subr.mxu0 0.0
  %274 = vmatpush1.msra.mxu0 0.0
  %275 = vmatprep.mubr.f32.mxu0 0.0
  %276 = vmatmul.mubr.f32.gmra.mrb[0].mxu0 %v200
  %v277 = vpop.f32.mrb[0].mxu0
  %v278 = vadd.f32 0.0, %v277
  %v279 = vpop.f32.mrb[0].mxu0
  %280 = vmatprep.mubr.f32.mxu0 0.0
  %281 = vmatmul.mubr.f32.gmra.mrb[0].mxu0 %v203
  %v282 = vpop.f32.mrb[0].mxu0
  %v283 = vadd.f32 0.0, %v282
  %v284 = vpop.f32.mrb[0].mxu0
  %285 = vmatprep.mubr.f32.mxu0 0.0
  %286 = vmatmul.mubr.f32.gmra.mrb[0].mxu0 %v206
  %v287 = vpop.f32.mrb[0].mxu0
  %v288 = vadd.f32 0.0, %v287
  %v289 = vpop.f32.mrb[0].mxu0
  %290 = vmatprep.mubr.f32.mxu0 0.0
  %291 = vmatmul.mubr.f32.gmra.mrb[0].mxu0 %v209
  %v292 = vpop.f32.mrb[0].mxu0
  %v293 = vadd.f32 0.0, %v292
  %v294 = vpop.f32.mrb[0].mxu0
  %295 = vdwg.mxu0
  %v296 = vmul.f32 %v278, %v129
  %v297 = vmul.f32 %v283, %v129
  %v298 = vmul.f32 %v288, %v129
  %v299 = vmul.f32 %v293, %v129
  %v300 = vadd.f32 %v296, %v139
  %v301 = vadd.f32 %v297, %v139
  %v302 = vadd.f32 %v298, %v139
  %v303 = vadd.f32 %v299, %v139
  %v304 = vsub.f32 %v300, %v190
  %v305 = vsub.f32 %v301, %v191
  %v306 = vsub.f32 %v302, %v192
  %v307 = vsub.f32 %v303, %v193
  %v308 = vmul.f32 %v304, 0.5
  %v309 = vmul.f32 %v305, 0.5
  %v310 = vmul.f32 %v306, 0.5
  %v311 = vmul.f32 %v307, 0.5
  %v312 = vadd.f32 %v190, %v308
  %v313 = vadd.f32 %v191, %v309
  %v314 = vadd.f32 %v192, %v310
  %v315 = vadd.f32 %v193, %v311
  %vm316 = vcmp.ge.f32.partialorder %v312, 1.0
  %vm317 = vcmp.ge.f32.partialorder %v313, 1.0
  %vm318 = vcmp.ge.f32.partialorder %v314, 1.0
  %vm319 = vcmp.ge.f32.partialorder %v315, 1.0
  %v320 = vsel %vm316, 1, 0
  %v321 = vsel %vm317, 1, 0
  %v322 = vsel %vm318, 1, 0
  %v323 = vsel %vm319, 1, 0
  %v324 = vcvt.s32.f32 %v320
  %v325 = vcvt.s32.f32 %v321
  %v326 = vcvt.s32.f32 %v322
  %v327 = vcvt.s32.f32 %v323
  %v328 = vpack.c.bf16 %v325, %v324
  %v329 = vpack.c.bf16 %v327, %v326
  %v332 = vunpack.c.l.b16 %v328
  %v333 = vunpack.c.h.b16 %v328
  %v334 = vunpack.c.l.b16 %v329
  %v335 = vunpack.c.h.b16 %v329
  %v336 = vpack.c.b16 %v332, %v332
  %v337 = vpack.c.b16 %v333, %v333
  %v338 = vpack.c.b16 %v334, %v334
  %v339 = vpack.c.b16 %v335, %v335
  %s344 = scalar_lea.vmem %s4, 16
  %345 = vst.msk [vmem:[%s344] sm:$0xf] %vm181, %v336
  %346 = vst.msk [vmem:[%s344 + $0x4] sm:$0xf] %vm181, %v337
  %347 = vst.msk [vmem:[%s344 + $0x8] sm:$0xf] %vm181, %v338
  %348 = vst.msk [vmem:[%s344 + $0xc] sm:$0xf] %vm181, %v339
  %v349 = vsub.f32 1.0, %v324
  %v350 = vsub.f32 1.0, %v325
  %v351 = vsub.f32 1.0, %v326
  %v352 = vsub.f32 1.0, %v327
  %v353 = vmul.f32 %v312, %v349
  %v354 = vmul.f32 %v313, %v350
  %v355 = vmul.f32 %v314, %v351
  %v356 = vmul.f32 %v315, %v352
  %s357 = scalar_lea.vmem %s0, 64
  %v358 = vld [vmem:[%s357] sm:$0xff]
  %v359 = vld [vmem:[%s357 + $0x8] sm:$0xff]
  %v360 = vld [vmem:[%s357 + $0x10] sm:$0xff]
  %v361 = vld [vmem:[%s357 + $0x18] sm:$0xff]
  %v363 = vsel %vm27, %v358, 0
  %v366 = vsel %vm27, %v359, 0
  %v369 = vsel %vm27, %v360, 0
  %v372 = vsel %vm27, %v361, 0
  %374 = vmatprep.subr.mxu0 0.0
  %375 = vmatpush1.msra.mxu0 %v17
  %376 = vmatprep.subr.mxu0 0.0
  %377 = vmatpush1.msra.mxu0 %v18
  %378 = vmatprep.subr.mxu0 0.0
  %379 = vmatpush1.msra.mxu0 %v19
  %380 = vmatprep.subr.mxu0 0.0
  %381 = vmatpush1.msra.mxu0 %v20
  %382 = vmatprep.subr.mxu0 0.0
  %383 = vmatpush1.msra.mxu0 0.0
  %384 = vmatprep.subr.mxu0 0.0
  %385 = vmatpush1.msra.mxu0 0.0
  %386 = vmatprep.subr.mxu0 0.0
  %387 = vmatpush1.msra.mxu0 0.0
  %388 = vmatprep.subr.mxu0 0.0
  %389 = vmatpush1.msra.mxu0 0.0
  %390 = vmatprep.subr.mxu0 0.0
  %391 = vmatpush1.msra.mxu0 0.0
  %392 = vmatprep.subr.mxu0 0.0
  %393 = vmatpush1.msra.mxu0 0.0
  %394 = vmatprep.subr.mxu0 0.0
  %395 = vmatpush1.msra.mxu0 0.0
  %396 = vmatprep.subr.mxu0 0.0
  %397 = vmatpush1.msra.mxu0 0.0
  %398 = vmatprep.subr.mxu0 0.0
  %399 = vmatpush1.msra.mxu0 0.0
  %400 = vmatprep.subr.mxu0 0.0
  %401 = vmatpush1.msra.mxu0 0.0
  %402 = vmatprep.subr.mxu0 0.0
  %403 = vmatpush1.msra.mxu0 0.0
  %404 = vmatprep.subr.mxu0 0.0
  %405 = vmatpush1.msra.mxu0 0.0
  %406 = vmatprep.subr.mxu0 0.0
  %407 = vmatpush1.msra.mxu0 0.0
  %408 = vmatprep.subr.mxu0 0.0
  %409 = vmatpush1.msra.mxu0 0.0
  %410 = vmatprep.subr.mxu0 0.0
  %411 = vmatpush1.msra.mxu0 0.0
  %412 = vmatprep.subr.mxu0 0.0
  %413 = vmatpush1.msra.mxu0 0.0
  %414 = vmatprep.subr.mxu0 0.0
  %415 = vmatpush1.msra.mxu0 0.0
  %416 = vmatprep.subr.mxu0 0.0
  %417 = vmatpush1.msra.mxu0 0.0
  %418 = vmatprep.subr.mxu0 0.0
  %419 = vmatpush1.msra.mxu0 0.0
  %420 = vmatprep.subr.mxu0 0.0
  %421 = vmatpush1.msra.mxu0 0.0
  %422 = vmatprep.subr.mxu0 0.0
  %423 = vmatpush1.msra.mxu0 0.0
  %424 = vmatprep.subr.mxu0 0.0
  %425 = vmatpush1.msra.mxu0 0.0
  %426 = vmatprep.subr.mxu0 0.0
  %427 = vmatpush1.msra.mxu0 0.0
  %428 = vmatprep.subr.mxu0 0.0
  %429 = vmatpush1.msra.mxu0 0.0
  %430 = vmatprep.subr.mxu0 0.0
  %431 = vmatpush1.msra.mxu0 0.0
  %432 = vmatprep.subr.mxu0 0.0
  %433 = vmatpush1.msra.mxu0 0.0
  %434 = vmatprep.subr.mxu0 0.0
  %435 = vmatpush1.msra.mxu0 0.0
  %436 = vmatprep.subr.mxu0 0.0
  %437 = vmatpush1.msra.mxu0 0.0
  %438 = vmatprep.mubr.f32.mxu0 0.0
  %439 = vmatmul.mubr.f32.gmra.mrb[0].mxu0 %v363
  %v440 = vpop.f32.mrb[0].mxu0
  %v441 = vadd.f32 0.0, %v440
  %v442 = vpop.f32.mrb[0].mxu0
  %443 = vmatprep.mubr.f32.mxu0 0.0
  %444 = vmatmul.mubr.f32.gmra.mrb[0].mxu0 %v366
  %v445 = vpop.f32.mrb[0].mxu0
  %v446 = vadd.f32 0.0, %v445
  %v447 = vpop.f32.mrb[0].mxu0
  %448 = vmatprep.mubr.f32.mxu0 0.0
  %449 = vmatmul.mubr.f32.gmra.mrb[0].mxu0 %v369
  %v450 = vpop.f32.mrb[0].mxu0
  %v451 = vadd.f32 0.0, %v450
  %v452 = vpop.f32.mrb[0].mxu0
  %453 = vmatprep.mubr.f32.mxu0 0.0
  %454 = vmatmul.mubr.f32.gmra.mrb[0].mxu0 %v372
  %v455 = vpop.f32.mrb[0].mxu0
  %v456 = vadd.f32 0.0, %v455
  %v457 = vpop.f32.mrb[0].mxu0
  %458 = vdwg.mxu0
  %v459 = vmul.f32 %v441, %v129
  %v460 = vmul.f32 %v446, %v129
  %v461 = vmul.f32 %v451, %v129
  %v462 = vmul.f32 %v456, %v129
  %v463 = vadd.f32 %v459, %v139
  %v464 = vadd.f32 %v460, %v139
  %v465 = vadd.f32 %v461, %v139
  %v466 = vadd.f32 %v462, %v139
  %v467 = vsub.f32 %v463, %v353
  %v468 = vsub.f32 %v464, %v354
  %v469 = vsub.f32 %v465, %v355
  %v470 = vsub.f32 %v466, %v356
  %v471 = vmul.f32 %v467, 0.5
  %v472 = vmul.f32 %v468, 0.5
  %v473 = vmul.f32 %v469, 0.5
  %v474 = vmul.f32 %v470, 0.5
  %v475 = vadd.f32 %v353, %v471
  %v476 = vadd.f32 %v354, %v472
  %v477 = vadd.f32 %v355, %v473
  %v478 = vadd.f32 %v356, %v474
  %vm479 = vcmp.ge.f32.partialorder %v475, 1.0
  %vm480 = vcmp.ge.f32.partialorder %v476, 1.0
  %vm481 = vcmp.ge.f32.partialorder %v477, 1.0
  %vm482 = vcmp.ge.f32.partialorder %v478, 1.0
  %v483 = vsel %vm479, 1, 0
  %v484 = vsel %vm480, 1, 0
  %v485 = vsel %vm481, 1, 0
  %v486 = vsel %vm482, 1, 0
  %v487 = vcvt.s32.f32 %v483
  %v488 = vcvt.s32.f32 %v484
  %v489 = vcvt.s32.f32 %v485
  %v490 = vcvt.s32.f32 %v486
  %v491 = vpack.c.bf16 %v488, %v487
  %v492 = vpack.c.bf16 %v490, %v489
  %v495 = vunpack.c.l.b16 %v491
  %v496 = vunpack.c.h.b16 %v491
  %v497 = vunpack.c.l.b16 %v492
  %v498 = vunpack.c.h.b16 %v492
  %v499 = vpack.c.b16 %v495, %v495
  %v500 = vpack.c.b16 %v496, %v496
  %v501 = vpack.c.b16 %v497, %v497
  %v502 = vpack.c.b16 %v498, %v498
  %s507 = scalar_lea.vmem %s4, 32
  %508 = vst.msk [vmem:[%s507] sm:$0xf] %vm181, %v499
  %509 = vst.msk [vmem:[%s507 + $0x4] sm:$0xf] %vm181, %v500
  %510 = vst.msk [vmem:[%s507 + $0x8] sm:$0xf] %vm181, %v501
  %511 = vst.msk [vmem:[%s507 + $0xc] sm:$0xf] %vm181, %v502
  %v512 = vsub.f32 1.0, %v487
  %v513 = vsub.f32 1.0, %v488
  %v514 = vsub.f32 1.0, %v489
  %v515 = vsub.f32 1.0, %v490
  %v516 = vmul.f32 %v475, %v512
  %v517 = vmul.f32 %v476, %v513
  %v518 = vmul.f32 %v477, %v514
  %v519 = vmul.f32 %v478, %v515
  %s520 = scalar_lea.vmem %s0, 96
  %v521 = vld [vmem:[%s520] sm:$0xff]
  %v522 = vld [vmem:[%s520 + $0x8] sm:$0xff]
  %v523 = vld [vmem:[%s520 + $0x10] sm:$0xff]
  %v524 = vld [vmem:[%s520 + $0x18] sm:$0xff]
  %v526 = vsel %vm27, %v521, 0
  %v529 = vsel %vm27, %v522, 0
  %v532 = vsel %vm27, %v523, 0
  %v535 = vsel %vm27, %v524, 0
  %537 = vmatprep.subr.mxu0 0.0
  %538 = vmatpush1.msra.mxu0 %v17
  %539 = vmatprep.subr.mxu0 0.0
  %540 = vmatpush1.msra.mxu0 %v18
  %541 = vmatprep.subr.mxu0 0.0
  %542 = vmatpush1.msra.mxu0 %v19
  %543 = vmatprep.subr.mxu0 0.0
  %544 = vmatpush1.msra.mxu0 %v20
  %545 = vmatprep.subr.mxu0 0.0
  %546 = vmatpush1.msra.mxu0 0.0
  %547 = vmatprep.subr.mxu0 0.0
  %548 = vmatpush1.msra.mxu0 0.0
  %549 = vmatprep.subr.mxu0 0.0
  %550 = vmatpush1.msra.mxu0 0.0
  %551 = vmatprep.subr.mxu0 0.0
  %552 = vmatpush1.msra.mxu0 0.0
  %553 = vmatprep.subr.mxu0 0.0
  %554 = vmatpush1.msra.mxu0 0.0
  %555 = vmatprep.subr.mxu0 0.0
  %556 = vmatpush1.msra.mxu0 0.0
  %557 = vmatprep.subr.mxu0 0.0
  %558 = vmatpush1.msra.mxu0 0.0
  %559 = vmatprep.subr.mxu0 0.0
  %560 = vmatpush1.msra.mxu0 0.0
  %561 = vmatprep.subr.mxu0 0.0
  %562 = vmatpush1.msra.mxu0 0.0
  %563 = vmatprep.subr.mxu0 0.0
  %564 = vmatpush1.msra.mxu0 0.0
  %565 = vmatprep.subr.mxu0 0.0
  %566 = vmatpush1.msra.mxu0 0.0
  %567 = vmatprep.subr.mxu0 0.0
  %568 = vmatpush1.msra.mxu0 0.0
  %569 = vmatprep.subr.mxu0 0.0
  %570 = vmatpush1.msra.mxu0 0.0
  %571 = vmatprep.subr.mxu0 0.0
  %572 = vmatpush1.msra.mxu0 0.0
  %573 = vmatprep.subr.mxu0 0.0
  %574 = vmatpush1.msra.mxu0 0.0
  %575 = vmatprep.subr.mxu0 0.0
  %576 = vmatpush1.msra.mxu0 0.0
  %577 = vmatprep.subr.mxu0 0.0
  %578 = vmatpush1.msra.mxu0 0.0
  %579 = vmatprep.subr.mxu0 0.0
  %580 = vmatpush1.msra.mxu0 0.0
  %581 = vmatprep.subr.mxu0 0.0
  %582 = vmatpush1.msra.mxu0 0.0
  %583 = vmatprep.subr.mxu0 0.0
  %584 = vmatpush1.msra.mxu0 0.0
  %585 = vmatprep.subr.mxu0 0.0
  %586 = vmatpush1.msra.mxu0 0.0
  %587 = vmatprep.subr.mxu0 0.0
  %588 = vmatpush1.msra.mxu0 0.0
  %589 = vmatprep.subr.mxu0 0.0
  %590 = vmatpush1.msra.mxu0 0.0
  %591 = vmatprep.subr.mxu0 0.0
  %592 = vmatpush1.msra.mxu0 0.0
  %593 = vmatprep.subr.mxu0 0.0
  %594 = vmatpush1.msra.mxu0 0.0
  %595 = vmatprep.subr.mxu0 0.0
  %596 = vmatpush1.msra.mxu0 0.0
  %597 = vmatprep.subr.mxu0 0.0
  %598 = vmatpush1.msra.mxu0 0.0
  %599 = vmatprep.subr.mxu0 0.0
  %600 = vmatpush1.msra.mxu0 0.0
  %601 = vmatprep.mubr.f32.mxu0 0.0
  %602 = vmatmul.mubr.f32.gmra.mrb[0].mxu0 %v526
  %v603 = vpop.f32.mrb[0].mxu0
  %v604 = vadd.f32 0.0, %v603
  %v605 = vpop.f32.mrb[0].mxu0
  %606 = vmatprep.mubr.f32.mxu0 0.0
  %607 = vmatmul.mubr.f32.gmra.mrb[0].mxu0 %v529
  %v608 = vpop.f32.mrb[0].mxu0
  %v609 = vadd.f32 0.0, %v608
  %v610 = vpop.f32.mrb[0].mxu0
  %611 = vmatprep.mubr.f32.mxu0 0.0
  %612 = vmatmul.mubr.f32.gmra.mrb[0].mxu0 %v532
  %v613 = vpop.f32.mrb[0].mxu0
  %v614 = vadd.f32 0.0, %v613
  %v615 = vpop.f32.mrb[0].mxu0
  %616 = vmatprep.mubr.f32.mxu0 0.0
  %617 = vmatmul.mubr.f32.gmra.mrb[0].mxu0 %v535
  %v618 = vpop.f32.mrb[0].mxu0
  %v619 = vadd.f32 0.0, %v618
  %v620 = vpop.f32.mrb[0].mxu0
  %621 = vdwg.mxu0
  %v622 = vmul.f32 %v604, %v129
  %v623 = vmul.f32 %v609, %v129
  %v624 = vmul.f32 %v614, %v129
  %v625 = vmul.f32 %v619, %v129
  %v626 = vadd.f32 %v622, %v139
  %v627 = vadd.f32 %v623, %v139
  %v628 = vadd.f32 %v624, %v139
  %v629 = vadd.f32 %v625, %v139
  %v630 = vsub.f32 %v626, %v516
  %v631 = vsub.f32 %v627, %v517
  %v632 = vsub.f32 %v628, %v518
  %v633 = vsub.f32 %v629, %v519
  %v634 = vmul.f32 %v630, 0.5
  %v635 = vmul.f32 %v631, 0.5
  %v636 = vmul.f32 %v632, 0.5
  %v637 = vmul.f32 %v633, 0.5
  %v638 = vadd.f32 %v516, %v634
  %v639 = vadd.f32 %v517, %v635
  %v640 = vadd.f32 %v518, %v636
  %v641 = vadd.f32 %v519, %v637
  %vm642 = vcmp.ge.f32.partialorder %v638, 1.0
  %vm643 = vcmp.ge.f32.partialorder %v639, 1.0
  %vm644 = vcmp.ge.f32.partialorder %v640, 1.0
  %vm645 = vcmp.ge.f32.partialorder %v641, 1.0
  %v646 = vsel %vm642, 1, 0
  %v647 = vsel %vm643, 1, 0
  %v648 = vsel %vm644, 1, 0
  %v649 = vsel %vm645, 1, 0
  %v650 = vcvt.s32.f32 %v646
  %v651 = vcvt.s32.f32 %v647
  %v652 = vcvt.s32.f32 %v648
  %v653 = vcvt.s32.f32 %v649
  %v654 = vpack.c.bf16 %v651, %v650
  %v655 = vpack.c.bf16 %v653, %v652
  %v658 = vunpack.c.l.b16 %v654
  %v659 = vunpack.c.h.b16 %v654
  %v660 = vunpack.c.l.b16 %v655
  %v661 = vunpack.c.h.b16 %v655
  %v662 = vpack.c.b16 %v658, %v658
  %v663 = vpack.c.b16 %v659, %v659
  %v664 = vpack.c.b16 %v660, %v660
  %v665 = vpack.c.b16 %v661, %v661
  %s670 = scalar_lea.vmem %s4, 48
  %671 = vst.msk [vmem:[%s670] sm:$0xf] %vm181, %v662
  %672 = vst.msk [vmem:[%s670 + $0x4] sm:$0xf] %vm181, %v663
  %673 = vst.msk [vmem:[%s670 + $0x8] sm:$0xf] %vm181, %v664
  %674 = vst.msk [vmem:[%s670 + $0xc] sm:$0xf] %vm181, %v665
  // Predicated region
  $region18: #{ssa_forward.3} parent=0 // pred_check
    _
  $region19: #{ssa_forward.3} parent=0 // pred_check_branch
    %676 = sbr.rel (0) target = $region21
  $region20: #{ssa_forward.3} parent=0 // pred_region
    _
  $region21: #{ssa_forward.3} parent=0 // pred_fallthru
    _
  // Predicated region
  $region22: #{ssa_forward.3} parent=0 // pred_check
    _
  $region23: #{ssa_forward.3} parent=0 // pred_check_branch
    %678 = sbr.rel (0) target = $region25
  $region24: #{ssa_forward.3} parent=0 // pred_region
    _
  $region25: #{ssa_forward.3} parent=0 // pred_fallthru
    _

// kernel: ssa_forward.5
$region0: #{ssa_forward.5}
  #allocation0 [shape = 'u32[]', space=smem, size = 0x4, offset = 0x4, fixed_abs, tag = 'smem constant byte address 0x4 - core index']
  #allocation1 [shape = 'u32[144,128]{1,0:T(1,128)}', space=vmem, size = 0x12000, scoped, tag = 'internal scratch']
  %s0 = inlined_call_operand.vmem [shape: f32[4,32,32], index: 0, kind: input, shape index: {}]
  %s1 = inlined_call_operand.vmem [shape: f32[32,32], index: 1, kind: input, shape index: {}]
  %s2 = inlined_call_operand.vmem [shape: f32[1,32], index: 2, kind: input, shape index: {}]
  %s3 = inlined_call_operand.vmem [shape: f32[1,32], index: 3, kind: input, shape index: {}]
  %s4 = inlined_call_operand.hbm [shape: f32[4,32,32], index: 4, kind: output, shape index: {}]
  %s5 = sld [smem:[#allocation0]]
  $region26: #{ssa_forward.5} parent=0
    _
  %s7 = ssub.s32 1, %s5
  %s8 = scalar_select 0, %s7, %s5
  $region1: #{ssa_forward.5} parent=0
    #allocation2 [shape = 'u8[65536]{0}', space=vmem, size = 0x10000, scoped, tag = 'output window, operand 0, single buffered']
    #allocation3 [shape = 's32[1]{0}', space=sflag, size = 0x4, scoped, tag = 'scoped memory for ssa_forward.5']
    %9 = vsyncpa [#allocation3], 0
    // Predicated region
    $region2: #{ssa_forward.5} parent=1 // pred_check
      _
    $region3: #{ssa_forward.5} parent=1 // pred_check_branch
      %11 = sbr.rel (0) target = $region5
    $region4: #{ssa_forward.5} parent=1 // pred_region
      _
    $region5: #{ssa_forward.5} parent=1 // pred_fallthru
      _
    // Predicated region
    $region6: #{ssa_forward.5} parent=1 // pred_check
      _
    $region7: #{ssa_forward.5} parent=1 // pred_check_branch
      %13 = sbr.rel (0) target = $region9
    $region8: #{ssa_forward.5} parent=1 // pred_region
      _
    $region9: #{ssa_forward.5} parent=1 // pred_fallthru
      _
    // Predicated region
    $region10: #{ssa_forward.5} parent=1 // pred_check
      _
    $region11: #{ssa_forward.5} parent=1 // pred_check_branch
      %15 = sbr.rel (0) target = $region13
    $region12: #{ssa_forward.5} parent=1 // pred_region
      _
    $region13: #{ssa_forward.5} parent=1 // pred_fallthru
      _
    // Predicated region
    $region14: #{ssa_forward.5} parent=1 // pred_check
      _
    $region15: #{ssa_forward.5} parent=1 // pred_check_branch
      %17 = sbr.rel (0) target = $region17
    $region16: #{ssa_forward.5} parent=1 // pred_region
      _
    $region17: #{ssa_forward.5} parent=1 // pred_fallthru
      _
    %v18 = vld [vmem:[%s1] sm:$0xff]
    %v19 = vld [vmem:[%s1 + $0x8] sm:$0xff]
    %v20 = vld [vmem:[%s1 + $0x10] sm:$0xff]
    %v21 = vld [vmem:[%s1 + $0x18] sm:$0xff]
    %v22 = vld [vmem:[%s2] sm:$0x1]
    %v23 = vld [vmem:[%s3] sm:$0x1]
    %v24 = vld [vmem:[%s0] sm:$0xff]
    %v25 = vld [vmem:[%s0 + $0x8] sm:$0xff]
    %v26 = vld [vmem:[%s0 + $0x10] sm:$0xff]
    %v27 = vld [vmem:[%s0 + $0x18] sm:$0xff]
    %vm28 = vcmask 261120
    %v30 = vsel %vm28, %v24, 0
    %v33 = vsel %vm28, %v25, 0
    %v36 = vsel %vm28, %v26, 0
    %v39 = vsel %vm28, %v27, 0
    %41 = vmatprep.subr.mxu0 0.0
    %42 = vmatpush1.msra.mxu0 %v18
    %43 = vmatprep.subr.mxu0 0.0
    %44 = vmatpush1.msra.mxu0 %v19
    %45 = vmatprep.subr.mxu0 0.0
    %46 = vmatpush1.msra.mxu0 %v20
    %47 = vmatprep.subr.mxu0 0.0
    %48 = vmatpush1.msra.mxu0 %v21
    %49 = vmatprep.subr.mxu0 0.0
    %50 = vmatpush1.msra.mxu0 0.0
    %51 = vmatprep.subr.mxu0 0.0
    %52 = vmatpush1.msra.mxu0 0.0
    %53 = vmatprep.subr.mxu0 0.0
    %54 = vmatpush1.msra.mxu0 0.0
    %55 = vmatprep.subr.mxu0 0.0
    %56 = vmatpush1.msra.mxu0 0.0
    %57 = vmatprep.subr.mxu0 0.0
    %58 = vmatpush1.msra.mxu0 0.0
    %59 = vmatprep.subr.mxu0 0.0
    %60 = vmatpush1.msra.mxu0 0.0
    %61 = vmatprep.subr.mxu0 0.0
    %62 = vmatpush1.msra.mxu0 0.0
    %63 = vmatprep.subr.mxu0 0.0
    %64 = vmatpush1.msra.mxu0 0.0
    %65 = vmatprep.subr.mxu0 0.0
    %66 = vmatpush1.msra.mxu0 0.0
    %67 = vmatprep.subr.mxu0 0.0
    %68 = vmatpush1.msra.mxu0 0.0
    %69 = vmatprep.subr.mxu0 0.0
    %70 = vmatpush1.msra.mxu0 0.0
    %71 = vmatprep.subr.mxu0 0.0
    %72 = vmatpush1.msra.mxu0 0.0
    %73 = vmatprep.subr.mxu0 0.0
    %74 = vmatpush1.msra.mxu0 0.0
    %75 = vmatprep.subr.mxu0 0.0
    %76 = vmatpush1.msra.mxu0 0.0
    %77 = vmatprep.subr.mxu0 0.0
    %78 = vmatpush1.msra.mxu0 0.0
    %79 = vmatprep.subr.mxu0 0.0
    %80 = vmatpush1.msra.mxu0 0.0
    %81 = vmatprep.subr.mxu0 0.0
    %82 = vmatpush1.msra.mxu0 0.0
    %83 = vmatprep.subr.mxu0 0.0
    %84 = vmatpush1.msra.mxu0 0.0
    %85 = vmatprep.subr.mxu0 0.0
    %86 = vmatpush1.msra.mxu0 0.0
    %87 = vmatprep.subr.mxu0 0.0
    %88 = vmatpush1.msra.mxu0 0.0
    %89 = vmatprep.subr.mxu0 0.0
    %90 = vmatpush1.msra.mxu0 0.0
    %91 = vmatprep.subr.mxu0 0.0
    %92 = vmatpush1.msra.mxu0 0.0
    %93 = vmatprep.subr.mxu0 0.0
    %94 = vmatpush1.msra.mxu0 0.0
    %95 = vmatprep.subr.mxu0 0.0
    %96 = vmatpush1.msra.mxu0 0.0
    %97 = vmatprep.subr.mxu0 0.0
    %98 = vmatpush1.msra.mxu0 0.0
    %99 = vmatprep.subr.mxu0 0.0
    %100 = vmatpush1.msra.mxu0 0.0
    %101 = vmatprep.subr.mxu0 0.0
    %102 = vmatpush1.msra.mxu0 0.0
    %103 = vmatprep.subr.mxu0 0.0
    %104 = vmatpush1.msra.mxu0 0.0
    %105 = vmatprep.mubr.f32.mxu0 0.0
    %106 = vmatmul.mubr.f32.gmra.mrb[0].mxu0 %v30
    %v107 = vpop.f32.mrb[0].mxu0
    %v108 = vadd.f32 0.0, %v107
    %v109 = vpop.f32.mrb[0].mxu0
    %110 = vmatprep.mubr.f32.mxu0 0.0
    %111 = vmatmul.mubr.f32.gmra.mrb[0].mxu0 %v33
    %v112 = vpop.f32.mrb[0].mxu0
    %v113 = vadd.f32 0.0, %v112
    %v114 = vpop.f32.mrb[0].mxu0
    %115 = vmatprep.mubr.f32.mxu0 0.0
    %116 = vmatmul.mubr.f32.gmra.mrb[0].mxu0 %v36
    %v117 = vpop.f32.mrb[0].mxu0
    %v118 = vadd.f32 0.0, %v117
    %v119 = vpop.f32.mrb[0].mxu0
    %120 = vmatprep.mubr.f32.mxu0 0.0
    %121 = vmatmul.mubr.f32.gmra.mrb[0].mxu0 %v39
    %v122 = vpop.f32.mrb[0].mxu0
    %v123 = vadd.f32 0.0, %v122
    %v124 = vpop.f32.mrb[0].mxu0
    %125 = vdwg.mxu0
    %v127 = vlaneseq
    %v128 = vshrl.u32 %v127, 7
    %v129 = vsub.s32 0, %v128
    %v130 = vrot.slane %v22, %v129
    %v132 = vmul.f32 %v108, %v130
    %v133 = vmul.f32 %v113, %v130
    %v134 = vmul.f32 %v118, %v130
    %v135 = vmul.f32 %v123, %v130
    %v137 = vlaneseq
    %v138 = vshrl.u32 %v137, 7
    %v139 = vsub.s32 0, %v138
    %v140 = vrot.slane %v23, %v139
    %v142 = vadd.f32 %v132, %v140
    %v143 = vadd.f32 %v133, %v140
    %v144 = vadd.f32 %v134, %v140
    %v145 = vadd.f32 %v135, %v140
    %v146 = vmul.f32 %v142, 0.5
    %v147 = vmul.f32 %v143, 0.5
    %v148 = vmul.f32 %v144, 0.5
    %v149 = vmul.f32 %v145, 0.5
    %v150 = vadd.f32 %v146, 0.0
    %v151 = vadd.f32 %v147, 0.0
    %v152 = vadd.f32 %v148, 0.0
    %v153 = vadd.f32 %v149, 0.0
    %vm154 = vcmp.ge.f32.partialorder %v150, 1.0
    %vm155 = vcmp.ge.f32.partialorder %v151, 1.0
    %vm156 = vcmp.ge.f32.partialorder %v152, 1.0
    %vm157 = vcmp.ge.f32.partialorder %v153, 1.0
    %v158 = vsel %vm154, 1, 0
    %v159 = vsel %vm155, 1, 0
    %v160 = vsel %vm156, 1, 0
    %v161 = vsel %vm157, 1, 0
    %v162 = vcvt.s32.f32 %v158
    %v163 = vcvt.s32.f32 %v159
    %v164 = vcvt.s32.f32 %v160
    %v165 = vcvt.s32.f32 %v161
    %166 = vst.msk [vmem:[#allocation2] sm:$0xff] %vm28, %v162
    %167 = vst.msk [vmem:[#allocation2 + $0x8] sm:$0xff] %vm28, %v163
    %168 = vst.msk [vmem:[#allocation2 + $0x10] sm:$0xff] %vm28, %v164
    %169 = vst.msk [vmem:[#allocation2 + $0x18] sm:$0xff] %vm28, %v165
    %v170 = vsub.f32 1.0, %v162
    %v171 = vsub.f32 1.0, %v163
    %v172 = vsub.f32 1.0, %v164
    %v173 = vsub.f32 1.0, %v165
    %v174 = vmul.f32 %v150, %v170
    %v175 = vmul.f32 %v151, %v171
    %v176 = vmul.f32 %v152, %v172
    %v177 = vmul.f32 %v153, %v173
    %s178 = scalar_lea.vmem %s0, 32
    %v179 = vld [vmem:[%s178] sm:$0xff]
    %v180 = vld [vmem:[%s178 + $0x8] sm:$0xff]
    %v181 = vld [vmem:[%s178 + $0x10] sm:$0xff]
    %v182 = vld [vmem:[%s178 + $0x18] sm:$0xff]
    %v184 = vsel %vm28, %v179, 0
    %v187 = vsel %vm28, %v180, 0
    %v190 = vsel %vm28, %v181, 0
    %v193 = vsel %vm28, %v182, 0
    %195 = vmatprep.subr.mxu0 0.0
    %196 = vmatpush1.msra.mxu0 %v18
    %197 = vmatprep.subr.mxu0 0.0
    %198 = vmatpush1.msra.mxu0 %v19
    %199 = vmatprep.subr.mxu0 0.0
    %200 = vmatpush1.msra.mxu0 %v20
    %201 = vmatprep.subr.mxu0 0.0
    %202 = vmatpush1.msra.mxu0 %v21
    %203 = vmatprep.subr.mxu0 0.0
    %204 = vmatpush1.msra.mxu0 0.0
    %205 = vmatprep.subr.mxu0 0.0
    %206 = vmatpush1.msra.mxu0 0.0
    %207 = vmatprep.subr.mxu0 0.0
    %208 = vmatpush1.msra.mxu0 0.0
    %209 = vmatprep.subr.mxu0 0.0
    %210 = vmatpush1.msra.mxu0 0.0
    %211 = vmatprep.subr.mxu0 0.0
    %212 = vmatpush1.msra.mxu0 0.0
    %213 = vmatprep.subr.mxu0 0.0
    %214 = vmatpush1.msra.mxu0 0.0
    %215 = vmatprep.subr.mxu0 0.0
    %216 = vmatpush1.msra.mxu0 0.0
    %217 = vmatprep.subr.mxu0 0.0
    %218 = vmatpush1.msra.mxu0 0.0
    %219 = vmatprep.subr.mxu0 0.0
    %220 = vmatpush1.msra.mxu0 0.0
    %221 = vmatprep.subr.mxu0 0.0
    %222 = vmatpush1.msra.mxu0 0.0
    %223 = vmatprep.subr.mxu0 0.0
    %224 = vmatpush1.msra.mxu0 0.0
    %225 = vmatprep.subr.mxu0 0.0
    %226 = vmatpush1.msra.mxu0 0.0
    %227 = vmatprep.subr.mxu0 0.0
    %228 = vmatpush1.msra.mxu0 0.0
    %229 = vmatprep.subr.mxu0 0.0
    %230 = vmatpush1.msra.mxu0 0.0
    %231 = vmatprep.subr.mxu0 0.0
    %232 = vmatpush1.msra.mxu0 0.0
    %233 = vmatprep.subr.mxu0 0.0
    %234 = vmatpush1.msra.mxu0 0.0
    %235 = vmatprep.subr.mxu0 0.0
    %236 = vmatpush1.msra.mxu0 0.0
    %237 = vmatprep.subr.mxu0 0.0
    %238 = vmatpush1.msra.mxu0 0.0
    %239 = vmatprep.subr.mxu0 0.0
    %240 = vmatpush1.msra.mxu0 0.0
    %241 = vmatprep.subr.mxu0 0.0
    %242 = vmatpush1.msra.mxu0 0.0
    %243 = vmatprep.subr.mxu0 0.0
    %244 = vmatpush1.msra.mxu0 0.0
    %245 = vmatprep.subr.mxu0 0.0
    %246 = vmatpush1.msra.mxu0 0.0
    %247 = vmatprep.subr.mxu0 0.0
    %248 = vmatpush1.msra.mxu0 0.0
    %249 = vmatprep.subr.mxu0 0.0
    %250 = vmatpush1.msra.mxu0 0.0
    %251 = vmatprep.subr.mxu0 0.0
    %252 = vmatpush1.msra.mxu0 0.0
    %253 = vmatprep.subr.mxu0 0.0
    %254 = vmatpush1.msra.mxu0 0.0
    %255 = vmatprep.subr.mxu0 0.0
    %256 = vmatpush1.msra.mxu0 0.0
    %257 = vmatprep.subr.mxu0 0.0
    %258 = vmatpush1.msra.mxu0 0.0
    %259 = vmatprep.mubr.f32.mxu0 0.0
    %260 = vmatmul.mubr.f32.gmra.mrb[0].mxu0 %v184
    %v261 = vpop.f32.mrb[0].mxu0
    %v262 = vadd.f32 0.0, %v261
    %v263 = vpop.f32.mrb[0].mxu0
    %264 = vmatprep.mubr.f32.mxu0 0.0
    %265 = vmatmul.mubr.f32.gmra.mrb[0].mxu0 %v187
    %v266 = vpop.f32.mrb[0].mxu0
    %v267 = vadd.f32 0.0, %v266
    %v268 = vpop.f32.mrb[0].mxu0
    %269 = vmatprep.mubr.f32.mxu0 0.0
    %270 = vmatmul.mubr.f32.gmra.mrb[0].mxu0 %v190
    %v271 = vpop.f32.mrb[0].mxu0
    %v272 = vadd.f32 0.0, %v271
    %v273 = vpop.f32.mrb[0].mxu0
    %274 = vmatprep.mubr.f32.mxu0 0.0
    %275 = vmatmul.mubr.f32.gmra.mrb[0].mxu0 %v193
    %v276 = vpop.f32.mrb[0].mxu0
    %v277 = vadd.f32 0.0, %v276
    %v278 = vpop.f32.mrb[0].mxu0
    %279 = vdwg.mxu0
    %v280 = vmul.f32 %v262, %v130
    %v281 = vmul.f32 %v267, %v130
    %v282 = vmul.f32 %v272, %v130
    %v283 = vmul.f32 %v277, %v130
    %v284 = vadd.f32 %v280, %v140
    %v285 = vadd.f32 %v281, %v140
    %v286 = vadd.f32 %v282, %v140
    %v287 = vadd.f32 %v283, %v140
    %v288 = vsub.f32 %v284, %v174
    %v289 = vsub.f32 %v285, %v175
    %v290 = vsub.f32 %v286, %v176
    %v291 = vsub.f32 %v287, %v177
    %v292 = vmul.f32 %v288, 0.5
    %v293 = vmul.f32 %v289, 0.5
    %v294 = vmul.f32 %v290, 0.5
    %v295 = vmul.f32 %v291, 0.5
    %v296 = vadd.f32 %v174, %v292
    %v297 = vadd.f32 %v175, %v293
    %v298 = vadd.f32 %v176, %v294
    %v299 = vadd.f32 %v177, %v295
    %vm300 = vcmp.ge.f32.partialorder %v296, 1.0
    %vm301 = vcmp.ge.f32.partialorder %v297, 1.0
    %vm302 = vcmp.ge.f32.partialorder %v298, 1.0
    %vm303 = vcmp.ge.f32.partialorder %v299, 1.0
    %v304 = vsel %vm300, 1, 0
    %v305 = vsel %vm301, 1, 0
    %v306 = vsel %vm302, 1, 0
    %v307 = vsel %vm303, 1, 0
    %v308 = vcvt.s32.f32 %v304
    %v309 = vcvt.s32.f32 %v305
    %v310 = vcvt.s32.f32 %v306
    %v311 = vcvt.s32.f32 %v307
    %s312 = scalar_lea.vmem [#allocation2], 32
    %313 = vst.msk [vmem:[%s312] sm:$0xff] %vm28, %v308
    %314 = vst.msk [vmem:[%s312 + $0x8] sm:$0xff] %vm28, %v309
    %315 = vst.msk [vmem:[%s312 + $0x10] sm:$0xff] %vm28, %v310
    %316 = vst.msk [vmem:[%s312 + $0x18] sm:$0xff] %vm28, %v311
    %v317 = vsub.f32 1.0, %v308
    %v318 = vsub.f32 1.0, %v309
    %v319 = vsub.f32 1.0, %v310
    %v320 = vsub.f32 1.0, %v311
    %v321 = vmul.f32 %v296, %v317
    %v322 = vmul.f32 %v297, %v318
    %v323 = vmul.f32 %v298, %v319
    %v324 = vmul.f32 %v299, %v320
    %s325 = scalar_lea.vmem %s0, 64
    %v326 = vld [vmem:[%s325] sm:$0xff]
    %v327 = vld [vmem:[%s325 + $0x8] sm:$0xff]
    %v328 = vld [vmem:[%s325 + $0x10] sm:$0xff]
    %v329 = vld [vmem:[%s325 + $0x18] sm:$0xff]
    %v331 = vsel %vm28, %v326, 0
    %v334 = vsel %vm28, %v327, 0
    %v337 = vsel %vm28, %v328, 0
    %v340 = vsel %vm28, %v329, 0
    %342 = vmatprep.subr.mxu0 0.0
    %343 = vmatpush1.msra.mxu0 %v18
    %344 = vmatprep.subr.mxu0 0.0
    %345 = vmatpush1.msra.mxu0 %v19
    %346 = vmatprep.subr.mxu0 0.0
    %347 = vmatpush1.msra.mxu0 %v20
    %348 = vmatprep.subr.mxu0 0.0
    %349 = vmatpush1.msra.mxu0 %v21
    %350 = vmatprep.subr.mxu0 0.0
    %351 = vmatpush1.msra.mxu0 0.0
    %352 = vmatprep.subr.mxu0 0.0
    %353 = vmatpush1.msra.mxu0 0.0
    %354 = vmatprep.subr.mxu0 0.0
    %355 = vmatpush1.msra.mxu0 0.0
    %356 = vmatprep.subr.mxu0 0.0
    %357 = vmatpush1.msra.mxu0 0.0
    %358 = vmatprep.subr.mxu0 0.0
    %359 = vmatpush1.msra.mxu0 0.0
    %360 = vmatprep.subr.mxu0 0.0
    %361 = vmatpush1.msra.mxu0 0.0
    %362 = vmatprep.subr.mxu0 0.0
    %363 = vmatpush1.msra.mxu0 0.0
    %364 = vmatprep.subr.mxu0 0.0
    %365 = vmatpush1.msra.mxu0 0.0
    %366 = vmatprep.subr.mxu0 0.0
    %367 = vmatpush1.msra.mxu0 0.0
    %368 = vmatprep.subr.mxu0 0.0
    %369 = vmatpush1.msra.mxu0 0.0
    %370 = vmatprep.subr.mxu0 0.0
    %371 = vmatpush1.msra.mxu0 0.0
    %372 = vmatprep.subr.mxu0 0.0
    %373 = vmatpush1.msra.mxu0 0.0
    %374 = vmatprep.subr.mxu0 0.0
    %375 = vmatpush1.msra.mxu0 0.0
    %376 = vmatprep.subr.mxu0 0.0
    %377 = vmatpush1.msra.mxu0 0.0
    %378 = vmatprep.subr.mxu0 0.0
    %379 = vmatpush1.msra.mxu0 0.0
    %380 = vmatprep.subr.mxu0 0.0
    %381 = vmatpush1.msra.mxu0 0.0
    %382 = vmatprep.subr.mxu0 0.0
    %383 = vmatpush1.msra.mxu0 0.0
    %384 = vmatprep.subr.mxu0 0.0
    %385 = vmatpush1.msra.mxu0 0.0
    %386 = vmatprep.subr.mxu0 0.0
    %387 = vmatpush1.msra.mxu0 0.0
    %388 = vmatprep.subr.mxu0 0.0
    %389 = vmatpush1.msra.mxu0 0.0
    %390 = vmatprep.subr.mxu0 0.0
    %391 = vmatpush1.msra.mxu0 0.0
    %392 = vmatprep.subr.mxu0 0.0
    %393 = vmatpush1.msra.mxu0 0.0
    %394 = vmatprep.subr.mxu0 0.0
    %395 = vmatpush1.msra.mxu0 0.0
    %396 = vmatprep.subr.mxu0 0.0
    %397 = vmatpush1.msra.mxu0 0.0
    %398 = vmatprep.subr.mxu0 0.0
    %399 = vmatpush1.msra.mxu0 0.0
    %400 = vmatprep.subr.mxu0 0.0
    %401 = vmatpush1.msra.mxu0 0.0
    %402 = vmatprep.subr.mxu0 0.0
    %403 = vmatpush1.msra.mxu0 0.0
    %404 = vmatprep.subr.mxu0 0.0
    %405 = vmatpush1.msra.mxu0 0.0
    %406 = vmatprep.mubr.f32.mxu0 0.0
    %407 = vmatmul.mubr.f32.gmra.mrb[0].mxu0 %v331
    %v408 = vpop.f32.mrb[0].mxu0
    %v409 = vadd.f32 0.0, %v408
    %v410 = vpop.f32.mrb[0].mxu0
    %411 = vmatprep.mubr.f32.mxu0 0.0
    %412 = vmatmul.mubr.f32.gmra.mrb[0].mxu0 %v334
    %v413 = vpop.f32.mrb[0].mxu0
    %v414 = vadd.f32 0.0, %v413
    %v415 = vpop.f32.mrb[0].mxu0
    %416 = vmatprep.mubr.f32.mxu0 0.0
    %417 = vmatmul.mubr.f32.gmra.mrb[0].mxu0 %v337
    %v418 = vpop.f32.mrb[0].mxu0
    %v419 = vadd.f32 0.0, %v418
    %v420 = vpop.f32.mrb[0].mxu0
    %421 = vmatprep.mubr.f32.mxu0 0.0
    %422 = vmatmul.mubr.f32.gmra.mrb[0].mxu0 %v340
    %v423 = vpop.f32.mrb[0].mxu0
    %v424 = vadd.f32 0.0, %v423
    %v425 = vpop.f32.mrb[0].mxu0
    %426 = vdwg.mxu0
    %v427 = vmul.f32 %v409, %v130
    %v428 = vmul.f32 %v414, %v130
    %v429 = vmul.f32 %v419, %v130
    %v430 = vmul.f32 %v424, %v130
    %v431 = vadd.f32 %v427, %v140
    %v432 = vadd.f32 %v428, %v140
    %v433 = vadd.f32 %v429, %v140
    %v434 = vadd.f32 %v430, %v140
    %v435 = vsub.f32 %v431, %v321
    %v436 = vsub.f32 %v432, %v322
    %v437 = vsub.f32 %v433, %v323
    %v438 = vsub.f32 %v434, %v324
    %v439 = vmul.f32 %v435, 0.5
    %v440 = vmul.f32 %v436, 0.5
    %v441 = vmul.f32 %v437, 0.5
    %v442 = vmul.f32 %v438, 0.5
    %v443 = vadd.f32 %v321, %v439
    %v444 = vadd.f32 %v322, %v440
    %v445 = vadd.f32 %v323, %v441
    %v446 = vadd.f32 %v324, %v442
    %vm447 = vcmp.ge.f32.partialorder %v443, 1.0
    %vm448 = vcmp.ge.f32.partialorder %v444, 1.0
    %vm449 = vcmp.ge.f32.partialorder %v445, 1.0
    %vm450 = vcmp.ge.f32.partialorder %v446, 1.0
    %v451 = vsel %vm447, 1, 0
    %v452 = vsel %vm448, 1, 0
    %v453 = vsel %vm449, 1, 0
    %v454 = vsel %vm450, 1, 0
    %v455 = vcvt.s32.f32 %v451
    %v456 = vcvt.s32.f32 %v452
    %v457 = vcvt.s32.f32 %v453
    %v458 = vcvt.s32.f32 %v454
    %s459 = scalar_lea.vmem [#allocation2], 64
    %460 = vst.msk [vmem:[%s459] sm:$0xff] %vm28, %v455
    %461 = vst.msk [vmem:[%s459 + $0x8] sm:$0xff] %vm28, %v456
    %462 = vst.msk [vmem:[%s459 + $0x10] sm:$0xff] %vm28, %v457
    %463 = vst.msk [vmem:[%s459 + $0x18] sm:$0xff] %vm28, %v458
    %v464 = vsub.f32 1.0, %v455
    %v465 = vsub.f32 1.0, %v456
    %v466 = vsub.f32 1.0, %v457
    %v467 = vsub.f32 1.0, %v458
    %v468 = vmul.f32 %v443, %v464
    %v469 = vmul.f32 %v444, %v465
    %v470 = vmul.f32 %v445, %v466
    %v471 = vmul.f32 %v446, %v467
    %s472 = scalar_lea.vmem %s0, 96
    %v473 = vld [vmem:[%s472] sm:$0xff]
    %v474 = vld [vmem:[%s472 + $0x8] sm:$0xff]
    %v475 = vld [vmem:[%s472 + $0x10] sm:$0xff]
    %v476 = vld [vmem:[%s472 + $0x18] sm:$0xff]
    %v478 = vsel %vm28, %v473, 0
    %v481 = vsel %vm28, %v474, 0
    %v484 = vsel %vm28, %v475, 0
    %v487 = vsel %vm28, %v476, 0
    %489 = vmatprep.subr.mxu0 0.0
    %490 = vmatpush1.msra.mxu0 %v18
    %491 = vmatprep.subr.mxu0 0.0
    %492 = vmatpush1.msra.mxu0 %v19
    %493 = vmatprep.subr.mxu0 0.0
    %494 = vmatpush1.msra.mxu0 %v20
    %495 = vmatprep.subr.mxu0 0.0
    %496 = vmatpush1.msra.mxu0 %v21
    %497 = vmatprep.subr.mxu0 0.0
    %498 = vmatpush1.msra.mxu0 0.0
    %499 = vmatprep.subr.mxu0 0.0
    %500 = vmatpush1.msra.mxu0 0.0
    %501 = vmatprep.subr.mxu0 0.0
    %502 = vmatpush1.msra.mxu0 0.0
    %503 = vmatprep.subr.mxu0 0.0
    %504 = vmatpush1.msra.mxu0 0.0
    %505 = vmatprep.subr.mxu0 0.0
    %506 = vmatpush1.msra.mxu0 0.0
    %507 = vmatprep.subr.mxu0 0.0
    %508 = vmatpush1.msra.mxu0 0.0
    %509 = vmatprep.subr.mxu0 0.0
    %510 = vmatpush1.msra.mxu0 0.0
    %511 = vmatprep.subr.mxu0 0.0
    %512 = vmatpush1.msra.mxu0 0.0
    %513 = vmatprep.subr.mxu0 0.0
    %514 = vmatpush1.msra.mxu0 0.0
    %515 = vmatprep.subr.mxu0 0.0
    %516 = vmatpush1.msra.mxu0 0.0
    %517 = vmatprep.subr.mxu0 0.0
    %518 = vmatpush1.msra.mxu0 0.0
    %519 = vmatprep.subr.mxu0 0.0
    %520 = vmatpush1.msra.mxu0 0.0
    %521 = vmatprep.subr.mxu0 0.0
    %522 = vmatpush1.msra.mxu0 0.0
    %523 = vmatprep.subr.mxu0 0.0
    %524 = vmatpush1.msra.mxu0 0.0
    %525 = vmatprep.subr.mxu0 0.0
    %526 = vmatpush1.msra.mxu0 0.0
    %527 = vmatprep.subr.mxu0 0.0
    %528 = vmatpush1.msra.mxu0 0.0
    %529 = vmatprep.subr.mxu0 0.0
    %530 = vmatpush1.msra.mxu0 0.0
    %531 = vmatprep.subr.mxu0 0.0
    %532 = vmatpush1.msra.mxu0 0.0
    %533 = vmatprep.subr.mxu0 0.0
    %534 = vmatpush1.msra.mxu0 0.0
    %535 = vmatprep.subr.mxu0 0.0
    %536 = vmatpush1.msra.mxu0 0.0
    %537 = vmatprep.subr.mxu0 0.0
    %538 = vmatpush1.msra.mxu0 0.0
    %539 = vmatprep.subr.mxu0 0.0
    %540 = vmatpush1.msra.mxu0 0.0
    %541 = vmatprep.subr.mxu0 0.0
    %542 = vmatpush1.msra.mxu0 0.0
    %543 = vmatprep.subr.mxu0 0.0
    %544 = vmatpush1.msra.mxu0 0.0
    %545 = vmatprep.subr.mxu0 0.0
    %546 = vmatpush1.msra.mxu0 0.0
    %547 = vmatprep.subr.mxu0 0.0
    %548 = vmatpush1.msra.mxu0 0.0
    %549 = vmatprep.subr.mxu0 0.0
    %550 = vmatpush1.msra.mxu0 0.0
    %551 = vmatprep.subr.mxu0 0.0
    %552 = vmatpush1.msra.mxu0 0.0
    %553 = vmatprep.mubr.f32.mxu0 0.0
    %554 = vmatmul.mubr.f32.gmra.mrb[0].mxu0 %v478
    %v555 = vpop.f32.mrb[0].mxu0
    %v556 = vadd.f32 0.0, %v555
    %v557 = vpop.f32.mrb[0].mxu0
    %558 = vmatprep.mubr.f32.mxu0 0.0
    %559 = vmatmul.mubr.f32.gmra.mrb[0].mxu0 %v481
    %v560 = vpop.f32.mrb[0].mxu0
    %v561 = vadd.f32 0.0, %v560
    %v562 = vpop.f32.mrb[0].mxu0
    %563 = vmatprep.mubr.f32.mxu0 0.0
    %564 = vmatmul.mubr.f32.gmra.mrb[0].mxu0 %v484
    %v565 = vpop.f32.mrb[0].mxu0
    %v566 = vadd.f32 0.0, %v565
    %v567 = vpop.f32.mrb[0].mxu0
    %568 = vmatprep.mubr.f32.mxu0 0.0
    %569 = vmatmul.mubr.f32.gmra.mrb[0].mxu0 %v487
    %v570 = vpop.f32.mrb[0].mxu0
    %v571 = vadd.f32 0.0, %v570
    %v572 = vpop.f32.mrb[0].mxu0
    %573 = vdwg.mxu0
    %v574 = vmul.f32 %v556, %v130
    %v575 = vmul.f32 %v561, %v130
    %v576 = vmul.f32 %v566, %v130
    %v577 = vmul.f32 %v571, %v130
    %v578 = vadd.f32 %v574, %v140
    %v579 = vadd.f32 %v575, %v140
    %v580 = vadd.f32 %v576, %v140
    %v581 = vadd.f32 %v577, %v140
    %v582 = vsub.f32 %v578, %v468
    %v583 = vsub.f32 %v579, %v469
    %v584 = vsub.f32 %v580, %v470
    %v585 = vsub.f32 %v581, %v471
    %v586 = vmul.f32 %v582, 0.5
    %v587 = vmul.f32 %v583, 0.5
    %v588 = vmul.f32 %v584, 0.5
    %v589 = vmul.f32 %v585, 0.5
    %v590 = vadd.f32 %v468, %v586
    %v591 = vadd.f32 %v469, %v587
    %v592 = vadd.f32 %v470, %v588
    %v593 = vadd.f32 %v471, %v589
    %vm594 = vcmp.ge.f32.partialorder %v590, 1.0
    %vm595 = vcmp.ge.f32.partialorder %v591, 1.0
    %vm596 = vcmp.ge.f32.partialorder %v592, 1.0
    %vm597 = vcmp.ge.f32.partialorder %v593, 1.0
    %v598 = vsel %vm594, 1, 0
    %v599 = vsel %vm595, 1, 0
    %v600 = vsel %vm596, 1, 0
    %v601 = vsel %vm597, 1, 0
    %v602 = vcvt.s32.f32 %v598
    %v603 = vcvt.s32.f32 %v599
    %v604 = vcvt.s32.f32 %v600
    %v605 = vcvt.s32.f32 %v601
    %s606 = scalar_lea.vmem [#allocation2], 96
    %607 = vst.msk [vmem:[%s606] sm:$0xff] %vm28, %v602
    %608 = vst.msk [vmem:[%s606 + $0x8] sm:$0xff] %vm28, %v603
    %609 = vst.msk [vmem:[%s606 + $0x10] sm:$0xff] %vm28, %v604
    %610 = vst.msk [vmem:[%s606 + $0x18] sm:$0xff] %vm28, %v605
    // Predicated region
    $region18: #{ssa_forward.5} parent=1 // pred_check
      _
    $region19: #{ssa_forward.5} parent=1 // pred_check_branch
      %612 = sbr.rel (0) target = $region21
    $region20: #{ssa_forward.5} parent=1 // pred_region
      %s614 = ssub.s32 2048, 2048
      %615 = vsyncadd [#allocation3], %s614
      %s616 = sshll.u32 [#allocation2], 4
      %s617 = int_to_ptr.vmem [resolvable:$true] %s616
      %622 = dma.vmem_to_hbm [thread:$0]  %s617, 2048, %s4, [#allocation3], 128, 128, 8
    $region21: #{ssa_forward.5} parent=1 // pred_fallthru
      _
    // Predicated region
    $region22: #{ssa_forward.5} parent=1 // pred_check
      _
    $region23: #{ssa_forward.5} parent=1 // pred_check_branch
      %624 = sbr.rel (0) target = $region25
    $region24: #{ssa_forward.5} parent=1 // pred_region
      %625 = dma.done [#allocation3], 2048
    $region25: #{ssa_forward.5} parent=1 // pred_fallthru
      _
    %626 = vsyncpa [#allocation3], 1

// kernel: ssa_forward.4
$region0: #{ssa_forward.4}
  #allocation0 [shape = 'u32[]', space=smem, size = 0x4, offset = 0x4, fixed_abs, tag = 'smem constant byte address 0x4 - core index']
  #allocation1 [shape = 'u32[144,128]{1,0:T(1,128)}', space=vmem, size = 0x12000, scoped, tag = 'internal scratch']
  #allocation8 [shape = 's32[]', space=sflag, size = 0x4, offset = 0, fixed_abs, tag = 'sflag constant byte address 0x0 - dummy sync flag']
  %s0 = inlined_call_operand.vmem [shape: bf16[4,16,16,4], index: 0, kind: input, shape index: {}]
  %s1 = inlined_call_operand.vmem [shape: bf16[4,16,16,4], index: 1, kind: input, shape index: {}]
  %s2 = inlined_call_operand.vmem [shape: bf16[4,16,16,4], index: 2, kind: input, shape index: {}]
  %s3 = inlined_call_operand.hbm [shape: f32[4,16,16,16], index: 3, kind: output, shape index: {0}]
  %s4 = inlined_call_operand.vmem [shape: f32[4,16,16,4], index: 4, kind: output, shape index: {1}]
  %5 = xla_tuple %s3, %s4
  %s6 = sld [smem:[#allocation0]]
  $region210: #{ssa_forward.4} parent=0
    _
  %s8 = ssub.s32 1, %s6
  %s9 = scalar_select 0, %s8, %s6
  $region1: #{ssa_forward.4} parent=0
    #allocation2 [shape = 'u8[262144]{0}', space=vmem, size = 0x40000, scoped, tag = 'input window, operand 0']
    #allocation3 [shape = 'u8[262144]{0}', space=vmem, size = 0x40000, scoped, tag = 'input window, operand 1']
    #allocation4 [shape = 'u8[262144]{0}', space=vmem, size = 0x40000, scoped, tag = 'input window, operand 2']
    #allocation5 [shape = 'u8[524288]{0}', space=vmem, size = 0x80000, scoped, tag = 'output window, operand 0']
    #allocation6 [shape = 's32[2]{0}', space=sflag, size = 0x8, scoped, tag = 'scoped memory for ssa_forward.4']
    #allocation7 [shape = 'u8[524288]{0}', space=vmem, size = 0x80000, scoped, tag = 'output window, operand 1']
    %10 = vsyncpa [#allocation6], 0
    %s11 = scalar_lea.sflag [#allocation6], 1
    %12 = vsyncpa %s11, 0
    loop: start=0, step=1, limit=4
    $region2: #{ssa_forward.4} parent=1 // loop_pre_header
      _
    $region3: #{ssa_forward.4} parent=1 // loop_header
      %s14 = sphi 0, %s18
      %p15 = scmp.ge.s32.totalorder %s14, 4
      %s24 = sphi 0, %s26
      %s27 = sphi 0, %s24
      %s28 = sphi 0, %s27
      %s44 = sphi 0, %s28
      %s50 = sphi 0, %s52
      %s53 = sphi 0, %s50
      %s54 = sphi 0, %s53
      %s70 = sphi 0, %s54
      %s76 = sphi 0, %s78
      %s79 = sphi 0, %s76
      %s80 = sphi 0, %s79
      %s96 = sphi 0, %s80
      %s102 = sphi 0, %s104
      %s105 = sphi 0, %s102
      %s106 = sphi 0, %s105
      %s122 = sphi 0, %s106
      %s128 = sphi 0, %s130
      %s131 = sphi 0, %s128
      %s132 = sphi 0, %s131
      %s148 = sphi 0, %s132
    $region4: #{ssa_forward.4} parent=1 // loop_header_branch
      %17 = sbr.rel (%p15) target = $region8
    $region5: #{ssa_forward.4} parent=1 // loop_body
      %s19 = ssub.s32 %s14, 1
      %s20 = ssub.s32 %s14, 2
      %s21 = sadd.s32 %s14, 1
      %s22 = ssub.s32 %s14, %s21
      %p23 = scmp.eq.s32.totalorder %s22, 0
      %s25 = sadd.s32 %s24, 1
      %s26 = scalar_select %p23, %s24, %s25
      %p29 = pneg %p23
      %p30 = scmp.eq.s32.totalorder %s14, 1
      %p31 = por %p29, %p30
      %p32 = scmp.ne.s32.totalorder %s24, %s27
      %p33 = scmp.eq.s32.totalorder %s14, 0
      %p34 = por %p32, %p33
      %p35 = scmp.ne.s32.totalorder %s24, %s27
      %p36 = scmp.eq.s32.totalorder %s19, 1
      %p37 = por %p35, %p36
      %p38 = scmp.ne.s32.totalorder %s27, %s28
      %p39 = scmp.eq.s32.totalorder %s19, 0
      %p40 = por %p38, %p39
      %p41 = scmp.ne.s32.totalorder %s27, %s28
      %p42 = scmp.eq.s32.totalorder %s20, 1
      %p43 = por %p41, %p42
      %p45 = scmp.ne.s32.totalorder %s28, %s44
      %p46 = scmp.eq.s32.totalorder %s20, 0
      %p47 = por %p45, %p46
      %s48 = ssub.s32 %s14, %s21
      %p49 = scmp.eq.s32.totalorder %s48, 0
      %s51 = sadd.s32 %s50, 1
      %s52 = scalar_select %p49, %s50, %s51
      %p55 = pneg %p49
      %p56 = scmp.eq.s32.totalorder %s14, 1
      %p57 = por %p55, %p56
      %p58 = scmp.ne.s32.totalorder %s50, %s53
      %p59 = scmp.eq.s32.totalorder %s14, 0
      %p60 = por %p58, %p59
      %p61 = scmp.ne.s32.totalorder %s50, %s53
      %p62 = scmp.eq.s32.totalorder %s19, 1
      %p63 = por %p61, %p62
      %p64 = scmp.ne.s32.totalorder %s53, %s54
      %p65 = scmp.eq.s32.totalorder %s19, 0
      %p66 = por %p64, %p65
      %p67 = scmp.ne.s32.totalorder %s53, %s54
      %p68 = scmp.eq.s32.totalorder %s20, 1
      %p69 = por %p67, %p68
      %p71 = scmp.ne.s32.totalorder %s54, %s70
      %p72 = scmp.eq.s32.totalorder %s20, 0
      %p73 = por %p71, %p72
      %s74 = ssub.s32 %s14, %s21
      %p75 = scmp.eq.s32.totalorder %s74, 0
      %s77 = sadd.s32 %s76, 1
      %s78 = scalar_select %p75, %s76, %s77
      %p81 = pneg %p75
      %p82 = scmp.eq.s32.totalorder %s14, 1
      %p83 = por %p81, %p82
      %p84 = scmp.ne.s32.totalorder %s76, %s79
      %p85 = scmp.eq.s32.totalorder %s14, 0
      %p86 = por %p84, %p85
      %p87 = scmp.ne.s32.totalorder %s76, %s79
      %p88 = scmp.eq.s32.totalorder %s19, 1
      %p89 = por %p87, %p88
      %p90 = scmp.ne.s32.totalorder %s79, %s80
      %p91 = scmp.eq.s32.totalorder %s19, 0
      %p92 = por %p90, %p91
      %p93 = scmp.ne.s32.totalorder %s79, %s80
      %p94 = scmp.eq.s32.totalorder %s20, 1
      %p95 = por %p93, %p94
      %p97 = scmp.ne.s32.totalorder %s80, %s96
      %p98 = scmp.eq.s32.totalorder %s20, 0
      %p99 = por %p97, %p98
      %s100 = ssub.s32 %s14, %s21
      %p101 = scmp.eq.s32.totalorder %s100, 0
      %s103 = sadd.s32 %s102, 1
      %s104 = scalar_select %p101, %s102, %s103
      %p107 = pneg %p101
      %p108 = scmp.eq.s32.totalorder %s14, 1
      %p109 = por %p107, %p108
      %p110 = scmp.ne.s32.totalorder %s102, %s105
      %p111 = scmp.eq.s32.totalorder %s14, 0
      %p112 = por %p110, %p111
      %p113 = scmp.ne.s32.totalorder %s102, %s105
      %p114 = scmp.eq.s32.totalorder %s19, 1
      %p115 = por %p113, %p114
      %p116 = scmp.ne.s32.totalorder %s105, %s106
      %p117 = scmp.eq.s32.totalorder %s19, 0
      %p118 = por %p116, %p117
      %p119 = scmp.ne.s32.totalorder %s105, %s106
      %p120 = scmp.eq.s32.totalorder %s20, 1
      %p121 = por %p119, %p120
      %p123 = scmp.ne.s32.totalorder %s106, %s122
      %p124 = scmp.eq.s32.totalorder %s20, 0
      %p125 = por %p123, %p124
      %s126 = ssub.s32 %s14, %s21
      %p127 = scmp.eq.s32.totalorder %s126, 0
      %s129 = sadd.s32 %s128, 1
      %s130 = scalar_select %p127, %s128, %s129
      %p133 = pneg %p127
      %p134 = scmp.eq.s32.totalorder %s14, 1
      %p135 = por %p133, %p134
      %p136 = scmp.ne.s32.totalorder %s128, %s131
      %p137 = scmp.eq.s32.totalorder %s14, 0
      %p138 = por %p136, %p137
      %p139 = scmp.ne.s32.totalorder %s128, %s131
      %p140 = scmp.eq.s32.totalorder %s19, 1
      %p141 = por %p139, %p140
      %p142 = scmp.ne.s32.totalorder %s131, %s132
      %p143 = scmp.eq.s32.totalorder %s19, 0
      %p144 = por %p142, %p143
      %p145 = scmp.ne.s32.totalorder %s131, %s132
      %p146 = scmp.eq.s32.totalorder %s20, 1
      %p147 = por %p145, %p146
      %p149 = scmp.ne.s32.totalorder %s132, %s148
      %p150 = scmp.eq.s32.totalorder %s20, 0
      %p151 = por %p149, %p150
      %p152 = scmp.le.s32.totalorder 1, %s14
      %p153 = scmp.lt.s32.totalorder %s14, 3
      %p154 = pnand %p152, %p153
      %p155 = pneg %p154
      // Predicated region
      $region9: #{ssa_forward.4} parent=5 // pred_check
        _
      $region10: #{ssa_forward.4} parent=5 // pred_check_branch
        %157 = sbr.rel (%p154) target = $region12
      $region11: #{ssa_forward.4} parent=5 // pred_region
        %s158 = ssub.s32 %s14, 1
      $region12: #{ssa_forward.4} parent=5 // pred_fallthru
        _
      %p159 = scmp.lt.s32.totalorder %s14, 2
      // Predicated region
      $region13: #{ssa_forward.4} parent=5 // pred_check
        %p160 = pneg %p159
      $region14: #{ssa_forward.4} parent=5 // pred_check_branch
        %162 = sbr.rel (%p160) target = $region16
      $region15: #{ssa_forward.4} parent=5 // pred_region
        // Predicated region
        $region17: #{ssa_forward.4} parent=15 // pred_check
          %p163 = pneg %p34
        $region18: #{ssa_forward.4} parent=15 // pred_check_branch
          %165 = sbr.rel (%p163) target = $region20
        $region19: #{ssa_forward.4} parent=15 // pred_region
          %s166 = sand.u32 %s24, 1
          %s167 = sand.u32 %s24, 1
          %s168 = smul.addr %s167, 256
          %s169 = scalar_lea.vmem [#allocation2], %s168
          %s170 = smul.u32 8, %s14
          %s171 = smul.addr %s170, 2
          %s172 = smul.addr %s171, 4
          %s173 = scalar_lea.vmem %s0, %s172
          // Predicated region
          $region21: #{ssa_forward.4} parent=19 // pred_check
            _
          $region22: #{ssa_forward.4} parent=19 // pred_check_branch
            %175 = sbr.rel (0) target = $region24
          $region23: #{ssa_forward.4} parent=19 // pred_region
            // Predicated region
            $region25: #{ssa_forward.4} parent=23 // pred_check
              _
            $region26: #{ssa_forward.4} parent=23 // pred_check_branch
              %177 = sbr.rel target = $region28
            $region27: #{ssa_forward.4} parent=23 // pred_region
              // Predicated region
              $region40: #{ssa_forward.4} parent=27 // pred_check
                _
              $region41: #{ssa_forward.4} parent=27 // pred_check_branch
                %318 = sbr.rel (0) target = $region43
              $region42: #{ssa_forward.4} parent=27 // pred_region
                loop: start=0, step=1, limit=1
                $region44: #{ssa_forward.4} parent=42 // loop_pre_header
                  _
                $region45: #{ssa_forward.4} parent=42 // loop_header
                  %s320 = sphi 0, %s324
                  %p321 = scmp.ge.s32.totalorder %s320, 1
                  %s325 = sphi %s173, %s173
                  %s326 = sphi %s169, %s169
                $region46: #{ssa_forward.4} parent=42 // loop_header_branch
                  %323 = sbr.rel (%p321) target = $region50
                $region47: #{ssa_forward.4} parent=42 // loop_body
                  _
                $region48: #{ssa_forward.4} parent=42 // loop_footer
                  %s324 = sadd.s32 1, %s320
                $region49: #{ssa_forward.4} parent=42 // loop_footer_branch
                  %319 = sbr.rel target = $region45
                $region50: #{ssa_forward.4} parent=42 // loop_exit
                  _
                loop: start=0, step=1, limit=1
                $region51: #{ssa_forward.4} parent=42 // loop_pre_header
                  _
                $region52: #{ssa_forward.4} parent=42 // loop_header
                  %s329 = sphi 0, %s333
                  %p330 = scmp.ge.s32.totalorder %s329, 1
                  %s334 = sphi %s173, %s173
                  %s335 = sphi %s169, %s169
                $region53: #{ssa_forward.4} parent=42 // loop_header_branch
                  %332 = sbr.rel (%p330) target = $region57
                $region54: #{ssa_forward.4} parent=42 // loop_body
                  %v336 = vld [vmem:[%s334] sm:$0xf]
                  %337 = vst [vmem:[%s335] sm:$0xf] %v336
                  %v338 = vld [vmem:[%s334 + $0x4] sm:$0xf]
                  %339 = vst [vmem:[%s335 + $0x4] sm:$0xf] %v338
                  %v340 = vld [vmem:[%s334 + $0x8] sm:$0xf]
                  %341 = vst [vmem:[%s335 + $0x8] sm:$0xf] %v340
                  %v342 = vld [vmem:[%s334 + $0xc] sm:$0xf]
                  %343 = vst [vmem:[%s335 + $0xc] sm:$0xf] %v342
                  %v344 = vld [vmem:[%s334 + $0x10] sm:$0xf]
                  %345 = vst [vmem:[%s335 + $0x10] sm:$0xf] %v344
                  %v346 = vld [vmem:[%s334 + $0x14] sm:$0xf]
                  %347 = vst [vmem:[%s335 + $0x14] sm:$0xf] %v346
                  %v348 = vld [vmem:[%s334 + $0x18] sm:$0xf]
                  %349 = vst [vmem:[%s335 + $0x18] sm:$0xf] %v348
                  %v350 = vld [vmem:[%s334 + $0x1c] sm:$0xf]
                  %351 = vst [vmem:[%s335 + $0x1c] sm:$0xf] %v350
                  %v352 = vld [vmem:[%s334 + $0x20] sm:$0xf]
                  %353 = vst [vmem:[%s335 + $0x20] sm:$0xf] %v352
                  %v354 = vld [vmem:[%s334 + $0x24] sm:$0xf]
                  %355 = vst [vmem:[%s335 + $0x24] sm:$0xf] %v354
                  %v356 = vld [vmem:[%s334 + $0x28] sm:$0xf]
                  %357 = vst [vmem:[%s335 + $0x28] sm:$0xf] %v356
                  %v358 = vld [vmem:[%s334 + $0x2c] sm:$0xf]
                  %359 = vst [vmem:[%s335 + $0x2c] sm:$0xf] %v358
                  %v360 = vld [vmem:[%s334 + $0x30] sm:$0xf]
                  %361 = vst [vmem:[%s335 + $0x30] sm:$0xf] %v360
                  %v362 = vld [vmem:[%s334 + $0x34] sm:$0xf]
                  %363 = vst [vmem:[%s335 + $0x34] sm:$0xf] %v362
                  %v364 = vld [vmem:[%s334 + $0x38] sm:$0xf]
                  %365 = vst [vmem:[%s335 + $0x38] sm:$0xf] %v364
                  %v366 = vld [vmem:[%s334 + $0x3c] sm:$0xf]
                  %367 = vst [vmem:[%s335 + $0x3c] sm:$0xf] %v366
                  %v368 = vld [vmem:[%s334 + $0x80] sm:$0xf]
                  %369 = vst [vmem:[%s335 + $0x40] sm:$0xf] %v368
                  %v370 = vld [vmem:[%s334 + $0x84] sm:$0xf]
                  %371 = vst [vmem:[%s335 + $0x44] sm:$0xf] %v370
                  %v372 = vld [vmem:[%s334 + $0x88] sm:$0xf]
                  %373 = vst [vmem:[%s335 + $0x48] sm:$0xf] %v372
                  %v374 = vld [vmem:[%s334 + $0x8c] sm:$0xf]
                  %375 = vst [vmem:[%s335 + $0x4c] sm:$0xf] %v374
                  %v376 = vld [vmem:[%s334 + $0x90] sm:$0xf]
                  %377 = vst [vmem:[%s335 + $0x50] sm:$0xf] %v376
                  %v378 = vld [vmem:[%s334 + $0x94] sm:$0xf]
                  %379 = vst [vmem:[%s335 + $0x54] sm:$0xf] %v378
                  %v380 = vld [vmem:[%s334 + $0x98] sm:$0xf]
                  %381 = vst [vmem:[%s335 + $0x58] sm:$0xf] %v380
                  %v382 = vld [vmem:[%s334 + $0x9c] sm:$0xf]
                  %383 = vst [vmem:[%s335 + $0x5c] sm:$0xf] %v382
                  %v384 = vld [vmem:[%s334 + $0xa0] sm:$0xf]
                  %385 = vst [vmem:[%s335 + $0x60] sm:$0xf] %v384
                  %v386 = vld [vmem:[%s334 + $0xa4] sm:$0xf]
                  %387 = vst [vmem:[%s335 + $0x64] sm:$0xf] %v386
                  %v388 = vld [vmem:[%s334 + $0xa8] sm:$0xf]
                  %389 = vst [vmem:[%s335 + $0x68] sm:$0xf] %v388
                  %v390 = vld [vmem:[%s334 + $0xac] sm:$0xf]
                  %391 = vst [vmem:[%s335 + $0x6c] sm:$0xf] %v390
                  %v392 = vld [vmem:[%s334 + $0xb0] sm:$0xf]
                  %393 = vst [vmem:[%s335 + $0x70] sm:$0xf] %v392
                  %v394 = vld [vmem:[%s334 + $0xb4] sm:$0xf]
                  %395 = vst [vmem:[%s335 + $0x74] sm:$0xf] %v394
                  %v396 = vld [vmem:[%s334 + $0xb8] sm:$0xf]
                  %397 = vst [vmem:[%s335 + $0x78] sm:$0xf] %v396
                  %v398 = vld [vmem:[%s334 + $0xbc] sm:$0xf]
                  %399 = vst [vmem:[%s335 + $0x7c] sm:$0xf] %v398
                  %v400 = vld [vmem:[%s334 + $0x100] sm:$0xf]
                  %401 = vst [vmem:[%s335 + $0x80] sm:$0xf] %v400
                  %v402 = vld [vmem:[%s334 + $0x104] sm:$0xf]
                  %403 = vst [vmem:[%s335 + $0x84] sm:$0xf] %v402
                  %v404 = vld [vmem:[%s334 + $0x108] sm:$0xf]
                  %405 = vst [vmem:[%s335 + $0x88] sm:$0xf] %v404
                  %v406 = vld [vmem:[%s334 + $0x10c] sm:$0xf]
                  %407 = vst [vmem:[%s335 + $0x8c] sm:$0xf] %v406
                  %v408 = vld [vmem:[%s334 + $0x110] sm:$0xf]
                  %409 = vst [vmem:[%s335 + $0x90] sm:$0xf] %v408
                  %v410 = vld [vmem:[%s334 + $0x114] sm:$0xf]
                  %411 = vst [vmem:[%s335 + $0x94] sm:$0xf] %v410
                  %v412 = vld [vmem:[%s334 + $0x118] sm:$0xf]
                  %413 = vst [vmem:[%s335 + $0x98] sm:$0xf] %v412
                  %v414 = vld [vmem:[%s334 + $0x11c] sm:$0xf]
                  %415 = vst [vmem:[%s335 + $0x9c] sm:$0xf] %v414
                  %v416 = vld [vmem:[%s334 + $0x120] sm:$0xf]
                  %417 = vst [vmem:[%s335 + $0xa0] sm:$0xf] %v416
                  %v418 = vld [vmem:[%s334 + $0x124] sm:$0xf]
                  %419 = vst [vmem:[%s335 + $0xa4] sm:$0xf] %v418
                  %v420 = vld [vmem:[%s334 + $0x128] sm:$0xf]
                  %421 = vst [vmem:[%s335 + $0xa8] sm:$0xf] %v420
                  %v422 = vld [vmem:[%s334 + $0x12c] sm:$0xf]
                  %423 = vst [vmem:[%s335 + $0xac] sm:$0xf] %v422
                  %v424 = vld [vmem:[%s334 + $0x130] sm:$0xf]
                  %425 = vst [vmem:[%s335 + $0xb0] sm:$0xf] %v424
                  %v426 = vld [vmem:[%s334 + $0x134] sm:$0xf]
                  %427 = vst [vmem:[%s335 + $0xb4] sm:$0xf] %v426
                  %v428 = vld [vmem:[%s334 + $0x138] sm:$0xf]
                  %429 = vst [vmem:[%s335 + $0xb8] sm:$0xf] %v428
                  %v430 = vld [vmem:[%s334 + $0x13c] sm:$0xf]
                  %431 = vst [vmem:[%s335 + $0xbc] sm:$0xf] %v430
                  %v432 = vld [vmem:[%s334 + $0x180] sm:$0xf]
                  %433 = vst [vmem:[%s335 + $0xc0] sm:$0xf] %v432
                  %v434 = vld [vmem:[%s334 + $0x184] sm:$0xf]
                  %435 = vst [vmem:[%s335 + $0xc4] sm:$0xf] %v434
                  %v436 = vld [vmem:[%s334 + $0x188] sm:$0xf]
                  %437 = vst [vmem:[%s335 + $0xc8] sm:$0xf] %v436
                  %v438 = vld [vmem:[%s334 + $0x18c] sm:$0xf]
                  %439 = vst [vmem:[%s335 + $0xcc] sm:$0xf] %v438
                  %v440 = vld [vmem:[%s334 + $0x190] sm:$0xf]
                  %441 = vst [vmem:[%s335 + $0xd0] sm:$0xf] %v440
                  %v442 = vld [vmem:[%s334 + $0x194] sm:$0xf]
                  %443 = vst [vmem:[%s335 + $0xd4] sm:$0xf] %v442
                  %v444 = vld [vmem:[%s334 + $0x198] sm:$0xf]
                  %445 = vst [vmem:[%s335 + $0xd8] sm:$0xf] %v444
                  %v446 = vld [vmem:[%s334 + $0x19c] sm:$0xf]
                  %447 = vst [vmem:[%s335 + $0xdc] sm:$0xf] %v446
                  %v448 = vld [vmem:[%s334 + $0x1a0] sm:$0xf]
                  %449 = vst [vmem:[%s335 + $0xe0] sm:$0xf] %v448
                  %v450 = vld [vmem:[%s334 + $0x1a4] sm:$0xf]
                  %451 = vst [vmem:[%s335 + $0xe4] sm:$0xf] %v450
                  %v452 = vld [vmem:[%s334 + $0x1a8] sm:$0xf]
                  %453 = vst [vmem:[%s335 + $0xe8] sm:$0xf] %v452
                  %v454 = vld [vmem:[%s334 + $0x1ac] sm:$0xf]
                  %455 = vst [vmem:[%s335 + $0xec] sm:$0xf] %v454
                  %v456 = vld [vmem:[%s334 + $0x1b0] sm:$0xf]
                  %457 = vst [vmem:[%s335 + $0xf0] sm:$0xf] %v456
                  %v458 = vld [vmem:[%s334 + $0x1b4] sm:$0xf]
                  %459 = vst [vmem:[%s335 + $0xf4] sm:$0xf] %v458
                  %v460 = vld [vmem:[%s334 + $0x1b8] sm:$0xf]
                  %461 = vst [vmem:[%s335 + $0xf8] sm:$0xf] %v460
                  %v462 = vld [vmem:[%s334 + $0x1bc] sm:$0xf]
                  %463 = vst [vmem:[%s335 + $0xfc] sm:$0xf] %v462
                $region55: #{ssa_forward.4} parent=42 // loop_footer
                  %s333 = sadd.s32 1, %s329
                $region56: #{ssa_forward.4} parent=42 // loop_footer_branch
                  %328 = sbr.rel target = $region52
                $region57: #{ssa_forward.4} parent=42 // loop_exit
                  _
              $region43: #{ssa_forward.4} parent=27 // pred_fallthru
                _
            $region28: #{ssa_forward.4} parent=23 // pred_fallthru
              _
            // Predicated region
            $region29: #{ssa_forward.4} parent=23 // pred_check
              _
            $region30: #{ssa_forward.4} parent=23 // pred_check_branch
              %179 = sbr.rel (0) target = $region32
            $region31: #{ssa_forward.4} parent=23 // pred_region
              loop: start=0, step=1, limit=1
              $region33: #{ssa_forward.4} parent=31 // loop_pre_header
                _
              $region34: #{ssa_forward.4} parent=31 // loop_header
                %s182 = sphi 0, %s186
                %p183 = scmp.ge.s32.totalorder %s182, 1
                %s187 = sphi %s173, %s173
                %s188 = sphi %s169, %s169
              $region35: #{ssa_forward.4} parent=31 // loop_header_branch
                %185 = sbr.rel (%p183) target = $region39
              $region36: #{ssa_forward.4} parent=31 // loop_body
                %v189 = vld [vmem:[%s187] sm:$0xf]
                %190 = vst [vmem:[%s188] sm:$0xf] %v189
                %v191 = vld [vmem:[%s187 + $0x4] sm:$0xf]
                %192 = vst [vmem:[%s188 + $0x4] sm:$0xf] %v191
                %v193 = vld [vmem:[%s187 + $0x8] sm:$0xf]
                %194 = vst [vmem:[%s188 + $0x8] sm:$0xf] %v193
                %v195 = vld [vmem:[%s187 + $0xc] sm:$0xf]
                %196 = vst [vmem:[%s188 + $0xc] sm:$0xf] %v195
                %v197 = vld [vmem:[%s187 + $0x10] sm:$0xf]
                %198 = vst [vmem:[%s188 + $0x10] sm:$0xf] %v197
                %v199 = vld [vmem:[%s187 + $0x14] sm:$0xf]
                %200 = vst [vmem:[%s188 + $0x14] sm:$0xf] %v199
                %v201 = vld [vmem:[%s187 + $0x18] sm:$0xf]
                %202 = vst [vmem:[%s188 + $0x18] sm:$0xf] %v201
                %v203 = vld [vmem:[%s187 + $0x1c] sm:$0xf]
                %204 = vst [vmem:[%s188 + $0x1c] sm:$0xf] %v203
                %v205 = vld [vmem:[%s187 + $0x20] sm:$0xf]
                %206 = vst [vmem:[%s188 + $0x20] sm:$0xf] %v205
                %v207 = vld [vmem:[%s187 + $0x24] sm:$0xf]
                %208 = vst [vmem:[%s188 + $0x24] sm:$0xf] %v207
                %v209 = vld [vmem:[%s187 + $0x28] sm:$0xf]
                %210 = vst [vmem:[%s188 + $0x28] sm:$0xf] %v209
                %v211 = vld [vmem:[%s187 + $0x2c] sm:$0xf]
                %212 = vst [vmem:[%s188 + $0x2c] sm:$0xf] %v211
                %v213 = vld [vmem:[%s187 + $0x30] sm:$0xf]
                %214 = vst [vmem:[%s188 + $0x30] sm:$0xf] %v213
                %v215 = vld [vmem:[%s187 + $0x34] sm:$0xf]
                %216 = vst [vmem:[%s188 + $0x34] sm:$0xf] %v215
                %v217 = vld [vmem:[%s187 + $0x38] sm:$0xf]
                %218 = vst [vmem:[%s188 + $0x38] sm:$0xf] %v217
                %v219 = vld [vmem:[%s187 + $0x3c] sm:$0xf]
                %220 = vst [vmem:[%s188 + $0x3c] sm:$0xf] %v219
                %v221 = vld [vmem:[%s187 + $0x80] sm:$0xf]
                %222 = vst [vmem:[%s188 + $0x40] sm:$0xf] %v221
                %v223 = vld [vmem:[%s187 + $0x84] sm:$0xf]
                %224 = vst [vmem:[%s188 + $0x44] sm:$0xf] %v223
                %v225 = vld [vmem:[%s187 + $0x88] sm:$0xf]
                %226 = vst [vmem:[%s188 + $0x48] sm:$0xf] %v225
                %v227 = vld [vmem:[%s187 + $0x8c] sm:$0xf]
                %228 = vst [vmem:[%s188 + $0x4c] sm:$0xf] %v227
                %v229 = vld [vmem:[%s187 + $0x90] sm:$0xf]
                %230 = vst [vmem:[%s188 + $0x50] sm:$0xf] %v229
                %v231 = vld [vmem:[%s187 + $0x94] sm:$0xf]
                %232 = vst [vmem:[%s188 + $0x54] sm:$0xf] %v231
                %v233 = vld [vmem:[%s187 + $0x98] sm:$0xf]
                %234 = vst [vmem:[%s188 + $0x58] sm:$0xf] %v233
                %v235 = vld [vmem:[%s187 + $0x9c] sm:$0xf]
                %236 = vst [vmem:[%s188 + $0x5c] sm:$0xf] %v235
                %v237 = vld [vmem:[%s187 + $0xa0] sm:$0xf]
                %238 = vst [vmem:[%s188 + $0x60] sm:$0xf] %v237
                %v239 = vld [vmem:[%s187 + $0xa4] sm:$0xf]
                %240 = vst [vmem:[%s188 + $0x64] sm:$0xf] %v239
                %v241 = vld [vmem:[%s187 + $0xa8] sm:$0xf]
                %242 = vst [vmem:[%s188 + $0x68] sm:$0xf] %v241
                %v243 = vld [vmem:[%s187 + $0xac] sm:$0xf]
                %244 = vst [vmem:[%s188 + $0x6c] sm:$0xf] %v243
                %v245 = vld [vmem:[%s187 + $0xb0] sm:$0xf]
                %246 = vst [vmem:[%s188 + $0x70] sm:$0xf] %v245
                %v247 = vld [vmem:[%s187 + $0xb4] sm:$0xf]
                %248 = vst [vmem:[%s188 + $0x74] sm:$0xf] %v247
                %v249 = vld [vmem:[%s187 + $0xb8] sm:$0xf]
                %250 = vst [vmem:[%s188 + $0x78] sm:$0xf] %v249
                %v251 = vld [vmem:[%s187 + $0xbc] sm:$0xf]
                %252 = vst [vmem:[%s188 + $0x7c] sm:$0xf] %v251
                %v253 = vld [vmem:[%s187 + $0x100] sm:$0xf]
                %254 = vst [vmem:[%s188 + $0x80] sm:$0xf] %v253
                %v255 = vld [vmem:[%s187 + $0x104] sm:$0xf]
                %256 = vst [vmem:[%s188 + $0x84] sm:$0xf] %v255
                %v257 = vld [vmem:[%s187 + $0x108] sm:$0xf]
                %258 = vst [vmem:[%s188 + $0x88] sm:$0xf] %v257
                %v259 = vld [vmem:[%s187 + $0x10c] sm:$0xf]
                %260 = vst [vmem:[%s188 + $0x8c] sm:$0xf] %v259
                %v261 = vld [vmem:[%s187 + $0x110] sm:$0xf]
                %262 = vst [vmem:[%s188 + $0x90] sm:$0xf] %v261
                %v263 = vld [vmem:[%s187 + $0x114] sm:$0xf]
                %264 = vst [vmem:[%s188 + $0x94] sm:$0xf] %v263
                %v265 = vld [vmem:[%s187 + $0x118] sm:$0xf]
                %266 = vst [vmem:[%s188 + $0x98] sm:$0xf] %v265
                %v267 = vld [vmem:[%s187 + $0x11c] sm:$0xf]
                %268 = vst [vmem:[%s188 + $0x9c] sm:$0xf] %v267
                %v269 = vld [vmem:[%s187 + $0x120] sm:$0xf]
                %270 = vst [vmem:[%s188 + $0xa0] sm:$0xf] %v269
                %v271 = vld [vmem:[%s187 + $0x124] sm:$0xf]
                %272 = vst [vmem:[%s188 + $0xa4] sm:$0xf] %v271
                %v273 = vld [vmem:[%s187 + $0x128] sm:$0xf]
                %274 = vst [vmem:[%s188 + $0xa8] sm:$0xf] %v273
                %v275 = vld [vmem:[%s187 + $0x12c] sm:$0xf]
                %276 = vst [vmem:[%s188 + $0xac] sm:$0xf] %v275
                %v277 = vld [vmem:[%s187 + $0x130] sm:$0xf]
                %278 = vst [vmem:[%s188 + $0xb0] sm:$0xf] %v277
                %v279 = vld [vmem:[%s187 + $0x134] sm:$0xf]
                %280 = vst [vmem:[%s188 + $0xb4] sm:$0xf] %v279
                %v281 = vld [vmem:[%s187 + $0x138] sm:$0xf]
                %282 = vst [vmem:[%s188 + $0xb8] sm:$0xf] %v281
                %v283 = vld [vmem:[%s187 + $0x13c] sm:$0xf]
                %284 = vst [vmem:[%s188 + $0xbc] sm:$0xf] %v283
                %v285 = vld [vmem:[%s187 + $0x180] sm:$0xf]
                %286 = vst [vmem:[%s188 + $0xc0] sm:$0xf] %v285
                %v287 = vld [vmem:[%s187 + $0x184] sm:$0xf]
                %288 = vst [vmem:[%s188 + $0xc4] sm:$0xf] %v287
                %v289 = vld [vmem:[%s187 + $0x188] sm:$0xf]
                %290 = vst [vmem:[%s188 + $0xc8] sm:$0xf] %v289
                %v291 = vld [vmem:[%s187 + $0x18c] sm:$0xf]
                %292 = vst [vmem:[%s188 + $0xcc] sm:$0xf] %v291
                %v293 = vld [vmem:[%s187 + $0x190] sm:$0xf]
                %294 = vst [vmem:[%s188 + $0xd0] sm:$0xf] %v293
                %v295 = vld [vmem:[%s187 + $0x194] sm:$0xf]
                %296 = vst [vmem:[%s188 + $0xd4] sm:$0xf] %v295
                %v297 = vld [vmem:[%s187 + $0x198] sm:$0xf]
                %298 = vst [vmem:[%s188 + $0xd8] sm:$0xf] %v297
                %v299 = vld [vmem:[%s187 + $0x19c] sm:$0xf]
                %300 = vst [vmem:[%s188 + $0xdc] sm:$0xf] %v299
                %v301 = vld [vmem:[%s187 + $0x1a0] sm:$0xf]
                %302 = vst [vmem:[%s188 + $0xe0] sm:$0xf] %v301
                %v303 = vld [vmem:[%s187 + $0x1a4] sm:$0xf]
                %304 = vst [vmem:[%s188 + $0xe4] sm:$0xf] %v303
                %v305 = vld [vmem:[%s187 + $0x1a8] sm:$0xf]
                %306 = vst [vmem:[%s188 + $0xe8] sm:$0xf] %v305
                %v307 = vld [vmem:[%s187 + $0x1ac] sm:$0xf]
                %308 = vst [vmem:[%s188 + $0xec] sm:$0xf] %v307
                %v309 = vld [vmem:[%s187 + $0x1b0] sm:$0xf]
                %310 = vst [vmem:[%s188 + $0xf0] sm:$0xf] %v309
                %v311 = vld [vmem:[%s187 + $0x1b4] sm:$0xf]
                %312 = vst [vmem:[%s188 + $0xf4] sm:$0xf] %v311
                %v313 = vld [vmem:[%s187 + $0x1b8] sm:$0xf]
                %314 = vst [vmem:[%s188 + $0xf8] sm:$0xf] %v313
                %v315 = vld [vmem:[%s187 + $0x1bc] sm:$0xf]
                %316 = vst [vmem:[%s188 + $0xfc] sm:$0xf] %v315
              $region37: #{ssa_forward.4} parent=31 // loop_footer
                %s186 = sadd.s32 1, %s182
              $region38: #{ssa_forward.4} parent=31 // loop_footer_branch
                %181 = sbr.rel target = $region34
              $region39: #{ssa_forward.4} parent=31 // loop_exit
                _
            $region32: #{ssa_forward.4} parent=23 // pred_fallthru
              _
          $region24: #{ssa_forward.4} parent=19 // pred_fallthru
            _
          %464 = vnop
        $region20: #{ssa_forward.4} parent=15 // pred_fallthru
          _
        // Predicated region
        $region58: #{ssa_forward.4} parent=15 // pred_check
          %p465 = pneg %p60
        $region59: #{ssa_forward.4} parent=15 // pred_check_branch
          %467 = sbr.rel (%p465) target = $region61
        $region60: #{ssa_forward.4} parent=15 // pred_region
          %s468 = sand.u32 %s50, 1
          %s469 = sand.u32 %s50, 1
          %s470 = smul.addr %s469, 256
          %s471 = scalar_lea.vmem [#allocation3], %s470
          %s472 = smul.u32 8, %s14
          %s473 = smul.addr %s472, 2
          %s474 = smul.addr %s473, 4
          %s475 = scalar_lea.vmem %s1, %s474
          // Predicated region
          $region62: #{ssa_forward.4} parent=60 // pred_check
            _
          $region63: #{ssa_forward.4} parent=60 // pred_check_branch
            %477 = sbr.rel (0) target = $region65
          $region64: #{ssa_forward.4} parent=60 // pred_region
            // Predicated region
            $region66: #{ssa_forward.4} parent=64 // pred_check
              _
            $region67: #{ssa_forward.4} parent=64 // pred_check_branch
              %479 = sbr.rel target = $region69
            $region68: #{ssa_forward.4} parent=64 // pred_region
              // Predicated region
              $region81: #{ssa_forward.4} parent=68 // pred_check
                _
              $region82: #{ssa_forward.4} parent=68 // pred_check_branch
                %620 = sbr.rel (0) target = $region84
              $region83: #{ssa_forward.4} parent=68 // pred_region
                loop: start=0, step=1, limit=1
                $region85: #{ssa_forward.4} parent=83 // loop_pre_header
                  _
                $region86: #{ssa_forward.4} parent=83 // loop_header
                  %s622 = sphi 0, %s626
                  %p623 = scmp.ge.s32.totalorder %s622, 1
                  %s627 = sphi %s475, %s475
                  %s628 = sphi %s471, %s471
                $region87: #{ssa_forward.4} parent=83 // loop_header_branch
                  %625 = sbr.rel (%p623) target = $region91
                $region88: #{ssa_forward.4} parent=83 // loop_body
                  _
                $region89: #{ssa_forward.4} parent=83 // loop_footer
                  %s626 = sadd.s32 1, %s622
                $region90: #{ssa_forward.4} parent=83 // loop_footer_branch
                  %621 = sbr.rel target = $region86
                $region91: #{ssa_forward.4} parent=83 // loop_exit
                  _
                loop: start=0, step=1, limit=1
                $region92: #{ssa_forward.4} parent=83 // loop_pre_header
                  _
                $region93: #{ssa_forward.4} parent=83 // loop_header
                  %s631 = sphi 0, %s635
                  %p632 = scmp.ge.s32.totalorder %s631, 1
                  %s636 = sphi %s475, %s475
                  %s637 = sphi %s471, %s471
                $region94: #{ssa_forward.4} parent=83 // loop_header_branch
                  %634 = sbr.rel (%p632) target = $region98
                $region95: #{ssa_forward.4} parent=83 // loop_body
                  %v638 = vld [vmem:[%s636] sm:$0xf]
                  %639 = vst [vmem:[%s637] sm:$0xf] %v638
                  %v640 = vld [vmem:[%s636 + $0x4] sm:$0xf]
                  %641 = vst [vmem:[%s637 + $0x4] sm:$0xf] %v640
                  %v642 = vld [vmem:[%s636 + $0x8] sm:$0xf]
                  %643 = vst [vmem:[%s637 + $0x8] sm:$0xf] %v642
                  %v644 = vld [vmem:[%s636 + $0xc] sm:$0xf]
                  %645 = vst [vmem:[%s637 + $0xc] sm:$0xf] %v644
                  %v646 = vld [vmem:[%s636 + $0x10] sm:$0xf]
                  %647 = vst [vmem:[%s637 + $0x10] sm:$0xf] %v646
                  %v648 = vld [vmem:[%s636 + $0x14] sm:$0xf]
                  %649 = vst [vmem:[%s637 + $0x14] sm:$0xf] %v648
                  %v650 = vld [vmem:[%s636 + $0x18] sm:$0xf]
                  %651 = vst [vmem:[%s637 + $0x18] sm:$0xf] %v650
                  %v652 = vld [vmem:[%s636 + $0x1c] sm:$0xf]
                  %653 = vst [vmem:[%s637 + $0x1c] sm:$0xf] %v652
                  %v654 = vld [vmem:[%s636 + $0x20] sm:$0xf]
                  %655 = vst [vmem:[%s637 + $0x20] sm:$0xf] %v654
                  %v656 = vld [vmem:[%s636 + $0x24] sm:$0xf]
                  %657 = vst [vmem:[%s637 + $0x24] sm:$0xf] %v656
                  %v658 = vld [vmem:[%s636 + $0x28] sm:$0xf]
                  %659 = vst [vmem:[%s637 + $0x28] sm:$0xf] %v658
                  %v660 = vld [vmem:[%s636 + $0x2c] sm:$0xf]
                  %661 = vst [vmem:[%s637 + $0x2c] sm:$0xf] %v660
                  %v662 = vld [vmem:[%s636 + $0x30] sm:$0xf]
                  %663 = vst [vmem:[%s637 + $0x30] sm:$0xf] %v662
                  %v664 = vld [vmem:[%s636 + $0x34] sm:$0xf]
                  %665 = vst [vmem:[%s637 + $0x34] sm:$0xf] %v664
                  %v666 = vld [vmem:[%s636 + $0x38] sm:$0xf]
                  %667 = vst [vmem:[%s637 + $0x38] sm:$0xf] %v666
                  %v668 = vld [vmem:[%s636 + $0x3c] sm:$0xf]
                  %669 = vst [vmem:[%s637 + $0x3c] sm:$0xf] %v668
                  %v670 = vld [vmem:[%s636 + $0x80] sm:$0xf]
                  %671 = vst [vmem:[%s637 + $0x40] sm:$0xf] %v670
                  %v672 = vld [vmem:[%s636 + $0x84] sm:$0xf]
                  %673 = vst [vmem:[%s637 + $0x44] sm:$0xf] %v672
                  %v674 = vld [vmem:[%s636 + $0x88] sm:$0xf]
                  %675 = vst [vmem:[%s637 + $0x48] sm:$0xf] %v674
                  %v676 = vld [vmem:[%s636 + $0x8c] sm:$0xf]
                  %677 = vst [vmem:[%s637 + $0x4c] sm:$0xf] %v676
                  %v678 = vld [vmem:[%s636 + $0x90] sm:$0xf]
                  %679 = vst [vmem:[%s637 + $0x50] sm:$0xf] %v678
                  %v680 = vld [vmem:[%s636 + $0x94] sm:$0xf]
                  %681 = vst [vmem:[%s637 + $0x54] sm:$0xf] %v680
                  %v682 = vld [vmem:[%s636 + $0x98] sm:$0xf]
                  %683 = vst [vmem:[%s637 + $0x58] sm:$0xf] %v682
                  %v684 = vld [vmem:[%s636 + $0x9c] sm:$0xf]
                  %685 = vst [vmem:[%s637 + $0x5c] sm:$0xf] %v684
                  %v686 = vld [vmem:[%s636 + $0xa0] sm:$0xf]
                  %687 = vst [vmem:[%s637 + $0x60] sm:$0xf] %v686
                  %v688 = vld [vmem:[%s636 + $0xa4] sm:$0xf]
                  %689 = vst [vmem:[%s637 + $0x64] sm:$0xf] %v688
                  %v690 = vld [vmem:[%s636 + $0xa8] sm:$0xf]
                  %691 = vst [vmem:[%s637 + $0x68] sm:$0xf] %v690
                  %v692 = vld [vmem:[%s636 + $0xac] sm:$0xf]
                  %693 = vst [vmem:[%s637 + $0x6c] sm:$0xf] %v692
                  %v694 = vld [vmem:[%s636 + $0xb0] sm:$0xf]
                  %695 = vst [vmem:[%s637 + $0x70] sm:$0xf] %v694
                  %v696 = vld [vmem:[%s636 + $0xb4] sm:$0xf]
                  %697 = vst [vmem:[%s637 + $0x74] sm:$0xf] %v696
                  %v698 = vld [vmem:[%s636 + $0xb8] sm:$0xf]
                  %699 = vst [vmem:[%s637 + $0x78] sm:$0xf] %v698
                  %v700 = vld [vmem:[%s636 + $0xbc] sm:$0xf]
                  %701 = vst [vmem:[%s637 + $0x7c] sm:$0xf] %v700
                  %v702 = vld [vmem:[%s636 + $0x100] sm:$0xf]
                  %703 = vst [vmem:[%s637 + $0x80] sm:$0xf] %v702
                  %v704 = vld [vmem:[%s636 + $0x104] sm:$0xf]
                  %705 = vst [vmem:[%s637 + $0x84] sm:$0xf] %v704
                  %v706 = vld [vmem:[%s636 + $0x108] sm:$0xf]
                  %707 = vst [vmem:[%s637 + $0x88] sm:$0xf] %v706
                  %v708 = vld [vmem:[%s636 + $0x10c] sm:$0xf]
                  %709 = vst [vmem:[%s637 + $0x8c] sm:$0xf] %v708
                  %v710 = vld [vmem:[%s636 + $0x110] sm:$0xf]
                  %711 = vst [vmem:[%s637 + $0x90] sm:$0xf] %v710
                  %v712 = vld [vmem:[%s636 + $0x114] sm:$0xf]
                  %713 = vst [vmem:[%s637 + $0x94] sm:$0xf] %v712
                  %v714 = vld [vmem:[%s636 + $0x118] sm:$0xf]
                  %715 = vst [vmem:[%s637 + $0x98] sm:$0xf] %v714
                  %v716 = vld [vmem:[%s636 + $0x11c] sm:$0xf]
                  %717 = vst [vmem:[%s637 + $0x9c] sm:$0xf] %v716
                  %v718 = vld [vmem:[%s636 + $0x120] sm:$0xf]
                  %719 = vst [vmem:[%s637 + $0xa0] sm:$0xf] %v718
                  %v720 = vld [vmem:[%s636 + $0x124] sm:$0xf]
                  %721 = vst [vmem:[%s637 + $0xa4] sm:$0xf] %v720
                  %v722 = vld [vmem:[%s636 + $0x128] sm:$0xf]
                  %723 = vst [vmem:[%s637 + $0xa8] sm:$0xf] %v722
                  %v724 = vld [vmem:[%s636 + $0x12c] sm:$0xf]
                  %725 = vst [vmem:[%s637 + $0xac] sm:$0xf] %v724
                  %v726 = vld [vmem:[%s636 + $0x130] sm:$0xf]
                  %727 = vst [vmem:[%s637 + $0xb0] sm:$0xf] %v726
                  %v728 = vld [vmem:[%s636 + $0x134] sm:$0xf]
                  %729 = vst [vmem:[%s637 + $0xb4] sm:$0xf] %v728
                  %v730 = vld [vmem:[%s636 + $0x138] sm:$0xf]
                  %731 = vst [vmem:[%s637 + $0xb8] sm:$0xf] %v730
                  %v732 = vld [vmem:[%s636 + $0x13c] sm:$0xf]
                  %733 = vst [vmem:[%s637 + $0xbc] sm:$0xf] %v732
                  %v734 = vld [vmem:[%s636 + $0x180] sm:$0xf]
                  %735 = vst [vmem:[%s637 + $0xc0] sm:$0xf] %v734
                  %v736 = vld [vmem:[%s636 + $0x184] sm:$0xf]
                  %737 = vst [vmem:[%s637 + $0xc4] sm:$0xf] %v736
                  %v738 = vld [vmem:[%s636 + $0x188] sm:$0xf]
                  %739 = vst [vmem:[%s637 + $0xc8] sm:$0xf] %v738
                  %v740 = vld [vmem:[%s636 + $0x18c] sm:$0xf]
                  %741 = vst [vmem:[%s637 + $0xcc] sm:$0xf] %v740
                  %v742 = vld [vmem:[%s636 + $0x190] sm:$0xf]
                  %743 = vst [vmem:[%s637 + $0xd0] sm:$0xf] %v742
                  %v744 = vld [vmem:[%s636 + $0x194] sm:$0xf]
                  %745 = vst [vmem:[%s637 + $0xd4] sm:$0xf] %v744
                  %v746 = vld [vmem:[%s636 + $0x198] sm:$0xf]
                  %747 = vst [vmem:[%s637 + $0xd8] sm:$0xf] %v746
                  %v748 = vld [vmem:[%s636 + $0x19c] sm:$0xf]
                  %749 = vst [vmem:[%s637 + $0xdc] sm:$0xf] %v748
                  %v750 = vld [vmem:[%s636 + $0x1a0] sm:$0xf]
                  %751 = vst [vmem:[%s637 + $0xe0] sm:$0xf] %v750
                  %v752 = vld [vmem:[%s636 + $0x1a4] sm:$0xf]
                  %753 = vst [vmem:[%s637 + $0xe4] sm:$0xf] %v752
                  %v754 = vld [vmem:[%s636 + $0x1a8] sm:$0xf]
                  %755 = vst [vmem:[%s637 + $0xe8] sm:$0xf] %v754
                  %v756 = vld [vmem:[%s636 + $0x1ac] sm:$0xf]
                  %757 = vst [vmem:[%s637 + $0xec] sm:$0xf] %v756
                  %v758 = vld [vmem:[%s636 + $0x1b0] sm:$0xf]
                  %759 = vst [vmem:[%s637 + $0xf0] sm:$0xf] %v758
                  %v760 = vld [vmem:[%s636 + $0x1b4] sm:$0xf]
                  %761 = vst [vmem:[%s637 + $0xf4] sm:$0xf] %v760
                  %v762 = vld [vmem:[%s636 + $0x1b8] sm:$0xf]
                  %763 = vst [vmem:[%s637 + $0xf8] sm:$0xf] %v762
                  %v764 = vld [vmem:[%s636 + $0x1bc] sm:$0xf]
                  %765 = vst [vmem:[%s637 + $0xfc] sm:$0xf] %v764
                $region96: #{ssa_forward.4} parent=83 // loop_footer
                  %s635 = sadd.s32 1, %s631
                $region97: #{ssa_forward.4} parent=83 // loop_footer_branch
                  %630 = sbr.rel target = $region93
                $region98: #{ssa_forward.4} parent=83 // loop_exit
                  _
              $region84: #{ssa_forward.4} parent=68 // pred_fallthru
                _
            $region69: #{ssa_forward.4} parent=64 // pred_fallthru
              _
            // Predicated region
            $region70: #{ssa_forward.4} parent=64 // pred_check
              _
            $region71: #{ssa_forward.4} parent=64 // pred_check_branch
              %481 = sbr.rel (0) target = $region73
            $region72: #{ssa_forward.4} parent=64 // pred_region
              loop: start=0, step=1, limit=1
              $region74: #{ssa_forward.4} parent=72 // loop_pre_header
                _
              $region75: #{ssa_forward.4} parent=72 // loop_header
                %s484 = sphi 0, %s488
                %p485 = scmp.ge.s32.totalorder %s484, 1
                %s489 = sphi %s475, %s475
                %s490 = sphi %s471, %s471
              $region76: #{ssa_forward.4} parent=72 // loop_header_branch
                %487 = sbr.rel (%p485) target = $region80
              $region77: #{ssa_forward.4} parent=72 // loop_body
                %v491 = vld [vmem:[%s489] sm:$0xf]
                %492 = vst [vmem:[%s490] sm:$0xf] %v491
                %v493 = vld [vmem:[%s489 + $0x4] sm:$0xf]
                %494 = vst [vmem:[%s490 + $0x4] sm:$0xf] %v493
                %v495 = vld [vmem:[%s489 + $0x8] sm:$0xf]
                %496 = vst [vmem:[%s490 + $0x8] sm:$0xf] %v495
                %v497 = vld [vmem:[%s489 + $0xc] sm:$0xf]
                %498 = vst [vmem:[%s490 + $0xc] sm:$0xf] %v497
                %v499 = vld [vmem:[%s489 + $0x10] sm:$0xf]
                %500 = vst [vmem:[%s490 + $0x10] sm:$0xf] %v499
                %v501 = vld [vmem:[%s489 + $0x14] sm:$0xf]
                %502 = vst [vmem:[%s490 + $0x14] sm:$0xf] %v501
                %v503 = vld [vmem:[%s489 + $0x18] sm:$0xf]
                %504 = vst [vmem:[%s490 + $0x18] sm:$0xf] %v503
                %v505 = vld [vmem:[%s489 + $0x1c] sm:$0xf]
                %506 = vst [vmem:[%s490 + $0x1c] sm:$0xf] %v505
                %v507 = vld [vmem:[%s489 + $0x20] sm:$0xf]
                %508 = vst [vmem:[%s490 + $0x20] sm:$0xf] %v507
                %v509 = vld [vmem:[%s489 + $0x24] sm:$0xf]
                %510 = vst [vmem:[%s490 + $0x24] sm:$0xf] %v509
                %v511 = vld [vmem:[%s489 + $0x28] sm:$0xf]
                %512 = vst [vmem:[%s490 + $0x28] sm:$0xf] %v511
                %v513 = vld [vmem:[%s489 + $0x2c] sm:$0xf]
                %514 = vst [vmem:[%s490 + $0x2c] sm:$0xf] %v513
                %v515 = vld [vmem:[%s489 + $0x30] sm:$0xf]
                %516 = vst [vmem:[%s490 + $0x30] sm:$0xf] %v515
                %v517 = vld [vmem:[%s489 + $0x34] sm:$0xf]
                %518 = vst [vmem:[%s490 + $0x34] sm:$0xf] %v517
                %v519 = vld [vmem:[%s489 + $0x38] sm:$0xf]
                %520 = vst [vmem:[%s490 + $0x38] sm:$0xf] %v519
                %v521 = vld [vmem:[%s489 + $0x3c] sm:$0xf]
                %522 = vst [vmem:[%s490 + $0x3c] sm:$0xf] %v521
                %v523 = vld [vmem:[%s489 + $0x80] sm:$0xf]
                %524 = vst [vmem:[%s490 + $0x40] sm:$0xf] %v523
                %v525 = vld [vmem:[%s489 + $0x84] sm:$0xf]
                %526 = vst [vmem:[%s490 + $0x44] sm:$0xf] %v525
                %v527 = vld [vmem:[%s489 + $0x88] sm:$0xf]
                %528 = vst [vmem:[%s490 + $0x48] sm:$0xf] %v527
                %v529 = vld [vmem:[%s489 + $0x8c] sm:$0xf]
                %530 = vst [vmem:[%s490 + $0x4c] sm:$0xf] %v529
                %v531 = vld [vmem:[%s489 + $0x90] sm:$0xf]
                %532 = vst [vmem:[%s490 + $0x50] sm:$0xf] %v531
                %v533 = vld [vmem:[%s489 + $0x94] sm:$0xf]
                %534 = vst [vmem:[%s490 + $0x54] sm:$0xf] %v533
                %v535 = vld [vmem:[%s489 + $0x98] sm:$0xf]
                %536 = vst [vmem:[%s490 + $0x58] sm:$0xf] %v535
                %v537 = vld [vmem:[%s489 + $0x9c] sm:$0xf]
                %538 = vst [vmem:[%s490 + $0x5c] sm:$0xf] %v537
                %v539 = vld [vmem:[%s489 + $0xa0] sm:$0xf]
                %540 = vst [vmem:[%s490 + $0x60] sm:$0xf] %v539
                %v541 = vld [vmem:[%s489 + $0xa4] sm:$0xf]
                %542 = vst [vmem:[%s490 + $0x64] sm:$0xf] %v541
                %v543 = vld [vmem:[%s489 + $0xa8] sm:$0xf]
                %544 = vst [vmem:[%s490 + $0x68] sm:$0xf] %v543
                %v545 = vld [vmem:[%s489 + $0xac] sm:$0xf]
                %546 = vst [vmem:[%s490 + $0x6c] sm:$0xf] %v545
                %v547 = vld [vmem:[%s489 + $0xb0] sm:$0xf]
                %548 = vst [vmem:[%s490 + $0x70] sm:$0xf] %v547
                %v549 = vld [vmem:[%s489 + $0xb4] sm:$0xf]
                %550 = vst [vmem:[%s490 + $0x74] sm:$0xf] %v549
                %v551 = vld [vmem:[%s489 + $0xb8] sm:$0xf]
                %552 = vst [vmem:[%s490 + $0x78] sm:$0xf] %v551
                %v553 = vld [vmem:[%s489 + $0xbc] sm:$0xf]
                %554 = vst [vmem:[%s490 + $0x7c] sm:$0xf] %v553
                %v555 = vld [vmem:[%s489 + $0x100] sm:$0xf]
                %556 = vst [vmem:[%s490 + $0x80] sm:$0xf] %v555
                %v557 = vld [vmem:[%s489 + $0x104] sm:$0xf]
                %558 = vst [vmem:[%s490 + $0x84] sm:$0xf] %v557
                %v559 = vld [vmem:[%s489 + $0x108] sm:$0xf]
                %560 = vst [vmem:[%s490 + $0x88] sm:$0xf] %v559
                %v561 = vld [vmem:[%s489 + $0x10c] sm:$0xf]
                %562 = vst [vmem:[%s490 + $0x8c] sm:$0xf] %v561
                %v563 = vld [vmem:[%s489 + $0x110] sm:$0xf]
                %564 = vst [vmem:[%s490 + $0x90] sm:$0xf] %v563
                %v565 = vld [vmem:[%s489 + $0x114] sm:$0xf]
                %566 = vst [vmem:[%s490 + $0x94] sm:$0xf] %v565
                %v567 = vld [vmem:[%s489 + $0x118] sm:$0xf]
                %568 = vst [vmem:[%s490 + $0x98] sm:$0xf] %v567
                %v569 = vld [vmem:[%s489 + $0x11c] sm:$0xf]
                %570 = vst [vmem:[%s490 + $0x9c] sm:$0xf] %v569
                %v571 = vld [vmem:[%s489 + $0x120] sm:$0xf]
                %572 = vst [vmem:[%s490 + $0xa0] sm:$0xf] %v571
                %v573 = vld [vmem:[%s489 + $0x124] sm:$0xf]
                %574 = vst [vmem:[%s490 + $0xa4] sm:$0xf] %v573
                %v575 = vld [vmem:[%s489 + $0x128] sm:$0xf]
                %576 = vst [vmem:[%s490 + $0xa8] sm:$0xf] %v575
                %v577 = vld [vmem:[%s489 + $0x12c] sm:$0xf]
                %578 = vst [vmem:[%s490 + $0xac] sm:$0xf] %v577
                %v579 = vld [vmem:[%s489 + $0x130] sm:$0xf]
                %580 = vst [vmem:[%s490 + $0xb0] sm:$0xf] %v579
                %v581 = vld [vmem:[%s489 + $0x134] sm:$0xf]
                %582 = vst [vmem:[%s490 + $0xb4] sm:$0xf] %v581
                %v583 = vld [vmem:[%s489 + $0x138] sm:$0xf]
                %584 = vst [vmem:[%s490 + $0xb8] sm:$0xf] %v583
                %v585 = vld [vmem:[%s489 + $0x13c] sm:$0xf]
                %586 = vst [vmem:[%s490 + $0xbc] sm:$0xf] %v585
                %v587 = vld [vmem:[%s489 + $0x180] sm:$0xf]
                %588 = vst [vmem:[%s490 + $0xc0] sm:$0xf] %v587
                %v589 = vld [vmem:[%s489 + $0x184] sm:$0xf]
                %590 = vst [vmem:[%s490 + $0xc4] sm:$0xf] %v589
                %v591 = vld [vmem:[%s489 + $0x188] sm:$0xf]
                %592 = vst [vmem:[%s490 + $0xc8] sm:$0xf] %v591
                %v593 = vld [vmem:[%s489 + $0x18c] sm:$0xf]
                %594 = vst [vmem:[%s490 + $0xcc] sm:$0xf] %v593
                %v595 = vld [vmem:[%s489 + $0x190] sm:$0xf]
                %596 = vst [vmem:[%s490 + $0xd0] sm:$0xf] %v595
                %v597 = vld [vmem:[%s489 + $0x194] sm:$0xf]
                %598 = vst [vmem:[%s490 + $0xd4] sm:$0xf] %v597
                %v599 = vld [vmem:[%s489 + $0x198] sm:$0xf]
                %600 = vst [vmem:[%s490 + $0xd8] sm:$0xf] %v599
                %v601 = vld [vmem:[%s489 + $0x19c] sm:$0xf]
                %602 = vst [vmem:[%s490 + $0xdc] sm:$0xf] %v601
                %v603 = vld [vmem:[%s489 + $0x1a0] sm:$0xf]
                %604 = vst [vmem:[%s490 + $0xe0] sm:$0xf] %v603
                %v605 = vld [vmem:[%s489 + $0x1a4] sm:$0xf]
                %606 = vst [vmem:[%s490 + $0xe4] sm:$0xf] %v605
                %v607 = vld [vmem:[%s489 + $0x1a8] sm:$0xf]
                %608 = vst [vmem:[%s490 + $0xe8] sm:$0xf] %v607
                %v609 = vld [vmem:[%s489 + $0x1ac] sm:$0xf]
                %610 = vst [vmem:[%s490 + $0xec] sm:$0xf] %v609
                %v611 = vld [vmem:[%s489 + $0x1b0] sm:$0xf]
                %612 = vst [vmem:[%s490 + $0xf0] sm:$0xf] %v611
                %v613 = vld [vmem:[%s489 + $0x1b4] sm:$0xf]
                %614 = vst [vmem:[%s490 + $0xf4] sm:$0xf] %v613
                %v615 = vld [vmem:[%s489 + $0x1b8] sm:$0xf]
                %616 = vst [vmem:[%s490 + $0xf8] sm:$0xf] %v615
                %v617 = vld [vmem:[%s489 + $0x1bc] sm:$0xf]
                %618 = vst [vmem:[%s490 + $0xfc] sm:$0xf] %v617
              $region78: #{ssa_forward.4} parent=72 // loop_footer
                %s488 = sadd.s32 1, %s484
              $region79: #{ssa_forward.4} parent=72 // loop_footer_branch
                %483 = sbr.rel target = $region75
              $region80: #{ssa_forward.4} parent=72 // loop_exit
                _
            $region73: #{ssa_forward.4} parent=64 // pred_fallthru
              _
          $region65: #{ssa_forward.4} parent=60 // pred_fallthru
            _
          %766 = vnop
        $region61: #{ssa_forward.4} parent=15 // pred_fallthru
          _
        // Predicated region
        $region99: #{ssa_forward.4} parent=15 // pred_check
          %p767 = pneg %p86
        $region100: #{ssa_forward.4} parent=15 // pred_check_branch
          %769 = sbr.rel (%p767) target = $region102
        $region101: #{ssa_forward.4} parent=15 // pred_region
          %s770 = sand.u32 %s76, 1
          %s771 = sand.u32 %s76, 1
          %s772 = smul.addr %s771, 256
          %s773 = scalar_lea.vmem [#allocation4], %s772
          %s774 = smul.u32 8, %s14
          %s775 = smul.addr %s774, 2
          %s776 = smul.addr %s775, 4
          %s777 = scalar_lea.vmem %s2, %s776
          // Predicated region
          $region103: #{ssa_forward.4} parent=101 // pred_check
            _
          $region104: #{ssa_forward.4} parent=101 // pred_check_branch
            %779 = sbr.rel (0) target = $region106
          $region105: #{ssa_forward.4} parent=101 // pred_region
            // Predicated region
            $region107: #{ssa_forward.4} parent=105 // pred_check
              _
            $region108: #{ssa_forward.4} parent=105 // pred_check_branch
              %781 = sbr.rel target = $region110
            $region109: #{ssa_forward.4} parent=105 // pred_region
              // Predicated region
              $region122: #{ssa_forward.4} parent=109 // pred_check
                _
              $region123: #{ssa_forward.4} parent=109 // pred_check_branch
                %922 = sbr.rel (0) target = $region125
              $region124: #{ssa_forward.4} parent=109 // pred_region
                loop: start=0, step=1, limit=1
                $region126: #{ssa_forward.4} parent=124 // loop_pre_header
                  _
                $region127: #{ssa_forward.4} parent=124 // loop_header
                  %s924 = sphi 0, %s928
                  %p925 = scmp.ge.s32.totalorder %s924, 1
                  %s929 = sphi %s777, %s777
                  %s930 = sphi %s773, %s773
                $region128: #{ssa_forward.4} parent=124 // loop_header_branch
                  %927 = sbr.rel (%p925) target = $region132
                $region129: #{ssa_forward.4} parent=124 // loop_body
                  _
                $region130: #{ssa_forward.4} parent=124 // loop_footer
                  %s928 = sadd.s32 1, %s924
                $region131: #{ssa_forward.4} parent=124 // loop_footer_branch
                  %923 = sbr.rel target = $region127
                $region132: #{ssa_forward.4} parent=124 // loop_exit
                  _
                loop: start=0, step=1, limit=1
                $region133: #{ssa_forward.4} parent=124 // loop_pre_header
                  _
                $region134: #{ssa_forward.4} parent=124 // loop_header
                  %s933 = sphi 0, %s937
                  %p934 = scmp.ge.s32.totalorder %s933, 1
                  %s938 = sphi %s777, %s777
                  %s939 = sphi %s773, %s773
                $region135: #{ssa_forward.4} parent=124 // loop_header_branch
                  %936 = sbr.rel (%p934) target = $region139
                $region136: #{ssa_forward.4} parent=124 // loop_body
                  %v940 = vld [vmem:[%s938] sm:$0xf]
                  %941 = vst [vmem:[%s939] sm:$0xf] %v940
                  %v942 = vld [vmem:[%s938 + $0x4] sm:$0xf]
                  %943 = vst [vmem:[%s939 + $0x4] sm:$0xf] %v942
                  %v944 = vld [vmem:[%s938 + $0x8] sm:$0xf]
                  %945 = vst [vmem:[%s939 + $0x8] sm:$0xf] %v944
                  %v946 = vld [vmem:[%s938 + $0xc] sm:$0xf]
                  %947 = vst [vmem:[%s939 + $0xc] sm:$0xf] %v946
                  %v948 = vld [vmem:[%s938 + $0x10] sm:$0xf]
                  %949 = vst [vmem:[%s939 + $0x10] sm:$0xf] %v948
                  %v950 = vld [vmem:[%s938 + $0x14] sm:$0xf]
                  %951 = vst [vmem:[%s939 + $0x14] sm:$0xf] %v950
                  %v952 = vld [vmem:[%s938 + $0x18] sm:$0xf]
                  %953 = vst [vmem:[%s939 + $0x18] sm:$0xf] %v952
                  %v954 = vld [vmem:[%s938 + $0x1c] sm:$0xf]
                  %955 = vst [vmem:[%s939 + $0x1c] sm:$0xf] %v954
                  %v956 = vld [vmem:[%s938 + $0x20] sm:$0xf]
                  %957 = vst [vmem:[%s939 + $0x20] sm:$0xf] %v956
                  %v958 = vld [vmem:[%s938 + $0x24] sm:$0xf]
                  %959 = vst [vmem:[%s939 + $0x24] sm:$0xf] %v958
                  %v960 = vld [vmem:[%s938 + $0x28] sm:$0xf]
                  %961 = vst [vmem:[%s939 + $0x28] sm:$0xf] %v960
                  %v962 = vld [vmem:[%s938 + $0x2c] sm:$0xf]
                  %963 = vst [vmem:[%s939 + $0x2c] sm:$0xf] %v962
                  %v964 = vld [vmem:[%s938 + $0x30] sm:$0xf]
                  %965 = vst [vmem:[%s939 + $0x30] sm:$0xf] %v964
                  %v966 = vld [vmem:[%s938 + $0x34] sm:$0xf]
                  %967 = vst [vmem:[%s939 + $0x34] sm:$0xf] %v966
                  %v968 = vld [vmem:[%s938 + $0x38] sm:$0xf]
                  %969 = vst [vmem:[%s939 + $0x38] sm:$0xf] %v968
                  %v970 = vld [vmem:[%s938 + $0x3c] sm:$0xf]
                  %971 = vst [vmem:[%s939 + $0x3c] sm:$0xf] %v970
                  %v972 = vld [vmem:[%s938 + $0x80] sm:$0xf]
                  %973 = vst [vmem:[%s939 + $0x40] sm:$0xf] %v972
                  %v974 = vld [vmem:[%s938 + $0x84] sm:$0xf]
                  %975 = vst [vmem:[%s939 + $0x44] sm:$0xf] %v974
                  %v976 = vld [vmem:[%s938 + $0x88] sm:$0xf]
                  %977 = vst [vmem:[%s939 + $0x48] sm:$0xf] %v976
                  %v978 = vld [vmem:[%s938 + $0x8c] sm:$0xf]
                  %979 = vst [vmem:[%s939 + $0x4c] sm:$0xf] %v978
                  %v980 = vld [vmem:[%s938 + $0x90] sm:$0xf]
                  %981 = vst [vmem:[%s939 + $0x50] sm:$0xf] %v980
                  %v982 = vld [vmem:[%s938 + $0x94] sm:$0xf]
                  %983 = vst [vmem:[%s939 + $0x54] sm:$0xf] %v982
                  %v984 = vld [vmem:[%s938 + $0x98] sm:$0xf]
                  %985 = vst [vmem:[%s939 + $0x58] sm:$0xf] %v984
                  %v986 = vld [vmem:[%s938 + $0x9c] sm:$0xf]
                  %987 = vst [vmem:[%s939 + $0x5c] sm:$0xf] %v986
                  %v988 = vld [vmem:[%s938 + $0xa0] sm:$0xf]
                  %989 = vst [vmem:[%s939 + $0x60] sm:$0xf] %v988
                  %v990 = vld [vmem:[%s938 + $0xa4] sm:$0xf]
                  %991 = vst [vmem:[%s939 + $0x64] sm:$0xf] %v990
                  %v992 = vld [vmem:[%s938 + $0xa8] sm:$0xf]
                  %993 = vst [vmem:[%s939 + $0x68] sm:$0xf] %v992
                  %v994 = vld [vmem:[%s938 + $0xac] sm:$0xf]
                  %995 = vst [vmem:[%s939 + $0x6c] sm:$0xf] %v994
                  %v996 = vld [vmem:[%s938 + $0xb0] sm:$0xf]
                  %997 = vst [vmem:[%s939 + $0x70] sm:$0xf] %v996
                  %v998 = vld [vmem:[%s938 + $0xb4] sm:$0xf]
                  %999 = vst [vmem:[%s939 + $0x74] sm:$0xf] %v998
                  %v1000 = vld [vmem:[%s938 + $0xb8] sm:$0xf]
                  %1001 = vst [vmem:[%s939 + $0x78] sm:$0xf] %v1000
                  %v1002 = vld [vmem:[%s938 + $0xbc] sm:$0xf]
                  %1003 = vst [vmem:[%s939 + $0x7c] sm:$0xf] %v1002
                  %v1004 = vld [vmem:[%s938 + $0x100] sm:$0xf]
                  %1005 = vst [vmem:[%s939 + $0x80] sm:$0xf] %v1004
                  %v1006 = vld [vmem:[%s938 + $0x104] sm:$0xf]
                  %1007 = vst [vmem:[%s939 + $0x84] sm:$0xf] %v1006
                  %v1008 = vld [vmem:[%s938 + $0x108] sm:$0xf]
                  %1009 = vst [vmem:[%s939 + $0x88] sm:$0xf] %v1008
                  %v1010 = vld [vmem:[%s938 + $0x10c] sm:$0xf]
                  %1011 = vst [vmem:[%s939 + $0x8c] sm:$0xf] %v1010
                  %v1012 = vld [vmem:[%s938 + $0x110] sm:$0xf]
                  %1013 = vst [vmem:[%s939 + $0x90] sm:$0xf] %v1012
                  %v1014 = vld [vmem:[%s938 + $0x114] sm:$0xf]
                  %1015 = vst [vmem:[%s939 + $0x94] sm:$0xf] %v1014
                  %v1016 = vld [vmem:[%s938 + $0x118] sm:$0xf]
                  %1017 = vst [vmem:[%s939 + $0x98] sm:$0xf] %v1016
                  %v1018 = vld [vmem:[%s938 + $0x11c] sm:$0xf]
                  %1019 = vst [vmem:[%s939 + $0x9c] sm:$0xf] %v1018
                  %v1020 = vld [vmem:[%s938 + $0x120] sm:$0xf]
                  %1021 = vst [vmem:[%s939 + $0xa0] sm:$0xf] %v1020
                  %v1022 = vld [vmem:[%s938 + $0x124] sm:$0xf]
                  %1023 = vst [vmem:[%s939 + $0xa4] sm:$0xf] %v1022
                  %v1024 = vld [vmem:[%s938 + $0x128] sm:$0xf]
                  %1025 = vst [vmem:[%s939 + $0xa8] sm:$0xf] %v1024
                  %v1026 = vld [vmem:[%s938 + $0x12c] sm:$0xf]
                  %1027 = vst [vmem:[%s939 + $0xac] sm:$0xf] %v1026
                  %v1028 = vld [vmem:[%s938 + $0x130] sm:$0xf]
                  %1029 = vst [vmem:[%s939 + $0xb0] sm:$0xf] %v1028
                  %v1030 = vld [vmem:[%s938 + $0x134] sm:$0xf]
                  %1031 = vst [vmem:[%s939 + $0xb4] sm:$0xf] %v1030
                  %v1032 = vld [vmem:[%s938 + $0x138] sm:$0xf]
                  %1033 = vst [vmem:[%s939 + $0xb8] sm:$0xf] %v1032
                  %v1034 = vld [vmem:[%s938 + $0x13c] sm:$0xf]
                  %1035 = vst [vmem:[%s939 + $0xbc] sm:$0xf] %v1034
                  %v1036 = vld [vmem:[%s938 + $0x180] sm:$0xf]
                  %1037 = vst [vmem:[%s939 + $0xc0] sm:$0xf] %v1036
                  %v1038 = vld [vmem:[%s938 + $0x184] sm:$0xf]
                  %1039 = vst [vmem:[%s939 + $0xc4] sm:$0xf] %v1038
                  %v1040 = vld [vmem:[%s938 + $0x188] sm:$0xf]
                  %1041 = vst [vmem:[%s939 + $0xc8] sm:$0xf] %v1040
                  %v1042 = vld [vmem:[%s938 + $0x18c] sm:$0xf]
                  %1043 = vst [vmem:[%s939 + $0xcc] sm:$0xf] %v1042
                  %v1044 = vld [vmem:[%s938 + $0x190] sm:$0xf]
                  %1045 = vst [vmem:[%s939 + $0xd0] sm:$0xf] %v1044
                  %v1046 = vld [vmem:[%s938 + $0x194] sm:$0xf]
                  %1047 = vst [vmem:[%s939 + $0xd4] sm:$0xf] %v1046
                  %v1048 = vld [vmem:[%s938 + $0x198] sm:$0xf]
                  %1049 = vst [vmem:[%s939 + $0xd8] sm:$0xf] %v1048
                  %v1050 = vld [vmem:[%s938 + $0x19c] sm:$0xf]
                  %1051 = vst [vmem:[%s939 + $0xdc] sm:$0xf] %v1050
                  %v1052 = vld [vmem:[%s938 + $0x1a0] sm:$0xf]
                  %1053 = vst [vmem:[%s939 + $0xe0] sm:$0xf] %v1052
                  %v1054 = vld [vmem:[%s938 + $0x1a4] sm:$0xf]
                  %1055 = vst [vmem:[%s939 + $0xe4] sm:$0xf] %v1054
                  %v1056 = vld [vmem:[%s938 + $0x1a8] sm:$0xf]
                  %1057 = vst [vmem:[%s939 + $0xe8] sm:$0xf] %v1056
                  %v1058 = vld [vmem:[%s938 + $0x1ac] sm:$0xf]
                  %1059 = vst [vmem:[%s939 + $0xec] sm:$0xf] %v1058
                  %v1060 = vld [vmem:[%s938 + $0x1b0] sm:$0xf]
                  %1061 = vst [vmem:[%s939 + $0xf0] sm:$0xf] %v1060
                  %v1062 = vld [vmem:[%s938 + $0x1b4] sm:$0xf]
                  %1063 = vst [vmem:[%s939 + $0xf4] sm:$0xf] %v1062
                  %v1064 = vld [vmem:[%s938 + $0x1b8] sm:$0xf]
                  %1065 = vst [vmem:[%s939 + $0xf8] sm:$0xf] %v1064
                  %v1066 = vld [vmem:[%s938 + $0x1bc] sm:$0xf]
                  %1067 = vst [vmem:[%s939 + $0xfc] sm:$0xf] %v1066
                $region137: #{ssa_forward.4} parent=124 // loop_footer
                  %s937 = sadd.s32 1, %s933
                $region138: #{ssa_forward.4} parent=124 // loop_footer_branch
                  %932 = sbr.rel target = $region134
                $region139: #{ssa_forward.4} parent=124 // loop_exit
                  _
              $region125: #{ssa_forward.4} parent=109 // pred_fallthru
                _
            $region110: #{ssa_forward.4} parent=105 // pred_fallthru
              _
            // Predicated region
            $region111: #{ssa_forward.4} parent=105 // pred_check
              _
            $region112: #{ssa_forward.4} parent=105 // pred_check_branch
              %783 = sbr.rel (0) target = $region114
            $region113: #{ssa_forward.4} parent=105 // pred_region
              loop: start=0, step=1, limit=1
              $region115: #{ssa_forward.4} parent=113 // loop_pre_header
                _
              $region116: #{ssa_forward.4} parent=113 // loop_header
                %s786 = sphi 0, %s790
                %p787 = scmp.ge.s32.totalorder %s786, 1
                %s791 = sphi %s777, %s777
                %s792 = sphi %s773, %s773
              $region117: #{ssa_forward.4} parent=113 // loop_header_branch
                %789 = sbr.rel (%p787) target = $region121
              $region118: #{ssa_forward.4} parent=113 // loop_body
                %v793 = vld [vmem:[%s791] sm:$0xf]
                %794 = vst [vmem:[%s792] sm:$0xf] %v793
                %v795 = vld [vmem:[%s791 + $0x4] sm:$0xf]
                %796 = vst [vmem:[%s792 + $0x4] sm:$0xf] %v795
                %v797 = vld [vmem:[%s791 + $0x8] sm:$0xf]
                %798 = vst [vmem:[%s792 + $0x8] sm:$0xf] %v797
                %v799 = vld [vmem:[%s791 + $0xc] sm:$0xf]
                %800 = vst [vmem:[%s792 + $0xc] sm:$0xf] %v799
                %v801 = vld [vmem:[%s791 + $0x10] sm:$0xf]
                %802 = vst [vmem:[%s792 + $0x10] sm:$0xf] %v801
                %v803 = vld [vmem:[%s791 + $0x14] sm:$0xf]
                %804 = vst [vmem:[%s792 + $0x14] sm:$0xf] %v803
                %v805 = vld [vmem:[%s791 + $0x18] sm:$0xf]
                %806 = vst [vmem:[%s792 + $0x18] sm:$0xf] %v805
                %v807 = vld [vmem:[%s791 + $0x1c] sm:$0xf]
                %808 = vst [vmem:[%s792 + $0x1c] sm:$0xf] %v807
                %v809 = vld [vmem:[%s791 + $0x20] sm:$0xf]
                %810 = vst [vmem:[%s792 + $0x20] sm:$0xf] %v809
                %v811 = vld [vmem:[%s791 + $0x24] sm:$0xf]
                %812 = vst [vmem:[%s792 + $0x24] sm:$0xf] %v811
                %v813 = vld [vmem:[%s791 + $0x28] sm:$0xf]
                %814 = vst [vmem:[%s792 + $0x28] sm:$0xf] %v813
                %v815 = vld [vmem:[%s791 + $0x2c] sm:$0xf]
                %816 = vst [vmem:[%s792 + $0x2c] sm:$0xf] %v815
                %v817 = vld [vmem:[%s791 + $0x30] sm:$0xf]
                %818 = vst [vmem:[%s792 + $0x30] sm:$0xf] %v817
                %v819 = vld [vmem:[%s791 + $0x34] sm:$0xf]
                %820 = vst [vmem:[%s792 + $0x34] sm:$0xf] %v819
                %v821 = vld [vmem:[%s791 + $0x38] sm:$0xf]
                %822 = vst [vmem:[%s792 + $0x38] sm:$0xf] %v821
                %v823 = vld [vmem:[%s791 + $0x3c] sm:$0xf]
                %824 = vst [vmem:[%s792 + $0x3c] sm:$0xf] %v823
                %v825 = vld [vmem:[%s791 + $0x80] sm:$0xf]
                %826 = vst [vmem:[%s792 + $0x40] sm:$0xf] %v825
                %v827 = vld [vmem:[%s791 + $0x84] sm:$0xf]
                %828 = vst [vmem:[%s792 + $0x44] sm:$0xf] %v827
                %v829 = vld [vmem:[%s791 + $0x88] sm:$0xf]
                %830 = vst [vmem:[%s792 + $0x48] sm:$0xf] %v829
                %v831 = vld [vmem:[%s791 + $0x8c] sm:$0xf]
                %832 = vst [vmem:[%s792 + $0x4c] sm:$0xf] %v831
                %v833 = vld [vmem:[%s791 + $0x90] sm:$0xf]
                %834 = vst [vmem:[%s792 + $0x50] sm:$0xf] %v833
                %v835 = vld [vmem:[%s791 + $0x94] sm:$0xf]
                %836 = vst [vmem:[%s792 + $0x54] sm:$0xf] %v835
                %v837 = vld [vmem:[%s791 + $0x98] sm:$0xf]
                %838 = vst [vmem:[%s792 + $0x58] sm:$0xf] %v837
                %v839 = vld [vmem:[%s791 + $0x9c] sm:$0xf]
                %840 = vst [vmem:[%s792 + $0x5c] sm:$0xf] %v839
                %v841 = vld [vmem:[%s791 + $0xa0] sm:$0xf]
                %842 = vst [vmem:[%s792 + $0x60] sm:$0xf] %v841
                %v843 = vld [vmem:[%s791 + $0xa4] sm:$0xf]
                %844 = vst [vmem:[%s792 + $0x64] sm:$0xf] %v843
                %v845 = vld [vmem:[%s791 + $0xa8] sm:$0xf]
                %846 = vst [vmem:[%s792 + $0x68] sm:$0xf] %v845
                %v847 = vld [vmem:[%s791 + $0xac] sm:$0xf]
                %848 = vst [vmem:[%s792 + $0x6c] sm:$0xf] %v847
                %v849 = vld [vmem:[%s791 + $0xb0] sm:$0xf]
                %850 = vst [vmem:[%s792 + $0x70] sm:$0xf] %v849
                %v851 = vld [vmem:[%s791 + $0xb4] sm:$0xf]
                %852 = vst [vmem:[%s792 + $0x74] sm:$0xf] %v851
                %v853 = vld [vmem:[%s791 + $0xb8] sm:$0xf]
                %854 = vst [vmem:[%s792 + $0x78] sm:$0xf] %v853
                %v855 = vld [vmem:[%s791 + $0xbc] sm:$0xf]
                %856 = vst [vmem:[%s792 + $0x7c] sm:$0xf] %v855
                %v857 = vld [vmem:[%s791 + $0x100] sm:$0xf]
                %858 = vst [vmem:[%s792 + $0x80] sm:$0xf] %v857
                %v859 = vld [vmem:[%s791 + $0x104] sm:$0xf]
                %860 = vst [vmem:[%s792 + $0x84] sm:$0xf] %v859
                %v861 = vld [vmem:[%s791 + $0x108] sm:$0xf]
                %862 = vst [vmem:[%s792 + $0x88] sm:$0xf] %v861
                %v863 = vld [vmem:[%s791 + $0x10c] sm:$0xf]
                %864 = vst [vmem:[%s792 + $0x8c] sm:$0xf] %v863
                %v865 = vld [vmem:[%s791 + $0x110] sm:$0xf]
                %866 = vst [vmem:[%s792 + $0x90] sm:$0xf] %v865
                %v867 = vld [vmem:[%s791 + $0x114] sm:$0xf]
                %868 = vst [vmem:[%s792 + $0x94] sm:$0xf] %v867
                %v869 = vld [vmem:[%s791 + $0x118] sm:$0xf]
                %870 = vst [vmem:[%s792 + $0x98] sm:$0xf] %v869
                %v871 = vld [vmem:[%s791 + $0x11c] sm:$0xf]
                %872 = vst [vmem:[%s792 + $0x9c] sm:$0xf] %v871
                %v873 = vld [vmem:[%s791 + $0x120] sm:$0xf]
                %874 = vst [vmem:[%s792 + $0xa0] sm:$0xf] %v873
                %v875 = vld [vmem:[%s791 + $0x124] sm:$0xf]
                %876 = vst [vmem:[%s792 + $0xa4] sm:$0xf] %v875
                %v877 = vld [vmem:[%s791 + $0x128] sm:$0xf]
                %878 = vst [vmem:[%s792 + $0xa8] sm:$0xf] %v877
                %v879 = vld [vmem:[%s791 + $0x12c] sm:$0xf]
                %880 = vst [vmem:[%s792 + $0xac] sm:$0xf] %v879
                %v881 = vld [vmem:[%s791 + $0x130] sm:$0xf]
                %882 = vst [vmem:[%s792 + $0xb0] sm:$0xf] %v881
                %v883 = vld [vmem:[%s791 + $0x134] sm:$0xf]
                %884 = vst [vmem:[%s792 + $0xb4] sm:$0xf] %v883
                %v885 = vld [vmem:[%s791 + $0x138] sm:$0xf]
                %886 = vst [vmem:[%s792 + $0xb8] sm:$0xf] %v885
                %v887 = vld [vmem:[%s791 + $0x13c] sm:$0xf]
                %888 = vst [vmem:[%s792 + $0xbc] sm:$0xf] %v887
                %v889 = vld [vmem:[%s791 + $0x180] sm:$0xf]
                %890 = vst [vmem:[%s792 + $0xc0] sm:$0xf] %v889
                %v891 = vld [vmem:[%s791 + $0x184] sm:$0xf]
                %892 = vst [vmem:[%s792 + $0xc4] sm:$0xf] %v891
                %v893 = vld [vmem:[%s791 + $0x188] sm:$0xf]
                %894 = vst [vmem:[%s792 + $0xc8] sm:$0xf] %v893
                %v895 = vld [vmem:[%s791 + $0x18c] sm:$0xf]
                %896 = vst [vmem:[%s792 + $0xcc] sm:$0xf] %v895
                %v897 = vld [vmem:[%s791 + $0x190] sm:$0xf]
                %898 = vst [vmem:[%s792 + $0xd0] sm:$0xf] %v897
                %v899 = vld [vmem:[%s791 + $0x194] sm:$0xf]
                %900 = vst [vmem:[%s792 + $0xd4] sm:$0xf] %v899
                %v901 = vld [vmem:[%s791 + $0x198] sm:$0xf]
                %902 = vst [vmem:[%s792 + $0xd8] sm:$0xf] %v901
                %v903 = vld [vmem:[%s791 + $0x19c] sm:$0xf]
                %904 = vst [vmem:[%s792 + $0xdc] sm:$0xf] %v903
                %v905 = vld [vmem:[%s791 + $0x1a0] sm:$0xf]
                %906 = vst [vmem:[%s792 + $0xe0] sm:$0xf] %v905
                %v907 = vld [vmem:[%s791 + $0x1a4] sm:$0xf]
                %908 = vst [vmem:[%s792 + $0xe4] sm:$0xf] %v907
                %v909 = vld [vmem:[%s791 + $0x1a8] sm:$0xf]
                %910 = vst [vmem:[%s792 + $0xe8] sm:$0xf] %v909
                %v911 = vld [vmem:[%s791 + $0x1ac] sm:$0xf]
                %912 = vst [vmem:[%s792 + $0xec] sm:$0xf] %v911
                %v913 = vld [vmem:[%s791 + $0x1b0] sm:$0xf]
                %914 = vst [vmem:[%s792 + $0xf0] sm:$0xf] %v913
                %v915 = vld [vmem:[%s791 + $0x1b4] sm:$0xf]
                %916 = vst [vmem:[%s792 + $0xf4] sm:$0xf] %v915
                %v917 = vld [vmem:[%s791 + $0x1b8] sm:$0xf]
                %918 = vst [vmem:[%s792 + $0xf8] sm:$0xf] %v917
                %v919 = vld [vmem:[%s791 + $0x1bc] sm:$0xf]
                %920 = vst [vmem:[%s792 + $0xfc] sm:$0xf] %v919
              $region119: #{ssa_forward.4} parent=113 // loop_footer
                %s790 = sadd.s32 1, %s786
              $region120: #{ssa_forward.4} parent=113 // loop_footer_branch
                %785 = sbr.rel target = $region116
              $region121: #{ssa_forward.4} parent=113 // loop_exit
                _
            $region114: #{ssa_forward.4} parent=105 // pred_fallthru
              _
          $region106: #{ssa_forward.4} parent=101 // pred_fallthru
            _
          %1068 = vnop
        $region102: #{ssa_forward.4} parent=15 // pred_fallthru
          _
      $region16: #{ssa_forward.4} parent=5 // pred_fallthru
        _
      %p1069 = scmp.le.s32.totalorder 1, %s14
      %p1070 = scmp.lt.s32.totalorder %s14, 3
      %p1071 = pnand %p1069, %p1070
      %p1072 = pneg %p1071
      // Predicated region
      $region140: #{ssa_forward.4} parent=5 // pred_check
        _
      $region141: #{ssa_forward.4} parent=5 // pred_check_branch
        %1074 = sbr.rel (%p1071) target = $region143
      $region142: #{ssa_forward.4} parent=5 // pred_region
        %s1075 = ssub.s32 %s14, 1
        %s1076 = sand.u32 %s27, 1
        %s1077 = sand.u32 %s27, 1
        %s1078 = smul.addr %s1077, 256
        %s1079 = scalar_lea.vmem [#allocation2], %s1078
        // Predicated region
        $region144: #{ssa_forward.4} parent=142 // pred_check
          %p1080 = pneg %p40
        $region145: #{ssa_forward.4} parent=142 // pred_check_branch
          %1082 = sbr.rel (%p1080) target = $region147
        $region146: #{ssa_forward.4} parent=142 // pred_region
          _
        $region147: #{ssa_forward.4} parent=142 // pred_fallthru
          _
        %s1083 = sand.u32 %s53, 1
        %s1084 = sand.u32 %s53, 1
        %s1085 = smul.addr %s1084, 256
        %s1086 = scalar_lea.vmem [#allocation3], %s1085
        // Predicated region
        $region148: #{ssa_forward.4} parent=142 // pred_check
          %p1087 = pneg %p66
        $region149: #{ssa_forward.4} parent=142 // pred_check_branch
          %1089 = sbr.rel (%p1087) target = $region151
        $region150: #{ssa_forward.4} parent=142 // pred_region
          _
        $region151: #{ssa_forward.4} parent=142 // pred_fallthru
          _
        %s1090 = sand.u32 %s79, 1
        %s1091 = sand.u32 %s79, 1
        %s1092 = smul.addr %s1091, 256
        %s1093 = scalar_lea.vmem [#allocation4], %s1092
        // Predicated region
        $region152: #{ssa_forward.4} parent=142 // pred_check
          %p1094 = pneg %p92
        $region153: #{ssa_forward.4} parent=142 // pred_check_branch
          %1096 = sbr.rel (%p1094) target = $region155
        $region154: #{ssa_forward.4} parent=142 // pred_region
          _
        $region155: #{ssa_forward.4} parent=142 // pred_fallthru
          _
        %s1097 = sand.u32 %s27, 1
        %s1098 = sand.u32 %s27, 1
        %s1099 = smul.addr %s1098, 256
        %s1100 = scalar_lea.vmem [#allocation2], %s1099
        %p1101 = pneg %p40
        %p1102 = pneg %p37
        %s1103 = sand.u32 %s53, 1
        %s1104 = sand.u32 %s53, 1
        %s1105 = smul.addr %s1104, 256
        %s1106 = scalar_lea.vmem [#allocation3], %s1105
        %p1107 = pneg %p66
        %p1108 = pneg %p63
        %s1109 = sand.u32 %s79, 1
        %s1110 = sand.u32 %s79, 1
        %s1111 = smul.addr %s1110, 256
        %s1112 = scalar_lea.vmem [#allocation4], %s1111
        %p1113 = pneg %p92
        %p1114 = pneg %p89
        %p1115 = pneg %p118
        %p1116 = pneg %p115
        %s1117 = sand.u32 %s105, 1
        %s1118 = scalar_lea.sflag [#allocation6], %s1117
        %s1119 = sand.u32 %s105, 1
        %s1120 = smul.addr %s1119, 512
        %s1121 = scalar_lea.vmem [#allocation5], %s1120
        %p1122 = pneg %p144
        %p1123 = pneg %p141
        %s1124 = sand.u32 %s131, 1
        %s1125 = sand.u32 %s131, 1
        %s1126 = smul.addr %s1125, 512
        %s1127 = scalar_lea.vmem [#allocation7], %s1126
        %s1128 = smul.u32 8, %s19
        %s1129 = smul.u32 8, %s19
        %s1130 = smul.u32 8, %s19
        %s1131 = smul.u32 8, %s19
        %s1132 = smul.u32 8, %s19
        %v1134 = vld [vmem:[%s1079] sm:$0xf]
        %v1135 = vld [vmem:[%s1079 + $0x4] sm:$0xf]
        %v1136 = vld [vmem:[%s1079 + $0x8] sm:$0xf]
        %v1137 = vld [vmem:[%s1079 + $0xc] sm:$0xf]
        %v1138 = vld [vmem:[%s1079 + $0x10] sm:$0xf]
        %v1139 = vld [vmem:[%s1079 + $0x14] sm:$0xf]
        %v1140 = vld [vmem:[%s1079 + $0x18] sm:$0xf]
        %v1141 = vld [vmem:[%s1079 + $0x1c] sm:$0xf]
        %v1142 = vld [vmem:[%s1079 + $0x20] sm:$0xf]
        %v1143 = vld [vmem:[%s1079 + $0x24] sm:$0xf]
        %v1144 = vld [vmem:[%s1079 + $0x28] sm:$0xf]
        %v1145 = vld [vmem:[%s1079 + $0x2c] sm:$0xf]
        %v1146 = vld [vmem:[%s1079 + $0x30] sm:$0xf]
        %v1147 = vld [vmem:[%s1079 + $0x34] sm:$0xf]
        %v1148 = vld [vmem:[%s1079 + $0x38] sm:$0xf]
        %v1149 = vld [vmem:[%s1079 + $0x3c] sm:$0xf]
        %v1150 = vld [vmem:[%s1086] sm:$0xf]
        %v1151 = vld [vmem:[%s1086 + $0x4] sm:$0xf]
        %v1152 = vld [vmem:[%s1086 + $0x8] sm:$0xf]
        %v1153 = vld [vmem:[%s1086 + $0xc] sm:$0xf]
        %v1154 = vld [vmem:[%s1086 + $0x10] sm:$0xf]
        %v1155 = vld [vmem:[%s1086 + $0x14] sm:$0xf]
        %v1156 = vld [vmem:[%s1086 + $0x18] sm:$0xf]
        %v1157 = vld [vmem:[%s1086 + $0x1c] sm:$0xf]
        %v1158 = vld [vmem:[%s1086 + $0x20] sm:$0xf]
        %v1159 = vld [vmem:[%s1086 + $0x24] sm:$0xf]
        %v1160 = vld [vmem:[%s1086 + $0x28] sm:$0xf]
        %v1161 = vld [vmem:[%s1086 + $0x2c] sm:$0xf]
        %v1162 = vld [vmem:[%s1086 + $0x30] sm:$0xf]
        %v1163 = vld [vmem:[%s1086 + $0x34] sm:$0xf]
        %v1164 = vld [vmem:[%s1086 + $0x38] sm:$0xf]
        %v1165 = vld [vmem:[%s1086 + $0x3c] sm:$0xf]
        %v1166 = vld [vmem:[%s1093] sm:$0xf]
        %v1167 = vld [vmem:[%s1093 + $0x4] sm:$0xf]
        %v1168 = vld [vmem:[%s1093 + $0x8] sm:$0xf]
        %v1169 = vld [vmem:[%s1093 + $0xc] sm:$0xf]
        %v1170 = vld [vmem:[%s1093 + $0x10] sm:$0xf]
        %v1171 = vld [vmem:[%s1093 + $0x14] sm:$0xf]
        %v1172 = vld [vmem:[%s1093 + $0x18] sm:$0xf]
        %v1173 = vld [vmem:[%s1093 + $0x1c] sm:$0xf]
        %v1174 = vld [vmem:[%s1093 + $0x20] sm:$0xf]
        %v1175 = vld [vmem:[%s1093 + $0x24] sm:$0xf]
        %v1176 = vld [vmem:[%s1093 + $0x28] sm:$0xf]
        %v1177 = vld [vmem:[%s1093 + $0x2c] sm:$0xf]
        %v1178 = vld [vmem:[%s1093 + $0x30] sm:$0xf]
        %v1179 = vld [vmem:[%s1093 + $0x34] sm:$0xf]
        %v1180 = vld [vmem:[%s1093 + $0x38] sm:$0xf]
        %v1181 = vld [vmem:[%s1093 + $0x3c] sm:$0xf]
        %v1182 = vunpack.c.l.bf16 %v1166
        %v1183 = vunpack.c.l.bf16 %v1167
        %v1184 = vunpack.c.l.bf16 %v1168
        %v1185 = vunpack.c.l.bf16 %v1169
        %v1186 = vunpack.c.l.bf16 %v1170
        %v1187 = vunpack.c.l.bf16 %v1171
        %v1188 = vunpack.c.l.bf16 %v1172
        %v1189 = vunpack.c.l.bf16 %v1173
        %v1190 = vunpack.c.l.bf16 %v1174
        %v1191 = vunpack.c.l.bf16 %v1175
        %v1192 = vunpack.c.l.bf16 %v1176
        %v1193 = vunpack.c.l.bf16 %v1177
        %v1194 = vunpack.c.l.bf16 %v1178
        %v1195 = vunpack.c.l.bf16 %v1179
        %v1196 = vunpack.c.l.bf16 %v1180
        %v1197 = vunpack.c.l.bf16 %v1181
        %v1200 = vunpack.c.l.b16 %v1134
        %v1201 = vunpack.c.l.b16 %v1135
        %v1202 = vpack.c.b16 %v1201, %v1200
        %v1205 = vunpack.c.l.b16 %v1150
        %v1206 = vunpack.c.l.b16 %v1151
        %v1207 = vpack.c.b16 %v1206, %v1205
        %vm1208 = vcmask 31744
        %v1210 = vsel %vm1208, %v1202, 0
        %v1213 = vsel %vm1208, %v1207, 0
        %1215 = vmatprep.subr.bf16.mxu0 0
        %1216 = vmatpush1.bf16.xpose.msra.mxu0 %v1213
        %1217 = vmatprep.subr.bf16.mxu0 0
        %1218 = vmatpush1.bf16.xpose.msra.mxu0 0
        %1219 = vmatprep.subr.bf16.mxu0 0
        %1220 = vmatpush1.bf16.xpose.msra.mxu0 0
        %1221 = vmatprep.subr.bf16.mxu0 0
        %1222 = vmatpush1.bf16.xpose.msra.mxu0 0
        %1223 = vmatprep.subr.bf16.mxu0 0
        %1224 = vmatpush1.bf16.xpose.msra.mxu0 0
        %1225 = vmatprep.subr.bf16.mxu0 0
        %1226 = vmatpush1.bf16.xpose.msra.mxu0 0
        %1227 = vmatprep.subr.bf16.mxu0 0
        %1228 = vmatpush1.bf16.xpose.msra.mxu0 0
        %1229 = vmatprep.subr.bf16.mxu0 0
        %1230 = vmatpush1.bf16.xpose.msra.mxu0 0
        %1231 = vmatprep.subr.bf16.mxu0 0
        %1232 = vmatpush1.bf16.xpose.msra.mxu0 0
        %1233 = vmatprep.subr.bf16.mxu0 0
        %1234 = vmatpush1.bf16.xpose.msra.mxu0 0
        %1235 = vmatprep.subr.bf16.mxu0 0
        %1236 = vmatpush1.bf16.xpose.msra.mxu0 0
        %1237 = vmatprep.subr.bf16.mxu0 0
        %1238 = vmatpush1.bf16.xpose.msra.mxu0 0
        %1239 = vmatprep.subr.bf16.mxu0 0
        %1240 = vmatpush1.bf16.xpose.msra.mxu0 0
        %1241 = vmatprep.subr.bf16.mxu0 0
        %1242 = vmatpush1.bf16.xpose.msra.mxu0 0
        %1243 = vmatprep.subr.bf16.mxu0 0
        %1244 = vmatpush1.bf16.xpose.msra.mxu0 0
        %1245 = vmatprep.subr.bf16.mxu0 0
        %1246 = vmatpush1.bf16.xpose.msra.mxu0 0
        %1247 = vmatprep.mubr.bf16.mxu0 0
        %1248 = vmatmul.mubr.bf16.gmra.mrb[0].mxu0 %v1210
        %v1249 = vpop.f32.mrb[0].mxu0
        %v1250 = vadd.f32 0.0, %v1249
        %v1251 = vpop.f32.mrb[0].mxu0
        %v1252 = vpop.f32.mrb[0].mxu0
        %v1253 = vadd.f32 0.0, %v1252
        %v1254 = vpop.f32.mrb[0].mxu0
        %1255 = vdwg.mxu0
        %v1258 = vunpack.c.l.b16 %v1136
        %v1259 = vunpack.c.l.b16 %v1137
        %v1260 = vpack.c.b16 %v1259, %v1258
        %v1263 = vunpack.c.l.b16 %v1152
        %v1264 = vunpack.c.l.b16 %v1153
        %v1265 = vpack.c.b16 %v1264, %v1263
        %v1267 = vsel %vm1208, %v1260, 0
        %v1270 = vsel %vm1208, %v1265, 0
        %1272 = vmatprep.subr.bf16.mxu0 0
        %1273 = vmatpush1.bf16.xpose.msra.mxu0 %v1270
        %1274 = vmatprep.subr.bf16.mxu0 0
        %1275 = vmatpush1.bf16.xpose.msra.mxu0 0
        %1276 = vmatprep.subr.bf16.mxu0 0
        %1277 = vmatpush1.bf16.xpose.msra.mxu0 0
        %1278 = vmatprep.subr.bf16.mxu0 0
        %1279 = vmatpush1.bf16.xpose.msra.mxu0 0
        %1280 = vmatprep.subr.bf16.mxu0 0
        %1281 = vmatpush1.bf16.xpose.msra.mxu0 0
        %1282 = vmatprep.subr.bf16.mxu0 0
        %1283 = vmatpush1.bf16.xpose.msra.mxu0 0
        %1284 = vmatprep.subr.bf16.mxu0 0
        %1285 = vmatpush1.bf16.xpose.msra.mxu0 0
        %1286 = vmatprep.subr.bf16.mxu0 0
        %1287 = vmatpush1.bf16.xpose.msra.mxu0 0
        %1288 = vmatprep.subr.bf16.mxu0 0
        %1289 = vmatpush1.bf16.xpose.msra.mxu0 0
        %1290 = vmatprep.subr.bf16.mxu0 0
        %1291 = vmatpush1.bf16.xpose.msra.mxu0 0
        %1292 = vmatprep.subr.bf16.mxu0 0
        %1293 = vmatpush1.bf16.xpose.msra.mxu0 0
        %1294 = vmatprep.subr.bf16.mxu0 0
        %1295 = vmatpush1.bf16.xpose.msra.mxu0 0
        %1296 = vmatprep.subr.bf16.mxu0 0
        %1297 = vmatpush1.bf16.xpose.msra.mxu0 0
        %1298 = vmatprep.subr.bf16.mxu0 0
        %1299 = vmatpush1.bf16.xpose.msra.mxu0 0
        %1300 = vmatprep.subr.bf16.mxu0 0
        %1301 = vmatpush1.bf16.xpose.msra.mxu0 0
        %1302 = vmatprep.subr.bf16.mxu0 0
        %1303 = vmatpush1.bf16.xpose.msra.mxu0 0
        %1304 = vmatprep.mubr.bf16.mxu0 0
        %1305 = vmatmul.mubr.bf16.gmra.mrb[0].mxu0 %v1267
        %v1306 = vpop.f32.mrb[0].mxu0
        %v1307 = vadd.f32 0.0, %v1306
        %v1308 = vpop.f32.mrb[0].mxu0
        %v1309 = vpop.f32.mrb[0].mxu0
        %v1310 = vadd.f32 0.0, %v1309
        %v1311 = vpop.f32.mrb[0].mxu0
        %1312 = vdwg.mxu0
        %v1315 = vunpack.c.l.b16 %v1138
        %v1316 = vunpack.c.l.b16 %v1139
        %v1317 = vpack.c.b16 %v1316, %v1315
        %v1320 = vunpack.c.l.b16 %v1154
        %v1321 = vunpack.c.l.b16 %v1155
        %v1322 = vpack.c.b16 %v1321, %v1320
        %v1324 = vsel %vm1208, %v1317, 0
        %v1327 = vsel %vm1208, %v1322, 0
        %1329 = vmatprep.subr.bf16.mxu0 0
        %1330 = vmatpush1.bf16.xpose.msra.mxu0 %v1327
        %1331 = vmatprep.subr.bf16.mxu0 0
        %1332 = vmatpush1.bf16.xpose.msra.mxu0 0
        %1333 = vmatprep.subr.bf16.mxu0 0
        %1334 = vmatpush1.bf16.xpose.msra.mxu0 0
        %1335 = vmatprep.subr.bf16.mxu0 0
        %1336 = vmatpush1.bf16.xpose.msra.mxu0 0
        %1337 = vmatprep.subr.bf16.mxu0 0
        %1338 = vmatpush1.bf16.xpose.msra.mxu0 0
        %1339 = vmatprep.subr.bf16.mxu0 0
        %1340 = vmatpush1.bf16.xpose.msra.mxu0 0
        %1341 = vmatprep.subr.bf16.mxu0 0
        %1342 = vmatpush1.bf16.xpose.msra.mxu0 0
        %1343 = vmatprep.subr.bf16.mxu0 0
        %1344 = vmatpush1.bf16.xpose.msra.mxu0 0
        %1345 = vmatprep.subr.bf16.mxu0 0
        %1346 = vmatpush1.bf16.xpose.msra.mxu0 0
        %1347 = vmatprep.subr.bf16.mxu0 0
        %1348 = vmatpush1.bf16.xpose.msra.mxu0 0
        %1349 = vmatprep.subr.bf16.mxu0 0
        %1350 = vmatpush1.bf16.xpose.msra.mxu0 0
        %1351 = vmatprep.subr.bf16.mxu0 0
        %1352 = vmatpush1.bf16.xpose.msra.mxu0 0
        %1353 = vmatprep.subr.bf16.mxu0 0
        %1354 = vmatpush1.bf16.xpose.msra.mxu0 0
        %1355 = vmatprep.subr.bf16.mxu0 0
        %1356 = vmatpush1.bf16.xpose.msra.mxu0 0
        %1357 = vmatprep.subr.bf16.mxu0 0
        %1358 = vmatpush1.bf16.xpose.msra.mxu0 0
        %1359 = vmatprep.subr.bf16.mxu0 0
        %1360 = vmatpush1.bf16.xpose.msra.mxu0 0
        %1361 = vmatprep.mubr.bf16.mxu0 0
        %1362 = vmatmul.mubr.bf16.gmra.mrb[0].mxu0 %v1324
        %v1363 = vpop.f32.mrb[0].mxu0
        %v1364 = vadd.f32 0.0, %v1363
        %v1365 = vpop.f32.mrb[0].mxu0
        %v1366 = vpop.f32.mrb[0].mxu0
        %v1367 = vadd.f32 0.0, %v1366
        %v1368 = vpop.f32.mrb[0].mxu0
        %1369 = vdwg.mxu0
        %v1372 = vunpack.c.l.b16 %v1140
        %v1373 = vunpack.c.l.b16 %v1141
        %v1374 = vpack.c.b16 %v1373, %v1372
        %v1377 = vunpack.c.l.b16 %v1156
        %v1378 = vunpack.c.l.b16 %v1157
        %v1379 = vpack.c.b16 %v1378, %v1377
        %v1381 = vsel %vm1208, %v1374, 0
        %v1384 = vsel %vm1208, %v1379, 0
        %1386 = vmatprep.subr.bf16.mxu0 0
        %1387 = vmatpush1.bf16.xpose.msra.mxu0 %v1384
        %1388 = vmatprep.subr.bf16.mxu0 0
        %1389 = vmatpush1.bf16.xpose.msra.mxu0 0
        %1390 = vmatprep.subr.bf16.mxu0 0
        %1391 = vmatpush1.bf16.xpose.msra.mxu0 0
        %1392 = vmatprep.subr.bf16.mxu0 0
        %1393 = vmatpush1.bf16.xpose.msra.mxu0 0
        %1394 = vmatprep.subr.bf16.mxu0 0
        %1395 = vmatpush1.bf16.xpose.msra.mxu0 0
        %1396 = vmatprep.subr.bf16.mxu0 0
        %1397 = vmatpush1.bf16.xpose.msra.mxu0 0
        %1398 = vmatprep.subr.bf16.mxu0 0
        %1399 = vmatpush1.bf16.xpose.msra.mxu0 0
        %1400 = vmatprep.subr.bf16.mxu0 0
        %1401 = vmatpush1.bf16.xpose.msra.mxu0 0
        %1402 = vmatprep.subr.bf16.mxu0 0
        %1403 = vmatpush1.bf16.xpose.msra.mxu0 0
        %1404 = vmatprep.subr.bf16.mxu0 0
        %1405 = vmatpush1.bf16.xpose.msra.mxu0 0
        %1406 = vmatprep.subr.bf16.mxu0 0
        %1407 = vmatpush1.bf16.xpose.msra.mxu0 0
        %1408 = vmatprep.subr.bf16.mxu0 0
        %1409 = vmatpush1.bf16.xpose.msra.mxu0 0
        %1410 = vmatprep.subr.bf16.mxu0 0
        %1411 = vmatpush1.bf16.xpose.msra.mxu0 0
        %1412 = vmatprep.subr.bf16.mxu0 0
        %1413 = vmatpush1.bf16.xpose.msra.mxu0 0
        %1414 = vmatprep.subr.bf16.mxu0 0
        %1415 = vmatpush1.bf16.xpose.msra.mxu0 0
        %1416 = vmatprep.subr.bf16.mxu0 0
        %1417 = vmatpush1.bf16.xpose.msra.mxu0 0
        %1418 = vmatprep.mubr.bf16.mxu0 0
        %1419 = vmatmul.mubr.bf16.gmra.mrb[0].mxu0 %v1381
        %v1420 = vpop.f32.mrb[0].mxu0
        %v1421 = vadd.f32 0.0, %v1420
        %v1422 = vpop.f32.mrb[0].mxu0
        %v1423 = vpop.f32.mrb[0].mxu0
        %v1424 = vadd.f32 0.0, %v1423
        %v1425 = vpop.f32.mrb[0].mxu0
        %1426 = vdwg.mxu0
        %v1429 = vunpack.c.l.b16 %v1142
        %v1430 = vunpack.c.l.b16 %v1143
        %v1431 = vpack.c.b16 %v1430, %v1429
        %v1434 = vunpack.c.l.b16 %v1158
        %v1435 = vunpack.c.l.b16 %v1159
        %v1436 = vpack.c.b16 %v1435, %v1434
        %v1438 = vsel %vm1208, %v1431, 0
        %v1441 = vsel %vm1208, %v1436, 0
        %1443 = vmatprep.subr.bf16.mxu0 0
        %1444 = vmatpush1.bf16.xpose.msra.mxu0 %v1441
        %1445 = vmatprep.subr.bf16.mxu0 0
        %1446 = vmatpush1.bf16.xpose.msra.mxu0 0
        %1447 = vmatprep.subr.bf16.mxu0 0
        %1448 = vmatpush1.bf16.xpose.msra.mxu0 0
        %1449 = vmatprep.subr.bf16.mxu0 0
        %1450 = vmatpush1.bf16.xpose.msra.mxu0 0
        %1451 = vmatprep.subr.bf16.mxu0 0
        %1452 = vmatpush1.bf16.xpose.msra.mxu0 0
        %1453 = vmatprep.subr.bf16.mxu0 0
        %1454 = vmatpush1.bf16.xpose.msra.mxu0 0
        %1455 = vmatprep.subr.bf16.mxu0 0
        %1456 = vmatpush1.bf16.xpose.msra.mxu0 0
        %1457 = vmatprep.subr.bf16.mxu0 0
        %1458 = vmatpush1.bf16.xpose.msra.mxu0 0
        %1459 = vmatprep.subr.bf16.mxu0 0
        %1460 = vmatpush1.bf16.xpose.msra.mxu0 0
        %1461 = vmatprep.subr.bf16.mxu0 0
        %1462 = vmatpush1.bf16.xpose.msra.mxu0 0
        %1463 = vmatprep.subr.bf16.mxu0 0
        %1464 = vmatpush1.bf16.xpose.msra.mxu0 0
        %1465 = vmatprep.subr.bf16.mxu0 0
        %1466 = vmatpush1.bf16.xpose.msra.mxu0 0
        %1467 = vmatprep.subr.bf16.mxu0 0
        %1468 = vmatpush1.bf16.xpose.msra.mxu0 0
        %1469 = vmatprep.subr.bf16.mxu0 0
        %1470 = vmatpush1.bf16.xpose.msra.mxu0 0
        %1471 = vmatprep.subr.bf16.mxu0 0
        %1472 = vmatpush1.bf16.xpose.msra.mxu0 0
        %1473 = vmatprep.subr.bf16.mxu0 0
        %1474 = vmatpush1.bf16.xpose.msra.mxu0 0
        %1475 = vmatprep.mubr.bf16.mxu0 0
        %1476 = vmatmul.mubr.bf16.gmra.mrb[0].mxu0 %v1438
        %v1477 = vpop.f32.mrb[0].mxu0
        %v1478 = vadd.f32 0.0, %v1477
        %v1479 = vpop.f32.mrb[0].mxu0
        %v1480 = vpop.f32.mrb[0].mxu0
        %v1481 = vadd.f32 0.0, %v1480
        %v1482 = vpop.f32.mrb[0].mxu0
        %1483 = vdwg.mxu0
        %v1486 = vunpack.c.l.b16 %v1144
        %v1487 = vunpack.c.l.b16 %v1145
        %v1488 = vpack.c.b16 %v1487, %v1486
        %v1491 = vunpack.c.l.b16 %v1160
        %v1492 = vunpack.c.l.b16 %v1161
        %v1493 = vpack.c.b16 %v1492, %v1491
        %v1495 = vsel %vm1208, %v1488, 0
        %v1498 = vsel %vm1208, %v1493, 0
        %1500 = vmatprep.subr.bf16.mxu0 0
        %1501 = vmatpush1.bf16.xpose.msra.mxu0 %v1498
        %1502 = vmatprep.subr.bf16.mxu0 0
        %1503 = vmatpush1.bf16.xpose.msra.mxu0 0
        %1504 = vmatprep.subr.bf16.mxu0 0
        %1505 = vmatpush1.bf16.xpose.msra.mxu0 0
        %1506 = vmatprep.subr.bf16.mxu0 0
        %1507 = vmatpush1.bf16.xpose.msra.mxu0 0
        %1508 = vmatprep.subr.bf16.mxu0 0
        %1509 = vmatpush1.bf16.xpose.msra.mxu0 0
        %1510 = vmatprep.subr.bf16.mxu0 0
        %1511 = vmatpush1.bf16.xpose.msra.mxu0 0
        %1512 = vmatprep.subr.bf16.mxu0 0
        %1513 = vmatpush1.bf16.xpose.msra.mxu0 0
        %1514 = vmatprep.subr.bf16.mxu0 0
        %1515 = vmatpush1.bf16.xpose.msra.mxu0 0
        %1516 = vmatprep.subr.bf16.mxu0 0
        %1517 = vmatpush1.bf16.xpose.msra.mxu0 0
        %1518 = vmatprep.subr.bf16.mxu0 0
        %1519 = vmatpush1.bf16.xpose.msra.mxu0 0
        %1520 = vmatprep.subr.bf16.mxu0 0
        %1521 = vmatpush1.bf16.xpose.msra.mxu0 0
        %1522 = vmatprep.subr.bf16.mxu0 0
        %1523 = vmatpush1.bf16.xpose.msra.mxu0 0
        %1524 = vmatprep.subr.bf16.mxu0 0
        %1525 = vmatpush1.bf16.xpose.msra.mxu0 0
        %1526 = vmatprep.subr.bf16.mxu0 0
        %1527 = vmatpush1.bf16.xpose.msra.mxu0 0
        %1528 = vmatprep.subr.bf16.mxu0 0
        %1529 = vmatpush1.bf16.xpose.msra.mxu0 0
        %1530 = vmatprep.subr.bf16.mxu0 0
        %1531 = vmatpush1.bf16.xpose.msra.mxu0 0
        %1532 = vmatprep.mubr.bf16.mxu0 0
        %1533 = vmatmul.mubr.bf16.gmra.mrb[0].mxu0 %v1495
        %v1534 = vpop.f32.mrb[0].mxu0
        %v1535 = vadd.f32 0.0, %v1534
        %v1536 = vpop.f32.mrb[0].mxu0
        %v1537 = vpop.f32.mrb[0].mxu0
        %v1538 = vadd.f32 0.0, %v1537
        %v1539 = vpop.f32.mrb[0].mxu0
        %1540 = vdwg.mxu0
        %v1543 = vunpack.c.l.b16 %v1146
        %v1544 = vunpack.c.l.b16 %v1147
        %v1545 = vpack.c.b16 %v1544, %v1543
        %v1548 = vunpack.c.l.b16 %v1162
        %v1549 = vunpack.c.l.b16 %v1163
        %v1550 = vpack.c.b16 %v1549, %v1548
        %v1552 = vsel %vm1208, %v1545, 0
        %v1555 = vsel %vm1208, %v1550, 0
        %1557 = vmatprep.subr.bf16.mxu0 0
        %1558 = vmatpush1.bf16.xpose.msra.mxu0 %v1555
        %1559 = vmatprep.subr.bf16.mxu0 0
        %1560 = vmatpush1.bf16.xpose.msra.mxu0 0
        %1561 = vmatprep.subr.bf16.mxu0 0
        %1562 = vmatpush1.bf16.xpose.msra.mxu0 0
        %1563 = vmatprep.subr.bf16.mxu0 0
        %1564 = vmatpush1.bf16.xpose.msra.mxu0 0
        %1565 = vmatprep.subr.bf16.mxu0 0
        %1566 = vmatpush1.bf16.xpose.msra.mxu0 0
        %1567 = vmatprep.subr.bf16.mxu0 0
        %1568 = vmatpush1.bf16.xpose.msra.mxu0 0
        %1569 = vmatprep.subr.bf16.mxu0 0
        %1570 = vmatpush1.bf16.xpose.msra.mxu0 0
        %1571 = vmatprep.subr.bf16.mxu0 0
        %1572 = vmatpush1.bf16.xpose.msra.mxu0 0
        %1573 = vmatprep.subr.bf16.mxu0 0
        %1574 = vmatpush1.bf16.xpose.msra.mxu0 0
        %1575 = vmatprep.subr.bf16.mxu0 0
        %1576 = vmatpush1.bf16.xpose.msra.mxu0 0
        %1577 = vmatprep.subr.bf16.mxu0 0
        %1578 = vmatpush1.bf16.xpose.msra.mxu0 0
        %1579 = vmatprep.subr.bf16.mxu0 0
        %1580 = vmatpush1.bf16.xpose.msra.mxu0 0
        %1581 = vmatprep.subr.bf16.mxu0 0
        %1582 = vmatpush1.bf16.xpose.msra.mxu0 0
        %1583 = vmatprep.subr.bf16.mxu0 0
        %1584 = vmatpush1.bf16.xpose.msra.mxu0 0
        %1585 = vmatprep.subr.bf16.mxu0 0
        %1586 = vmatpush1.bf16.xpose.msra.mxu0 0
        %1587 = vmatprep.subr.bf16.mxu0 0
        %1588 = vmatpush1.bf16.xpose.msra.mxu0 0
        %1589 = vmatprep.mubr.bf16.mxu0 0
        %1590 = vmatmul.mubr.bf16.gmra.mrb[0].mxu0 %v1552
        %v1591 = vpop.f32.mrb[0].mxu0
        %v1592 = vadd.f32 0.0, %v1591
        %v1593 = vpop.f32.mrb[0].mxu0
        %v1594 = vpop.f32.mrb[0].mxu0
        %v1595 = vadd.f32 0.0, %v1594
        %v1596 = vpop.f32.mrb[0].mxu0
        %1597 = vdwg.mxu0
        %v1600 = vunpack.c.l.b16 %v1148
        %v1601 = vunpack.c.l.b16 %v1149
        %v1602 = vpack.c.b16 %v1601, %v1600
        %v1605 = vunpack.c.l.b16 %v1164
        %v1606 = vunpack.c.l.b16 %v1165
        %v1607 = vpack.c.b16 %v1606, %v1605
        %v1609 = vsel %vm1208, %v1602, 0
        %v1612 = vsel %vm1208, %v1607, 0
        %1614 = vmatprep.subr.bf16.mxu0 0
        %1615 = vmatpush1.bf16.xpose.msra.mxu0 %v1612
        %1616 = vmatprep.subr.bf16.mxu0 0
        %1617 = vmatpush1.bf16.xpose.msra.mxu0 0
        %1618 = vmatprep.subr.bf16.mxu0 0
        %1619 = vmatpush1.bf16.xpose.msra.mxu0 0
        %1620 = vmatprep.subr.bf16.mxu0 0
        %1621 = vmatpush1.bf16.xpose.msra.mxu0 0
        %1622 = vmatprep.subr.bf16.mxu0 0
        %1623 = vmatpush1.bf16.xpose.msra.mxu0 0
        %1624 = vmatprep.subr.bf16.mxu0 0
        %1625 = vmatpush1.bf16.xpose.msra.mxu0 0
        %1626 = vmatprep.subr.bf16.mxu0 0
        %1627 = vmatpush1.bf16.xpose.msra.mxu0 0
        %1628 = vmatprep.subr.bf16.mxu0 0
        %1629 = vmatpush1.bf16.xpose.msra.mxu0 0
        %1630 = vmatprep.subr.bf16.mxu0 0
        %1631 = vmatpush1.bf16.xpose.msra.mxu0 0
        %1632 = vmatprep.subr.bf16.mxu0 0
        %1633 = vmatpush1.bf16.xpose.msra.mxu0 0
        %1634 = vmatprep.subr.bf16.mxu0 0
        %1635 = vmatpush1.bf16.xpose.msra.mxu0 0
        %1636 = vmatprep.subr.bf16.mxu0 0
        %1637 = vmatpush1.bf16.xpose.msra.mxu0 0
        %1638 = vmatprep.subr.bf16.mxu0 0
        %1639 = vmatpush1.bf16.xpose.msra.mxu0 0
        %1640 = vmatprep.subr.bf16.mxu0 0
        %1641 = vmatpush1.bf16.xpose.msra.mxu0 0
        %1642 = vmatprep.subr.bf16.mxu0 0
        %1643 = vmatpush1.bf16.xpose.msra.mxu0 0
        %1644 = vmatprep.subr.bf16.mxu0 0
        %1645 = vmatpush1.bf16.xpose.msra.mxu0 0
        %1646 = vmatprep.mubr.bf16.mxu0 0
        %1647 = vmatmul.mubr.bf16.gmra.mrb[0].mxu0 %v1609
        %v1648 = vpop.f32.mrb[0].mxu0
        %v1649 = vadd.f32 0.0, %v1648
        %v1650 = vpop.f32.mrb[0].mxu0
        %v1651 = vpop.f32.mrb[0].mxu0
        %v1652 = vadd.f32 0.0, %v1651
        %v1653 = vpop.f32.mrb[0].mxu0
        %1654 = vdwg.mxu0
        %v1655 = vmul.f32 %v1250, 0.125
        %v1656 = vmul.f32 %v1253, 0.125
        %v1657 = vmul.f32 %v1307, 0.125
        %v1658 = vmul.f32 %v1310, 0.125
        %v1659 = vmul.f32 %v1364, 0.125
        %v1660 = vmul.f32 %v1367, 0.125
        %v1661 = vmul.f32 %v1421, 0.125
        %v1662 = vmul.f32 %v1424, 0.125
        %v1663 = vmul.f32 %v1478, 0.125
        %v1664 = vmul.f32 %v1481, 0.125
        %v1665 = vmul.f32 %v1535, 0.125
        %v1666 = vmul.f32 %v1538, 0.125
        %v1667 = vmul.f32 %v1592, 0.125
        %v1668 = vmul.f32 %v1595, 0.125
        %v1669 = vmul.f32 %v1649, 0.125
        %v1670 = vmul.f32 %v1652, 0.125
        %vm1671 = vcmask 130048
        %v1673 = vsel %vm1671, %v1655, 0
        %v1676 = vsel %vm1671, %v1656, 0
        %1678 = vmatprep.subr.mxu0 0.0
        %1679 = vmatpush1.msra.mxu0 %v1182
        %1680 = vmatprep.subr.mxu0 0.0
        %1681 = vmatpush1.msra.mxu0 %v1183
        %1682 = vmatprep.subr.mxu0 0.0
        %1683 = vmatpush1.msra.mxu0 0.0
        %1684 = vmatprep.subr.mxu0 0.0
        %1685 = vmatpush1.msra.mxu0 0.0
        %1686 = vmatprep.subr.mxu0 0.0
        %1687 = vmatpush1.msra.mxu0 0.0
        %1688 = vmatprep.subr.mxu0 0.0
        %1689 = vmatpush1.msra.mxu0 0.0
        %1690 = vmatprep.subr.mxu0 0.0
        %1691 = vmatpush1.msra.mxu0 0.0
        %1692 = vmatprep.subr.mxu0 0.0
        %1693 = vmatpush1.msra.mxu0 0.0
        %1694 = vmatprep.subr.mxu0 0.0
        %1695 = vmatpush1.msra.mxu0 0.0
        %1696 = vmatprep.subr.mxu0 0.0
        %1697 = vmatpush1.msra.mxu0 0.0
        %1698 = vmatprep.subr.mxu0 0.0
        %1699 = vmatpush1.msra.mxu0 0.0
        %1700 = vmatprep.subr.mxu0 0.0
        %1701 = vmatpush1.msra.mxu0 0.0
        %1702 = vmatprep.subr.mxu0 0.0
        %1703 = vmatpush1.msra.mxu0 0.0
        %1704 = vmatprep.subr.mxu0 0.0
        %1705 = vmatpush1.msra.mxu0 0.0
        %1706 = vmatprep.subr.mxu0 0.0
        %1707 = vmatpush1.msra.mxu0 0.0
        %1708 = vmatprep.subr.mxu0 0.0
        %1709 = vmatpush1.msra.mxu0 0.0
        %1710 = vmatprep.subr.mxu0 0.0
        %1711 = vmatpush1.msra.mxu0 0.0
        %1712 = vmatprep.subr.mxu0 0.0
        %1713 = vmatpush1.msra.mxu0 0.0
        %1714 = vmatprep.subr.mxu0 0.0
        %1715 = vmatpush1.msra.mxu0 0.0
        %1716 = vmatprep.subr.mxu0 0.0
        %1717 = vmatpush1.msra.mxu0 0.0
        %1718 = vmatprep.subr.mxu0 0.0
        %1719 = vmatpush1.msra.mxu0 0.0
        %1720 = vmatprep.subr.mxu0 0.0
        %1721 = vmatpush1.msra.mxu0 0.0
        %1722 = vmatprep.subr.mxu0 0.0
        %1723 = vmatpush1.msra.mxu0 0.0
        %1724 = vmatprep.subr.mxu0 0.0
        %1725 = vmatpush1.msra.mxu0 0.0
        %1726 = vmatprep.subr.mxu0 0.0
        %1727 = vmatpush1.msra.mxu0 0.0
        %1728 = vmatprep.subr.mxu0 0.0
        %1729 = vmatpush1.msra.mxu0 0.0
        %1730 = vmatprep.subr.mxu0 0.0
        %1731 = vmatpush1.msra.mxu0 0.0
        %1732 = vmatprep.subr.mxu0 0.0
        %1733 = vmatpush1.msra.mxu0 0.0
        %1734 = vmatprep.subr.mxu0 0.0
        %1735 = vmatpush1.msra.mxu0 0.0
        %1736 = vmatprep.subr.mxu0 0.0
        %1737 = vmatpush1.msra.mxu0 0.0
        %1738 = vmatprep.subr.mxu0 0.0
        %1739 = vmatpush1.msra.mxu0 0.0
        %1740 = vmatprep.subr.mxu0 0.0
        %1741 = vmatpush1.msra.mxu0 0.0
        %1742 = vmatprep.mubr.f32.mxu0 0.0
        %1743 = vmatmul.mubr.f32.gmra.mrb[0].mxu0 %v1673
        %v1744 = vpop.f32.mrb[0].mxu0
        %v1745 = vadd.f32 0.0, %v1744
        %v1746 = vpop.f32.mrb[0].mxu0
        %1747 = vmatprep.mubr.f32.mxu0 0.0
        %1748 = vmatmul.mubr.f32.gmra.mrb[0].mxu0 %v1676
        %v1749 = vpop.f32.mrb[0].mxu0
        %v1750 = vadd.f32 0.0, %v1749
        %v1751 = vpop.f32.mrb[0].mxu0
        %1752 = vdwg.mxu0
        %v1754 = vsel %vm1671, %v1657, 0
        %v1757 = vsel %vm1671, %v1658, 0
        %1759 = vmatprep.subr.mxu0 0.0
        %1760 = vmatpush1.msra.mxu0 %v1184
        %1761 = vmatprep.subr.mxu0 0.0
        %1762 = vmatpush1.msra.mxu0 %v1185
        %1763 = vmatprep.subr.mxu0 0.0
        %1764 = vmatpush1.msra.mxu0 0.0
        %1765 = vmatprep.subr.mxu0 0.0
        %1766 = vmatpush1.msra.mxu0 0.0
        %1767 = vmatprep.subr.mxu0 0.0
        %1768 = vmatpush1.msra.mxu0 0.0
        %1769 = vmatprep.subr.mxu0 0.0
        %1770 = vmatpush1.msra.mxu0 0.0
        %1771 = vmatprep.subr.mxu0 0.0
        %1772 = vmatpush1.msra.mxu0 0.0
        %1773 = vmatprep.subr.mxu0 0.0
        %1774 = vmatpush1.msra.mxu0 0.0
        %1775 = vmatprep.subr.mxu0 0.0
        %1776 = vmatpush1.msra.mxu0 0.0
        %1777 = vmatprep.subr.mxu0 0.0
        %1778 = vmatpush1.msra.mxu0 0.0
        %1779 = vmatprep.subr.mxu0 0.0
        %1780 = vmatpush1.msra.mxu0 0.0
        %1781 = vmatprep.subr.mxu0 0.0
        %1782 = vmatpush1.msra.mxu0 0.0
        %1783 = vmatprep.subr.mxu0 0.0
        %1784 = vmatpush1.msra.mxu0 0.0
        %1785 = vmatprep.subr.mxu0 0.0
        %1786 = vmatpush1.msra.mxu0 0.0
        %1787 = vmatprep.subr.mxu0 0.0
        %1788 = vmatpush1.msra.mxu0 0.0
        %1789 = vmatprep.subr.mxu0 0.0
        %1790 = vmatpush1.msra.mxu0 0.0
        %1791 = vmatprep.subr.mxu0 0.0
        %1792 = vmatpush1.msra.mxu0 0.0
        %1793 = vmatprep.subr.mxu0 0.0
        %1794 = vmatpush1.msra.mxu0 0.0
        %1795 = vmatprep.subr.mxu0 0.0
        %1796 = vmatpush1.msra.mxu0 0.0
        %1797 = vmatprep.subr.mxu0 0.0
        %1798 = vmatpush1.msra.mxu0 0.0
        %1799 = vmatprep.subr.mxu0 0.0
        %1800 = vmatpush1.msra.mxu0 0.0
        %1801 = vmatprep.subr.mxu0 0.0
        %1802 = vmatpush1.msra.mxu0 0.0
        %1803 = vmatprep.subr.mxu0 0.0
        %1804 = vmatpush1.msra.mxu0 0.0
        %1805 = vmatprep.subr.mxu0 0.0
        %1806 = vmatpush1.msra.mxu0 0.0
        %1807 = vmatprep.subr.mxu0 0.0
        %1808 = vmatpush1.msra.mxu0 0.0
        %1809 = vmatprep.subr.mxu0 0.0
        %1810 = vmatpush1.msra.mxu0 0.0
        %1811 = vmatprep.subr.mxu0 0.0
        %1812 = vmatpush1.msra.mxu0 0.0
        %1813 = vmatprep.subr.mxu0 0.0
        %1814 = vmatpush1.msra.mxu0 0.0
        %1815 = vmatprep.subr.mxu0 0.0
        %1816 = vmatpush1.msra.mxu0 0.0
        %1817 = vmatprep.subr.mxu0 0.0
        %1818 = vmatpush1.msra.mxu0 0.0
        %1819 = vmatprep.subr.mxu0 0.0
        %1820 = vmatpush1.msra.mxu0 0.0
        %1821 = vmatprep.subr.mxu0 0.0
        %1822 = vmatpush1.msra.mxu0 0.0
        %1823 = vmatprep.mubr.f32.mxu0 0.0
        %1824 = vmatmul.mubr.f32.gmra.mrb[0].mxu0 %v1754
        %v1825 = vpop.f32.mrb[0].mxu0
        %v1826 = vadd.f32 0.0, %v1825
        %v1827 = vpop.f32.mrb[0].mxu0
        %1828 = vmatprep.mubr.f32.mxu0 0.0
        %1829 = vmatmul.mubr.f32.gmra.mrb[0].mxu0 %v1757
        %v1830 = vpop.f32.mrb[0].mxu0
        %v1831 = vadd.f32 0.0, %v1830
        %v1832 = vpop.f32.mrb[0].mxu0
        %1833 = vdwg.mxu0
        %v1835 = vsel %vm1671, %v1659, 0
        %v1838 = vsel %vm1671, %v1660, 0
        %1840 = vmatprep.subr.mxu0 0.0
        %1841 = vmatpush1.msra.mxu0 %v1186
        %1842 = vmatprep.subr.mxu0 0.0
        %1843 = vmatpush1.msra.mxu0 %v1187
        %1844 = vmatprep.subr.mxu0 0.0
        %1845 = vmatpush1.msra.mxu0 0.0
        %1846 = vmatprep.subr.mxu0 0.0
        %1847 = vmatpush1.msra.mxu0 0.0
        %1848 = vmatprep.subr.mxu0 0.0
        %1849 = vmatpush1.msra.mxu0 0.0
        %1850 = vmatprep.subr.mxu0 0.0
        %1851 = vmatpush1.msra.mxu0 0.0
        %1852 = vmatprep.subr.mxu0 0.0
        %1853 = vmatpush1.msra.mxu0 0.0
        %1854 = vmatprep.subr.mxu0 0.0
        %1855 = vmatpush1.msra.mxu0 0.0
        %1856 = vmatprep.subr.mxu0 0.0
        %1857 = vmatpush1.msra.mxu0 0.0
        %1858 = vmatprep.subr.mxu0 0.0
        %1859 = vmatpush1.msra.mxu0 0.0
        %1860 = vmatprep.subr.mxu0 0.0
        %1861 = vmatpush1.msra.mxu0 0.0
        %1862 = vmatprep.subr.mxu0 0.0
        %1863 = vmatpush1.msra.mxu0 0.0
        %1864 = vmatprep.subr.mxu0 0.0
        %1865 = vmatpush1.msra.mxu0 0.0
        %1866 = vmatprep.subr.mxu0 0.0
        %1867 = vmatpush1.msra.mxu0 0.0
        %1868 = vmatprep.subr.mxu0 0.0
        %1869 = vmatpush1.msra.mxu0 0.0
        %1870 = vmatprep.subr.mxu0 0.0
        %1871 = vmatpush1.msra.mxu0 0.0
        %1872 = vmatprep.subr.mxu0 0.0
        %1873 = vmatpush1.msra.mxu0 0.0
        %1874 = vmatprep.subr.mxu0 0.0
        %1875 = vmatpush1.msra.mxu0 0.0
        %1876 = vmatprep.subr.mxu0 0.0
        %1877 = vmatpush1.msra.mxu0 0.0
        %1878 = vmatprep.subr.mxu0 0.0
        %1879 = vmatpush1.msra.mxu0 0.0
        %1880 = vmatprep.subr.mxu0 0.0
        %1881 = vmatpush1.msra.mxu0 0.0
        %1882 = vmatprep.subr.mxu0 0.0
        %1883 = vmatpush1.msra.mxu0 0.0
        %1884 = vmatprep.subr.mxu0 0.0
        %1885 = vmatpush1.msra.mxu0 0.0
        %1886 = vmatprep.subr.mxu0 0.0
        %1887 = vmatpush1.msra.mxu0 0.0
        %1888 = vmatprep.subr.mxu0 0.0
        %1889 = vmatpush1.msra.mxu0 0.0
        %1890 = vmatprep.subr.mxu0 0.0
        %1891 = vmatpush1.msra.mxu0 0.0
        %1892 = vmatprep.subr.mxu0 0.0
        %1893 = vmatpush1.msra.mxu0 0.0
        %1894 = vmatprep.subr.mxu0 0.0
        %1895 = vmatpush1.msra.mxu0 0.0
        %1896 = vmatprep.subr.mxu0 0.0
        %1897 = vmatpush1.msra.mxu0 0.0
        %1898 = vmatprep.subr.mxu0 0.0
        %1899 = vmatpush1.msra.mxu0 0.0
        %1900 = vmatprep.subr.mxu0 0.0
        %1901 = vmatpush1.msra.mxu0 0.0
        %1902 = vmatprep.subr.mxu0 0.0
        %1903 = vmatpush1.msra.mxu0 0.0
        %1904 = vmatprep.mubr.f32.mxu0 0.0
        %1905 = vmatmul.mubr.f32.gmra.mrb[0].mxu0 %v1835
        %v1906 = vpop.f32.mrb[0].mxu0
        %v1907 = vadd.f32 0.0, %v1906
        %v1908 = vpop.f32.mrb[0].mxu0
        %1909 = vmatprep.mubr.f32.mxu0 0.0
        %1910 = vmatmul.mubr.f32.gmra.mrb[0].mxu0 %v1838
        %v1911 = vpop.f32.mrb[0].mxu0
        %v1912 = vadd.f32 0.0, %v1911
        %v1913 = vpop.f32.mrb[0].mxu0
        %1914 = vdwg.mxu0
        %v1916 = vsel %vm1671, %v1661, 0
        %v1919 = vsel %vm1671, %v1662, 0
        %1921 = vmatprep.subr.mxu0 0.0
        %1922 = vmatpush1.msra.mxu0 %v1188
        %1923 = vmatprep.subr.mxu0 0.0
        %1924 = vmatpush1.msra.mxu0 %v1189
        %1925 = vmatprep.subr.mxu0 0.0
        %1926 = vmatpush1.msra.mxu0 0.0
        %1927 = vmatprep.subr.mxu0 0.0
        %1928 = vmatpush1.msra.mxu0 0.0
        %1929 = vmatprep.subr.mxu0 0.0
        %1930 = vmatpush1.msra.mxu0 0.0
        %1931 = vmatprep.subr.mxu0 0.0
        %1932 = vmatpush1.msra.mxu0 0.0
        %1933 = vmatprep.subr.mxu0 0.0
        %1934 = vmatpush1.msra.mxu0 0.0
        %1935 = vmatprep.subr.mxu0 0.0
        %1936 = vmatpush1.msra.mxu0 0.0
        %1937 = vmatprep.subr.mxu0 0.0
        %1938 = vmatpush1.msra.mxu0 0.0
        %1939 = vmatprep.subr.mxu0 0.0
        %1940 = vmatpush1.msra.mxu0 0.0
        %1941 = vmatprep.subr.mxu0 0.0
        %1942 = vmatpush1.msra.mxu0 0.0
        %1943 = vmatprep.subr.mxu0 0.0
        %1944 = vmatpush1.msra.mxu0 0.0
        %1945 = vmatprep.subr.mxu0 0.0
        %1946 = vmatpush1.msra.mxu0 0.0
        %1947 = vmatprep.subr.mxu0 0.0
        %1948 = vmatpush1.msra.mxu0 0.0
        %1949 = vmatprep.subr.mxu0 0.0
        %1950 = vmatpush1.msra.mxu0 0.0
        %1951 = vmatprep.subr.mxu0 0.0
        %1952 = vmatpush1.msra.mxu0 0.0
        %1953 = vmatprep.subr.mxu0 0.0
        %1954 = vmatpush1.msra.mxu0 0.0
        %1955 = vmatprep.subr.mxu0 0.0
        %1956 = vmatpush1.msra.mxu0 0.0
        %1957 = vmatprep.subr.mxu0 0.0
        %1958 = vmatpush1.msra.mxu0 0.0
        %1959 = vmatprep.subr.mxu0 0.0
        %1960 = vmatpush1.msra.mxu0 0.0
        %1961 = vmatprep.subr.mxu0 0.0
        %1962 = vmatpush1.msra.mxu0 0.0
        %1963 = vmatprep.subr.mxu0 0.0
        %1964 = vmatpush1.msra.mxu0 0.0
        %1965 = vmatprep.subr.mxu0 0.0
        %1966 = vmatpush1.msra.mxu0 0.0
        %1967 = vmatprep.subr.mxu0 0.0
        %1968 = vmatpush1.msra.mxu0 0.0
        %1969 = vmatprep.subr.mxu0 0.0
        %1970 = vmatpush1.msra.mxu0 0.0
        %1971 = vmatprep.subr.mxu0 0.0
        %1972 = vmatpush1.msra.mxu0 0.0
        %1973 = vmatprep.subr.mxu0 0.0
        %1974 = vmatpush1.msra.mxu0 0.0
        %1975 = vmatprep.subr.mxu0 0.0
        %1976 = vmatpush1.msra.mxu0 0.0
        %1977 = vmatprep.subr.mxu0 0.0
        %1978 = vmatpush1.msra.mxu0 0.0
        %1979 = vmatprep.subr.mxu0 0.0
        %1980 = vmatpush1.msra.mxu0 0.0
        %1981 = vmatprep.subr.mxu0 0.0
        %1982 = vmatpush1.msra.mxu0 0.0
        %1983 = vmatprep.subr.mxu0 0.0
        %1984 = vmatpush1.msra.mxu0 0.0
        %1985 = vmatprep.mubr.f32.mxu0 0.0
        %1986 = vmatmul.mubr.f32.gmra.mrb[0].mxu0 %v1916
        %v1987 = vpop.f32.mrb[0].mxu0
        %v1988 = vadd.f32 0.0, %v1987
        %v1989 = vpop.f32.mrb[0].mxu0
        %1990 = vmatprep.mubr.f32.mxu0 0.0
        %1991 = vmatmul.mubr.f32.gmra.mrb[0].mxu0 %v1919
        %v1992 = vpop.f32.mrb[0].mxu0
        %v1993 = vadd.f32 0.0, %v1992
        %v1994 = vpop.f32.mrb[0].mxu0
        %1995 = vdwg.mxu0
        %v1997 = vsel %vm1671, %v1663, 0
        %v2000 = vsel %vm1671, %v1664, 0
        %2002 = vmatprep.subr.mxu0 0.0
        %2003 = vmatpush1.msra.mxu0 %v1190
        %2004 = vmatprep.subr.mxu0 0.0
        %2005 = vmatpush1.msra.mxu0 %v1191
        %2006 = vmatprep.subr.mxu0 0.0
        %2007 = vmatpush1.msra.mxu0 0.0
        %2008 = vmatprep.subr.mxu0 0.0
        %2009 = vmatpush1.msra.mxu0 0.0
        %2010 = vmatprep.subr.mxu0 0.0
        %2011 = vmatpush1.msra.mxu0 0.0
        %2012 = vmatprep.subr.mxu0 0.0
        %2013 = vmatpush1.msra.mxu0 0.0
        %2014 = vmatprep.subr.mxu0 0.0
        %2015 = vmatpush1.msra.mxu0 0.0
        %2016 = vmatprep.subr.mxu0 0.0
        %2017 = vmatpush1.msra.mxu0 0.0
        %2018 = vmatprep.subr.mxu0 0.0
        %2019 = vmatpush1.msra.mxu0 0.0
        %2020 = vmatprep.subr.mxu0 0.0
        %2021 = vmatpush1.msra.mxu0 0.0
        %2022 = vmatprep.subr.mxu0 0.0
        %2023 = vmatpush1.msra.mxu0 0.0
        %2024 = vmatprep.subr.mxu0 0.0
        %2025 = vmatpush1.msra.mxu0 0.0
        %2026 = vmatprep.subr.mxu0 0.0
        %2027 = vmatpush1.msra.mxu0 0.0
        %2028 = vmatprep.subr.mxu0 0.0
        %2029 = vmatpush1.msra.mxu0 0.0
        %2030 = vmatprep.subr.mxu0 0.0
        %2031 = vmatpush1.msra.mxu0 0.0
        %2032 = vmatprep.subr.mxu0 0.0
        %2033 = vmatpush1.msra.mxu0 0.0
        %2034 = vmatprep.subr.mxu0 0.0
        %2035 = vmatpush1.msra.mxu0 0.0
        %2036 = vmatprep.subr.mxu0 0.0
        %2037 = vmatpush1.msra.mxu0 0.0
        %2038 = vmatprep.subr.mxu0 0.0
        %2039 = vmatpush1.msra.mxu0 0.0
        %2040 = vmatprep.subr.mxu0 0.0
        %2041 = vmatpush1.msra.mxu0 0.0
        %2042 = vmatprep.subr.mxu0 0.0
        %2043 = vmatpush1.msra.mxu0 0.0
        %2044 = vmatprep.subr.mxu0 0.0
        %2045 = vmatpush1.msra.mxu0 0.0
        %2046 = vmatprep.subr.mxu0 0.0
        %2047 = vmatpush1.msra.mxu0 0.0
        %2048 = vmatprep.subr.mxu0 0.0
        %2049 = vmatpush1.msra.mxu0 0.0
        %2050 = vmatprep.subr.mxu0 0.0
        %2051 = vmatpush1.msra.mxu0 0.0
        %2052 = vmatprep.subr.mxu0 0.0
        %2053 = vmatpush1.msra.mxu0 0.0
        %2054 = vmatprep.subr.mxu0 0.0
        %2055 = vmatpush1.msra.mxu0 0.0
        %2056 = vmatprep.subr.mxu0 0.0
        %2057 = vmatpush1.msra.mxu0 0.0
        %2058 = vmatprep.subr.mxu0 0.0
        %2059 = vmatpush1.msra.mxu0 0.0
        %2060 = vmatprep.subr.mxu0 0.0
        %2061 = vmatpush1.msra.mxu0 0.0
        %2062 = vmatprep.subr.mxu0 0.0
        %2063 = vmatpush1.msra.mxu0 0.0
        %2064 = vmatprep.subr.mxu0 0.0
        %2065 = vmatpush1.msra.mxu0 0.0
        %2066 = vmatprep.mubr.f32.mxu0 0.0
        %2067 = vmatmul.mubr.f32.gmra.mrb[0].mxu0 %v1997
        %v2068 = vpop.f32.mrb[0].mxu0
        %v2069 = vadd.f32 0.0, %v2068
        %v2070 = vpop.f32.mrb[0].mxu0
        %2071 = vmatprep.mubr.f32.mxu0 0.0
        %2072 = vmatmul.mubr.f32.gmra.mrb[0].mxu0 %v2000
        %v2073 = vpop.f32.mrb[0].mxu0
        %v2074 = vadd.f32 0.0, %v2073
        %v2075 = vpop.f32.mrb[0].mxu0
        %2076 = vdwg.mxu0
        %v2078 = vsel %vm1671, %v1665, 0
        %v2081 = vsel %vm1671, %v1666, 0
        %2083 = vmatprep.subr.mxu0 0.0
        %2084 = vmatpush1.msra.mxu0 %v1192
        %2085 = vmatprep.subr.mxu0 0.0
        %2086 = vmatpush1.msra.mxu0 %v1193
        %2087 = vmatprep.subr.mxu0 0.0
        %2088 = vmatpush1.msra.mxu0 0.0
        %2089 = vmatprep.subr.mxu0 0.0
        %2090 = vmatpush1.msra.mxu0 0.0
        %2091 = vmatprep.subr.mxu0 0.0
        %2092 = vmatpush1.msra.mxu0 0.0
        %2093 = vmatprep.subr.mxu0 0.0
        %2094 = vmatpush1.msra.mxu0 0.0
        %2095 = vmatprep.subr.mxu0 0.0
        %2096 = vmatpush1.msra.mxu0 0.0
        %2097 = vmatprep.subr.mxu0 0.0
        %2098 = vmatpush1.msra.mxu0 0.0
        %2099 = vmatprep.subr.mxu0 0.0
        %2100 = vmatpush1.msra.mxu0 0.0
        %2101 = vmatprep.subr.mxu0 0.0
        %2102 = vmatpush1.msra.mxu0 0.0
        %2103 = vmatprep.subr.mxu0 0.0
        %2104 = vmatpush1.msra.mxu0 0.0
        %2105 = vmatprep.subr.mxu0 0.0
        %2106 = vmatpush1.msra.mxu0 0.0
        %2107 = vmatprep.subr.mxu0 0.0
        %2108 = vmatpush1.msra.mxu0 0.0
        %2109 = vmatprep.subr.mxu0 0.0
        %2110 = vmatpush1.msra.mxu0 0.0
        %2111 = vmatprep.subr.mxu0 0.0
        %2112 = vmatpush1.msra.mxu0 0.0
        %2113 = vmatprep.subr.mxu0 0.0
        %2114 = vmatpush1.msra.mxu0 0.0
        %2115 = vmatprep.subr.mxu0 0.0
        %2116 = vmatpush1.msra.mxu0 0.0
        %2117 = vmatprep.subr.mxu0 0.0
        %2118 = vmatpush1.msra.mxu0 0.0
        %2119 = vmatprep.subr.mxu0 0.0
        %2120 = vmatpush1.msra.mxu0 0.0
        %2121 = vmatprep.subr.mxu0 0.0
        %2122 = vmatpush1.msra.mxu0 0.0
        %2123 = vmatprep.subr.mxu0 0.0
        %2124 = vmatpush1.msra.mxu0 0.0
        %2125 = vmatprep.subr.mxu0 0.0
        %2126 = vmatpush1.msra.mxu0 0.0
        %2127 = vmatprep.subr.mxu0 0.0
        %2128 = vmatpush1.msra.mxu0 0.0
        %2129 = vmatprep.subr.mxu0 0.0
        %2130 = vmatpush1.msra.mxu0 0.0
        %2131 = vmatprep.subr.mxu0 0.0
        %2132 = vmatpush1.msra.mxu0 0.0
        %2133 = vmatprep.subr.mxu0 0.0
        %2134 = vmatpush1.msra.mxu0 0.0
        %2135 = vmatprep.subr.mxu0 0.0
        %2136 = vmatpush1.msra.mxu0 0.0
        %2137 = vmatprep.subr.mxu0 0.0
        %2138 = vmatpush1.msra.mxu0 0.0
        %2139 = vmatprep.subr.mxu0 0.0
        %2140 = vmatpush1.msra.mxu0 0.0
        %2141 = vmatprep.subr.mxu0 0.0
        %2142 = vmatpush1.msra.mxu0 0.0
        %2143 = vmatprep.subr.mxu0 0.0
        %2144 = vmatpush1.msra.mxu0 0.0
        %2145 = vmatprep.subr.mxu0 0.0
        %2146 = vmatpush1.msra.mxu0 0.0
        %2147 = vmatprep.mubr.f32.mxu0 0.0
        %2148 = vmatmul.mubr.f32.gmra.mrb[0].mxu0 %v2078
        %v2149 = vpop.f32.mrb[0].mxu0
        %v2150 = vadd.f32 0.0, %v2149
        %v2151 = vpop.f32.mrb[0].mxu0
        %2152 = vmatprep.mubr.f32.mxu0 0.0
        %2153 = vmatmul.mubr.f32.gmra.mrb[0].mxu0 %v2081
        %v2154 = vpop.f32.mrb[0].mxu0
        %v2155 = vadd.f32 0.0, %v2154
        %v2156 = vpop.f32.mrb[0].mxu0
        %2157 = vdwg.mxu0
        %v2159 = vsel %vm1671, %v1667, 0
        %v2162 = vsel %vm1671, %v1668, 0
        %2164 = vmatprep.subr.mxu0 0.0
        %2165 = vmatpush1.msra.mxu0 %v1194
        %2166 = vmatprep.subr.mxu0 0.0
        %2167 = vmatpush1.msra.mxu0 %v1195
        %2168 = vmatprep.subr.mxu0 0.0
        %2169 = vmatpush1.msra.mxu0 0.0
        %2170 = vmatprep.subr.mxu0 0.0
        %2171 = vmatpush1.msra.mxu0 0.0
        %2172 = vmatprep.subr.mxu0 0.0
        %2173 = vmatpush1.msra.mxu0 0.0
        %2174 = vmatprep.subr.mxu0 0.0
        %2175 = vmatpush1.msra.mxu0 0.0
        %2176 = vmatprep.subr.mxu0 0.0
        %2177 = vmatpush1.msra.mxu0 0.0
        %2178 = vmatprep.subr.mxu0 0.0
        %2179 = vmatpush1.msra.mxu0 0.0
        %2180 = vmatprep.subr.mxu0 0.0
        %2181 = vmatpush1.msra.mxu0 0.0
        %2182 = vmatprep.subr.mxu0 0.0
        %2183 = vmatpush1.msra.mxu0 0.0
        %2184 = vmatprep.subr.mxu0 0.0
        %2185 = vmatpush1.msra.mxu0 0.0
        %2186 = vmatprep.subr.mxu0 0.0
        %2187 = vmatpush1.msra.mxu0 0.0
        %2188 = vmatprep.subr.mxu0 0.0
        %2189 = vmatpush1.msra.mxu0 0.0
        %2190 = vmatprep.subr.mxu0 0.0
        %2191 = vmatpush1.msra.mxu0 0.0
        %2192 = vmatprep.subr.mxu0 0.0
        %2193 = vmatpush1.msra.mxu0 0.0
        %2194 = vmatprep.subr.mxu0 0.0
        %2195 = vmatpush1.msra.mxu0 0.0
        %2196 = vmatprep.subr.mxu0 0.0
        %2197 = vmatpush1.msra.mxu0 0.0
        %2198 = vmatprep.subr.mxu0 0.0
        %2199 = vmatpush1.msra.mxu0 0.0
        %2200 = vmatprep.subr.mxu0 0.0
        %2201 = vmatpush1.msra.mxu0 0.0
        %2202 = vmatprep.subr.mxu0 0.0
        %2203 = vmatpush1.msra.mxu0 0.0
        %2204 = vmatprep.subr.mxu0 0.0
        %2205 = vmatpush1.msra.mxu0 0.0
        %2206 = vmatprep.subr.mxu0 0.0
        %2207 = vmatpush1.msra.mxu0 0.0
        %2208 = vmatprep.subr.mxu0 0.0
        %2209 = vmatpush1.msra.mxu0 0.0
        %2210 = vmatprep.subr.mxu0 0.0
        %2211 = vmatpush1.msra.mxu0 0.0
        %2212 = vmatprep.subr.mxu0 0.0
        %2213 = vmatpush1.msra.mxu0 0.0
        %2214 = vmatprep.subr.mxu0 0.0
        %2215 = vmatpush1.msra.mxu0 0.0
        %2216 = vmatprep.subr.mxu0 0.0
        %2217 = vmatpush1.msra.mxu0 0.0
        %2218 = vmatprep.subr.mxu0 0.0
        %2219 = vmatpush1.msra.mxu0 0.0
        %2220 = vmatprep.subr.mxu0 0.0
        %2221 = vmatpush1.msra.mxu0 0.0
        %2222 = vmatprep.subr.mxu0 0.0
        %2223 = vmatpush1.msra.mxu0 0.0
        %2224 = vmatprep.subr.mxu0 0.0
        %2225 = vmatpush1.msra.mxu0 0.0
        %2226 = vmatprep.subr.mxu0 0.0
        %2227 = vmatpush1.msra.mxu0 0.0
        %2228 = vmatprep.mubr.f32.mxu0 0.0
        %2229 = vmatmul.mubr.f32.gmra.mrb[0].mxu0 %v2159
        %v2230 = vpop.f32.mrb[0].mxu0
        %v2231 = vadd.f32 0.0, %v2230
        %v2232 = vpop.f32.mrb[0].mxu0
        %2233 = vmatprep.mubr.f32.mxu0 0.0
        %2234 = vmatmul.mubr.f32.gmra.mrb[0].mxu0 %v2162
        %v2235 = vpop.f32.mrb[0].mxu0
        %v2236 = vadd.f32 0.0, %v2235
        %v2237 = vpop.f32.mrb[0].mxu0
        %2238 = vdwg.mxu0
        %v2240 = vsel %vm1671, %v1669, 0
        %v2243 = vsel %vm1671, %v1670, 0
        %2245 = vmatprep.subr.mxu0 0.0
        %2246 = vmatpush1.msra.mxu0 %v1196
        %2247 = vmatprep.subr.mxu0 0.0
        %2248 = vmatpush1.msra.mxu0 %v1197
        %2249 = vmatprep.subr.mxu0 0.0
        %2250 = vmatpush1.msra.mxu0 0.0
        %2251 = vmatprep.subr.mxu0 0.0
        %2252 = vmatpush1.msra.mxu0 0.0
        %2253 = vmatprep.subr.mxu0 0.0
        %2254 = vmatpush1.msra.mxu0 0.0
        %2255 = vmatprep.subr.mxu0 0.0
        %2256 = vmatpush1.msra.mxu0 0.0
        %2257 = vmatprep.subr.mxu0 0.0
        %2258 = vmatpush1.msra.mxu0 0.0
        %2259 = vmatprep.subr.mxu0 0.0
        %2260 = vmatpush1.msra.mxu0 0.0
        %2261 = vmatprep.subr.mxu0 0.0
        %2262 = vmatpush1.msra.mxu0 0.0
        %2263 = vmatprep.subr.mxu0 0.0
        %2264 = vmatpush1.msra.mxu0 0.0
        %2265 = vmatprep.subr.mxu0 0.0
        %2266 = vmatpush1.msra.mxu0 0.0
        %2267 = vmatprep.subr.mxu0 0.0
        %2268 = vmatpush1.msra.mxu0 0.0
        %2269 = vmatprep.subr.mxu0 0.0
        %2270 = vmatpush1.msra.mxu0 0.0
        %2271 = vmatprep.subr.mxu0 0.0
        %2272 = vmatpush1.msra.mxu0 0.0
        %2273 = vmatprep.subr.mxu0 0.0
        %2274 = vmatpush1.msra.mxu0 0.0
        %2275 = vmatprep.subr.mxu0 0.0
        %2276 = vmatpush1.msra.mxu0 0.0
        %2277 = vmatprep.subr.mxu0 0.0
        %2278 = vmatpush1.msra.mxu0 0.0
        %2279 = vmatprep.subr.mxu0 0.0
        %2280 = vmatpush1.msra.mxu0 0.0
        %2281 = vmatprep.subr.mxu0 0.0
        %2282 = vmatpush1.msra.mxu0 0.0
        %2283 = vmatprep.subr.mxu0 0.0
        %2284 = vmatpush1.msra.mxu0 0.0
        %2285 = vmatprep.subr.mxu0 0.0
        %2286 = vmatpush1.msra.mxu0 0.0
        %2287 = vmatprep.subr.mxu0 0.0
        %2288 = vmatpush1.msra.mxu0 0.0
        %2289 = vmatprep.subr.mxu0 0.0
        %2290 = vmatpush1.msra.mxu0 0.0
        %2291 = vmatprep.subr.mxu0 0.0
        %2292 = vmatpush1.msra.mxu0 0.0
        %2293 = vmatprep.subr.mxu0 0.0
        %2294 = vmatpush1.msra.mxu0 0.0
        %2295 = vmatprep.subr.mxu0 0.0
        %2296 = vmatpush1.msra.mxu0 0.0
        %2297 = vmatprep.subr.mxu0 0.0
        %2298 = vmatpush1.msra.mxu0 0.0
        %2299 = vmatprep.subr.mxu0 0.0
        %2300 = vmatpush1.msra.mxu0 0.0
        %2301 = vmatprep.subr.mxu0 0.0
        %2302 = vmatpush1.msra.mxu0 0.0
        %2303 = vmatprep.subr.mxu0 0.0
        %2304 = vmatpush1.msra.mxu0 0.0
        %2305 = vmatprep.subr.mxu0 0.0
        %2306 = vmatpush1.msra.mxu0 0.0
        %2307 = vmatprep.subr.mxu0 0.0
        %2308 = vmatpush1.msra.mxu0 0.0
        %2309 = vmatprep.mubr.f32.mxu0 0.0
        %2310 = vmatmul.mubr.f32.gmra.mrb[0].mxu0 %v2240
        %v2311 = vpop.f32.mrb[0].mxu0
        %v2312 = vadd.f32 0.0, %v2311
        %v2313 = vpop.f32.mrb[0].mxu0
        %2314 = vmatprep.mubr.f32.mxu0 0.0
        %2315 = vmatmul.mubr.f32.gmra.mrb[0].mxu0 %v2243
        %v2316 = vpop.f32.mrb[0].mxu0
        %v2317 = vadd.f32 0.0, %v2316
        %v2318 = vpop.f32.mrb[0].mxu0
        %2319 = vdwg.mxu0
        %2320 = vst.msk [vmem:[%s1121] sm:$0xff] %vm1671, %v1655
        %2321 = vst.msk [vmem:[%s1121 + $0x8] sm:$0xff] %vm1671, %v1656
        %2322 = vst.msk [vmem:[%s1121 + $0x10] sm:$0xff] %vm1671, %v1657
        %2323 = vst.msk [vmem:[%s1121 + $0x18] sm:$0xff] %vm1671, %v1658
        %2324 = vst.msk [vmem:[%s1121 + $0x20] sm:$0xff] %vm1671, %v1659
        %2325 = vst.msk [vmem:[%s1121 + $0x28] sm:$0xff] %vm1671, %v1660
        %2326 = vst.msk [vmem:[%s1121 + $0x30] sm:$0xff] %vm1671, %v1661
        %2327 = vst.msk [vmem:[%s1121 + $0x38] sm:$0xff] %vm1671, %v1662
        %2328 = vst.msk [vmem:[%s1121 + $0x40] sm:$0xff] %vm1671, %v1663
        %2329 = vst.msk [vmem:[%s1121 + $0x48] sm:$0xff] %vm1671, %v1664
        %2330 = vst.msk [vmem:[%s1121 + $0x50] sm:$0xff] %vm1671, %v1665
        %2331 = vst.msk [vmem:[%s1121 + $0x58] sm:$0xff] %vm1671, %v1666
        %2332 = vst.msk [vmem:[%s1121 + $0x60] sm:$0xff] %vm1671, %v1667
        %2333 = vst.msk [vmem:[%s1121 + $0x68] sm:$0xff] %vm1671, %v1668
        %2334 = vst.msk [vmem:[%s1121 + $0x70] sm:$0xff] %vm1671, %v1669
        %2335 = vst.msk [vmem:[%s1121 + $0x78] sm:$0xff] %vm1671, %v1670
        %v2336 = vmul.f32 %v1745, 0.5
        %v2337 = vmul.f32 %v1750, 0.5
        %v2338 = vmul.f32 %v1826, 0.5
        %v2339 = vmul.f32 %v1831, 0.5
        %v2340 = vmul.f32 %v1907, 0.5
        %v2341 = vmul.f32 %v1912, 0.5
        %v2342 = vmul.f32 %v1988, 0.5
        %v2343 = vmul.f32 %v1993, 0.5
        %v2344 = vmul.f32 %v2069, 0.5
        %v2345 = vmul.f32 %v2074, 0.5
        %v2346 = vmul.f32 %v2150, 0.5
        %v2347 = vmul.f32 %v2155, 0.5
        %v2348 = vmul.f32 %v2231, 0.5
        %v2349 = vmul.f32 %v2236, 0.5
        %v2350 = vmul.f32 %v2312, 0.5
        %v2351 = vmul.f32 %v2317, 0.5
        %v2352 = vadd.f32 %v2336, 0.0
        %v2353 = vadd.f32 %v2337, 0.0
        %v2354 = vadd.f32 %v2338, 0.0
        %v2355 = vadd.f32 %v2339, 0.0
        %v2356 = vadd.f32 %v2340, 0.0
        %v2357 = vadd.f32 %v2341, 0.0
        %v2358 = vadd.f32 %v2342, 0.0
        %v2359 = vadd.f32 %v2343, 0.0
        %v2360 = vadd.f32 %v2344, 0.0
        %v2361 = vadd.f32 %v2345, 0.0
        %v2362 = vadd.f32 %v2346, 0.0
        %v2363 = vadd.f32 %v2347, 0.0
        %v2364 = vadd.f32 %v2348, 0.0
        %v2365 = vadd.f32 %v2349, 0.0
        %v2366 = vadd.f32 %v2350, 0.0
        %v2367 = vadd.f32 %v2351, 0.0
        %vm2368 = vcmp.ge.f32.partialorder %v2352, 0.5
        %vm2369 = vcmp.ge.f32.partialorder %v2353, 0.5
        %vm2370 = vcmp.ge.f32.partialorder %v2354, 0.5
        %vm2371 = vcmp.ge.f32.partialorder %v2355, 0.5
        %vm2372 = vcmp.ge.f32.partialorder %v2356, 0.5
        %vm2373 = vcmp.ge.f32.partialorder %v2357, 0.5
        %vm2374 = vcmp.ge.f32.partialorder %v2358, 0.5
        %vm2375 = vcmp.ge.f32.partialorder %v2359, 0.5
        %vm2376 = vcmp.ge.f32.partialorder %v2360, 0.5
        %vm2377 = vcmp.ge.f32.partialorder %v2361, 0.5
        %vm2378 = vcmp.ge.f32.partialorder %v2362, 0.5
        %vm2379 = vcmp.ge.f32.partialorder %v2363, 0.5
        %vm2380 = vcmp.ge.f32.partialorder %v2364, 0.5
        %vm2381 = vcmp.ge.f32.partialorder %v2365, 0.5
        %vm2382 = vcmp.ge.f32.partialorder %v2366, 0.5
        %vm2383 = vcmp.ge.f32.partialorder %v2367, 0.5
        %v2384 = vsel %vm2368, 1, 0
        %v2385 = vsel %vm2369, 1, 0
        %v2386 = vsel %vm2370, 1, 0
        %v2387 = vsel %vm2371, 1, 0
        %v2388 = vsel %vm2372, 1, 0
        %v2389 = vsel %vm2373, 1, 0
        %v2390 = vsel %vm2374, 1, 0
        %v2391 = vsel %vm2375, 1, 0
        %v2392 = vsel %vm2376, 1, 0
        %v2393 = vsel %vm2377, 1, 0
        %v2394 = vsel %vm2378, 1, 0
        %v2395 = vsel %vm2379, 1, 0
        %v2396 = vsel %vm2380, 1, 0
        %v2397 = vsel %vm2381, 1, 0
        %v2398 = vsel %vm2382, 1, 0
        %v2399 = vsel %vm2383, 1, 0
        %v2400 = vcvt.s32.f32 %v2384
        %v2401 = vcvt.s32.f32 %v2385
        %v2402 = vcvt.s32.f32 %v2386
        %v2403 = vcvt.s32.f32 %v2387
        %v2404 = vcvt.s32.f32 %v2388
        %v2405 = vcvt.s32.f32 %v2389
        %v2406 = vcvt.s32.f32 %v2390
        %v2407 = vcvt.s32.f32 %v2391
        %v2408 = vcvt.s32.f32 %v2392
        %v2409 = vcvt.s32.f32 %v2393
        %v2410 = vcvt.s32.f32 %v2394
        %v2411 = vcvt.s32.f32 %v2395
        %v2412 = vcvt.s32.f32 %v2396
        %v2413 = vcvt.s32.f32 %v2397
        %v2414 = vcvt.s32.f32 %v2398
        %v2415 = vcvt.s32.f32 %v2399
        %2416 = vst.msk [vmem:[%s1127] sm:$0xff] %vm1208, %v2400
        %2417 = vst.msk [vmem:[%s1127 + $0x8] sm:$0xff] %vm1208, %v2401
        %2418 = vst.msk [vmem:[%s1127 + $0x10] sm:$0xff] %vm1208, %v2402
        %2419 = vst.msk [vmem:[%s1127 + $0x18] sm:$0xff] %vm1208, %v2403
        %2420 = vst.msk [vmem:[%s1127 + $0x20] sm:$0xff] %vm1208, %v2404
        %2421 = vst.msk [vmem:[%s1127 + $0x28] sm:$0xff] %vm1208, %v2405
        %2422 = vst.msk [vmem:[%s1127 + $0x30] sm:$0xff] %vm1208, %v2406
        %2423 = vst.msk [vmem:[%s1127 + $0x38] sm:$0xff] %vm1208, %v2407
        %2424 = vst.msk [vmem:[%s1127 + $0x40] sm:$0xff] %vm1208, %v2408
        %2425 = vst.msk [vmem:[%s1127 + $0x48] sm:$0xff] %vm1208, %v2409
        %2426 = vst.msk [vmem:[%s1127 + $0x50] sm:$0xff] %vm1208, %v2410
        %2427 = vst.msk [vmem:[%s1127 + $0x58] sm:$0xff] %vm1208, %v2411
        %2428 = vst.msk [vmem:[%s1127 + $0x60] sm:$0xff] %vm1208, %v2412
        %2429 = vst.msk [vmem:[%s1127 + $0x68] sm:$0xff] %vm1208, %v2413
        %2430 = vst.msk [vmem:[%s1127 + $0x70] sm:$0xff] %vm1208, %v2414
        %2431 = vst.msk [vmem:[%s1127 + $0x78] sm:$0xff] %vm1208, %v2415
        %v2432 = vsub.f32 1.0, %v2400
        %v2433 = vsub.f32 1.0, %v2401
        %v2434 = vsub.f32 1.0, %v2402
        %v2435 = vsub.f32 1.0, %v2403
        %v2436 = vsub.f32 1.0, %v2404
        %v2437 = vsub.f32 1.0, %v2405
        %v2438 = vsub.f32 1.0, %v2406
        %v2439 = vsub.f32 1.0, %v2407
        %v2440 = vsub.f32 1.0, %v2408
        %v2441 = vsub.f32 1.0, %v2409
        %v2442 = vsub.f32 1.0, %v2410
        %v2443 = vsub.f32 1.0, %v2411
        %v2444 = vsub.f32 1.0, %v2412
        %v2445 = vsub.f32 1.0, %v2413
        %v2446 = vsub.f32 1.0, %v2414
        %v2447 = vsub.f32 1.0, %v2415
        %v2448 = vmul.f32 %v2352, %v2432
        %v2449 = vmul.f32 %v2353, %v2433
        %v2450 = vmul.f32 %v2354, %v2434
        %v2451 = vmul.f32 %v2355, %v2435
        %v2452 = vmul.f32 %v2356, %v2436
        %v2453 = vmul.f32 %v2357, %v2437
        %v2454 = vmul.f32 %v2358, %v2438
        %v2455 = vmul.f32 %v2359, %v2439
        %v2456 = vmul.f32 %v2360, %v2440
        %v2457 = vmul.f32 %v2361, %v2441
        %v2458 = vmul.f32 %v2362, %v2442
        %v2459 = vmul.f32 %v2363, %v2443
        %v2460 = vmul.f32 %v2364, %v2444
        %v2461 = vmul.f32 %v2365, %v2445
        %v2462 = vmul.f32 %v2366, %v2446
        %v2463 = vmul.f32 %v2367, %v2447
        %s2464 = scalar_lea.vmem %s1079, 64 [#allocation2]
        %v2465 = vld [vmem:[%s2464] sm:$0xf]
        %v2466 = vld [vmem:[%s2464 + $0x4] sm:$0xf]
        %v2467 = vld [vmem:[%s2464 + $0x8] sm:$0xf]
        %v2468 = vld [vmem:[%s2464 + $0xc] sm:$0xf]
        %v2469 = vld [vmem:[%s2464 + $0x10] sm:$0xf]
        %v2470 = vld [vmem:[%s2464 + $0x14] sm:$0xf]
        %v2471 = vld [vmem:[%s2464 + $0x18] sm:$0xf]
        %v2472 = vld [vmem:[%s2464 + $0x1c] sm:$0xf]
        %v2473 = vld [vmem:[%s2464 + $0x20] sm:$0xf]
        %v2474 = vld [vmem:[%s2464 + $0x24] sm:$0xf]
        %v2475 = vld [vmem:[%s2464 + $0x28] sm:$0xf]
        %v2476 = vld [vmem:[%s2464 + $0x2c] sm:$0xf]
        %v2477 = vld [vmem:[%s2464 + $0x30] sm:$0xf]
        %v2478 = vld [vmem:[%s2464 + $0x34] sm:$0xf]
        %v2479 = vld [vmem:[%s2464 + $0x38] sm:$0xf]
        %v2480 = vld [vmem:[%s2464 + $0x3c] sm:$0xf]
        %s2481 = scalar_lea.vmem %s1086, 64 [#allocation3]
        %v2482 = vld [vmem:[%s2481] sm:$0xf]
        %v2483 = vld [vmem:[%s2481 + $0x4] sm:$0xf]
        %v2484 = vld [vmem:[%s2481 + $0x8] sm:$0xf]
        %v2485 = vld [vmem:[%s2481 + $0xc] sm:$0xf]
        %v2486 = vld [vmem:[%s2481 + $0x10] sm:$0xf]
        %v2487 = vld [vmem:[%s2481 + $0x14] sm:$0xf]
        %v2488 = vld [vmem:[%s2481 + $0x18] sm:$0xf]
        %v2489 = vld [vmem:[%s2481 + $0x1c] sm:$0xf]
        %v2490 = vld [vmem:[%s2481 + $0x20] sm:$0xf]
        %v2491 = vld [vmem:[%s2481 + $0x24] sm:$0xf]
        %v2492 = vld [vmem:[%s2481 + $0x28] sm:$0xf]
        %v2493 = vld [vmem:[%s2481 + $0x2c] sm:$0xf]
        %v2494 = vld [vmem:[%s2481 + $0x30] sm:$0xf]
        %v2495 = vld [vmem:[%s2481 + $0x34] sm:$0xf]
        %v2496 = vld [vmem:[%s2481 + $0x38] sm:$0xf]
        %v2497 = vld [vmem:[%s2481 + $0x3c] sm:$0xf]
        %s2498 = scalar_lea.vmem %s1093, 64 [#allocation4]
        %v2499 = vld [vmem:[%s2498] sm:$0xf]
        %v2500 = vld [vmem:[%s2498 + $0x4] sm:$0xf]
        %v2501 = vld [vmem:[%s2498 + $0x8] sm:$0xf]
        %v2502 = vld [vmem:[%s2498 + $0xc] sm:$0xf]
        %v2503 = vld [vmem:[%s2498 + $0x10] sm:$0xf]
        %v2504 = vld [vmem:[%s2498 + $0x14] sm:$0xf]
        %v2505 = vld [vmem:[%s2498 + $0x18] sm:$0xf]
        %v2506 = vld [vmem:[%s2498 + $0x1c] sm:$0xf]
        %v2507 = vld [vmem:[%s2498 + $0x20] sm:$0xf]
        %v2508 = vld [vmem:[%s2498 + $0x24] sm:$0xf]
        %v2509 = vld [vmem:[%s2498 + $0x28] sm:$0xf]
        %v2510 = vld [vmem:[%s2498 + $0x2c] sm:$0xf]
        %v2511 = vld [vmem:[%s2498 + $0x30] sm:$0xf]
        %v2512 = vld [vmem:[%s2498 + $0x34] sm:$0xf]
        %v2513 = vld [vmem:[%s2498 + $0x38] sm:$0xf]
        %v2514 = vld [vmem:[%s2498 + $0x3c] sm:$0xf]
        %v2515 = vunpack.c.l.bf16 %v2499
        %v2516 = vunpack.c.l.bf16 %v2500
        %v2517 = vunpack.c.l.bf16 %v2501
        %v2518 = vunpack.c.l.bf16 %v2502
        %v2519 = vunpack.c.l.bf16 %v2503
        %v2520 = vunpack.c.l.bf16 %v2504
        %v2521 = vunpack.c.l.bf16 %v2505
        %v2522 = vunpack.c.l.bf16 %v2506
        %v2523 = vunpack.c.l.bf16 %v2507
        %v2524 = vunpack.c.l.bf16 %v2508
        %v2525 = vunpack.c.l.bf16 %v2509
        %v2526 = vunpack.c.l.bf16 %v2510
        %v2527 = vunpack.c.l.bf16 %v2511
        %v2528 = vunpack.c.l.bf16 %v2512
        %v2529 = vunpack.c.l.bf16 %v2513
        %v2530 = vunpack.c.l.bf16 %v2514
        %v2533 = vunpack.c.l.b16 %v2465
        %v2534 = vunpack.c.l.b16 %v2466
        %v2535 = vpack.c.b16 %v2534, %v2533
        %v2538 = vunpack.c.l.b16 %v2482
        %v2539 = vunpack.c.l.b16 %v2483
        %v2540 = vpack.c.b16 %v2539, %v2538
        %v2542 = vsel %vm1208, %v2535, 0
        %v2545 = vsel %vm1208, %v2540, 0
        %2547 = vmatprep.subr.bf16.mxu0 0
        %2548 = vmatpush1.bf16.xpose.msra.mxu0 %v2545
        %2549 = vmatprep.subr.bf16.mxu0 0
        %2550 = vmatpush1.bf16.xpose.msra.mxu0 0
        %2551 = vmatprep.subr.bf16.mxu0 0
        %2552 = vmatpush1.bf16.xpose.msra.mxu0 0
        %2553 = vmatprep.subr.bf16.mxu0 0
        %2554 = vmatpush1.bf16.xpose.msra.mxu0 0
        %2555 = vmatprep.subr.bf16.mxu0 0
        %2556 = vmatpush1.bf16.xpose.msra.mxu0 0
        %2557 = vmatprep.subr.bf16.mxu0 0
        %2558 = vmatpush1.bf16.xpose.msra.mxu0 0
        %2559 = vmatprep.subr.bf16.mxu0 0
        %2560 = vmatpush1.bf16.xpose.msra.mxu0 0
        %2561 = vmatprep.subr.bf16.mxu0 0
        %2562 = vmatpush1.bf16.xpose.msra.mxu0 0
        %2563 = vmatprep.subr.bf16.mxu0 0
        %2564 = vmatpush1.bf16.xpose.msra.mxu0 0
        %2565 = vmatprep.subr.bf16.mxu0 0
        %2566 = vmatpush1.bf16.xpose.msra.mxu0 0
        %2567 = vmatprep.subr.bf16.mxu0 0
        %2568 = vmatpush1.bf16.xpose.msra.mxu0 0
        %2569 = vmatprep.subr.bf16.mxu0 0
        %2570 = vmatpush1.bf16.xpose.msra.mxu0 0
        %2571 = vmatprep.subr.bf16.mxu0 0
        %2572 = vmatpush1.bf16.xpose.msra.mxu0 0
        %2573 = vmatprep.subr.bf16.mxu0 0
        %2574 = vmatpush1.bf16.xpose.msra.mxu0 0
        %2575 = vmatprep.subr.bf16.mxu0 0
        %2576 = vmatpush1.bf16.xpose.msra.mxu0 0
        %2577 = vmatprep.subr.bf16.mxu0 0
        %2578 = vmatpush1.bf16.xpose.msra.mxu0 0
        %2579 = vmatprep.mubr.bf16.mxu0 0
        %2580 = vmatmul.mubr.bf16.gmra.mrb[0].mxu0 %v2542
        %v2581 = vpop.f32.mrb[0].mxu0
        %v2582 = vadd.f32 0.0, %v2581
        %v2583 = vpop.f32.mrb[0].mxu0
        %v2584 = vpop.f32.mrb[0].mxu0
        %v2585 = vadd.f32 0.0, %v2584
        %v2586 = vpop.f32.mrb[0].mxu0
        %2587 = vdwg.mxu0
        %v2590 = vunpack.c.l.b16 %v2467
        %v2591 = vunpack.c.l.b16 %v2468
        %v2592 = vpack.c.b16 %v2591, %v2590
        %v2595 = vunpack.c.l.b16 %v2484
        %v2596 = vunpack.c.l.b16 %v2485
        %v2597 = vpack.c.b16 %v2596, %v2595
        %v2599 = vsel %vm1208, %v2592, 0
        %v2602 = vsel %vm1208, %v2597, 0
        %2604 = vmatprep.subr.bf16.mxu0 0
        %2605 = vmatpush1.bf16.xpose.msra.mxu0 %v2602
        %2606 = vmatprep.subr.bf16.mxu0 0
        %2607 = vmatpush1.bf16.xpose.msra.mxu0 0
        %2608 = vmatprep.subr.bf16.mxu0 0
        %2609 = vmatpush1.bf16.xpose.msra.mxu0 0
        %2610 = vmatprep.subr.bf16.mxu0 0
        %2611 = vmatpush1.bf16.xpose.msra.mxu0 0
        %2612 = vmatprep.subr.bf16.mxu0 0
        %2613 = vmatpush1.bf16.xpose.msra.mxu0 0
        %2614 = vmatprep.subr.bf16.mxu0 0
        %2615 = vmatpush1.bf16.xpose.msra.mxu0 0
        %2616 = vmatprep.subr.bf16.mxu0 0
        %2617 = vmatpush1.bf16.xpose.msra.mxu0 0
        %2618 = vmatprep.subr.bf16.mxu0 0
        %2619 = vmatpush1.bf16.xpose.msra.mxu0 0
        %2620 = vmatprep.subr.bf16.mxu0 0
        %2621 = vmatpush1.bf16.xpose.msra.mxu0 0
        %2622 = vmatprep.subr.bf16.mxu0 0
        %2623 = vmatpush1.bf16.xpose.msra.mxu0 0
        %2624 = vmatprep.subr.bf16.mxu0 0
        %2625 = vmatpush1.bf16.xpose.msra.mxu0 0
        %2626 = vmatprep.subr.bf16.mxu0 0
        %2627 = vmatpush1.bf16.xpose.msra.mxu0 0
        %2628 = vmatprep.subr.bf16.mxu0 0
        %2629 = vmatpush1.bf16.xpose.msra.mxu0 0
        %2630 = vmatprep.subr.bf16.mxu0 0
        %2631 = vmatpush1.bf16.xpose.msra.mxu0 0
        %2632 = vmatprep.subr.bf16.mxu0 0
        %2633 = vmatpush1.bf16.xpose.msra.mxu0 0
        %2634 = vmatprep.subr.bf16.mxu0 0
        %2635 = vmatpush1.bf16.xpose.msra.mxu0 0
        %2636 = vmatprep.mubr.bf16.mxu0 0
        %2637 = vmatmul.mubr.bf16.gmra.mrb[0].mxu0 %v2599
        %v2638 = vpop.f32.mrb[0].mxu0
        %v2639 = vadd.f32 0.0, %v2638
        %v2640 = vpop.f32.mrb[0].mxu0
        %v2641 = vpop.f32.mrb[0].mxu0
        %v2642 = vadd.f32 0.0, %v2641
        %v2643 = vpop.f32.mrb[0].mxu0
        %2644 = vdwg.mxu0
        %v2647 = vunpack.c.l.b16 %v2469
        %v2648 = vunpack.c.l.b16 %v2470
        %v2649 = vpack.c.b16 %v2648, %v2647
        %v2652 = vunpack.c.l.b16 %v2486
        %v2653 = vunpack.c.l.b16 %v2487
        %v2654 = vpack.c.b16 %v2653, %v2652
        %v2656 = vsel %vm1208, %v2649, 0
        %v2659 = vsel %vm1208, %v2654, 0
        %2661 = vmatprep.subr.bf16.mxu0 0
        %2662 = vmatpush1.bf16.xpose.msra.mxu0 %v2659
        %2663 = vmatprep.subr.bf16.mxu0 0
        %2664 = vmatpush1.bf16.xpose.msra.mxu0 0
        %2665 = vmatprep.subr.bf16.mxu0 0
        %2666 = vmatpush1.bf16.xpose.msra.mxu0 0
        %2667 = vmatprep.subr.bf16.mxu0 0
        %2668 = vmatpush1.bf16.xpose.msra.mxu0 0
        %2669 = vmatprep.subr.bf16.mxu0 0
        %2670 = vmatpush1.bf16.xpose.msra.mxu0 0
        %2671 = vmatprep.subr.bf16.mxu0 0
        %2672 = vmatpush1.bf16.xpose.msra.mxu0 0
        %2673 = vmatprep.subr.bf16.mxu0 0
        %2674 = vmatpush1.bf16.xpose.msra.mxu0 0
        %2675 = vmatprep.subr.bf16.mxu0 0
        %2676 = vmatpush1.bf16.xpose.msra.mxu0 0
        %2677 = vmatprep.subr.bf16.mxu0 0
        %2678 = vmatpush1.bf16.xpose.msra.mxu0 0
        %2679 = vmatprep.subr.bf16.mxu0 0
        %2680 = vmatpush1.bf16.xpose.msra.mxu0 0
        %2681 = vmatprep.subr.bf16.mxu0 0
        %2682 = vmatpush1.bf16.xpose.msra.mxu0 0
        %2683 = vmatprep.subr.bf16.mxu0 0
        %2684 = vmatpush1.bf16.xpose.msra.mxu0 0
        %2685 = vmatprep.subr.bf16.mxu0 0
        %2686 = vmatpush1.bf16.xpose.msra.mxu0 0
        %2687 = vmatprep.subr.bf16.mxu0 0
        %2688 = vmatpush1.bf16.xpose.msra.mxu0 0
        %2689 = vmatprep.subr.bf16.mxu0 0
        %2690 = vmatpush1.bf16.xpose.msra.mxu0 0
        %2691 = vmatprep.subr.bf16.mxu0 0
        %2692 = vmatpush1.bf16.xpose.msra.mxu0 0
        %2693 = vmatprep.mubr.bf16.mxu0 0
        %2694 = vmatmul.mubr.bf16.gmra.mrb[0].mxu0 %v2656
        %v2695 = vpop.f32.mrb[0].mxu0
        %v2696 = vadd.f32 0.0, %v2695
        %v2697 = vpop.f32.mrb[0].mxu0
        %v2698 = vpop.f32.mrb[0].mxu0
        %v2699 = vadd.f32 0.0, %v2698
        %v2700 = vpop.f32.mrb[0].mxu0
        %2701 = vdwg.mxu0
        %v2704 = vunpack.c.l.b16 %v2471
        %v2705 = vunpack.c.l.b16 %v2472
        %v2706 = vpack.c.b16 %v2705, %v2704
        %v2709 = vunpack.c.l.b16 %v2488
        %v2710 = vunpack.c.l.b16 %v2489
        %v2711 = vpack.c.b16 %v2710, %v2709
        %v2713 = vsel %vm1208, %v2706, 0
        %v2716 = vsel %vm1208, %v2711, 0
        %2718 = vmatprep.subr.bf16.mxu0 0
        %2719 = vmatpush1.bf16.xpose.msra.mxu0 %v2716
        %2720 = vmatprep.subr.bf16.mxu0 0
        %2721 = vmatpush1.bf16.xpose.msra.mxu0 0
        %2722 = vmatprep.subr.bf16.mxu0 0
        %2723 = vmatpush1.bf16.xpose.msra.mxu0 0
        %2724 = vmatprep.subr.bf16.mxu0 0
        %2725 = vmatpush1.bf16.xpose.msra.mxu0 0
        %2726 = vmatprep.subr.bf16.mxu0 0
        %2727 = vmatpush1.bf16.xpose.msra.mxu0 0
        %2728 = vmatprep.subr.bf16.mxu0 0
        %2729 = vmatpush1.bf16.xpose.msra.mxu0 0
        %2730 = vmatprep.subr.bf16.mxu0 0
        %2731 = vmatpush1.bf16.xpose.msra.mxu0 0
        %2732 = vmatprep.subr.bf16.mxu0 0
        %2733 = vmatpush1.bf16.xpose.msra.mxu0 0
        %2734 = vmatprep.subr.bf16.mxu0 0
        %2735 = vmatpush1.bf16.xpose.msra.mxu0 0
        %2736 = vmatprep.subr.bf16.mxu0 0
        %2737 = vmatpush1.bf16.xpose.msra.mxu0 0
        %2738 = vmatprep.subr.bf16.mxu0 0
        %2739 = vmatpush1.bf16.xpose.msra.mxu0 0
        %2740 = vmatprep.subr.bf16.mxu0 0
        %2741 = vmatpush1.bf16.xpose.msra.mxu0 0
        %2742 = vmatprep.subr.bf16.mxu0 0
        %2743 = vmatpush1.bf16.xpose.msra.mxu0 0
        %2744 = vmatprep.subr.bf16.mxu0 0
        %2745 = vmatpush1.bf16.xpose.msra.mxu0 0
        %2746 = vmatprep.subr.bf16.mxu0 0
        %2747 = vmatpush1.bf16.xpose.msra.mxu0 0
        %2748 = vmatprep.subr.bf16.mxu0 0
        %2749 = vmatpush1.bf16.xpose.msra.mxu0 0
        %2750 = vmatprep.mubr.bf16.mxu0 0
        %2751 = vmatmul.mubr.bf16.gmra.mrb[0].mxu0 %v2713
        %v2752 = vpop.f32.mrb[0].mxu0
        %v2753 = vadd.f32 0.0, %v2752
        %v2754 = vpop.f32.mrb[0].mxu0
        %v2755 = vpop.f32.mrb[0].mxu0
        %v2756 = vadd.f32 0.0, %v2755
        %v2757 = vpop.f32.mrb[0].mxu0
        %2758 = vdwg.mxu0
        %v2761 = vunpack.c.l.b16 %v2473
        %v2762 = vunpack.c.l.b16 %v2474
        %v2763 = vpack.c.b16 %v2762, %v2761
        %v2766 = vunpack.c.l.b16 %v2490
        %v2767 = vunpack.c.l.b16 %v2491
        %v2768 = vpack.c.b16 %v2767, %v2766
        %v2770 = vsel %vm1208, %v2763, 0
        %v2773 = vsel %vm1208, %v2768, 0
        %2775 = vmatprep.subr.bf16.mxu0 0
        %2776 = vmatpush1.bf16.xpose.msra.mxu0 %v2773
        %2777 = vmatprep.subr.bf16.mxu0 0
        %2778 = vmatpush1.bf16.xpose.msra.mxu0 0
        %2779 = vmatprep.subr.bf16.mxu0 0
        %2780 = vmatpush1.bf16.xpose.msra.mxu0 0
        %2781 = vmatprep.subr.bf16.mxu0 0
        %2782 = vmatpush1.bf16.xpose.msra.mxu0 0
        %2783 = vmatprep.subr.bf16.mxu0 0
        %2784 = vmatpush1.bf16.xpose.msra.mxu0 0
        %2785 = vmatprep.subr.bf16.mxu0 0
        %2786 = vmatpush1.bf16.xpose.msra.mxu0 0
        %2787 = vmatprep.subr.bf16.mxu0 0
        %2788 = vmatpush1.bf16.xpose.msra.mxu0 0
        %2789 = vmatprep.subr.bf16.mxu0 0
        %2790 = vmatpush1.bf16.xpose.msra.mxu0 0
        %2791 = vmatprep.subr.bf16.mxu0 0
        %2792 = vmatpush1.bf16.xpose.msra.mxu0 0
        %2793 = vmatprep.subr.bf16.mxu0 0
        %2794 = vmatpush1.bf16.xpose.msra.mxu0 0
        %2795 = vmatprep.subr.bf16.mxu0 0
        %2796 = vmatpush1.bf16.xpose.msra.mxu0 0
        %2797 = vmatprep.subr.bf16.mxu0 0
        %2798 = vmatpush1.bf16.xpose.msra.mxu0 0
        %2799 = vmatprep.subr.bf16.mxu0 0
        %2800 = vmatpush1.bf16.xpose.msra.mxu0 0
        %2801 = vmatprep.subr.bf16.mxu0 0
        %2802 = vmatpush1.bf16.xpose.msra.mxu0 0
        %2803 = vmatprep.subr.bf16.mxu0 0
        %2804 = vmatpush1.bf16.xpose.msra.mxu0 0
        %2805 = vmatprep.subr.bf16.mxu0 0
        %2806 = vmatpush1.bf16.xpose.msra.mxu0 0
        %2807 = vmatprep.mubr.bf16.mxu0 0
        %2808 = vmatmul.mubr.bf16.gmra.mrb[0].mxu0 %v2770
        %v2809 = vpop.f32.mrb[0].mxu0
        %v2810 = vadd.f32 0.0, %v2809
        %v2811 = vpop.f32.mrb[0].mxu0
        %v2812 = vpop.f32.mrb[0].mxu0
        %v2813 = vadd.f32 0.0, %v2812
        %v2814 = vpop.f32.mrb[0].mxu0
        %2815 = vdwg.mxu0
        %v2818 = vunpack.c.l.b16 %v2475
        %v2819 = vunpack.c.l.b16 %v2476
        %v2820 = vpack.c.b16 %v2819, %v2818
        %v2823 = vunpack.c.l.b16 %v2492
        %v2824 = vunpack.c.l.b16 %v2493
        %v2825 = vpack.c.b16 %v2824, %v2823
        %v2827 = vsel %vm1208, %v2820, 0
        %v2830 = vsel %vm1208, %v2825, 0
        %2832 = vmatprep.subr.bf16.mxu0 0
        %2833 = vmatpush1.bf16.xpose.msra.mxu0 %v2830
        %2834 = vmatprep.subr.bf16.mxu0 0
        %2835 = vmatpush1.bf16.xpose.msra.mxu0 0
        %2836 = vmatprep.subr.bf16.mxu0 0
        %2837 = vmatpush1.bf16.xpose.msra.mxu0 0
        %2838 = vmatprep.subr.bf16.mxu0 0
        %2839 = vmatpush1.bf16.xpose.msra.mxu0 0
        %2840 = vmatprep.subr.bf16.mxu0 0
        %2841 = vmatpush1.bf16.xpose.msra.mxu0 0
        %2842 = vmatprep.subr.bf16.mxu0 0
        %2843 = vmatpush1.bf16.xpose.msra.mxu0 0
        %2844 = vmatprep.subr.bf16.mxu0 0
        %2845 = vmatpush1.bf16.xpose.msra.mxu0 0
        %2846 = vmatprep.subr.bf16.mxu0 0
        %2847 = vmatpush1.bf16.xpose.msra.mxu0 0
        %2848 = vmatprep.subr.bf16.mxu0 0
        %2849 = vmatpush1.bf16.xpose.msra.mxu0 0
        %2850 = vmatprep.subr.bf16.mxu0 0
        %2851 = vmatpush1.bf16.xpose.msra.mxu0 0
        %2852 = vmatprep.subr.bf16.mxu0 0
        %2853 = vmatpush1.bf16.xpose.msra.mxu0 0
        %2854 = vmatprep.subr.bf16.mxu0 0
        %2855 = vmatpush1.bf16.xpose.msra.mxu0 0
        %2856 = vmatprep.subr.bf16.mxu0 0
        %2857 = vmatpush1.bf16.xpose.msra.mxu0 0
        %2858 = vmatprep.subr.bf16.mxu0 0
        %2859 = vmatpush1.bf16.xpose.msra.mxu0 0
        %2860 = vmatprep.subr.bf16.mxu0 0
        %2861 = vmatpush1.bf16.xpose.msra.mxu0 0
        %2862 = vmatprep.subr.bf16.mxu0 0
        %2863 = vmatpush1.bf16.xpose.msra.mxu0 0
        %2864 = vmatprep.mubr.bf16.mxu0 0
        %2865 = vmatmul.mubr.bf16.gmra.mrb[0].mxu0 %v2827
        %v2866 = vpop.f32.mrb[0].mxu0
        %v2867 = vadd.f32 0.0, %v2866
        %v2868 = vpop.f32.mrb[0].mxu0
        %v2869 = vpop.f32.mrb[0].mxu0
        %v2870 = vadd.f32 0.0, %v2869
        %v2871 = vpop.f32.mrb[0].mxu0
        %2872 = vdwg.mxu0
        %v2875 = vunpack.c.l.b16 %v2477
        %v2876 = vunpack.c.l.b16 %v2478
        %v2877 = vpack.c.b16 %v2876, %v2875
        %v2880 = vunpack.c.l.b16 %v2494
        %v2881 = vunpack.c.l.b16 %v2495
        %v2882 = vpack.c.b16 %v2881, %v2880
        %v2884 = vsel %vm1208, %v2877, 0
        %v2887 = vsel %vm1208, %v2882, 0
        %2889 = vmatprep.subr.bf16.mxu0 0
        %2890 = vmatpush1.bf16.xpose.msra.mxu0 %v2887
        %2891 = vmatprep.subr.bf16.mxu0 0
        %2892 = vmatpush1.bf16.xpose.msra.mxu0 0
        %2893 = vmatprep.subr.bf16.mxu0 0
        %2894 = vmatpush1.bf16.xpose.msra.mxu0 0
        %2895 = vmatprep.subr.bf16.mxu0 0
        %2896 = vmatpush1.bf16.xpose.msra.mxu0 0
        %2897 = vmatprep.subr.bf16.mxu0 0
        %2898 = vmatpush1.bf16.xpose.msra.mxu0 0
        %2899 = vmatprep.subr.bf16.mxu0 0
        %2900 = vmatpush1.bf16.xpose.msra.mxu0 0
        %2901 = vmatprep.subr.bf16.mxu0 0
        %2902 = vmatpush1.bf16.xpose.msra.mxu0 0
        %2903 = vmatprep.subr.bf16.mxu0 0
        %2904 = vmatpush1.bf16.xpose.msra.mxu0 0
        %2905 = vmatprep.subr.bf16.mxu0 0
        %2906 = vmatpush1.bf16.xpose.msra.mxu0 0
        %2907 = vmatprep.subr.bf16.mxu0 0
        %2908 = vmatpush1.bf16.xpose.msra.mxu0 0
        %2909 = vmatprep.subr.bf16.mxu0 0
        %2910 = vmatpush1.bf16.xpose.msra.mxu0 0
        %2911 = vmatprep.subr.bf16.mxu0 0
        %2912 = vmatpush1.bf16.xpose.msra.mxu0 0
        %2913 = vmatprep.subr.bf16.mxu0 0
        %2914 = vmatpush1.bf16.xpose.msra.mxu0 0
        %2915 = vmatprep.subr.bf16.mxu0 0
        %2916 = vmatpush1.bf16.xpose.msra.mxu0 0
        %2917 = vmatprep.subr.bf16.mxu0 0
        %2918 = vmatpush1.bf16.xpose.msra.mxu0 0
        %2919 = vmatprep.subr.bf16.mxu0 0
        %2920 = vmatpush1.bf16.xpose.msra.mxu0 0
        %2921 = vmatprep.mubr.bf16.mxu0 0
        %2922 = vmatmul.mubr.bf16.gmra.mrb[0].mxu0 %v2884
        %v2923 = vpop.f32.mrb[0].mxu0
        %v2924 = vadd.f32 0.0, %v2923
        %v2925 = vpop.f32.mrb[0].mxu0
        %v2926 = vpop.f32.mrb[0].mxu0
        %v2927 = vadd.f32 0.0, %v2926
        %v2928 = vpop.f32.mrb[0].mxu0
        %2929 = vdwg.mxu0
        %v2932 = vunpack.c.l.b16 %v2479
        %v2933 = vunpack.c.l.b16 %v2480
        %v2934 = vpack.c.b16 %v2933, %v2932
        %v2937 = vunpack.c.l.b16 %v2496
        %v2938 = vunpack.c.l.b16 %v2497
        %v2939 = vpack.c.b16 %v2938, %v2937
        %v2941 = vsel %vm1208, %v2934, 0
        %v2944 = vsel %vm1208, %v2939, 0
        %2946 = vmatprep.subr.bf16.mxu0 0
        %2947 = vmatpush1.bf16.xpose.msra.mxu0 %v2944
        %2948 = vmatprep.subr.bf16.mxu0 0
        %2949 = vmatpush1.bf16.xpose.msra.mxu0 0
        %2950 = vmatprep.subr.bf16.mxu0 0
        %2951 = vmatpush1.bf16.xpose.msra.mxu0 0
        %2952 = vmatprep.subr.bf16.mxu0 0
        %2953 = vmatpush1.bf16.xpose.msra.mxu0 0
        %2954 = vmatprep.subr.bf16.mxu0 0
        %2955 = vmatpush1.bf16.xpose.msra.mxu0 0
        %2956 = vmatprep.subr.bf16.mxu0 0
        %2957 = vmatpush1.bf16.xpose.msra.mxu0 0
        %2958 = vmatprep.subr.bf16.mxu0 0
        %2959 = vmatpush1.bf16.xpose.msra.mxu0 0
        %2960 = vmatprep.subr.bf16.mxu0 0
        %2961 = vmatpush1.bf16.xpose.msra.mxu0 0
        %2962 = vmatprep.subr.bf16.mxu0 0
        %2963 = vmatpush1.bf16.xpose.msra.mxu0 0
        %2964 = vmatprep.subr.bf16.mxu0 0
        %2965 = vmatpush1.bf16.xpose.msra.mxu0 0
        %2966 = vmatprep.subr.bf16.mxu0 0
        %2967 = vmatpush1.bf16.xpose.msra.mxu0 0
        %2968 = vmatprep.subr.bf16.mxu0 0
        %2969 = vmatpush1.bf16.xpose.msra.mxu0 0
        %2970 = vmatprep.subr.bf16.mxu0 0
        %2971 = vmatpush1.bf16.xpose.msra.mxu0 0
        %2972 = vmatprep.subr.bf16.mxu0 0
        %2973 = vmatpush1.bf16.xpose.msra.mxu0 0
        %2974 = vmatprep.subr.bf16.mxu0 0
        %2975 = vmatpush1.bf16.xpose.msra.mxu0 0
        %2976 = vmatprep.subr.bf16.mxu0 0
        %2977 = vmatpush1.bf16.xpose.msra.mxu0 0
        %2978 = vmatprep.mubr.bf16.mxu0 0
        %2979 = vmatmul.mubr.bf16.gmra.mrb[0].mxu0 %v2941
        %v2980 = vpop.f32.mrb[0].mxu0
        %v2981 = vadd.f32 0.0, %v2980
        %v2982 = vpop.f32.mrb[0].mxu0
        %v2983 = vpop.f32.mrb[0].mxu0
        %v2984 = vadd.f32 0.0, %v2983
        %v2985 = vpop.f32.mrb[0].mxu0
        %2986 = vdwg.mxu0
        %v2987 = vmul.f32 %v2582, 0.125
        %v2988 = vmul.f32 %v2585, 0.125
        %v2989 = vmul.f32 %v2639, 0.125
        %v2990 = vmul.f32 %v2642, 0.125
        %v2991 = vmul.f32 %v2696, 0.125
        %v2992 = vmul.f32 %v2699, 0.125
        %v2993 = vmul.f32 %v2753, 0.125
        %v2994 = vmul.f32 %v2756, 0.125
        %v2995 = vmul.f32 %v2810, 0.125
        %v2996 = vmul.f32 %v2813, 0.125
        %v2997 = vmul.f32 %v2867, 0.125
        %v2998 = vmul.f32 %v2870, 0.125
        %v2999 = vmul.f32 %v2924, 0.125
        %v3000 = vmul.f32 %v2927, 0.125
        %v3001 = vmul.f32 %v2981, 0.125
        %v3002 = vmul.f32 %v2984, 0.125
        %v3004 = vsel %vm1671, %v2987, 0
        %v3007 = vsel %vm1671, %v2988, 0
        %3009 = vmatprep.subr.mxu0 0.0
        %3010 = vmatpush1.msra.mxu0 %v2515
        %3011 = vmatprep.subr.mxu0 0.0
        %3012 = vmatpush1.msra.mxu0 %v2516
        %3013 = vmatprep.subr.mxu0 0.0
        %3014 = vmatpush1.msra.mxu0 0.0
        %3015 = vmatprep.subr.mxu0 0.0
        %3016 = vmatpush1.msra.mxu0 0.0
        %3017 = vmatprep.subr.mxu0 0.0
        %3018 = vmatpush1.msra.mxu0 0.0
        %3019 = vmatprep.subr.mxu0 0.0
        %3020 = vmatpush1.msra.mxu0 0.0
        %3021 = vmatprep.subr.mxu0 0.0
        %3022 = vmatpush1.msra.mxu0 0.0
        %3023 = vmatprep.subr.mxu0 0.0
        %3024 = vmatpush1.msra.mxu0 0.0
        %3025 = vmatprep.subr.mxu0 0.0
        %3026 = vmatpush1.msra.mxu0 0.0
        %3027 = vmatprep.subr.mxu0 0.0
        %3028 = vmatpush1.msra.mxu0 0.0
        %3029 = vmatprep.subr.mxu0 0.0
        %3030 = vmatpush1.msra.mxu0 0.0
        %3031 = vmatprep.subr.mxu0 0.0
        %3032 = vmatpush1.msra.mxu0 0.0
        %3033 = vmatprep.subr.mxu0 0.0
        %3034 = vmatpush1.msra.mxu0 0.0
        %3035 = vmatprep.subr.mxu0 0.0
        %3036 = vmatpush1.msra.mxu0 0.0
        %3037 = vmatprep.subr.mxu0 0.0
        %3038 = vmatpush1.msra.mxu0 0.0
        %3039 = vmatprep.subr.mxu0 0.0
        %3040 = vmatpush1.msra.mxu0 0.0
        %3041 = vmatprep.subr.mxu0 0.0
        %3042 = vmatpush1.msra.mxu0 0.0
        %3043 = vmatprep.subr.mxu0 0.0
        %3044 = vmatpush1.msra.mxu0 0.0
        %3045 = vmatprep.subr.mxu0 0.0
        %3046 = vmatpush1.msra.mxu0 0.0
        %3047 = vmatprep.subr.mxu0 0.0
        %3048 = vmatpush1.msra.mxu0 0.0
        %3049 = vmatprep.subr.mxu0 0.0
        %3050 = vmatpush1.msra.mxu0 0.0
        %3051 = vmatprep.subr.mxu0 0.0
        %3052 = vmatpush1.msra.mxu0 0.0
        %3053 = vmatprep.subr.mxu0 0.0
        %3054 = vmatpush1.msra.mxu0 0.0
        %3055 = vmatprep.subr.mxu0 0.0
        %3056 = vmatpush1.msra.mxu0 0.0
        %3057 = vmatprep.subr.mxu0 0.0
        %3058 = vmatpush1.msra.mxu0 0.0
        %3059 = vmatprep.subr.mxu0 0.0
        %3060 = vmatpush1.msra.mxu0 0.0
        %3061 = vmatprep.subr.mxu0 0.0
        %3062 = vmatpush1.msra.mxu0 0.0
        %3063 = vmatprep.subr.mxu0 0.0
        %3064 = vmatpush1.msra.mxu0 0.0
        %3065 = vmatprep.subr.mxu0 0.0
        %3066 = vmatpush1.msra.mxu0 0.0
        %3067 = vmatprep.subr.mxu0 0.0
        %3068 = vmatpush1.msra.mxu0 0.0
        %3069 = vmatprep.subr.mxu0 0.0
        %3070 = vmatpush1.msra.mxu0 0.0
        %3071 = vmatprep.subr.mxu0 0.0
        %3072 = vmatpush1.msra.mxu0 0.0
        %3073 = vmatprep.mubr.f32.mxu0 0.0
        %3074 = vmatmul.mubr.f32.gmra.mrb[0].mxu0 %v3004
        %v3075 = vpop.f32.mrb[0].mxu0
        %v3076 = vadd.f32 0.0, %v3075
        %v3077 = vpop.f32.mrb[0].mxu0
        %3078 = vmatprep.mubr.f32.mxu0 0.0
        %3079 = vmatmul.mubr.f32.gmra.mrb[0].mxu0 %v3007
        %v3080 = vpop.f32.mrb[0].mxu0
        %v3081 = vadd.f32 0.0, %v3080
        %v3082 = vpop.f32.mrb[0].mxu0
        %3083 = vdwg.mxu0
        %v3085 = vsel %vm1671, %v2989, 0
        %v3088 = vsel %vm1671, %v2990, 0
        %3090 = vmatprep.subr.mxu0 0.0
        %3091 = vmatpush1.msra.mxu0 %v2517
        %3092 = vmatprep.subr.mxu0 0.0
        %3093 = vmatpush1.msra.mxu0 %v2518
        %3094 = vmatprep.subr.mxu0 0.0
        %3095 = vmatpush1.msra.mxu0 0.0
        %3096 = vmatprep.subr.mxu0 0.0
        %3097 = vmatpush1.msra.mxu0 0.0
        %3098 = vmatprep.subr.mxu0 0.0
        %3099 = vmatpush1.msra.mxu0 0.0
        %3100 = vmatprep.subr.mxu0 0.0
        %3101 = vmatpush1.msra.mxu0 0.0
        %3102 = vmatprep.subr.mxu0 0.0
        %3103 = vmatpush1.msra.mxu0 0.0
        %3104 = vmatprep.subr.mxu0 0.0
        %3105 = vmatpush1.msra.mxu0 0.0
        %3106 = vmatprep.subr.mxu0 0.0
        %3107 = vmatpush1.msra.mxu0 0.0
        %3108 = vmatprep.subr.mxu0 0.0
        %3109 = vmatpush1.msra.mxu0 0.0
        %3110 = vmatprep.subr.mxu0 0.0
        %3111 = vmatpush1.msra.mxu0 0.0
        %3112 = vmatprep.subr.mxu0 0.0
        %3113 = vmatpush1.msra.mxu0 0.0
        %3114 = vmatprep.subr.mxu0 0.0
        %3115 = vmatpush1.msra.mxu0 0.0
        %3116 = vmatprep.subr.mxu0 0.0
        %3117 = vmatpush1.msra.mxu0 0.0
        %3118 = vmatprep.subr.mxu0 0.0
        %3119 = vmatpush1.msra.mxu0 0.0
        %3120 = vmatprep.subr.mxu0 0.0
        %3121 = vmatpush1.msra.mxu0 0.0
        %3122 = vmatprep.subr.mxu0 0.0
        %3123 = vmatpush1.msra.mxu0 0.0
        %3124 = vmatprep.subr.mxu0 0.0
        %3125 = vmatpush1.msra.mxu0 0.0
        %3126 = vmatprep.subr.mxu0 0.0
        %3127 = vmatpush1.msra.mxu0 0.0
        %3128 = vmatprep.subr.mxu0 0.0
        %3129 = vmatpush1.msra.mxu0 0.0
        %3130 = vmatprep.subr.mxu0 0.0
        %3131 = vmatpush1.msra.mxu0 0.0
        %3132 = vmatprep.subr.mxu0 0.0
        %3133 = vmatpush1.msra.mxu0 0.0
        %3134 = vmatprep.subr.mxu0 0.0
        %3135 = vmatpush1.msra.mxu0 0.0
        %3136 = vmatprep.subr.mxu0 0.0
        %3137 = vmatpush1.msra.mxu0 0.0
        %3138 = vmatprep.subr.mxu0 0.0
        %3139 = vmatpush1.msra.mxu0 0.0
        %3140 = vmatprep.subr.mxu0 0.0
        %3141 = vmatpush1.msra.mxu0 0.0
        %3142 = vmatprep.subr.mxu0 0.0
        %3143 = vmatpush1.msra.mxu0 0.0
        %3144 = vmatprep.subr.mxu0 0.0
        %3145 = vmatpush1.msra.mxu0 0.0
        %3146 = vmatprep.subr.mxu0 0.0
        %3147 = vmatpush1.msra.mxu0 0.0
        %3148 = vmatprep.subr.mxu0 0.0
        %3149 = vmatpush1.msra.mxu0 0.0
        %3150 = vmatprep.subr.mxu0 0.0
        %3151 = vmatpush1.msra.mxu0 0.0
        %3152 = vmatprep.subr.mxu0 0.0
        %3153 = vmatpush1.msra.mxu0 0.0
        %3154 = vmatprep.mubr.f32.mxu0 0.0
        %3155 = vmatmul.mubr.f32.gmra.mrb[0].mxu0 %v3085
        %v3156 = vpop.f32.mrb[0].mxu0
        %v3157 = vadd.f32 0.0, %v3156
        %v3158 = vpop.f32.mrb[0].mxu0
        %3159 = vmatprep.mubr.f32.mxu0 0.0
        %3160 = vmatmul.mubr.f32.gmra.mrb[0].mxu0 %v3088
        %v3161 = vpop.f32.mrb[0].mxu0
        %v3162 = vadd.f32 0.0, %v3161
        %v3163 = vpop.f32.mrb[0].mxu0
        %3164 = vdwg.mxu0
        %v3166 = vsel %vm1671, %v2991, 0
        %v3169 = vsel %vm1671, %v2992, 0
        %3171 = vmatprep.subr.mxu0 0.0
        %3172 = vmatpush1.msra.mxu0 %v2519
        %3173 = vmatprep.subr.mxu0 0.0
        %3174 = vmatpush1.msra.mxu0 %v2520
        %3175 = vmatprep.subr.mxu0 0.0
        %3176 = vmatpush1.msra.mxu0 0.0
        %3177 = vmatprep.subr.mxu0 0.0
        %3178 = vmatpush1.msra.mxu0 0.0
        %3179 = vmatprep.subr.mxu0 0.0
        %3180 = vmatpush1.msra.mxu0 0.0
        %3181 = vmatprep.subr.mxu0 0.0
        %3182 = vmatpush1.msra.mxu0 0.0
        %3183 = vmatprep.subr.mxu0 0.0
        %3184 = vmatpush1.msra.mxu0 0.0
        %3185 = vmatprep.subr.mxu0 0.0
        %3186 = vmatpush1.msra.mxu0 0.0
        %3187 = vmatprep.subr.mxu0 0.0
        %3188 = vmatpush1.msra.mxu0 0.0
        %3189 = vmatprep.subr.mxu0 0.0
        %3190 = vmatpush1.msra.mxu0 0.0
        %3191 = vmatprep.subr.mxu0 0.0
        %3192 = vmatpush1.msra.mxu0 0.0
        %3193 = vmatprep.subr.mxu0 0.0
        %3194 = vmatpush1.msra.mxu0 0.0
        %3195 = vmatprep.subr.mxu0 0.0
        %3196 = vmatpush1.msra.mxu0 0.0
        %3197 = vmatprep.subr.mxu0 0.0
        %3198 = vmatpush1.msra.mxu0 0.0
        %3199 = vmatprep.subr.mxu0 0.0
        %3200 = vmatpush1.msra.mxu0 0.0
        %3201 = vmatprep.subr.mxu0 0.0
        %3202 = vmatpush1.msra.mxu0 0.0
        %3203 = vmatprep.subr.mxu0 0.0
        %3204 = vmatpush1.msra.mxu0 0.0
        %3205 = vmatprep.subr.mxu0 0.0
        %3206 = vmatpush1.msra.mxu0 0.0
        %3207 = vmatprep.subr.mxu0 0.0
        %3208 = vmatpush1.msra.mxu0 0.0
        %3209 = vmatprep.subr.mxu0 0.0
        %3210 = vmatpush1.msra.mxu0 0.0
        %3211 = vmatprep.subr.mxu0 0.0
        %3212 = vmatpush1.msra.mxu0 0.0
        %3213 = vmatprep.subr.mxu0 0.0
        %3214 = vmatpush1.msra.mxu0 0.0
        %3215 = vmatprep.subr.mxu0 0.0
        %3216 = vmatpush1.msra.mxu0 0.0
        %3217 = vmatprep.subr.mxu0 0.0
        %3218 = vmatpush1.msra.mxu0 0.0
        %3219 = vmatprep.subr.mxu0 0.0
        %3220 = vmatpush1.msra.mxu0 0.0
        %3221 = vmatprep.subr.mxu0 0.0
        %3222 = vmatpush1.msra.mxu0 0.0
        %3223 = vmatprep.subr.mxu0 0.0
        %3224 = vmatpush1.msra.mxu0 0.0
        %3225 = vmatprep.subr.mxu0 0.0
        %3226 = vmatpush1.msra.mxu0 0.0
        %3227 = vmatprep.subr.mxu0 0.0
        %3228 = vmatpush1.msra.mxu0 0.0
        %3229 = vmatprep.subr.mxu0 0.0
        %3230 = vmatpush1.msra.mxu0 0.0
        %3231 = vmatprep.subr.mxu0 0.0
        %3232 = vmatpush1.msra.mxu0 0.0
        %3233 = vmatprep.subr.mxu0 0.0
        %3234 = vmatpush1.msra.mxu0 0.0
        %3235 = vmatprep.mubr.f32.mxu0 0.0
        %3236 = vmatmul.mubr.f32.gmra.mrb[0].mxu0 %v3166
        %v3237 = vpop.f32.mrb[0].mxu0
        %v3238 = vadd.f32 0.0, %v3237
        %v3239 = vpop.f32.mrb[0].mxu0
        %3240 = vmatprep.mubr.f32.mxu0 0.0
        %3241 = vmatmul.mubr.f32.gmra.mrb[0].mxu0 %v3169
        %v3242 = vpop.f32.mrb[0].mxu0
        %v3243 = vadd.f32 0.0, %v3242
        %v3244 = vpop.f32.mrb[0].mxu0
        %3245 = vdwg.mxu0
        %v3247 = vsel %vm1671, %v2993, 0
        %v3250 = vsel %vm1671, %v2994, 0
        %3252 = vmatprep.subr.mxu0 0.0
        %3253 = vmatpush1.msra.mxu0 %v2521
        %3254 = vmatprep.subr.mxu0 0.0
        %3255 = vmatpush1.msra.mxu0 %v2522
        %3256 = vmatprep.subr.mxu0 0.0
        %3257 = vmatpush1.msra.mxu0 0.0
        %3258 = vmatprep.subr.mxu0 0.0
        %3259 = vmatpush1.msra.mxu0 0.0
        %3260 = vmatprep.subr.mxu0 0.0
        %3261 = vmatpush1.msra.mxu0 0.0
        %3262 = vmatprep.subr.mxu0 0.0
        %3263 = vmatpush1.msra.mxu0 0.0
        %3264 = vmatprep.subr.mxu0 0.0
        %3265 = vmatpush1.msra.mxu0 0.0
        %3266 = vmatprep.subr.mxu0 0.0
        %3267 = vmatpush1.msra.mxu0 0.0
        %3268 = vmatprep.subr.mxu0 0.0
        %3269 = vmatpush1.msra.mxu0 0.0
        %3270 = vmatprep.subr.mxu0 0.0
        %3271 = vmatpush1.msra.mxu0 0.0
        %3272 = vmatprep.subr.mxu0 0.0
        %3273 = vmatpush1.msra.mxu0 0.0
        %3274 = vmatprep.subr.mxu0 0.0
        %3275 = vmatpush1.msra.mxu0 0.0
        %3276 = vmatprep.subr.mxu0 0.0
        %3277 = vmatpush1.msra.mxu0 0.0
        %3278 = vmatprep.subr.mxu0 0.0
        %3279 = vmatpush1.msra.mxu0 0.0
        %3280 = vmatprep.subr.mxu0 0.0
        %3281 = vmatpush1.msra.mxu0 0.0
        %3282 = vmatprep.subr.mxu0 0.0
        %3283 = vmatpush1.msra.mxu0 0.0
        %3284 = vmatprep.subr.mxu0 0.0
        %3285 = vmatpush1.msra.mxu0 0.0
        %3286 = vmatprep.subr.mxu0 0.0
        %3287 = vmatpush1.msra.mxu0 0.0
        %3288 = vmatprep.subr.mxu0 0.0
        %3289 = vmatpush1.msra.mxu0 0.0
        %3290 = vmatprep.subr.mxu0 0.0
        %3291 = vmatpush1.msra.mxu0 0.0
        %3292 = vmatprep.subr.mxu0 0.0
        %3293 = vmatpush1.msra.mxu0 0.0
        %3294 = vmatprep.subr.mxu0 0.0
        %3295 = vmatpush1.msra.mxu0 0.0
        %3296 = vmatprep.subr.mxu0 0.0
        %3297 = vmatpush1.msra.mxu0 0.0
        %3298 = vmatprep.subr.mxu0 0.0
        %3299 = vmatpush1.msra.mxu0 0.0
        %3300 = vmatprep.subr.mxu0 0.0
        %3301 = vmatpush1.msra.mxu0 0.0
        %3302 = vmatprep.subr.mxu0 0.0
        %3303 = vmatpush1.msra.mxu0 0.0
        %3304 = vmatprep.subr.mxu0 0.0
        %3305 = vmatpush1.msra.mxu0 0.0
        %3306 = vmatprep.subr.mxu0 0.0
        %3307 = vmatpush1.msra.mxu0 0.0
        %3308 = vmatprep.subr.mxu0 0.0
        %3309 = vmatpush1.msra.mxu0 0.0
        %3310 = vmatprep.subr.mxu0 0.0
        %3311 = vmatpush1.msra.mxu0 0.0
        %3312 = vmatprep.subr.mxu0 0.0
        %3313 = vmatpush1.msra.mxu0 0.0
        %3314 = vmatprep.subr.mxu0 0.0
        %3315 = vmatpush1.msra.mxu0 0.0
        %3316 = vmatprep.mubr.f32.mxu0 0.0
        %3317 = vmatmul.mubr.f32.gmra.mrb[0].mxu0 %v3247
        %v3318 = vpop.f32.mrb[0].mxu0
        %v3319 = vadd.f32 0.0, %v3318
        %v3320 = vpop.f32.mrb[0].mxu0
        %3321 = vmatprep.mubr.f32.mxu0 0.0
        %3322 = vmatmul.mubr.f32.gmra.mrb[0].mxu0 %v3250
        %v3323 = vpop.f32.mrb[0].mxu0
        %v3324 = vadd.f32 0.0, %v3323
        %v3325 = vpop.f32.mrb[0].mxu0
        %3326 = vdwg.mxu0
        %v3328 = vsel %vm1671, %v2995, 0
        %v3331 = vsel %vm1671, %v2996, 0
        %3333 = vmatprep.subr.mxu0 0.0
        %3334 = vmatpush1.msra.mxu0 %v2523
        %3335 = vmatprep.subr.mxu0 0.0
        %3336 = vmatpush1.msra.mxu0 %v2524
        %3337 = vmatprep.subr.mxu0 0.0
        %3338 = vmatpush1.msra.mxu0 0.0
        %3339 = vmatprep.subr.mxu0 0.0
        %3340 = vmatpush1.msra.mxu0 0.0
        %3341 = vmatprep.subr.mxu0 0.0
        %3342 = vmatpush1.msra.mxu0 0.0
        %3343 = vmatprep.subr.mxu0 0.0
        %3344 = vmatpush1.msra.mxu0 0.0
        %3345 = vmatprep.subr.mxu0 0.0
        %3346 = vmatpush1.msra.mxu0 0.0
        %3347 = vmatprep.subr.mxu0 0.0
        %3348 = vmatpush1.msra.mxu0 0.0
        %3349 = vmatprep.subr.mxu0 0.0
        %3350 = vmatpush1.msra.mxu0 0.0
        %3351 = vmatprep.subr.mxu0 0.0
        %3352 = vmatpush1.msra.mxu0 0.0
        %3353 = vmatprep.subr.mxu0 0.0
        %3354 = vmatpush1.msra.mxu0 0.0
        %3355 = vmatprep.subr.mxu0 0.0
        %3356 = vmatpush1.msra.mxu0 0.0
        %3357 = vmatprep.subr.mxu0 0.0
        %3358 = vmatpush1.msra.mxu0 0.0
        %3359 = vmatprep.subr.mxu0 0.0
        %3360 = vmatpush1.msra.mxu0 0.0
        %3361 = vmatprep.subr.mxu0 0.0
        %3362 = vmatpush1.msra.mxu0 0.0
        %3363 = vmatprep.subr.mxu0 0.0
        %3364 = vmatpush1.msra.mxu0 0.0
        %3365 = vmatprep.subr.mxu0 0.0
        %3366 = vmatpush1.msra.mxu0 0.0
        %3367 = vmatprep.subr.mxu0 0.0
        %3368 = vmatpush1.msra.mxu0 0.0
        %3369 = vmatprep.subr.mxu0 0.0
        %3370 = vmatpush1.msra.mxu0 0.0
        %3371 = vmatprep.subr.mxu0 0.0
        %3372 = vmatpush1.msra.mxu0 0.0
        %3373 = vmatprep.subr.mxu0 0.0
        %3374 = vmatpush1.msra.mxu0 0.0
        %3375 = vmatprep.subr.mxu0 0.0
        %3376 = vmatpush1.msra.mxu0 0.0
        %3377 = vmatprep.subr.mxu0 0.0
        %3378 = vmatpush1.msra.mxu0 0.0
        %3379 = vmatprep.subr.mxu0 0.0
        %3380 = vmatpush1.msra.mxu0 0.0
        %3381 = vmatprep.subr.mxu0 0.0
        %3382 = vmatpush1.msra.mxu0 0.0
        %3383 = vmatprep.subr.mxu0 0.0
        %3384 = vmatpush1.msra.mxu0 0.0
        %3385 = vmatprep.subr.mxu0 0.0
        %3386 = vmatpush1.msra.mxu0 0.0
        %3387 = vmatprep.subr.mxu0 0.0
        %3388 = vmatpush1.msra.mxu0 0.0
        %3389 = vmatprep.subr.mxu0 0.0
        %3390 = vmatpush1.msra.mxu0 0.0
        %3391 = vmatprep.subr.mxu0 0.0
        %3392 = vmatpush1.msra.mxu0 0.0
        %3393 = vmatprep.subr.mxu0 0.0
        %3394 = vmatpush1.msra.mxu0 0.0
        %3395 = vmatprep.subr.mxu0 0.0
        %3396 = vmatpush1.msra.mxu0 0.0
        %3397 = vmatprep.mubr.f32.mxu0 0.0
        %3398 = vmatmul.mubr.f32.gmra.mrb[0].mxu0 %v3328
        %v3399 = vpop.f32.mrb[0].mxu0
        %v3400 = vadd.f32 0.0, %v3399
        %v3401 = vpop.f32.mrb[0].mxu0
        %3402 = vmatprep.mubr.f32.mxu0 0.0
        %3403 = vmatmul.mubr.f32.gmra.mrb[0].mxu0 %v3331
        %v3404 = vpop.f32.mrb[0].mxu0
        %v3405 = vadd.f32 0.0, %v3404
        %v3406 = vpop.f32.mrb[0].mxu0
        %3407 = vdwg.mxu0
        %v3409 = vsel %vm1671, %v2997, 0
        %v3412 = vsel %vm1671, %v2998, 0
        %3414 = vmatprep.subr.mxu0 0.0
        %3415 = vmatpush1.msra.mxu0 %v2525
        %3416 = vmatprep.subr.mxu0 0.0
        %3417 = vmatpush1.msra.mxu0 %v2526
        %3418 = vmatprep.subr.mxu0 0.0
        %3419 = vmatpush1.msra.mxu0 0.0
        %3420 = vmatprep.subr.mxu0 0.0
        %3421 = vmatpush1.msra.mxu0 0.0
        %3422 = vmatprep.subr.mxu0 0.0
        %3423 = vmatpush1.msra.mxu0 0.0
        %3424 = vmatprep.subr.mxu0 0.0
        %3425 = vmatpush1.msra.mxu0 0.0
        %3426 = vmatprep.subr.mxu0 0.0
        %3427 = vmatpush1.msra.mxu0 0.0
        %3428 = vmatprep.subr.mxu0 0.0
        %3429 = vmatpush1.msra.mxu0 0.0
        %3430 = vmatprep.subr.mxu0 0.0
        %3431 = vmatpush1.msra.mxu0 0.0
        %3432 = vmatprep.subr.mxu0 0.0
        %3433 = vmatpush1.msra.mxu0 0.0
        %3434 = vmatprep.subr.mxu0 0.0
        %3435 = vmatpush1.msra.mxu0 0.0
        %3436 = vmatprep.subr.mxu0 0.0
        %3437 = vmatpush1.msra.mxu0 0.0
        %3438 = vmatprep.subr.mxu0 0.0
        %3439 = vmatpush1.msra.mxu0 0.0
        %3440 = vmatprep.subr.mxu0 0.0
        %3441 = vmatpush1.msra.mxu0 0.0
        %3442 = vmatprep.subr.mxu0 0.0
        %3443 = vmatpush1.msra.mxu0 0.0
        %3444 = vmatprep.subr.mxu0 0.0
        %3445 = vmatpush1.msra.mxu0 0.0
        %3446 = vmatprep.subr.mxu0 0.0
        %3447 = vmatpush1.msra.mxu0 0.0
        %3448 = vmatprep.subr.mxu0 0.0
        %3449 = vmatpush1.msra.mxu0 0.0
        %3450 = vmatprep.subr.mxu0 0.0
        %3451 = vmatpush1.msra.mxu0 0.0
        %3452 = vmatprep.subr.mxu0 0.0
        %3453 = vmatpush1.msra.mxu0 0.0
        %3454 = vmatprep.subr.mxu0 0.0
        %3455 = vmatpush1.msra.mxu0 0.0
        %3456 = vmatprep.subr.mxu0 0.0
        %3457 = vmatpush1.msra.mxu0 0.0
        %3458 = vmatprep.subr.mxu0 0.0
        %3459 = vmatpush1.msra.mxu0 0.0
        %3460 = vmatprep.subr.mxu0 0.0
        %3461 = vmatpush1.msra.mxu0 0.0
        %3462 = vmatprep.subr.mxu0 0.0
        %3463 = vmatpush1.msra.mxu0 0.0
        %3464 = vmatprep.subr.mxu0 0.0
        %3465 = vmatpush1.msra.mxu0 0.0
        %3466 = vmatprep.subr.mxu0 0.0
        %3467 = vmatpush1.msra.mxu0 0.0
        %3468 = vmatprep.subr.mxu0 0.0
        %3469 = vmatpush1.msra.mxu0 0.0
        %3470 = vmatprep.subr.mxu0 0.0
        %3471 = vmatpush1.msra.mxu0 0.0
        %3472 = vmatprep.subr.mxu0 0.0
        %3473 = vmatpush1.msra.mxu0 0.0
        %3474 = vmatprep.subr.mxu0 0.0
        %3475 = vmatpush1.msra.mxu0 0.0
        %3476 = vmatprep.subr.mxu0 0.0
        %3477 = vmatpush1.msra.mxu0 0.0
        %3478 = vmatprep.mubr.f32.mxu0 0.0
        %3479 = vmatmul.mubr.f32.gmra.mrb[0].mxu0 %v3409
        %v3480 = vpop.f32.mrb[0].mxu0
        %v3481 = vadd.f32 0.0, %v3480
        %v3482 = vpop.f32.mrb[0].mxu0
        %3483 = vmatprep.mubr.f32.mxu0 0.0
        %3484 = vmatmul.mubr.f32.gmra.mrb[0].mxu0 %v3412
        %v3485 = vpop.f32.mrb[0].mxu0
        %v3486 = vadd.f32 0.0, %v3485
        %v3487 = vpop.f32.mrb[0].mxu0
        %3488 = vdwg.mxu0
        %v3490 = vsel %vm1671, %v2999, 0
        %v3493 = vsel %vm1671, %v3000, 0
        %3495 = vmatprep.subr.mxu0 0.0
        %3496 = vmatpush1.msra.mxu0 %v2527
        %3497 = vmatprep.subr.mxu0 0.0
        %3498 = vmatpush1.msra.mxu0 %v2528
        %3499 = vmatprep.subr.mxu0 0.0
        %3500 = vmatpush1.msra.mxu0 0.0
        %3501 = vmatprep.subr.mxu0 0.0
        %3502 = vmatpush1.msra.mxu0 0.0
        %3503 = vmatprep.subr.mxu0 0.0
        %3504 = vmatpush1.msra.mxu0 0.0
        %3505 = vmatprep.subr.mxu0 0.0
        %3506 = vmatpush1.msra.mxu0 0.0
        %3507 = vmatprep.subr.mxu0 0.0
        %3508 = vmatpush1.msra.mxu0 0.0
        %3509 = vmatprep.subr.mxu0 0.0
        %3510 = vmatpush1.msra.mxu0 0.0
        %3511 = vmatprep.subr.mxu0 0.0
        %3512 = vmatpush1.msra.mxu0 0.0
        %3513 = vmatprep.subr.mxu0 0.0
        %3514 = vmatpush1.msra.mxu0 0.0
        %3515 = vmatprep.subr.mxu0 0.0
        %3516 = vmatpush1.msra.mxu0 0.0
        %3517 = vmatprep.subr.mxu0 0.0
        %3518 = vmatpush1.msra.mxu0 0.0
        %3519 = vmatprep.subr.mxu0 0.0
        %3520 = vmatpush1.msra.mxu0 0.0
        %3521 = vmatprep.subr.mxu0 0.0
        %3522 = vmatpush1.msra.mxu0 0.0
        %3523 = vmatprep.subr.mxu0 0.0
        %3524 = vmatpush1.msra.mxu0 0.0
        %3525 = vmatprep.subr.mxu0 0.0
        %3526 = vmatpush1.msra.mxu0 0.0
        %3527 = vmatprep.subr.mxu0 0.0
        %3528 = vmatpush1.msra.mxu0 0.0
        %3529 = vmatprep.subr.mxu0 0.0
        %3530 = vmatpush1.msra.mxu0 0.0
        %3531 = vmatprep.subr.mxu0 0.0
        %3532 = vmatpush1.msra.mxu0 0.0
        %3533 = vmatprep.subr.mxu0 0.0
        %3534 = vmatpush1.msra.mxu0 0.0
        %3535 = vmatprep.subr.mxu0 0.0
        %3536 = vmatpush1.msra.mxu0 0.0
        %3537 = vmatprep.subr.mxu0 0.0
        %3538 = vmatpush1.msra.mxu0 0.0
        %3539 = vmatprep.subr.mxu0 0.0
        %3540 = vmatpush1.msra.mxu0 0.0
        %3541 = vmatprep.subr.mxu0 0.0
        %3542 = vmatpush1.msra.mxu0 0.0
        %3543 = vmatprep.subr.mxu0 0.0
        %3544 = vmatpush1.msra.mxu0 0.0
        %3545 = vmatprep.subr.mxu0 0.0
        %3546 = vmatpush1.msra.mxu0 0.0
        %3547 = vmatprep.subr.mxu0 0.0
        %3548 = vmatpush1.msra.mxu0 0.0
        %3549 = vmatprep.subr.mxu0 0.0
        %3550 = vmatpush1.msra.mxu0 0.0
        %3551 = vmatprep.subr.mxu0 0.0
        %3552 = vmatpush1.msra.mxu0 0.0
        %3553 = vmatprep.subr.mxu0 0.0
        %3554 = vmatpush1.msra.mxu0 0.0
        %3555 = vmatprep.subr.mxu0 0.0
        %3556 = vmatpush1.msra.mxu0 0.0
        %3557 = vmatprep.subr.mxu0 0.0
        %3558 = vmatpush1.msra.mxu0 0.0
        %3559 = vmatprep.mubr.f32.mxu0 0.0
        %3560 = vmatmul.mubr.f32.gmra.mrb[0].mxu0 %v3490
        %v3561 = vpop.f32.mrb[0].mxu0
        %v3562 = vadd.f32 0.0, %v3561
        %v3563 = vpop.f32.mrb[0].mxu0
        %3564 = vmatprep.mubr.f32.mxu0 0.0
        %3565 = vmatmul.mubr.f32.gmra.mrb[0].mxu0 %v3493
        %v3566 = vpop.f32.mrb[0].mxu0
        %v3567 = vadd.f32 0.0, %v3566
        %v3568 = vpop.f32.mrb[0].mxu0
        %3569 = vdwg.mxu0
        %v3571 = vsel %vm1671, %v3001, 0
        %v3574 = vsel %vm1671, %v3002, 0
        %3576 = vmatprep.subr.mxu0 0.0
        %3577 = vmatpush1.msra.mxu0 %v2529
        %3578 = vmatprep.subr.mxu0 0.0
        %3579 = vmatpush1.msra.mxu0 %v2530
        %3580 = vmatprep.subr.mxu0 0.0
        %3581 = vmatpush1.msra.mxu0 0.0
        %3582 = vmatprep.subr.mxu0 0.0
        %3583 = vmatpush1.msra.mxu0 0.0
        %3584 = vmatprep.subr.mxu0 0.0
        %3585 = vmatpush1.msra.mxu0 0.0
        %3586 = vmatprep.subr.mxu0 0.0
        %3587 = vmatpush1.msra.mxu0 0.0
        %3588 = vmatprep.subr.mxu0 0.0
        %3589 = vmatpush1.msra.mxu0 0.0
        %3590 = vmatprep.subr.mxu0 0.0
        %3591 = vmatpush1.msra.mxu0 0.0
        %3592 = vmatprep.subr.mxu0 0.0
        %3593 = vmatpush1.msra.mxu0 0.0
        %3594 = vmatprep.subr.mxu0 0.0
        %3595 = vmatpush1.msra.mxu0 0.0
        %3596 = vmatprep.subr.mxu0 0.0
        %3597 = vmatpush1.msra.mxu0 0.0
        %3598 = vmatprep.subr.mxu0 0.0
        %3599 = vmatpush1.msra.mxu0 0.0
        %3600 = vmatprep.subr.mxu0 0.0
        %3601 = vmatpush1.msra.mxu0 0.0
        %3602 = vmatprep.subr.mxu0 0.0
        %3603 = vmatpush1.msra.mxu0 0.0
        %3604 = vmatprep.subr.mxu0 0.0
        %3605 = vmatpush1.msra.mxu0 0.0
        %3606 = vmatprep.subr.mxu0 0.0
        %3607 = vmatpush1.msra.mxu0 0.0
        %3608 = vmatprep.subr.mxu0 0.0
        %3609 = vmatpush1.msra.mxu0 0.0
        %3610 = vmatprep.subr.mxu0 0.0
        %3611 = vmatpush1.msra.mxu0 0.0
        %3612 = vmatprep.subr.mxu0 0.0
        %3613 = vmatpush1.msra.mxu0 0.0
        %3614 = vmatprep.subr.mxu0 0.0
        %3615 = vmatpush1.msra.mxu0 0.0
        %3616 = vmatprep.subr.mxu0 0.0
        %3617 = vmatpush1.msra.mxu0 0.0
        %3618 = vmatprep.subr.mxu0 0.0
        %3619 = vmatpush1.msra.mxu0 0.0
        %3620 = vmatprep.subr.mxu0 0.0
        %3621 = vmatpush1.msra.mxu0 0.0
        %3622 = vmatprep.subr.mxu0 0.0
        %3623 = vmatpush1.msra.mxu0 0.0
        %3624 = vmatprep.subr.mxu0 0.0
        %3625 = vmatpush1.msra.mxu0 0.0
        %3626 = vmatprep.subr.mxu0 0.0
        %3627 = vmatpush1.msra.mxu0 0.0
        %3628 = vmatprep.subr.mxu0 0.0
        %3629 = vmatpush1.msra.mxu0 0.0
        %3630 = vmatprep.subr.mxu0 0.0
        %3631 = vmatpush1.msra.mxu0 0.0
        %3632 = vmatprep.subr.mxu0 0.0
        %3633 = vmatpush1.msra.mxu0 0.0
        %3634 = vmatprep.subr.mxu0 0.0
        %3635 = vmatpush1.msra.mxu0 0.0
        %3636 = vmatprep.subr.mxu0 0.0
        %3637 = vmatpush1.msra.mxu0 0.0
        %3638 = vmatprep.subr.mxu0 0.0
        %3639 = vmatpush1.msra.mxu0 0.0
        %3640 = vmatprep.mubr.f32.mxu0 0.0
        %3641 = vmatmul.mubr.f32.gmra.mrb[0].mxu0 %v3571
        %v3642 = vpop.f32.mrb[0].mxu0
        %v3643 = vadd.f32 0.0, %v3642
        %v3644 = vpop.f32.mrb[0].mxu0
        %3645 = vmatprep.mubr.f32.mxu0 0.0
        %3646 = vmatmul.mubr.f32.gmra.mrb[0].mxu0 %v3574
        %v3647 = vpop.f32.mrb[0].mxu0
        %v3648 = vadd.f32 0.0, %v3647
        %v3649 = vpop.f32.mrb[0].mxu0
        %3650 = vdwg.mxu0
        %s3651 = scalar_lea.vmem %s1121, 128 [#allocation5]
        %3652 = vst.msk [vmem:[%s3651] sm:$0xff] %vm1671, %v2987
        %3653 = vst.msk [vmem:[%s3651 + $0x8] sm:$0xff] %vm1671, %v2988
        %3654 = vst.msk [vmem:[%s3651 + $0x10] sm:$0xff] %vm1671, %v2989
        %3655 = vst.msk [vmem:[%s3651 + $0x18] sm:$0xff] %vm1671, %v2990
        %3656 = vst.msk [vmem:[%s3651 + $0x20] sm:$0xff] %vm1671, %v2991
        %3657 = vst.msk [vmem:[%s3651 + $0x28] sm:$0xff] %vm1671, %v2992
        %3658 = vst.msk [vmem:[%s3651 + $0x30] sm:$0xff] %vm1671, %v2993
        %3659 = vst.msk [vmem:[%s3651 + $0x38] sm:$0xff] %vm1671, %v2994
        %3660 = vst.msk [vmem:[%s3651 + $0x40] sm:$0xff] %vm1671, %v2995
        %3661 = vst.msk [vmem:[%s3651 + $0x48] sm:$0xff] %vm1671, %v2996
        %3662 = vst.msk [vmem:[%s3651 + $0x50] sm:$0xff] %vm1671, %v2997
        %3663 = vst.msk [vmem:[%s3651 + $0x58] sm:$0xff] %vm1671, %v2998
        %3664 = vst.msk [vmem:[%s3651 + $0x60] sm:$0xff] %vm1671, %v2999
        %3665 = vst.msk [vmem:[%s3651 + $0x68] sm:$0xff] %vm1671, %v3000
        %3666 = vst.msk [vmem:[%s3651 + $0x70] sm:$0xff] %vm1671, %v3001
        %3667 = vst.msk [vmem:[%s3651 + $0x78] sm:$0xff] %vm1671, %v3002
        %v3668 = vsub.f32 %v3076, %v2448
        %v3669 = vsub.f32 %v3081, %v2449
        %v3670 = vsub.f32 %v3157, %v2450
        %v3671 = vsub.f32 %v3162, %v2451
        %v3672 = vsub.f32 %v3238, %v2452
        %v3673 = vsub.f32 %v3243, %v2453
        %v3674 = vsub.f32 %v3319, %v2454
        %v3675 = vsub.f32 %v3324, %v2455
        %v3676 = vsub.f32 %v3400, %v2456
        %v3677 = vsub.f32 %v3405, %v2457
        %v3678 = vsub.f32 %v3481, %v2458
        %v3679 = vsub.f32 %v3486, %v2459
        %v3680 = vsub.f32 %v3562, %v2460
        %v3681 = vsub.f32 %v3567, %v2461
        %v3682 = vsub.f32 %v3643, %v2462
        %v3683 = vsub.f32 %v3648, %v2463
        %v3684 = vmul.f32 %v3668, 0.5
        %v3685 = vmul.f32 %v3669, 0.5
        %v3686 = vmul.f32 %v3670, 0.5
        %v3687 = vmul.f32 %v3671, 0.5
        %v3688 = vmul.f32 %v3672, 0.5
        %v3689 = vmul.f32 %v3673, 0.5
        %v3690 = vmul.f32 %v3674, 0.5
        %v3691 = vmul.f32 %v3675, 0.5
        %v3692 = vmul.f32 %v3676, 0.5
        %v3693 = vmul.f32 %v3677, 0.5
        %v3694 = vmul.f32 %v3678, 0.5
        %v3695 = vmul.f32 %v3679, 0.5
        %v3696 = vmul.f32 %v3680, 0.5
        %v3697 = vmul.f32 %v3681, 0.5
        %v3698 = vmul.f32 %v3682, 0.5
        %v3699 = vmul.f32 %v3683, 0.5
        %v3700 = vadd.f32 %v2448, %v3684
        %v3701 = vadd.f32 %v2449, %v3685
        %v3702 = vadd.f32 %v2450, %v3686
        %v3703 = vadd.f32 %v2451, %v3687
        %v3704 = vadd.f32 %v2452, %v3688
        %v3705 = vadd.f32 %v2453, %v3689
        %v3706 = vadd.f32 %v2454, %v3690
        %v3707 = vadd.f32 %v2455, %v3691
        %v3708 = vadd.f32 %v2456, %v3692
        %v3709 = vadd.f32 %v2457, %v3693
        %v3710 = vadd.f32 %v2458, %v3694
        %v3711 = vadd.f32 %v2459, %v3695
        %v3712 = vadd.f32 %v2460, %v3696
        %v3713 = vadd.f32 %v2461, %v3697
        %v3714 = vadd.f32 %v2462, %v3698
        %v3715 = vadd.f32 %v2463, %v3699
        %vm3716 = vcmp.ge.f32.partialorder %v3700, 0.5
        %vm3717 = vcmp.ge.f32.partialorder %v3701, 0.5
        %vm3718 = vcmp.ge.f32.partialorder %v3702, 0.5
        %vm3719 = vcmp.ge.f32.partialorder %v3703, 0.5
        %vm3720 = vcmp.ge.f32.partialorder %v3704, 0.5
        %vm3721 = vcmp.ge.f32.partialorder %v3705, 0.5
        %vm3722 = vcmp.ge.f32.partialorder %v3706, 0.5
        %vm3723 = vcmp.ge.f32.partialorder %v3707, 0.5
        %vm3724 = vcmp.ge.f32.partialorder %v3708, 0.5
        %vm3725 = vcmp.ge.f32.partialorder %v3709, 0.5
        %vm3726 = vcmp.ge.f32.partialorder %v3710, 0.5
        %vm3727 = vcmp.ge.f32.partialorder %v3711, 0.5
        %vm3728 = vcmp.ge.f32.partialorder %v3712, 0.5
        %vm3729 = vcmp.ge.f32.partialorder %v3713, 0.5
        %vm3730 = vcmp.ge.f32.partialorder %v3714, 0.5
        %vm3731 = vcmp.ge.f32.partialorder %v3715, 0.5
        %v3732 = vsel %vm3716, 1, 0
        %v3733 = vsel %vm3717, 1, 0
        %v3734 = vsel %vm3718, 1, 0
        %v3735 = vsel %vm3719, 1, 0
        %v3736 = vsel %vm3720, 1, 0
        %v3737 = vsel %vm3721, 1, 0
        %v3738 = vsel %vm3722, 1, 0
        %v3739 = vsel %vm3723, 1, 0
        %v3740 = vsel %vm3724, 1, 0
        %v3741 = vsel %vm3725, 1, 0
        %v3742 = vsel %vm3726, 1, 0
        %v3743 = vsel %vm3727, 1, 0
        %v3744 = vsel %vm3728, 1, 0
        %v3745 = vsel %vm3729, 1, 0
        %v3746 = vsel %vm3730, 1, 0
        %v3747 = vsel %vm3731, 1, 0
        %v3748 = vcvt.s32.f32 %v3732
        %v3749 = vcvt.s32.f32 %v3733
        %v3750 = vcvt.s32.f32 %v3734
        %v3751 = vcvt.s32.f32 %v3735
        %v3752 = vcvt.s32.f32 %v3736
        %v3753 = vcvt.s32.f32 %v3737
        %v3754 = vcvt.s32.f32 %v3738
        %v3755 = vcvt.s32.f32 %v3739
        %v3756 = vcvt.s32.f32 %v3740
        %v3757 = vcvt.s32.f32 %v3741
        %v3758 = vcvt.s32.f32 %v3742
        %v3759 = vcvt.s32.f32 %v3743
        %v3760 = vcvt.s32.f32 %v3744
        %v3761 = vcvt.s32.f32 %v3745
        %v3762 = vcvt.s32.f32 %v3746
        %v3763 = vcvt.s32.f32 %v3747
        %s3764 = scalar_lea.vmem %s1127, 128 [#allocation7]
        %3765 = vst.msk [vmem:[%s3764] sm:$0xff] %vm1208, %v3748
        %3766 = vst.msk [vmem:[%s3764 + $0x8] sm:$0xff] %vm1208, %v3749
        %3767 = vst.msk [vmem:[%s3764 + $0x10] sm:$0xff] %vm1208, %v3750
        %3768 = vst.msk [vmem:[%s3764 + $0x18] sm:$0xff] %vm1208, %v3751
        %3769 = vst.msk [vmem:[%s3764 + $0x20] sm:$0xff] %vm1208, %v3752
        %3770 = vst.msk [vmem:[%s3764 + $0x28] sm:$0xff] %vm1208, %v3753
        %3771 = vst.msk [vmem:[%s3764 + $0x30] sm:$0xff] %vm1208, %v3754
        %3772 = vst.msk [vmem:[%s3764 + $0x38] sm:$0xff] %vm1208, %v3755
        %3773 = vst.msk [vmem:[%s3764 + $0x40] sm:$0xff] %vm1208, %v3756
        %3774 = vst.msk [vmem:[%s3764 + $0x48] sm:$0xff] %vm1208, %v3757
        %3775 = vst.msk [vmem:[%s3764 + $0x50] sm:$0xff] %vm1208, %v3758
        %3776 = vst.msk [vmem:[%s3764 + $0x58] sm:$0xff] %vm1208, %v3759
        %3777 = vst.msk [vmem:[%s3764 + $0x60] sm:$0xff] %vm1208, %v3760
        %3778 = vst.msk [vmem:[%s3764 + $0x68] sm:$0xff] %vm1208, %v3761
        %3779 = vst.msk [vmem:[%s3764 + $0x70] sm:$0xff] %vm1208, %v3762
        %3780 = vst.msk [vmem:[%s3764 + $0x78] sm:$0xff] %vm1208, %v3763
        %v3781 = vsub.f32 1.0, %v3748
        %v3782 = vsub.f32 1.0, %v3749
        %v3783 = vsub.f32 1.0, %v3750
        %v3784 = vsub.f32 1.0, %v3751
        %v3785 = vsub.f32 1.0, %v3752
        %v3786 = vsub.f32 1.0, %v3753
        %v3787 = vsub.f32 1.0, %v3754
        %v3788 = vsub.f32 1.0, %v3755
        %v3789 = vsub.f32 1.0, %v3756
        %v3790 = vsub.f32 1.0, %v3757
        %v3791 = vsub.f32 1.0, %v3758
        %v3792 = vsub.f32 1.0, %v3759
        %v3793 = vsub.f32 1.0, %v3760
        %v3794 = vsub.f32 1.0, %v3761
        %v3795 = vsub.f32 1.0, %v3762
        %v3796 = vsub.f32 1.0, %v3763
        %v3797 = vmul.f32 %v3700, %v3781
        %v3798 = vmul.f32 %v3701, %v3782
        %v3799 = vmul.f32 %v3702, %v3783
        %v3800 = vmul.f32 %v3703, %v3784
        %v3801 = vmul.f32 %v3704, %v3785
        %v3802 = vmul.f32 %v3705, %v3786
        %v3803 = vmul.f32 %v3706, %v3787
        %v3804 = vmul.f32 %v3707, %v3788
        %v3805 = vmul.f32 %v3708, %v3789
        %v3806 = vmul.f32 %v3709, %v3790
        %v3807 = vmul.f32 %v3710, %v3791
        %v3808 = vmul.f32 %v3711, %v3792
        %v3809 = vmul.f32 %v3712, %v3793
        %v3810 = vmul.f32 %v3713, %v3794
        %v3811 = vmul.f32 %v3714, %v3795
        %v3812 = vmul.f32 %v3715, %v3796
        %s3813 = scalar_lea.vmem %s1079, 128 [#allocation2]
        %v3814 = vld [vmem:[%s3813] sm:$0xf]
        %v3815 = vld [vmem:[%s3813 + $0x4] sm:$0xf]
        %v3816 = vld [vmem:[%s3813 + $0x8] sm:$0xf]
        %v3817 = vld [vmem:[%s3813 + $0xc] sm:$0xf]
        %v3818 = vld [vmem:[%s3813 + $0x10] sm:$0xf]
        %v3819 = vld [vmem:[%s3813 + $0x14] sm:$0xf]
        %v3820 = vld [vmem:[%s3813 + $0x18] sm:$0xf]
        %v3821 = vld [vmem:[%s3813 + $0x1c] sm:$0xf]
        %v3822 = vld [vmem:[%s3813 + $0x20] sm:$0xf]
        %v3823 = vld [vmem:[%s3813 + $0x24] sm:$0xf]
        %v3824 = vld [vmem:[%s3813 + $0x28] sm:$0xf]
        %v3825 = vld [vmem:[%s3813 + $0x2c] sm:$0xf]
        %v3826 = vld [vmem:[%s3813 + $0x30] sm:$0xf]
        %v3827 = vld [vmem:[%s3813 + $0x34] sm:$0xf]
        %v3828 = vld [vmem:[%s3813 + $0x38] sm:$0xf]
        %v3829 = vld [vmem:[%s3813 + $0x3c] sm:$0xf]
        %s3830 = scalar_lea.vmem %s1086, 128 [#allocation3]
        %v3831 = vld [vmem:[%s3830] sm:$0xf]
        %v3832 = vld [vmem:[%s3830 + $0x4] sm:$0xf]
        %v3833 = vld [vmem:[%s3830 + $0x8] sm:$0xf]
        %v3834 = vld [vmem:[%s3830 + $0xc] sm:$0xf]
        %v3835 = vld [vmem:[%s3830 + $0x10] sm:$0xf]
        %v3836 = vld [vmem:[%s3830 + $0x14] sm:$0xf]
        %v3837 = vld [vmem:[%s3830 + $0x18] sm:$0xf]
        %v3838 = vld [vmem:[%s3830 + $0x1c] sm:$0xf]
        %v3839 = vld [vmem:[%s3830 + $0x20] sm:$0xf]
        %v3840 = vld [vmem:[%s3830 + $0x24] sm:$0xf]
        %v3841 = vld [vmem:[%s3830 + $0x28] sm:$0xf]
        %v3842 = vld [vmem:[%s3830 + $0x2c] sm:$0xf]
        %v3843 = vld [vmem:[%s3830 + $0x30] sm:$0xf]
        %v3844 = vld [vmem:[%s3830 + $0x34] sm:$0xf]
        %v3845 = vld [vmem:[%s3830 + $0x38] sm:$0xf]
        %v3846 = vld [vmem:[%s3830 + $0x3c] sm:$0xf]
        %s3847 = scalar_lea.vmem %s1093, 128 [#allocation4]
        %v3848 = vld [vmem:[%s3847] sm:$0xf]
        %v3849 = vld [vmem:[%s3847 + $0x4] sm:$0xf]
        %v3850 = vld [vmem:[%s3847 + $0x8] sm:$0xf]
        %v3851 = vld [vmem:[%s3847 + $0xc] sm:$0xf]
        %v3852 = vld [vmem:[%s3847 + $0x10] sm:$0xf]
        %v3853 = vld [vmem:[%s3847 + $0x14] sm:$0xf]
        %v3854 = vld [vmem:[%s3847 + $0x18] sm:$0xf]
        %v3855 = vld [vmem:[%s3847 + $0x1c] sm:$0xf]
        %v3856 = vld [vmem:[%s3847 + $0x20] sm:$0xf]
        %v3857 = vld [vmem:[%s3847 + $0x24] sm:$0xf]
        %v3858 = vld [vmem:[%s3847 + $0x28] sm:$0xf]
        %v3859 = vld [vmem:[%s3847 + $0x2c] sm:$0xf]
        %v3860 = vld [vmem:[%s3847 + $0x30] sm:$0xf]
        %v3861 = vld [vmem:[%s3847 + $0x34] sm:$0xf]
        %v3862 = vld [vmem:[%s3847 + $0x38] sm:$0xf]
        %v3863 = vld [vmem:[%s3847 + $0x3c] sm:$0xf]
        %v3864 = vunpack.c.l.bf16 %v3848
        %v3865 = vunpack.c.l.bf16 %v3849
        %v3866 = vunpack.c.l.bf16 %v3850
        %v3867 = vunpack.c.l.bf16 %v3851
        %v3868 = vunpack.c.l.bf16 %v3852
        %v3869 = vunpack.c.l.bf16 %v3853
        %v3870 = vunpack.c.l.bf16 %v3854
        %v3871 = vunpack.c.l.bf16 %v3855
        %v3872 = vunpack.c.l.bf16 %v3856
        %v3873 = vunpack.c.l.bf16 %v3857
        %v3874 = vunpack.c.l.bf16 %v3858
        %v3875 = vunpack.c.l.bf16 %v3859
        %v3876 = vunpack.c.l.bf16 %v3860
        %v3877 = vunpack.c.l.bf16 %v3861
        %v3878 = vunpack.c.l.bf16 %v3862
        %v3879 = vunpack.c.l.bf16 %v3863
        %v3882 = vunpack.c.l.b16 %v3814
        %v3883 = vunpack.c.l.b16 %v3815
        %v3884 = vpack.c.b16 %v3883, %v3882
        %v3887 = vunpack.c.l.b16 %v3831
        %v3888 = vunpack.c.l.b16 %v3832
        %v3889 = vpack.c.b16 %v3888, %v3887
        %v3891 = vsel %vm1208, %v3884, 0
        %v3894 = vsel %vm1208, %v3889, 0
        %3896 = vmatprep.subr.bf16.mxu0 0
        %3897 = vmatpush1.bf16.xpose.msra.mxu0 %v3894
        %3898 = vmatprep.subr.bf16.mxu0 0
        %3899 = vmatpush1.bf16.xpose.msra.mxu0 0
        %3900 = vmatprep.subr.bf16.mxu0 0
        %3901 = vmatpush1.bf16.xpose.msra.mxu0 0
        %3902 = vmatprep.subr.bf16.mxu0 0
        %3903 = vmatpush1.bf16.xpose.msra.mxu0 0
        %3904 = vmatprep.subr.bf16.mxu0 0
        %3905 = vmatpush1.bf16.xpose.msra.mxu0 0
        %3906 = vmatprep.subr.bf16.mxu0 0
        %3907 = vmatpush1.bf16.xpose.msra.mxu0 0
        %3908 = vmatprep.subr.bf16.mxu0 0
        %3909 = vmatpush1.bf16.xpose.msra.mxu0 0
        %3910 = vmatprep.subr.bf16.mxu0 0
        %3911 = vmatpush1.bf16.xpose.msra.mxu0 0
        %3912 = vmatprep.subr.bf16.mxu0 0
        %3913 = vmatpush1.bf16.xpose.msra.mxu0 0
        %3914 = vmatprep.subr.bf16.mxu0 0
        %3915 = vmatpush1.bf16.xpose.msra.mxu0 0
        %3916 = vmatprep.subr.bf16.mxu0 0
        %3917 = vmatpush1.bf16.xpose.msra.mxu0 0
        %3918 = vmatprep.subr.bf16.mxu0 0
        %3919 = vmatpush1.bf16.xpose.msra.mxu0 0
        %3920 = vmatprep.subr.bf16.mxu0 0
        %3921 = vmatpush1.bf16.xpose.msra.mxu0 0
        %3922 = vmatprep.subr.bf16.mxu0 0
        %3923 = vmatpush1.bf16.xpose.msra.mxu0 0
        %3924 = vmatprep.subr.bf16.mxu0 0
        %3925 = vmatpush1.bf16.xpose.msra.mxu0 0
        %3926 = vmatprep.subr.bf16.mxu0 0
        %3927 = vmatpush1.bf16.xpose.msra.mxu0 0
        %3928 = vmatprep.mubr.bf16.mxu0 0
        %3929 = vmatmul.mubr.bf16.gmra.mrb[0].mxu0 %v3891
        %v3930 = vpop.f32.mrb[0].mxu0
        %v3931 = vadd.f32 0.0, %v3930
        %v3932 = vpop.f32.mrb[0].mxu0
        %v3933 = vpop.f32.mrb[0].mxu0
        %v3934 = vadd.f32 0.0, %v3933
        %v3935 = vpop.f32.mrb[0].mxu0
        %3936 = vdwg.mxu0
        %v3939 = vunpack.c.l.b16 %v3816
        %v3940 = vunpack.c.l.b16 %v3817
        %v3941 = vpack.c.b16 %v3940, %v3939
        %v3944 = vunpack.c.l.b16 %v3833
        %v3945 = vunpack.c.l.b16 %v3834
        %v3946 = vpack.c.b16 %v3945, %v3944
        %v3948 = vsel %vm1208, %v3941, 0
        %v3951 = vsel %vm1208, %v3946, 0
        %3953 = vmatprep.subr.bf16.mxu0 0
        %3954 = vmatpush1.bf16.xpose.msra.mxu0 %v3951
        %3955 = vmatprep.subr.bf16.mxu0 0
        %3956 = vmatpush1.bf16.xpose.msra.mxu0 0
        %3957 = vmatprep.subr.bf16.mxu0 0
        %3958 = vmatpush1.bf16.xpose.msra.mxu0 0
        %3959 = vmatprep.subr.bf16.mxu0 0
        %3960 = vmatpush1.bf16.xpose.msra.mxu0 0
        %3961 = vmatprep.subr.bf16.mxu0 0
        %3962 = vmatpush1.bf16.xpose.msra.mxu0 0
        %3963 = vmatprep.subr.bf16.mxu0 0
        %3964 = vmatpush1.bf16.xpose.msra.mxu0 0
        %3965 = vmatprep.subr.bf16.mxu0 0
        %3966 = vmatpush1.bf16.xpose.msra.mxu0 0
        %3967 = vmatprep.subr.bf16.mxu0 0
        %3968 = vmatpush1.bf16.xpose.msra.mxu0 0
        %3969 = vmatprep.subr.bf16.mxu0 0
        %3970 = vmatpush1.bf16.xpose.msra.mxu0 0
        %3971 = vmatprep.subr.bf16.mxu0 0
        %3972 = vmatpush1.bf16.xpose.msra.mxu0 0
        %3973 = vmatprep.subr.bf16.mxu0 0
        %3974 = vmatpush1.bf16.xpose.msra.mxu0 0
        %3975 = vmatprep.subr.bf16.mxu0 0
        %3976 = vmatpush1.bf16.xpose.msra.mxu0 0
        %3977 = vmatprep.subr.bf16.mxu0 0
        %3978 = vmatpush1.bf16.xpose.msra.mxu0 0
        %3979 = vmatprep.subr.bf16.mxu0 0
        %3980 = vmatpush1.bf16.xpose.msra.mxu0 0
        %3981 = vmatprep.subr.bf16.mxu0 0
        %3982 = vmatpush1.bf16.xpose.msra.mxu0 0
        %3983 = vmatprep.subr.bf16.mxu0 0
        %3984 = vmatpush1.bf16.xpose.msra.mxu0 0
        %3985 = vmatprep.mubr.bf16.mxu0 0
        %3986 = vmatmul.mubr.bf16.gmra.mrb[0].mxu0 %v3948
        %v3987 = vpop.f32.mrb[0].mxu0
        %v3988 = vadd.f32 0.0, %v3987
        %v3989 = vpop.f32.mrb[0].mxu0
        %v3990 = vpop.f32.mrb[0].mxu0
        %v3991 = vadd.f32 0.0, %v3990
        %v3992 = vpop.f32.mrb[0].mxu0
        %3993 = vdwg.mxu0
        %v3996 = vunpack.c.l.b16 %v3818
        %v3997 = vunpack.c.l.b16 %v3819
        %v3998 = vpack.c.b16 %v3997, %v3996
        %v4001 = vunpack.c.l.b16 %v3835
        %v4002 = vunpack.c.l.b16 %v3836
        %v4003 = vpack.c.b16 %v4002, %v4001
        %v4005 = vsel %vm1208, %v3998, 0
        %v4008 = vsel %vm1208, %v4003, 0
        %4010 = vmatprep.subr.bf16.mxu0 0
        %4011 = vmatpush1.bf16.xpose.msra.mxu0 %v4008
        %4012 = vmatprep.subr.bf16.mxu0 0
        %4013 = vmatpush1.bf16.xpose.msra.mxu0 0
        %4014 = vmatprep.subr.bf16.mxu0 0
        %4015 = vmatpush1.bf16.xpose.msra.mxu0 0
        %4016 = vmatprep.subr.bf16.mxu0 0
        %4017 = vmatpush1.bf16.xpose.msra.mxu0 0
        %4018 = vmatprep.subr.bf16.mxu0 0
        %4019 = vmatpush1.bf16.xpose.msra.mxu0 0
        %4020 = vmatprep.subr.bf16.mxu0 0
        %4021 = vmatpush1.bf16.xpose.msra.mxu0 0
        %4022 = vmatprep.subr.bf16.mxu0 0
        %4023 = vmatpush1.bf16.xpose.msra.mxu0 0
        %4024 = vmatprep.subr.bf16.mxu0 0
        %4025 = vmatpush1.bf16.xpose.msra.mxu0 0
        %4026 = vmatprep.subr.bf16.mxu0 0
        %4027 = vmatpush1.bf16.xpose.msra.mxu0 0
        %4028 = vmatprep.subr.bf16.mxu0 0
        %4029 = vmatpush1.bf16.xpose.msra.mxu0 0
        %4030 = vmatprep.subr.bf16.mxu0 0
        %4031 = vmatpush1.bf16.xpose.msra.mxu0 0
        %4032 = vmatprep.subr.bf16.mxu0 0
        %4033 = vmatpush1.bf16.xpose.msra.mxu0 0
        %4034 = vmatprep.subr.bf16.mxu0 0
        %4035 = vmatpush1.bf16.xpose.msra.mxu0 0
        %4036 = vmatprep.subr.bf16.mxu0 0
        %4037 = vmatpush1.bf16.xpose.msra.mxu0 0
        %4038 = vmatprep.subr.bf16.mxu0 0
        %4039 = vmatpush1.bf16.xpose.msra.mxu0 0
        %4040 = vmatprep.subr.bf16.mxu0 0
        %4041 = vmatpush1.bf16.xpose.msra.mxu0 0
        %4042 = vmatprep.mubr.bf16.mxu0 0
        %4043 = vmatmul.mubr.bf16.gmra.mrb[0].mxu0 %v4005
        %v4044 = vpop.f32.mrb[0].mxu0
        %v4045 = vadd.f32 0.0, %v4044
        %v4046 = vpop.f32.mrb[0].mxu0
        %v4047 = vpop.f32.mrb[0].mxu0
        %v4048 = vadd.f32 0.0, %v4047
        %v4049 = vpop.f32.mrb[0].mxu0
        %4050 = vdwg.mxu0
        %v4053 = vunpack.c.l.b16 %v3820
        %v4054 = vunpack.c.l.b16 %v3821
        %v4055 = vpack.c.b16 %v4054, %v4053
        %v4058 = vunpack.c.l.b16 %v3837
        %v4059 = vunpack.c.l.b16 %v3838
        %v4060 = vpack.c.b16 %v4059, %v4058
        %v4062 = vsel %vm1208, %v4055, 0
        %v4065 = vsel %vm1208, %v4060, 0
        %4067 = vmatprep.subr.bf16.mxu0 0
        %4068 = vmatpush1.bf16.xpose.msra.mxu0 %v4065
        %4069 = vmatprep.subr.bf16.mxu0 0
        %4070 = vmatpush1.bf16.xpose.msra.mxu0 0
        %4071 = vmatprep.subr.bf16.mxu0 0
        %4072 = vmatpush1.bf16.xpose.msra.mxu0 0
        %4073 = vmatprep.subr.bf16.mxu0 0
        %4074 = vmatpush1.bf16.xpose.msra.mxu0 0
        %4075 = vmatprep.subr.bf16.mxu0 0
        %4076 = vmatpush1.bf16.xpose.msra.mxu0 0
        %4077 = vmatprep.subr.bf16.mxu0 0
        %4078 = vmatpush1.bf16.xpose.msra.mxu0 0
        %4079 = vmatprep.subr.bf16.mxu0 0
        %4080 = vmatpush1.bf16.xpose.msra.mxu0 0
        %4081 = vmatprep.subr.bf16.mxu0 0
        %4082 = vmatpush1.bf16.xpose.msra.mxu0 0
        %4083 = vmatprep.subr.bf16.mxu0 0
        %4084 = vmatpush1.bf16.xpose.msra.mxu0 0
        %4085 = vmatprep.subr.bf16.mxu0 0
        %4086 = vmatpush1.bf16.xpose.msra.mxu0 0
        %4087 = vmatprep.subr.bf16.mxu0 0
        %4088 = vmatpush1.bf16.xpose.msra.mxu0 0
        %4089 = vmatprep.subr.bf16.mxu0 0
        %4090 = vmatpush1.bf16.xpose.msra.mxu0 0
        %4091 = vmatprep.subr.bf16.mxu0 0
        %4092 = vmatpush1.bf16.xpose.msra.mxu0 0
        %4093 = vmatprep.subr.bf16.mxu0 0
        %4094 = vmatpush1.bf16.xpose.msra.mxu0 0
        %4095 = vmatprep.subr.bf16.mxu0 0
        %4096 = vmatpush1.bf16.xpose.msra.mxu0 0
        %4097 = vmatprep.subr.bf16.mxu0 0
        %4098 = vmatpush1.bf16.xpose.msra.mxu0 0
        %4099 = vmatprep.mubr.bf16.mxu0 0
        %4100 = vmatmul.mubr.bf16.gmra.mrb[0].mxu0 %v4062
        %v4101 = vpop.f32.mrb[0].mxu0
        %v4102 = vadd.f32 0.0, %v4101
        %v4103 = vpop.f32.mrb[0].mxu0
        %v4104 = vpop.f32.mrb[0].mxu0
        %v4105 = vadd.f32 0.0, %v4104
        %v4106 = vpop.f32.mrb[0].mxu0
        %4107 = vdwg.mxu0
        %v4110 = vunpack.c.l.b16 %v3822
        %v4111 = vunpack.c.l.b16 %v3823
        %v4112 = vpack.c.b16 %v4111, %v4110
        %v4115 = vunpack.c.l.b16 %v3839
        %v4116 = vunpack.c.l.b16 %v3840
        %v4117 = vpack.c.b16 %v4116, %v4115
        %v4119 = vsel %vm1208, %v4112, 0
        %v4122 = vsel %vm1208, %v4117, 0
        %4124 = vmatprep.subr.bf16.mxu0 0
        %4125 = vmatpush1.bf16.xpose.msra.mxu0 %v4122
        %4126 = vmatprep.subr.bf16.mxu0 0
        %4127 = vmatpush1.bf16.xpose.msra.mxu0 0
        %4128 = vmatprep.subr.bf16.mxu0 0
        %4129 = vmatpush1.bf16.xpose.msra.mxu0 0
        %4130 = vmatprep.subr.bf16.mxu0 0
        %4131 = vmatpush1.bf16.xpose.msra.mxu0 0
        %4132 = vmatprep.subr.bf16.mxu0 0
        %4133 = vmatpush1.bf16.xpose.msra.mxu0 0
        %4134 = vmatprep.subr.bf16.mxu0 0
        %4135 = vmatpush1.bf16.xpose.msra.mxu0 0
        %4136 = vmatprep.subr.bf16.mxu0 0
        %4137 = vmatpush1.bf16.xpose.msra.mxu0 0
        %4138 = vmatprep.subr.bf16.mxu0 0
        %4139 = vmatpush1.bf16.xpose.msra.mxu0 0
        %4140 = vmatprep.subr.bf16.mxu0 0
        %4141 = vmatpush1.bf16.xpose.msra.mxu0 0
        %4142 = vmatprep.subr.bf16.mxu0 0
        %4143 = vmatpush1.bf16.xpose.msra.mxu0 0
        %4144 = vmatprep.subr.bf16.mxu0 0
        %4145 = vmatpush1.bf16.xpose.msra.mxu0 0
        %4146 = vmatprep.subr.bf16.mxu0 0
        %4147 = vmatpush1.bf16.xpose.msra.mxu0 0
        %4148 = vmatprep.subr.bf16.mxu0 0
        %4149 = vmatpush1.bf16.xpose.msra.mxu0 0
        %4150 = vmatprep.subr.bf16.mxu0 0
        %4151 = vmatpush1.bf16.xpose.msra.mxu0 0
        %4152 = vmatprep.subr.bf16.mxu0 0
        %4153 = vmatpush1.bf16.xpose.msra.mxu0 0
        %4154 = vmatprep.subr.bf16.mxu0 0
        %4155 = vmatpush1.bf16.xpose.msra.mxu0 0
        %4156 = vmatprep.mubr.bf16.mxu0 0
        %4157 = vmatmul.mubr.bf16.gmra.mrb[0].mxu0 %v4119
        %v4158 = vpop.f32.mrb[0].mxu0
        %v4159 = vadd.f32 0.0, %v4158
        %v4160 = vpop.f32.mrb[0].mxu0
        %v4161 = vpop.f32.mrb[0].mxu0
        %v4162 = vadd.f32 0.0, %v4161
        %v4163 = vpop.f32.mrb[0].mxu0
        %4164 = vdwg.mxu0
        %v4167 = vunpack.c.l.b16 %v3824
        %v4168 = vunpack.c.l.b16 %v3825
        %v4169 = vpack.c.b16 %v4168, %v4167
        %v4172 = vunpack.c.l.b16 %v3841
        %v4173 = vunpack.c.l.b16 %v3842
        %v4174 = vpack.c.b16 %v4173, %v4172
        %v4176 = vsel %vm1208, %v4169, 0
        %v4179 = vsel %vm1208, %v4174, 0
        %4181 = vmatprep.subr.bf16.mxu0 0
        %4182 = vmatpush1.bf16.xpose.msra.mxu0 %v4179
        %4183 = vmatprep.subr.bf16.mxu0 0
        %4184 = vmatpush1.bf16.xpose.msra.mxu0 0
        %4185 = vmatprep.subr.bf16.mxu0 0
        %4186 = vmatpush1.bf16.xpose.msra.mxu0 0
        %4187 = vmatprep.subr.bf16.mxu0 0
        %4188 = vmatpush1.bf16.xpose.msra.mxu0 0
        %4189 = vmatprep.subr.bf16.mxu0 0
        %4190 = vmatpush1.bf16.xpose.msra.mxu0 0
        %4191 = vmatprep.subr.bf16.mxu0 0
        %4192 = vmatpush1.bf16.xpose.msra.mxu0 0
        %4193 = vmatprep.subr.bf16.mxu0 0
        %4194 = vmatpush1.bf16.xpose.msra.mxu0 0
        %4195 = vmatprep.subr.bf16.mxu0 0
        %4196 = vmatpush1.bf16.xpose.msra.mxu0 0
        %4197 = vmatprep.subr.bf16.mxu0 0
        %4198 = vmatpush1.bf16.xpose.msra.mxu0 0
        %4199 = vmatprep.subr.bf16.mxu0 0
        %4200 = vmatpush1.bf16.xpose.msra.mxu0 0
        %4201 = vmatprep.subr.bf16.mxu0 0
        %4202 = vmatpush1.bf16.xpose.msra.mxu0 0
        %4203 = vmatprep.subr.bf16.mxu0 0
        %4204 = vmatpush1.bf16.xpose.msra.mxu0 0
        %4205 = vmatprep.subr.bf16.mxu0 0
        %4206 = vmatpush1.bf16.xpose.msra.mxu0 0
        %4207 = vmatprep.subr.bf16.mxu0 0
        %4208 = vmatpush1.bf16.xpose.msra.mxu0 0
        %4209 = vmatprep.subr.bf16.mxu0 0
        %4210 = vmatpush1.bf16.xpose.msra.mxu0 0
        %4211 = vmatprep.subr.bf16.mxu0 0
        %4212 = vmatpush1.bf16.xpose.msra.mxu0 0
        %4213 = vmatprep.mubr.bf16.mxu0 0
        %4214 = vmatmul.mubr.bf16.gmra.mrb[0].mxu0 %v4176
        %v4215 = vpop.f32.mrb[0].mxu0
        %v4216 = vadd.f32 0.0, %v4215
        %v4217 = vpop.f32.mrb[0].mxu0
        %v4218 = vpop.f32.mrb[0].mxu0
        %v4219 = vadd.f32 0.0, %v4218
        %v4220 = vpop.f32.mrb[0].mxu0
        %4221 = vdwg.mxu0
        %v4224 = vunpack.c.l.b16 %v3826
        %v4225 = vunpack.c.l.b16 %v3827
        %v4226 = vpack.c.b16 %v4225, %v4224
        %v4229 = vunpack.c.l.b16 %v3843
        %v4230 = vunpack.c.l.b16 %v3844
        %v4231 = vpack.c.b16 %v4230, %v4229
        %v4233 = vsel %vm1208, %v4226, 0
        %v4236 = vsel %vm1208, %v4231, 0
        %4238 = vmatprep.subr.bf16.mxu0 0
        %4239 = vmatpush1.bf16.xpose.msra.mxu0 %v4236
        %4240 = vmatprep.subr.bf16.mxu0 0
        %4241 = vmatpush1.bf16.xpose.msra.mxu0 0
        %4242 = vmatprep.subr.bf16.mxu0 0
        %4243 = vmatpush1.bf16.xpose.msra.mxu0 0
        %4244 = vmatprep.subr.bf16.mxu0 0
        %4245 = vmatpush1.bf16.xpose.msra.mxu0 0
        %4246 = vmatprep.subr.bf16.mxu0 0
        %4247 = vmatpush1.bf16.xpose.msra.mxu0 0
        %4248 = vmatprep.subr.bf16.mxu0 0
        %4249 = vmatpush1.bf16.xpose.msra.mxu0 0
        %4250 = vmatprep.subr.bf16.mxu0 0
        %4251 = vmatpush1.bf16.xpose.msra.mxu0 0
        %4252 = vmatprep.subr.bf16.mxu0 0
        %4253 = vmatpush1.bf16.xpose.msra.mxu0 0
        %4254 = vmatprep.subr.bf16.mxu0 0
        %4255 = vmatpush1.bf16.xpose.msra.mxu0 0
        %4256 = vmatprep.subr.bf16.mxu0 0
        %4257 = vmatpush1.bf16.xpose.msra.mxu0 0
        %4258 = vmatprep.subr.bf16.mxu0 0
        %4259 = vmatpush1.bf16.xpose.msra.mxu0 0
        %4260 = vmatprep.subr.bf16.mxu0 0
        %4261 = vmatpush1.bf16.xpose.msra.mxu0 0
        %4262 = vmatprep.subr.bf16.mxu0 0
        %4263 = vmatpush1.bf16.xpose.msra.mxu0 0
        %4264 = vmatprep.subr.bf16.mxu0 0
        %4265 = vmatpush1.bf16.xpose.msra.mxu0 0
        %4266 = vmatprep.subr.bf16.mxu0 0
        %4267 = vmatpush1.bf16.xpose.msra.mxu0 0
        %4268 = vmatprep.subr.bf16.mxu0 0
        %4269 = vmatpush1.bf16.xpose.msra.mxu0 0
        %4270 = vmatprep.mubr.bf16.mxu0 0
        %4271 = vmatmul.mubr.bf16.gmra.mrb[0].mxu0 %v4233
        %v4272 = vpop.f32.mrb[0].mxu0
        %v4273 = vadd.f32 0.0, %v4272
        %v4274 = vpop.f32.mrb[0].mxu0
        %v4275 = vpop.f32.mrb[0].mxu0
        %v4276 = vadd.f32 0.0, %v4275
        %v4277 = vpop.f32.mrb[0].mxu0
        %4278 = vdwg.mxu0
        %v4281 = vunpack.c.l.b16 %v3828
        %v4282 = vunpack.c.l.b16 %v3829
        %v4283 = vpack.c.b16 %v4282, %v4281
        %v4286 = vunpack.c.l.b16 %v3845
        %v4287 = vunpack.c.l.b16 %v3846
        %v4288 = vpack.c.b16 %v4287, %v4286
        %v4290 = vsel %vm1208, %v4283, 0
        %v4293 = vsel %vm1208, %v4288, 0
        %4295 = vmatprep.subr.bf16.mxu0 0
        %4296 = vmatpush1.bf16.xpose.msra.mxu0 %v4293
        %4297 = vmatprep.subr.bf16.mxu0 0
        %4298 = vmatpush1.bf16.xpose.msra.mxu0 0
        %4299 = vmatprep.subr.bf16.mxu0 0
        %4300 = vmatpush1.bf16.xpose.msra.mxu0 0
        %4301 = vmatprep.subr.bf16.mxu0 0
        %4302 = vmatpush1.bf16.xpose.msra.mxu0 0
        %4303 = vmatprep.subr.bf16.mxu0 0
        %4304 = vmatpush1.bf16.xpose.msra.mxu0 0
        %4305 = vmatprep.subr.bf16.mxu0 0
        %4306 = vmatpush1.bf16.xpose.msra.mxu0 0
        %4307 = vmatprep.subr.bf16.mxu0 0
        %4308 = vmatpush1.bf16.xpose.msra.mxu0 0
        %4309 = vmatprep.subr.bf16.mxu0 0
        %4310 = vmatpush1.bf16.xpose.msra.mxu0 0
        %4311 = vmatprep.subr.bf16.mxu0 0
        %4312 = vmatpush1.bf16.xpose.msra.mxu0 0
        %4313 = vmatprep.subr.bf16.mxu0 0
        %4314 = vmatpush1.bf16.xpose.msra.mxu0 0
        %4315 = vmatprep.subr.bf16.mxu0 0
        %4316 = vmatpush1.bf16.xpose.msra.mxu0 0
        %4317 = vmatprep.subr.bf16.mxu0 0
        %4318 = vmatpush1.bf16.xpose.msra.mxu0 0
        %4319 = vmatprep.subr.bf16.mxu0 0
        %4320 = vmatpush1.bf16.xpose.msra.mxu0 0
        %4321 = vmatprep.subr.bf16.mxu0 0
        %4322 = vmatpush1.bf16.xpose.msra.mxu0 0
        %4323 = vmatprep.subr.bf16.mxu0 0
        %4324 = vmatpush1.bf16.xpose.msra.mxu0 0
        %4325 = vmatprep.subr.bf16.mxu0 0
        %4326 = vmatpush1.bf16.xpose.msra.mxu0 0
        %4327 = vmatprep.mubr.bf16.mxu0 0
        %4328 = vmatmul.mubr.bf16.gmra.mrb[0].mxu0 %v4290
        %v4329 = vpop.f32.mrb[0].mxu0
        %v4330 = vadd.f32 0.0, %v4329
        %v4331 = vpop.f32.mrb[0].mxu0
        %v4332 = vpop.f32.mrb[0].mxu0
        %v4333 = vadd.f32 0.0, %v4332
        %v4334 = vpop.f32.mrb[0].mxu0
        %4335 = vdwg.mxu0
        %v4336 = vmul.f32 %v3931, 0.125
        %v4337 = vmul.f32 %v3934, 0.125
        %v4338 = vmul.f32 %v3988, 0.125
        %v4339 = vmul.f32 %v3991, 0.125
        %v4340 = vmul.f32 %v4045, 0.125
        %v4341 = vmul.f32 %v4048, 0.125
        %v4342 = vmul.f32 %v4102, 0.125
        %v4343 = vmul.f32 %v4105, 0.125
        %v4344 = vmul.f32 %v4159, 0.125
        %v4345 = vmul.f32 %v4162, 0.125
        %v4346 = vmul.f32 %v4216, 0.125
        %v4347 = vmul.f32 %v4219, 0.125
        %v4348 = vmul.f32 %v4273, 0.125
        %v4349 = vmul.f32 %v4276, 0.125
        %v4350 = vmul.f32 %v4330, 0.125
        %v4351 = vmul.f32 %v4333, 0.125
        %v4353 = vsel %vm1671, %v4336, 0
        %v4356 = vsel %vm1671, %v4337, 0
        %4358 = vmatprep.subr.mxu0 0.0
        %4359 = vmatpush1.msra.mxu0 %v3864
        %4360 = vmatprep.subr.mxu0 0.0
        %4361 = vmatpush1.msra.mxu0 %v3865
        %4362 = vmatprep.subr.mxu0 0.0
        %4363 = vmatpush1.msra.mxu0 0.0
        %4364 = vmatprep.subr.mxu0 0.0
        %4365 = vmatpush1.msra.mxu0 0.0
        %4366 = vmatprep.subr.mxu0 0.0
        %4367 = vmatpush1.msra.mxu0 0.0
        %4368 = vmatprep.subr.mxu0 0.0
        %4369 = vmatpush1.msra.mxu0 0.0
        %4370 = vmatprep.subr.mxu0 0.0
        %4371 = vmatpush1.msra.mxu0 0.0
        %4372 = vmatprep.subr.mxu0 0.0
        %4373 = vmatpush1.msra.mxu0 0.0
        %4374 = vmatprep.subr.mxu0 0.0
        %4375 = vmatpush1.msra.mxu0 0.0
        %4376 = vmatprep.subr.mxu0 0.0
        %4377 = vmatpush1.msra.mxu0 0.0
        %4378 = vmatprep.subr.mxu0 0.0
        %4379 = vmatpush1.msra.mxu0 0.0
        %4380 = vmatprep.subr.mxu0 0.0
        %4381 = vmatpush1.msra.mxu0 0.0
        %4382 = vmatprep.subr.mxu0 0.0
        %4383 = vmatpush1.msra.mxu0 0.0
        %4384 = vmatprep.subr.mxu0 0.0
        %4385 = vmatpush1.msra.mxu0 0.0
        %4386 = vmatprep.subr.mxu0 0.0
        %4387 = vmatpush1.msra.mxu0 0.0
        %4388 = vmatprep.subr.mxu0 0.0
        %4389 = vmatpush1.msra.mxu0 0.0
        %4390 = vmatprep.subr.mxu0 0.0
        %4391 = vmatpush1.msra.mxu0 0.0
        %4392 = vmatprep.subr.mxu0 0.0
        %4393 = vmatpush1.msra.mxu0 0.0
        %4394 = vmatprep.subr.mxu0 0.0
        %4395 = vmatpush1.msra.mxu0 0.0
        %4396 = vmatprep.subr.mxu0 0.0
        %4397 = vmatpush1.msra.mxu0 0.0
        %4398 = vmatprep.subr.mxu0 0.0
        %4399 = vmatpush1.msra.mxu0 0.0
        %4400 = vmatprep.subr.mxu0 0.0
        %4401 = vmatpush1.msra.mxu0 0.0
        %4402 = vmatprep.subr.mxu0 0.0
        %4403 = vmatpush1.msra.mxu0 0.0
        %4404 = vmatprep.subr.mxu0 0.0
        %4405 = vmatpush1.msra.mxu0 0.0
        %4406 = vmatprep.subr.mxu0 0.0
        %4407 = vmatpush1.msra.mxu0 0.0
        %4408 = vmatprep.subr.mxu0 0.0
        %4409 = vmatpush1.msra.mxu0 0.0
        %4410 = vmatprep.subr.mxu0 0.0
        %4411 = vmatpush1.msra.mxu0 0.0
        %4412 = vmatprep.subr.mxu0 0.0
        %4413 = vmatpush1.msra.mxu0 0.0
        %4414 = vmatprep.subr.mxu0 0.0
        %4415 = vmatpush1.msra.mxu0 0.0
        %4416 = vmatprep.subr.mxu0 0.0
        %4417 = vmatpush1.msra.mxu0 0.0
        %4418 = vmatprep.subr.mxu0 0.0
        %4419 = vmatpush1.msra.mxu0 0.0
        %4420 = vmatprep.subr.mxu0 0.0
        %4421 = vmatpush1.msra.mxu0 0.0
        %4422 = vmatprep.mubr.f32.mxu0 0.0
        %4423 = vmatmul.mubr.f32.gmra.mrb[0].mxu0 %v4353
        %v4424 = vpop.f32.mrb[0].mxu0
        %v4425 = vadd.f32 0.0, %v4424
        %v4426 = vpop.f32.mrb[0].mxu0
        %4427 = vmatprep.mubr.f32.mxu0 0.0
        %4428 = vmatmul.mubr.f32.gmra.mrb[0].mxu0 %v4356
        %v4429 = vpop.f32.mrb[0].mxu0
        %v4430 = vadd.f32 0.0, %v4429
        %v4431 = vpop.f32.mrb[0].mxu0
        %4432 = vdwg.mxu0
        %v4434 = vsel %vm1671, %v4338, 0
        %v4437 = vsel %vm1671, %v4339, 0
        %4439 = vmatprep.subr.mxu0 0.0
        %4440 = vmatpush1.msra.mxu0 %v3866
        %4441 = vmatprep.subr.mxu0 0.0
        %4442 = vmatpush1.msra.mxu0 %v3867
        %4443 = vmatprep.subr.mxu0 0.0
        %4444 = vmatpush1.msra.mxu0 0.0
        %4445 = vmatprep.subr.mxu0 0.0
        %4446 = vmatpush1.msra.mxu0 0.0
        %4447 = vmatprep.subr.mxu0 0.0
        %4448 = vmatpush1.msra.mxu0 0.0
        %4449 = vmatprep.subr.mxu0 0.0
        %4450 = vmatpush1.msra.mxu0 0.0
        %4451 = vmatprep.subr.mxu0 0.0
        %4452 = vmatpush1.msra.mxu0 0.0
        %4453 = vmatprep.subr.mxu0 0.0
        %4454 = vmatpush1.msra.mxu0 0.0
        %4455 = vmatprep.subr.mxu0 0.0
        %4456 = vmatpush1.msra.mxu0 0.0
        %4457 = vmatprep.subr.mxu0 0.0
        %4458 = vmatpush1.msra.mxu0 0.0
        %4459 = vmatprep.subr.mxu0 0.0
        %4460 = vmatpush1.msra.mxu0 0.0
        %4461 = vmatprep.subr.mxu0 0.0
        %4462 = vmatpush1.msra.mxu0 0.0
        %4463 = vmatprep.subr.mxu0 0.0
        %4464 = vmatpush1.msra.mxu0 0.0
        %4465 = vmatprep.subr.mxu0 0.0
        %4466 = vmatpush1.msra.mxu0 0.0
        %4467 = vmatprep.subr.mxu0 0.0
        %4468 = vmatpush1.msra.mxu0 0.0
        %4469 = vmatprep.subr.mxu0 0.0
        %4470 = vmatpush1.msra.mxu0 0.0
        %4471 = vmatprep.subr.mxu0 0.0
        %4472 = vmatpush1.msra.mxu0 0.0
        %4473 = vmatprep.subr.mxu0 0.0
        %4474 = vmatpush1.msra.mxu0 0.0
        %4475 = vmatprep.subr.mxu0 0.0
        %4476 = vmatpush1.msra.mxu0 0.0
        %4477 = vmatprep.subr.mxu0 0.0
        %4478 = vmatpush1.msra.mxu0 0.0
        %4479 = vmatprep.subr.mxu0 0.0
        %4480 = vmatpush1.msra.mxu0 0.0
        %4481 = vmatprep.subr.mxu0 0.0
        %4482 = vmatpush1.msra.mxu0 0.0
        %4483 = vmatprep.subr.mxu0 0.0
        %4484 = vmatpush1.msra.mxu0 0.0
        %4485 = vmatprep.subr.mxu0 0.0
        %4486 = vmatpush1.msra.mxu0 0.0
        %4487 = vmatprep.subr.mxu0 0.0
        %4488 = vmatpush1.msra.mxu0 0.0
        %4489 = vmatprep.subr.mxu0 0.0
        %4490 = vmatpush1.msra.mxu0 0.0
        %4491 = vmatprep.subr.mxu0 0.0
        %4492 = vmatpush1.msra.mxu0 0.0
        %4493 = vmatprep.subr.mxu0 0.0
        %4494 = vmatpush1.msra.mxu0 0.0
        %4495 = vmatprep.subr.mxu0 0.0
        %4496 = vmatpush1.msra.mxu0 0.0
        %4497 = vmatprep.subr.mxu0 0.0
        %4498 = vmatpush1.msra.mxu0 0.0
        %4499 = vmatprep.subr.mxu0 0.0
        %4500 = vmatpush1.msra.mxu0 0.0
        %4501 = vmatprep.subr.mxu0 0.0
        %4502 = vmatpush1.msra.mxu0 0.0
        %4503 = vmatprep.mubr.f32.mxu0 0.0
        %4504 = vmatmul.mubr.f32.gmra.mrb[0].mxu0 %v4434
        %v4505 = vpop.f32.mrb[0].mxu0
        %v4506 = vadd.f32 0.0, %v4505
        %v4507 = vpop.f32.mrb[0].mxu0
        %4508 = vmatprep.mubr.f32.mxu0 0.0
        %4509 = vmatmul.mubr.f32.gmra.mrb[0].mxu0 %v4437
        %v4510 = vpop.f32.mrb[0].mxu0
        %v4511 = vadd.f32 0.0, %v4510
        %v4512 = vpop.f32.mrb[0].mxu0
        %4513 = vdwg.mxu0
        %v4515 = vsel %vm1671, %v4340, 0
        %v4518 = vsel %vm1671, %v4341, 0
        %4520 = vmatprep.subr.mxu0 0.0
        %4521 = vmatpush1.msra.mxu0 %v3868
        %4522 = vmatprep.subr.mxu0 0.0
        %4523 = vmatpush1.msra.mxu0 %v3869
        %4524 = vmatprep.subr.mxu0 0.0
        %4525 = vmatpush1.msra.mxu0 0.0
        %4526 = vmatprep.subr.mxu0 0.0
        %4527 = vmatpush1.msra.mxu0 0.0
        %4528 = vmatprep.subr.mxu0 0.0
        %4529 = vmatpush1.msra.mxu0 0.0
        %4530 = vmatprep.subr.mxu0 0.0
        %4531 = vmatpush1.msra.mxu0 0.0
        %4532 = vmatprep.subr.mxu0 0.0
        %4533 = vmatpush1.msra.mxu0 0.0
        %4534 = vmatprep.subr.mxu0 0.0
        %4535 = vmatpush1.msra.mxu0 0.0
        %4536 = vmatprep.subr.mxu0 0.0
        %4537 = vmatpush1.msra.mxu0 0.0
        %4538 = vmatprep.subr.mxu0 0.0
        %4539 = vmatpush1.msra.mxu0 0.0
        %4540 = vmatprep.subr.mxu0 0.0
        %4541 = vmatpush1.msra.mxu0 0.0
        %4542 = vmatprep.subr.mxu0 0.0
        %4543 = vmatpush1.msra.mxu0 0.0
        %4544 = vmatprep.subr.mxu0 0.0
        %4545 = vmatpush1.msra.mxu0 0.0
        %4546 = vmatprep.subr.mxu0 0.0
        %4547 = vmatpush1.msra.mxu0 0.0
        %4548 = vmatprep.subr.mxu0 0.0
        %4549 = vmatpush1.msra.mxu0 0.0
        %4550 = vmatprep.subr.mxu0 0.0
        %4551 = vmatpush1.msra.mxu0 0.0
        %4552 = vmatprep.subr.mxu0 0.0
        %4553 = vmatpush1.msra.mxu0 0.0
        %4554 = vmatprep.subr.mxu0 0.0
        %4555 = vmatpush1.msra.mxu0 0.0
        %4556 = vmatprep.subr.mxu0 0.0
        %4557 = vmatpush1.msra.mxu0 0.0
        %4558 = vmatprep.subr.mxu0 0.0
        %4559 = vmatpush1.msra.mxu0 0.0
        %4560 = vmatprep.subr.mxu0 0.0
        %4561 = vmatpush1.msra.mxu0 0.0
        %4562 = vmatprep.subr.mxu0 0.0
        %4563 = vmatpush1.msra.mxu0 0.0
        %4564 = vmatprep.subr.mxu0 0.0
        %4565 = vmatpush1.msra.mxu0 0.0
        %4566 = vmatprep.subr.mxu0 0.0
        %4567 = vmatpush1.msra.mxu0 0.0
        %4568 = vmatprep.subr.mxu0 0.0
        %4569 = vmatpush1.msra.mxu0 0.0
        %4570 = vmatprep.subr.mxu0 0.0
        %4571 = vmatpush1.msra.mxu0 0.0
        %4572 = vmatprep.subr.mxu0 0.0
        %4573 = vmatpush1.msra.mxu0 0.0
        %4574 = vmatprep.subr.mxu0 0.0
        %4575 = vmatpush1.msra.mxu0 0.0
        %4576 = vmatprep.subr.mxu0 0.0
        %4577 = vmatpush1.msra.mxu0 0.0
        %4578 = vmatprep.subr.mxu0 0.0
        %4579 = vmatpush1.msra.mxu0 0.0
        %4580 = vmatprep.subr.mxu0 0.0
        %4581 = vmatpush1.msra.mxu0 0.0
        %4582 = vmatprep.subr.mxu0 0.0
        %4583 = vmatpush1.msra.mxu0 0.0
        %4584 = vmatprep.mubr.f32.mxu0 0.0
        %4585 = vmatmul.mubr.f32.gmra.mrb[0].mxu0 %v4515
        %v4586 = vpop.f32.mrb[0].mxu0
        %v4587 = vadd.f32 0.0, %v4586
        %v4588 = vpop.f32.mrb[0].mxu0
        %4589 = vmatprep.mubr.f32.mxu0 0.0
        %4590 = vmatmul.mubr.f32.gmra.mrb[0].mxu0 %v4518
        %v4591 = vpop.f32.mrb[0].mxu0
        %v4592 = vadd.f32 0.0, %v4591
        %v4593 = vpop.f32.mrb[0].mxu0
        %4594 = vdwg.mxu0
        %v4596 = vsel %vm1671, %v4342, 0
        %v4599 = vsel %vm1671, %v4343, 0
        %4601 = vmatprep.subr.mxu0 0.0
        %4602 = vmatpush1.msra.mxu0 %v3870
        %4603 = vmatprep.subr.mxu0 0.0
        %4604 = vmatpush1.msra.mxu0 %v3871
        %4605 = vmatprep.subr.mxu0 0.0
        %4606 = vmatpush1.msra.mxu0 0.0
        %4607 = vmatprep.subr.mxu0 0.0
        %4608 = vmatpush1.msra.mxu0 0.0
        %4609 = vmatprep.subr.mxu0 0.0
        %4610 = vmatpush1.msra.mxu0 0.0
        %4611 = vmatprep.subr.mxu0 0.0
        %4612 = vmatpush1.msra.mxu0 0.0
        %4613 = vmatprep.subr.mxu0 0.0
        %4614 = vmatpush1.msra.mxu0 0.0
        %4615 = vmatprep.subr.mxu0 0.0
        %4616 = vmatpush1.msra.mxu0 0.0
        %4617 = vmatprep.subr.mxu0 0.0
        %4618 = vmatpush1.msra.mxu0 0.0
        %4619 = vmatprep.subr.mxu0 0.0
        %4620 = vmatpush1.msra.mxu0 0.0
        %4621 = vmatprep.subr.mxu0 0.0
        %4622 = vmatpush1.msra.mxu0 0.0
        %4623 = vmatprep.subr.mxu0 0.0
        %4624 = vmatpush1.msra.mxu0 0.0
        %4625 = vmatprep.subr.mxu0 0.0
        %4626 = vmatpush1.msra.mxu0 0.0
        %4627 = vmatprep.subr.mxu0 0.0
        %4628 = vmatpush1.msra.mxu0 0.0
        %4629 = vmatprep.subr.mxu0 0.0
        %4630 = vmatpush1.msra.mxu0 0.0
        %4631 = vmatprep.subr.mxu0 0.0
        %4632 = vmatpush1.msra.mxu0 0.0
        %4633 = vmatprep.subr.mxu0 0.0
        %4634 = vmatpush1.msra.mxu0 0.0
        %4635 = vmatprep.subr.mxu0 0.0
        %4636 = vmatpush1.msra.mxu0 0.0
        %4637 = vmatprep.subr.mxu0 0.0
        %4638 = vmatpush1.msra.mxu0 0.0
        %4639 = vmatprep.subr.mxu0 0.0
        %4640 = vmatpush1.msra.mxu0 0.0
        %4641 = vmatprep.subr.mxu0 0.0
        %4642 = vmatpush1.msra.mxu0 0.0
        %4643 = vmatprep.subr.mxu0 0.0
        %4644 = vmatpush1.msra.mxu0 0.0
        %4645 = vmatprep.subr.mxu0 0.0
        %4646 = vmatpush1.msra.mxu0 0.0
        %4647 = vmatprep.subr.mxu0 0.0
        %4648 = vmatpush1.msra.mxu0 0.0
        %4649 = vmatprep.subr.mxu0 0.0
        %4650 = vmatpush1.msra.mxu0 0.0
        %4651 = vmatprep.subr.mxu0 0.0
        %4652 = vmatpush1.msra.mxu0 0.0
        %4653 = vmatprep.subr.mxu0 0.0
        %4654 = vmatpush1.msra.mxu0 0.0
        %4655 = vmatprep.subr.mxu0 0.0
        %4656 = vmatpush1.msra.mxu0 0.0
        %4657 = vmatprep.subr.mxu0 0.0
        %4658 = vmatpush1.msra.mxu0 0.0
        %4659 = vmatprep.subr.mxu0 0.0
        %4660 = vmatpush1.msra.mxu0 0.0
        %4661 = vmatprep.subr.mxu0 0.0
        %4662 = vmatpush1.msra.mxu0 0.0
        %4663 = vmatprep.subr.mxu0 0.0
        %4664 = vmatpush1.msra.mxu0 0.0
        %4665 = vmatprep.mubr.f32.mxu0 0.0
        %4666 = vmatmul.mubr.f32.gmra.mrb[0].mxu0 %v4596
        %v4667 = vpop.f32.mrb[0].mxu0
        %v4668 = vadd.f32 0.0, %v4667
        %v4669 = vpop.f32.mrb[0].mxu0
        %4670 = vmatprep.mubr.f32.mxu0 0.0
        %4671 = vmatmul.mubr.f32.gmra.mrb[0].mxu0 %v4599
        %v4672 = vpop.f32.mrb[0].mxu0
        %v4673 = vadd.f32 0.0, %v4672
        %v4674 = vpop.f32.mrb[0].mxu0
        %4675 = vdwg.mxu0
        %v4677 = vsel %vm1671, %v4344, 0
        %v4680 = vsel %vm1671, %v4345, 0
        %4682 = vmatprep.subr.mxu0 0.0
        %4683 = vmatpush1.msra.mxu0 %v3872
        %4684 = vmatprep.subr.mxu0 0.0
        %4685 = vmatpush1.msra.mxu0 %v3873
        %4686 = vmatprep.subr.mxu0 0.0
        %4687 = vmatpush1.msra.mxu0 0.0
        %4688 = vmatprep.subr.mxu0 0.0
        %4689 = vmatpush1.msra.mxu0 0.0
        %4690 = vmatprep.subr.mxu0 0.0
        %4691 = vmatpush1.msra.mxu0 0.0
        %4692 = vmatprep.subr.mxu0 0.0
        %4693 = vmatpush1.msra.mxu0 0.0
        %4694 = vmatprep.subr.mxu0 0.0
        %4695 = vmatpush1.msra.mxu0 0.0
        %4696 = vmatprep.subr.mxu0 0.0
        %4697 = vmatpush1.msra.mxu0 0.0
        %4698 = vmatprep.subr.mxu0 0.0
        %4699 = vmatpush1.msra.mxu0 0.0
        %4700 = vmatprep.subr.mxu0 0.0
        %4701 = vmatpush1.msra.mxu0 0.0
        %4702 = vmatprep.subr.mxu0 0.0
        %4703 = vmatpush1.msra.mxu0 0.0
        %4704 = vmatprep.subr.mxu0 0.0
        %4705 = vmatpush1.msra.mxu0 0.0
        %4706 = vmatprep.subr.mxu0 0.0
        %4707 = vmatpush1.msra.mxu0 0.0
        %4708 = vmatprep.subr.mxu0 0.0
        %4709 = vmatpush1.msra.mxu0 0.0
        %4710 = vmatprep.subr.mxu0 0.0
        %4711 = vmatpush1.msra.mxu0 0.0
        %4712 = vmatprep.subr.mxu0 0.0
        %4713 = vmatpush1.msra.mxu0 0.0
        %4714 = vmatprep.subr.mxu0 0.0
        %4715 = vmatpush1.msra.mxu0 0.0
        %4716 = vmatprep.subr.mxu0 0.0
        %4717 = vmatpush1.msra.mxu0 0.0
        %4718 = vmatprep.subr.mxu0 0.0
        %4719 = vmatpush1.msra.mxu0 0.0
        %4720 = vmatprep.subr.mxu0 0.0
        %4721 = vmatpush1.msra.mxu0 0.0
        %4722 = vmatprep.subr.mxu0 0.0
        %4723 = vmatpush1.msra.mxu0 0.0
        %4724 = vmatprep.subr.mxu0 0.0
        %4725 = vmatpush1.msra.mxu0 0.0
        %4726 = vmatprep.subr.mxu0 0.0
        %4727 = vmatpush1.msra.mxu0 0.0
        %4728 = vmatprep.subr.mxu0 0.0
        %4729 = vmatpush1.msra.mxu0 0.0
        %4730 = vmatprep.subr.mxu0 0.0
        %4731 = vmatpush1.msra.mxu0 0.0
        %4732 = vmatprep.subr.mxu0 0.0
        %4733 = vmatpush1.msra.mxu0 0.0
        %4734 = vmatprep.subr.mxu0 0.0
        %4735 = vmatpush1.msra.mxu0 0.0
        %4736 = vmatprep.subr.mxu0 0.0
        %4737 = vmatpush1.msra.mxu0 0.0
        %4738 = vmatprep.subr.mxu0 0.0
        %4739 = vmatpush1.msra.mxu0 0.0
        %4740 = vmatprep.subr.mxu0 0.0
        %4741 = vmatpush1.msra.mxu0 0.0
        %4742 = vmatprep.subr.mxu0 0.0
        %4743 = vmatpush1.msra.mxu0 0.0
        %4744 = vmatprep.subr.mxu0 0.0
        %4745 = vmatpush1.msra.mxu0 0.0
        %4746 = vmatprep.mubr.f32.mxu0 0.0
        %4747 = vmatmul.mubr.f32.gmra.mrb[0].mxu0 %v4677
        %v4748 = vpop.f32.mrb[0].mxu0
        %v4749 = vadd.f32 0.0, %v4748
        %v4750 = vpop.f32.mrb[0].mxu0
        %4751 = vmatprep.mubr.f32.mxu0 0.0
        %4752 = vmatmul.mubr.f32.gmra.mrb[0].mxu0 %v4680
        %v4753 = vpop.f32.mrb[0].mxu0
        %v4754 = vadd.f32 0.0, %v4753
        %v4755 = vpop.f32.mrb[0].mxu0
        %4756 = vdwg.mxu0
        %v4758 = vsel %vm1671, %v4346, 0
        %v4761 = vsel %vm1671, %v4347, 0
        %4763 = vmatprep.subr.mxu0 0.0
        %4764 = vmatpush1.msra.mxu0 %v3874
        %4765 = vmatprep.subr.mxu0 0.0
        %4766 = vmatpush1.msra.mxu0 %v3875
        %4767 = vmatprep.subr.mxu0 0.0
        %4768 = vmatpush1.msra.mxu0 0.0
        %4769 = vmatprep.subr.mxu0 0.0
        %4770 = vmatpush1.msra.mxu0 0.0
        %4771 = vmatprep.subr.mxu0 0.0
        %4772 = vmatpush1.msra.mxu0 0.0
        %4773 = vmatprep.subr.mxu0 0.0
        %4774 = vmatpush1.msra.mxu0 0.0
        %4775 = vmatprep.subr.mxu0 0.0
        %4776 = vmatpush1.msra.mxu0 0.0
        %4777 = vmatprep.subr.mxu0 0.0
        %4778 = vmatpush1.msra.mxu0 0.0
        %4779 = vmatprep.subr.mxu0 0.0
        %4780 = vmatpush1.msra.mxu0 0.0
        %4781 = vmatprep.subr.mxu0 0.0
        %4782 = vmatpush1.msra.mxu0 0.0
        %4783 = vmatprep.subr.mxu0 0.0
        %4784 = vmatpush1.msra.mxu0 0.0
        %4785 = vmatprep.subr.mxu0 0.0
        %4786 = vmatpush1.msra.mxu0 0.0
        %4787 = vmatprep.subr.mxu0 0.0
        %4788 = vmatpush1.msra.mxu0 0.0
        %4789 = vmatprep.subr.mxu0 0.0
        %4790 = vmatpush1.msra.mxu0 0.0
        %4791 = vmatprep.subr.mxu0 0.0
        %4792 = vmatpush1.msra.mxu0 0.0
        %4793 = vmatprep.subr.mxu0 0.0
        %4794 = vmatpush1.msra.mxu0 0.0
        %4795 = vmatprep.subr.mxu0 0.0
        %4796 = vmatpush1.msra.mxu0 0.0
        %4797 = vmatprep.subr.mxu0 0.0
        %4798 = vmatpush1.msra.mxu0 0.0
        %4799 = vmatprep.subr.mxu0 0.0
        %4800 = vmatpush1.msra.mxu0 0.0
        %4801 = vmatprep.subr.mxu0 0.0
        %4802 = vmatpush1.msra.mxu0 0.0
        %4803 = vmatprep.subr.mxu0 0.0
        %4804 = vmatpush1.msra.mxu0 0.0
        %4805 = vmatprep.subr.mxu0 0.0
        %4806 = vmatpush1.msra.mxu0 0.0
        %4807 = vmatprep.subr.mxu0 0.0
        %4808 = vmatpush1.msra.mxu0 0.0
        %4809 = vmatprep.subr.mxu0 0.0
        %4810 = vmatpush1.msra.mxu0 0.0
        %4811 = vmatprep.subr.mxu0 0.0
        %4812 = vmatpush1.msra.mxu0 0.0
        %4813 = vmatprep.subr.mxu0 0.0
        %4814 = vmatpush1.msra.mxu0 0.0
        %4815 = vmatprep.subr.mxu0 0.0
        %4816 = vmatpush1.msra.mxu0 0.0
        %4817 = vmatprep.subr.mxu0 0.0
        %4818 = vmatpush1.msra.mxu0 0.0
        %4819 = vmatprep.subr.mxu0 0.0
        %4820 = vmatpush1.msra.mxu0 0.0
        %4821 = vmatprep.subr.mxu0 0.0
        %4822 = vmatpush1.msra.mxu0 0.0
        %4823 = vmatprep.subr.mxu0 0.0
        %4824 = vmatpush1.msra.mxu0 0.0
        %4825 = vmatprep.subr.mxu0 0.0
        %4826 = vmatpush1.msra.mxu0 0.0
        %4827 = vmatprep.mubr.f32.mxu0 0.0
        %4828 = vmatmul.mubr.f32.gmra.mrb[0].mxu0 %v4758
        %v4829 = vpop.f32.mrb[0].mxu0
        %v4830 = vadd.f32 0.0, %v4829
        %v4831 = vpop.f32.mrb[0].mxu0
        %4832 = vmatprep.mubr.f32.mxu0 0.0
        %4833 = vmatmul.mubr.f32.gmra.mrb[0].mxu0 %v4761
        %v4834 = vpop.f32.mrb[0].mxu0
        %v4835 = vadd.f32 0.0, %v4834
        %v4836 = vpop.f32.mrb[0].mxu0
        %4837 = vdwg.mxu0
        %v4839 = vsel %vm1671, %v4348, 0
        %v4842 = vsel %vm1671, %v4349, 0
        %4844 = vmatprep.subr.mxu0 0.0
        %4845 = vmatpush1.msra.mxu0 %v3876
        %4846 = vmatprep.subr.mxu0 0.0
        %4847 = vmatpush1.msra.mxu0 %v3877
        %4848 = vmatprep.subr.mxu0 0.0
        %4849 = vmatpush1.msra.mxu0 0.0
        %4850 = vmatprep.subr.mxu0 0.0
        %4851 = vmatpush1.msra.mxu0 0.0
        %4852 = vmatprep.subr.mxu0 0.0
        %4853 = vmatpush1.msra.mxu0 0.0
        %4854 = vmatprep.subr.mxu0 0.0
        %4855 = vmatpush1.msra.mxu0 0.0
        %4856 = vmatprep.subr.mxu0 0.0
        %4857 = vmatpush1.msra.mxu0 0.0
        %4858 = vmatprep.subr.mxu0 0.0
        %4859 = vmatpush1.msra.mxu0 0.0
        %4860 = vmatprep.subr.mxu0 0.0
        %4861 = vmatpush1.msra.mxu0 0.0
        %4862 = vmatprep.subr.mxu0 0.0
        %4863 = vmatpush1.msra.mxu0 0.0
        %4864 = vmatprep.subr.mxu0 0.0
        %4865 = vmatpush1.msra.mxu0 0.0
        %4866 = vmatprep.subr.mxu0 0.0
        %4867 = vmatpush1.msra.mxu0 0.0
        %4868 = vmatprep.subr.mxu0 0.0
        %4869 = vmatpush1.msra.mxu0 0.0
        %4870 = vmatprep.subr.mxu0 0.0
        %4871 = vmatpush1.msra.mxu0 0.0
        %4872 = vmatprep.subr.mxu0 0.0
        %4873 = vmatpush1.msra.mxu0 0.0
        %4874 = vmatprep.subr.mxu0 0.0
        %4875 = vmatpush1.msra.mxu0 0.0
        %4876 = vmatprep.subr.mxu0 0.0
        %4877 = vmatpush1.msra.mxu0 0.0
        %4878 = vmatprep.subr.mxu0 0.0
        %4879 = vmatpush1.msra.mxu0 0.0
        %4880 = vmatprep.subr.mxu0 0.0
        %4881 = vmatpush1.msra.mxu0 0.0
        %4882 = vmatprep.subr.mxu0 0.0
        %4883 = vmatpush1.msra.mxu0 0.0
        %4884 = vmatprep.subr.mxu0 0.0
        %4885 = vmatpush1.msra.mxu0 0.0
        %4886 = vmatprep.subr.mxu0 0.0
        %4887 = vmatpush1.msra.mxu0 0.0
        %4888 = vmatprep.subr.mxu0 0.0
        %4889 = vmatpush1.msra.mxu0 0.0
        %4890 = vmatprep.subr.mxu0 0.0
        %4891 = vmatpush1.msra.mxu0 0.0
        %4892 = vmatprep.subr.mxu0 0.0
        %4893 = vmatpush1.msra.mxu0 0.0
        %4894 = vmatprep.subr.mxu0 0.0
        %4895 = vmatpush1.msra.mxu0 0.0
        %4896 = vmatprep.subr.mxu0 0.0
        %4897 = vmatpush1.msra.mxu0 0.0
        %4898 = vmatprep.subr.mxu0 0.0
        %4899 = vmatpush1.msra.mxu0 0.0
        %4900 = vmatprep.subr.mxu0 0.0
        %4901 = vmatpush1.msra.mxu0 0.0
        %4902 = vmatprep.subr.mxu0 0.0
        %4903 = vmatpush1.msra.mxu0 0.0
        %4904 = vmatprep.subr.mxu0 0.0
        %4905 = vmatpush1.msra.mxu0 0.0
        %4906 = vmatprep.subr.mxu0 0.0
        %4907 = vmatpush1.msra.mxu0 0.0
        %4908 = vmatprep.mubr.f32.mxu0 0.0
        %4909 = vmatmul.mubr.f32.gmra.mrb[0].mxu0 %v4839
        %v4910 = vpop.f32.mrb[0].mxu0
        %v4911 = vadd.f32 0.0, %v4910
        %v4912 = vpop.f32.mrb[0].mxu0
        %4913 = vmatprep.mubr.f32.mxu0 0.0
        %4914 = vmatmul.mubr.f32.gmra.mrb[0].mxu0 %v4842
        %v4915 = vpop.f32.mrb[0].mxu0
        %v4916 = vadd.f32 0.0, %v4915
        %v4917 = vpop.f32.mrb[0].mxu0
        %4918 = vdwg.mxu0
        %v4920 = vsel %vm1671, %v4350, 0
        %v4923 = vsel %vm1671, %v4351, 0
        %4925 = vmatprep.subr.mxu0 0.0
        %4926 = vmatpush1.msra.mxu0 %v3878
        %4927 = vmatprep.subr.mxu0 0.0
        %4928 = vmatpush1.msra.mxu0 %v3879
        %4929 = vmatprep.subr.mxu0 0.0
        %4930 = vmatpush1.msra.mxu0 0.0
        %4931 = vmatprep.subr.mxu0 0.0
        %4932 = vmatpush1.msra.mxu0 0.0
        %4933 = vmatprep.subr.mxu0 0.0
        %4934 = vmatpush1.msra.mxu0 0.0
        %4935 = vmatprep.subr.mxu0 0.0
        %4936 = vmatpush1.msra.mxu0 0.0
        %4937 = vmatprep.subr.mxu0 0.0
        %4938 = vmatpush1.msra.mxu0 0.0
        %4939 = vmatprep.subr.mxu0 0.0
        %4940 = vmatpush1.msra.mxu0 0.0
        %4941 = vmatprep.subr.mxu0 0.0
        %4942 = vmatpush1.msra.mxu0 0.0
        %4943 = vmatprep.subr.mxu0 0.0
        %4944 = vmatpush1.msra.mxu0 0.0
        %4945 = vmatprep.subr.mxu0 0.0
        %4946 = vmatpush1.msra.mxu0 0.0
        %4947 = vmatprep.subr.mxu0 0.0
        %4948 = vmatpush1.msra.mxu0 0.0
        %4949 = vmatprep.subr.mxu0 0.0
        %4950 = vmatpush1.msra.mxu0 0.0
        %4951 = vmatprep.subr.mxu0 0.0
        %4952 = vmatpush1.msra.mxu0 0.0
        %4953 = vmatprep.subr.mxu0 0.0
        %4954 = vmatpush1.msra.mxu0 0.0
        %4955 = vmatprep.subr.mxu0 0.0
        %4956 = vmatpush1.msra.mxu0 0.0
        %4957 = vmatprep.subr.mxu0 0.0
        %4958 = vmatpush1.msra.mxu0 0.0
        %4959 = vmatprep.subr.mxu0 0.0
        %4960 = vmatpush1.msra.mxu0 0.0
        %4961 = vmatprep.subr.mxu0 0.0
        %4962 = vmatpush1.msra.mxu0 0.0
        %4963 = vmatprep.subr.mxu0 0.0
        %4964 = vmatpush1.msra.mxu0 0.0
        %4965 = vmatprep.subr.mxu0 0.0
        %4966 = vmatpush1.msra.mxu0 0.0
        %4967 = vmatprep.subr.mxu0 0.0
        %4968 = vmatpush1.msra.mxu0 0.0
        %4969 = vmatprep.subr.mxu0 0.0
        %4970 = vmatpush1.msra.mxu0 0.0
        %4971 = vmatprep.subr.mxu0 0.0
        %4972 = vmatpush1.msra.mxu0 0.0
        %4973 = vmatprep.subr.mxu0 0.0
        %4974 = vmatpush1.msra.mxu0 0.0
        %4975 = vmatprep.subr.mxu0 0.0
        %4976 = vmatpush1.msra.mxu0 0.0
        %4977 = vmatprep.subr.mxu0 0.0
        %4978 = vmatpush1.msra.mxu0 0.0
        %4979 = vmatprep.subr.mxu0 0.0
        %4980 = vmatpush1.msra.mxu0 0.0
        %4981 = vmatprep.subr.mxu0 0.0
        %4982 = vmatpush1.msra.mxu0 0.0
        %4983 = vmatprep.subr.mxu0 0.0
        %4984 = vmatpush1.msra.mxu0 0.0
        %4985 = vmatprep.subr.mxu0 0.0
        %4986 = vmatpush1.msra.mxu0 0.0
        %4987 = vmatprep.subr.mxu0 0.0
        %4988 = vmatpush1.msra.mxu0 0.0
        %4989 = vmatprep.mubr.f32.mxu0 0.0
        %4990 = vmatmul.mubr.f32.gmra.mrb[0].mxu0 %v4920
        %v4991 = vpop.f32.mrb[0].mxu0
        %v4992 = vadd.f32 0.0, %v4991
        %v4993 = vpop.f32.mrb[0].mxu0
        %4994 = vmatprep.mubr.f32.mxu0 0.0
        %4995 = vmatmul.mubr.f32.gmra.mrb[0].mxu0 %v4923
        %v4996 = vpop.f32.mrb[0].mxu0
        %v4997 = vadd.f32 0.0, %v4996
        %v4998 = vpop.f32.mrb[0].mxu0
        %4999 = vdwg.mxu0
        %s5000 = scalar_lea.vmem %s1121, 256 [#allocation5]
        %5001 = vst.msk [vmem:[%s5000] sm:$0xff] %vm1671, %v4336
        %5002 = vst.msk [vmem:[%s5000 + $0x8] sm:$0xff] %vm1671, %v4337
        %5003 = vst.msk [vmem:[%s5000 + $0x10] sm:$0xff] %vm1671, %v4338
        %5004 = vst.msk [vmem:[%s5000 + $0x18] sm:$0xff] %vm1671, %v4339
        %5005 = vst.msk [vmem:[%s5000 + $0x20] sm:$0xff] %vm1671, %v4340
        %5006 = vst.msk [vmem:[%s5000 + $0x28] sm:$0xff] %vm1671, %v4341
        %5007 = vst.msk [vmem:[%s5000 + $0x30] sm:$0xff] %vm1671, %v4342
        %5008 = vst.msk [vmem:[%s5000 + $0x38] sm:$0xff] %vm1671, %v4343
        %5009 = vst.msk [vmem:[%s5000 + $0x40] sm:$0xff] %vm1671, %v4344
        %5010 = vst.msk [vmem:[%s5000 + $0x48] sm:$0xff] %vm1671, %v4345
        %5011 = vst.msk [vmem:[%s5000 + $0x50] sm:$0xff] %vm1671, %v4346
        %5012 = vst.msk [vmem:[%s5000 + $0x58] sm:$0xff] %vm1671, %v4347
        %5013 = vst.msk [vmem:[%s5000 + $0x60] sm:$0xff] %vm1671, %v4348
        %5014 = vst.msk [vmem:[%s5000 + $0x68] sm:$0xff] %vm1671, %v4349
        %5015 = vst.msk [vmem:[%s5000 + $0x70] sm:$0xff] %vm1671, %v4350
        %5016 = vst.msk [vmem:[%s5000 + $0x78] sm:$0xff] %vm1671, %v4351
        %v5017 = vsub.f32 %v4425, %v3797
        %v5018 = vsub.f32 %v4430, %v3798
        %v5019 = vsub.f32 %v4506, %v3799
        %v5020 = vsub.f32 %v4511, %v3800
        %v5021 = vsub.f32 %v4587, %v3801
        %v5022 = vsub.f32 %v4592, %v3802
        %v5023 = vsub.f32 %v4668, %v3803
        %v5024 = vsub.f32 %v4673, %v3804
        %v5025 = vsub.f32 %v4749, %v3805
        %v5026 = vsub.f32 %v4754, %v3806
        %v5027 = vsub.f32 %v4830, %v3807
        %v5028 = vsub.f32 %v4835, %v3808
        %v5029 = vsub.f32 %v4911, %v3809
        %v5030 = vsub.f32 %v4916, %v3810
        %v5031 = vsub.f32 %v4992, %v3811
        %v5032 = vsub.f32 %v4997, %v3812
        %v5033 = vmul.f32 %v5017, 0.5
        %v5034 = vmul.f32 %v5018, 0.5
        %v5035 = vmul.f32 %v5019, 0.5
        %v5036 = vmul.f32 %v5020, 0.5
        %v5037 = vmul.f32 %v5021, 0.5
        %v5038 = vmul.f32 %v5022, 0.5
        %v5039 = vmul.f32 %v5023, 0.5
        %v5040 = vmul.f32 %v5024, 0.5
        %v5041 = vmul.f32 %v5025, 0.5
        %v5042 = vmul.f32 %v5026, 0.5
        %v5043 = vmul.f32 %v5027, 0.5
        %v5044 = vmul.f32 %v5028, 0.5
        %v5045 = vmul.f32 %v5029, 0.5
        %v5046 = vmul.f32 %v5030, 0.5
        %v5047 = vmul.f32 %v5031, 0.5
        %v5048 = vmul.f32 %v5032, 0.5
        %v5049 = vadd.f32 %v3797, %v5033
        %v5050 = vadd.f32 %v3798, %v5034
        %v5051 = vadd.f32 %v3799, %v5035
        %v5052 = vadd.f32 %v3800, %v5036
        %v5053 = vadd.f32 %v3801, %v5037
        %v5054 = vadd.f32 %v3802, %v5038
        %v5055 = vadd.f32 %v3803, %v5039
        %v5056 = vadd.f32 %v3804, %v5040
        %v5057 = vadd.f32 %v3805, %v5041
        %v5058 = vadd.f32 %v3806, %v5042
        %v5059 = vadd.f32 %v3807, %v5043
        %v5060 = vadd.f32 %v3808, %v5044
        %v5061 = vadd.f32 %v3809, %v5045
        %v5062 = vadd.f32 %v3810, %v5046
        %v5063 = vadd.f32 %v3811, %v5047
        %v5064 = vadd.f32 %v3812, %v5048
        %vm5065 = vcmp.ge.f32.partialorder %v5049, 0.5
        %vm5066 = vcmp.ge.f32.partialorder %v5050, 0.5
        %vm5067 = vcmp.ge.f32.partialorder %v5051, 0.5
        %vm5068 = vcmp.ge.f32.partialorder %v5052, 0.5
        %vm5069 = vcmp.ge.f32.partialorder %v5053, 0.5
        %vm5070 = vcmp.ge.f32.partialorder %v5054, 0.5
        %vm5071 = vcmp.ge.f32.partialorder %v5055, 0.5
        %vm5072 = vcmp.ge.f32.partialorder %v5056, 0.5
        %vm5073 = vcmp.ge.f32.partialorder %v5057, 0.5
        %vm5074 = vcmp.ge.f32.partialorder %v5058, 0.5
        %vm5075 = vcmp.ge.f32.partialorder %v5059, 0.5
        %vm5076 = vcmp.ge.f32.partialorder %v5060, 0.5
        %vm5077 = vcmp.ge.f32.partialorder %v5061, 0.5
        %vm5078 = vcmp.ge.f32.partialorder %v5062, 0.5
        %vm5079 = vcmp.ge.f32.partialorder %v5063, 0.5
        %vm5080 = vcmp.ge.f32.partialorder %v5064, 0.5
        %v5081 = vsel %vm5065, 1, 0
        %v5082 = vsel %vm5066, 1, 0
        %v5083 = vsel %vm5067, 1, 0
        %v5084 = vsel %vm5068, 1, 0
        %v5085 = vsel %vm5069, 1, 0
        %v5086 = vsel %vm5070, 1, 0
        %v5087 = vsel %vm5071, 1, 0
        %v5088 = vsel %vm5072, 1, 0
        %v5089 = vsel %vm5073, 1, 0
        %v5090 = vsel %vm5074, 1, 0
        %v5091 = vsel %vm5075, 1, 0
        %v5092 = vsel %vm5076, 1, 0
        %v5093 = vsel %vm5077, 1, 0
        %v5094 = vsel %vm5078, 1, 0
        %v5095 = vsel %vm5079, 1, 0
        %v5096 = vsel %vm5080, 1, 0
        %v5097 = vcvt.s32.f32 %v5081
        %v5098 = vcvt.s32.f32 %v5082
        %v5099 = vcvt.s32.f32 %v5083
        %v5100 = vcvt.s32.f32 %v5084
        %v5101 = vcvt.s32.f32 %v5085
        %v5102 = vcvt.s32.f32 %v5086
        %v5103 = vcvt.s32.f32 %v5087
        %v5104 = vcvt.s32.f32 %v5088
        %v5105 = vcvt.s32.f32 %v5089
        %v5106 = vcvt.s32.f32 %v5090
        %v5107 = vcvt.s32.f32 %v5091
        %v5108 = vcvt.s32.f32 %v5092
        %v5109 = vcvt.s32.f32 %v5093
        %v5110 = vcvt.s32.f32 %v5094
        %v5111 = vcvt.s32.f32 %v5095
        %v5112 = vcvt.s32.f32 %v5096
        %s5113 = scalar_lea.vmem %s1127, 256 [#allocation7]
        %5114 = vst.msk [vmem:[%s5113] sm:$0xff] %vm1208, %v5097
        %5115 = vst.msk [vmem:[%s5113 + $0x8] sm:$0xff] %vm1208, %v5098
        %5116 = vst.msk [vmem:[%s5113 + $0x10] sm:$0xff] %vm1208, %v5099
        %5117 = vst.msk [vmem:[%s5113 + $0x18] sm:$0xff] %vm1208, %v5100
        %5118 = vst.msk [vmem:[%s5113 + $0x20] sm:$0xff] %vm1208, %v5101
        %5119 = vst.msk [vmem:[%s5113 + $0x28] sm:$0xff] %vm1208, %v5102
        %5120 = vst.msk [vmem:[%s5113 + $0x30] sm:$0xff] %vm1208, %v5103
        %5121 = vst.msk [vmem:[%s5113 + $0x38] sm:$0xff] %vm1208, %v5104
        %5122 = vst.msk [vmem:[%s5113 + $0x40] sm:$0xff] %vm1208, %v5105
        %5123 = vst.msk [vmem:[%s5113 + $0x48] sm:$0xff] %vm1208, %v5106
        %5124 = vst.msk [vmem:[%s5113 + $0x50] sm:$0xff] %vm1208, %v5107
        %5125 = vst.msk [vmem:[%s5113 + $0x58] sm:$0xff] %vm1208, %v5108
        %5126 = vst.msk [vmem:[%s5113 + $0x60] sm:$0xff] %vm1208, %v5109
        %5127 = vst.msk [vmem:[%s5113 + $0x68] sm:$0xff] %vm1208, %v5110
        %5128 = vst.msk [vmem:[%s5113 + $0x70] sm:$0xff] %vm1208, %v5111
        %5129 = vst.msk [vmem:[%s5113 + $0x78] sm:$0xff] %vm1208, %v5112
        %v5130 = vsub.f32 1.0, %v5097
        %v5131 = vsub.f32 1.0, %v5098
        %v5132 = vsub.f32 1.0, %v5099
        %v5133 = vsub.f32 1.0, %v5100
        %v5134 = vsub.f32 1.0, %v5101
        %v5135 = vsub.f32 1.0, %v5102
        %v5136 = vsub.f32 1.0, %v5103
        %v5137 = vsub.f32 1.0, %v5104
        %v5138 = vsub.f32 1.0, %v5105
        %v5139 = vsub.f32 1.0, %v5106
        %v5140 = vsub.f32 1.0, %v5107
        %v5141 = vsub.f32 1.0, %v5108
        %v5142 = vsub.f32 1.0, %v5109
        %v5143 = vsub.f32 1.0, %v5110
        %v5144 = vsub.f32 1.0, %v5111
        %v5145 = vsub.f32 1.0, %v5112
        %v5146 = vmul.f32 %v5049, %v5130
        %v5147 = vmul.f32 %v5050, %v5131
        %v5148 = vmul.f32 %v5051, %v5132
        %v5149 = vmul.f32 %v5052, %v5133
        %v5150 = vmul.f32 %v5053, %v5134
        %v5151 = vmul.f32 %v5054, %v5135
        %v5152 = vmul.f32 %v5055, %v5136
        %v5153 = vmul.f32 %v5056, %v5137
        %v5154 = vmul.f32 %v5057, %v5138
        %v5155 = vmul.f32 %v5058, %v5139
        %v5156 = vmul.f32 %v5059, %v5140
        %v5157 = vmul.f32 %v5060, %v5141
        %v5158 = vmul.f32 %v5061, %v5142
        %v5159 = vmul.f32 %v5062, %v5143
        %v5160 = vmul.f32 %v5063, %v5144
        %v5161 = vmul.f32 %v5064, %v5145
        %s5162 = scalar_lea.vmem %s1079, 192 [#allocation2]
        %v5163 = vld [vmem:[%s5162] sm:$0xf]
        %v5164 = vld [vmem:[%s5162 + $0x4] sm:$0xf]
        %v5165 = vld [vmem:[%s5162 + $0x8] sm:$0xf]
        %v5166 = vld [vmem:[%s5162 + $0xc] sm:$0xf]
        %v5167 = vld [vmem:[%s5162 + $0x10] sm:$0xf]
        %v5168 = vld [vmem:[%s5162 + $0x14] sm:$0xf]
        %v5169 = vld [vmem:[%s5162 + $0x18] sm:$0xf]
        %v5170 = vld [vmem:[%s5162 + $0x1c] sm:$0xf]
        %v5171 = vld [vmem:[%s5162 + $0x20] sm:$0xf]
        %v5172 = vld [vmem:[%s5162 + $0x24] sm:$0xf]
        %v5173 = vld [vmem:[%s5162 + $0x28] sm:$0xf]
        %v5174 = vld [vmem:[%s5162 + $0x2c] sm:$0xf]
        %v5175 = vld [vmem:[%s5162 + $0x30] sm:$0xf]
        %v5176 = vld [vmem:[%s5162 + $0x34] sm:$0xf]
        %v5177 = vld [vmem:[%s5162 + $0x38] sm:$0xf]
        %v5178 = vld [vmem:[%s5162 + $0x3c] sm:$0xf]
        %s5179 = scalar_lea.vmem %s1086, 192 [#allocation3]
        %v5180 = vld [vmem:[%s5179] sm:$0xf]
        %v5181 = vld [vmem:[%s5179 + $0x4] sm:$0xf]
        %v5182 = vld [vmem:[%s5179 + $0x8] sm:$0xf]
        %v5183 = vld [vmem:[%s5179 + $0xc] sm:$0xf]
        %v5184 = vld [vmem:[%s5179 + $0x10] sm:$0xf]
        %v5185 = vld [vmem:[%s5179 + $0x14] sm:$0xf]
        %v5186 = vld [vmem:[%s5179 + $0x18] sm:$0xf]
        %v5187 = vld [vmem:[%s5179 + $0x1c] sm:$0xf]
        %v5188 = vld [vmem:[%s5179 + $0x20] sm:$0xf]
        %v5189 = vld [vmem:[%s5179 + $0x24] sm:$0xf]
        %v5190 = vld [vmem:[%s5179 + $0x28] sm:$0xf]
        %v5191 = vld [vmem:[%s5179 + $0x2c] sm:$0xf]
        %v5192 = vld [vmem:[%s5179 + $0x30] sm:$0xf]
        %v5193 = vld [vmem:[%s5179 + $0x34] sm:$0xf]
        %v5194 = vld [vmem:[%s5179 + $0x38] sm:$0xf]
        %v5195 = vld [vmem:[%s5179 + $0x3c] sm:$0xf]
        %s5196 = scalar_lea.vmem %s1093, 192 [#allocation4]
        %v5197 = vld [vmem:[%s5196] sm:$0xf]
        %v5198 = vld [vmem:[%s5196 + $0x4] sm:$0xf]
        %v5199 = vld [vmem:[%s5196 + $0x8] sm:$0xf]
        %v5200 = vld [vmem:[%s5196 + $0xc] sm:$0xf]
        %v5201 = vld [vmem:[%s5196 + $0x10] sm:$0xf]
        %v5202 = vld [vmem:[%s5196 + $0x14] sm:$0xf]
        %v5203 = vld [vmem:[%s5196 + $0x18] sm:$0xf]
        %v5204 = vld [vmem:[%s5196 + $0x1c] sm:$0xf]
        %v5205 = vld [vmem:[%s5196 + $0x20] sm:$0xf]
        %v5206 = vld [vmem:[%s5196 + $0x24] sm:$0xf]
        %v5207 = vld [vmem:[%s5196 + $0x28] sm:$0xf]
        %v5208 = vld [vmem:[%s5196 + $0x2c] sm:$0xf]
        %v5209 = vld [vmem:[%s5196 + $0x30] sm:$0xf]
        %v5210 = vld [vmem:[%s5196 + $0x34] sm:$0xf]
        %v5211 = vld [vmem:[%s5196 + $0x38] sm:$0xf]
        %v5212 = vld [vmem:[%s5196 + $0x3c] sm:$0xf]
        %v5213 = vunpack.c.l.bf16 %v5197
        %v5214 = vunpack.c.l.bf16 %v5198
        %v5215 = vunpack.c.l.bf16 %v5199
        %v5216 = vunpack.c.l.bf16 %v5200
        %v5217 = vunpack.c.l.bf16 %v5201
        %v5218 = vunpack.c.l.bf16 %v5202
        %v5219 = vunpack.c.l.bf16 %v5203
        %v5220 = vunpack.c.l.bf16 %v5204
        %v5221 = vunpack.c.l.bf16 %v5205
        %v5222 = vunpack.c.l.bf16 %v5206
        %v5223 = vunpack.c.l.bf16 %v5207
        %v5224 = vunpack.c.l.bf16 %v5208
        %v5225 = vunpack.c.l.bf16 %v5209
        %v5226 = vunpack.c.l.bf16 %v5210
        %v5227 = vunpack.c.l.bf16 %v5211
        %v5228 = vunpack.c.l.bf16 %v5212
        %v5231 = vunpack.c.l.b16 %v5163
        %v5232 = vunpack.c.l.b16 %v5164
        %v5233 = vpack.c.b16 %v5232, %v5231
        %v5236 = vunpack.c.l.b16 %v5180
        %v5237 = vunpack.c.l.b16 %v5181
        %v5238 = vpack.c.b16 %v5237, %v5236
        %v5240 = vsel %vm1208, %v5233, 0
        %v5243 = vsel %vm1208, %v5238, 0
        %5245 = vmatprep.subr.bf16.mxu0 0
        %5246 = vmatpush1.bf16.xpose.msra.mxu0 %v5243
        %5247 = vmatprep.subr.bf16.mxu0 0
        %5248 = vmatpush1.bf16.xpose.msra.mxu0 0
        %5249 = vmatprep.subr.bf16.mxu0 0
        %5250 = vmatpush1.bf16.xpose.msra.mxu0 0
        %5251 = vmatprep.subr.bf16.mxu0 0
        %5252 = vmatpush1.bf16.xpose.msra.mxu0 0
        %5253 = vmatprep.subr.bf16.mxu0 0
        %5254 = vmatpush1.bf16.xpose.msra.mxu0 0
        %5255 = vmatprep.subr.bf16.mxu0 0
        %5256 = vmatpush1.bf16.xpose.msra.mxu0 0
        %5257 = vmatprep.subr.bf16.mxu0 0
        %5258 = vmatpush1.bf16.xpose.msra.mxu0 0
        %5259 = vmatprep.subr.bf16.mxu0 0
        %5260 = vmatpush1.bf16.xpose.msra.mxu0 0
        %5261 = vmatprep.subr.bf16.mxu0 0
        %5262 = vmatpush1.bf16.xpose.msra.mxu0 0
        %5263 = vmatprep.subr.bf16.mxu0 0
        %5264 = vmatpush1.bf16.xpose.msra.mxu0 0
        %5265 = vmatprep.subr.bf16.mxu0 0
        %5266 = vmatpush1.bf16.xpose.msra.mxu0 0
        %5267 = vmatprep.subr.bf16.mxu0 0
        %5268 = vmatpush1.bf16.xpose.msra.mxu0 0
        %5269 = vmatprep.subr.bf16.mxu0 0
        %5270 = vmatpush1.bf16.xpose.msra.mxu0 0
        %5271 = vmatprep.subr.bf16.mxu0 0
        %5272 = vmatpush1.bf16.xpose.msra.mxu0 0
        %5273 = vmatprep.subr.bf16.mxu0 0
        %5274 = vmatpush1.bf16.xpose.msra.mxu0 0
        %5275 = vmatprep.subr.bf16.mxu0 0
        %5276 = vmatpush1.bf16.xpose.msra.mxu0 0
        %5277 = vmatprep.mubr.bf16.mxu0 0
        %5278 = vmatmul.mubr.bf16.gmra.mrb[0].mxu0 %v5240
        %v5279 = vpop.f32.mrb[0].mxu0
        %v5280 = vadd.f32 0.0, %v5279
        %v5281 = vpop.f32.mrb[0].mxu0
        %v5282 = vpop.f32.mrb[0].mxu0
        %v5283 = vadd.f32 0.0, %v5282
        %v5284 = vpop.f32.mrb[0].mxu0
        %5285 = vdwg.mxu0
        %v5288 = vunpack.c.l.b16 %v5165
        %v5289 = vunpack.c.l.b16 %v5166
        %v5290 = vpack.c.b16 %v5289, %v5288
        %v5293 = vunpack.c.l.b16 %v5182
        %v5294 = vunpack.c.l.b16 %v5183
        %v5295 = vpack.c.b16 %v5294, %v5293
        %v5297 = vsel %vm1208, %v5290, 0
        %v5300 = vsel %vm1208, %v5295, 0
        %5302 = vmatprep.subr.bf16.mxu0 0
        %5303 = vmatpush1.bf16.xpose.msra.mxu0 %v5300
        %5304 = vmatprep.subr.bf16.mxu0 0
        %5305 = vmatpush1.bf16.xpose.msra.mxu0 0
        %5306 = vmatprep.subr.bf16.mxu0 0
        %5307 = vmatpush1.bf16.xpose.msra.mxu0 0
        %5308 = vmatprep.subr.bf16.mxu0 0
        %5309 = vmatpush1.bf16.xpose.msra.mxu0 0
        %5310 = vmatprep.subr.bf16.mxu0 0
        %5311 = vmatpush1.bf16.xpose.msra.mxu0 0
        %5312 = vmatprep.subr.bf16.mxu0 0
        %5313 = vmatpush1.bf16.xpose.msra.mxu0 0
        %5314 = vmatprep.subr.bf16.mxu0 0
        %5315 = vmatpush1.bf16.xpose.msra.mxu0 0
        %5316 = vmatprep.subr.bf16.mxu0 0
        %5317 = vmatpush1.bf16.xpose.msra.mxu0 0
        %5318 = vmatprep.subr.bf16.mxu0 0
        %5319 = vmatpush1.bf16.xpose.msra.mxu0 0
        %5320 = vmatprep.subr.bf16.mxu0 0
        %5321 = vmatpush1.bf16.xpose.msra.mxu0 0
        %5322 = vmatprep.subr.bf16.mxu0 0
        %5323 = vmatpush1.bf16.xpose.msra.mxu0 0
        %5324 = vmatprep.subr.bf16.mxu0 0
        %5325 = vmatpush1.bf16.xpose.msra.mxu0 0
        %5326 = vmatprep.subr.bf16.mxu0 0
        %5327 = vmatpush1.bf16.xpose.msra.mxu0 0
        %5328 = vmatprep.subr.bf16.mxu0 0
        %5329 = vmatpush1.bf16.xpose.msra.mxu0 0
        %5330 = vmatprep.subr.bf16.mxu0 0
        %5331 = vmatpush1.bf16.xpose.msra.mxu0 0
        %5332 = vmatprep.subr.bf16.mxu0 0
        %5333 = vmatpush1.bf16.xpose.msra.mxu0 0
        %5334 = vmatprep.mubr.bf16.mxu0 0
        %5335 = vmatmul.mubr.bf16.gmra.mrb[0].mxu0 %v5297
        %v5336 = vpop.f32.mrb[0].mxu0
        %v5337 = vadd.f32 0.0, %v5336
        %v5338 = vpop.f32.mrb[0].mxu0
        %v5339 = vpop.f32.mrb[0].mxu0
        %v5340 = vadd.f32 0.0, %v5339
        %v5341 = vpop.f32.mrb[0].mxu0
        %5342 = vdwg.mxu0
        %v5345 = vunpack.c.l.b16 %v5167
        %v5346 = vunpack.c.l.b16 %v5168
        %v5347 = vpack.c.b16 %v5346, %v5345
        %v5350 = vunpack.c.l.b16 %v5184
        %v5351 = vunpack.c.l.b16 %v5185
        %v5352 = vpack.c.b16 %v5351, %v5350
        %v5354 = vsel %vm1208, %v5347, 0
        %v5357 = vsel %vm1208, %v5352, 0
        %5359 = vmatprep.subr.bf16.mxu0 0
        %5360 = vmatpush1.bf16.xpose.msra.mxu0 %v5357
        %5361 = vmatprep.subr.bf16.mxu0 0
        %5362 = vmatpush1.bf16.xpose.msra.mxu0 0
        %5363 = vmatprep.subr.bf16.mxu0 0
        %5364 = vmatpush1.bf16.xpose.msra.mxu0 0
        %5365 = vmatprep.subr.bf16.mxu0 0
        %5366 = vmatpush1.bf16.xpose.msra.mxu0 0
        %5367 = vmatprep.subr.bf16.mxu0 0
        %5368 = vmatpush1.bf16.xpose.msra.mxu0 0
        %5369 = vmatprep.subr.bf16.mxu0 0
        %5370 = vmatpush1.bf16.xpose.msra.mxu0 0
        %5371 = vmatprep.subr.bf16.mxu0 0
        %5372 = vmatpush1.bf16.xpose.msra.mxu0 0
        %5373 = vmatprep.subr.bf16.mxu0 0
        %5374 = vmatpush1.bf16.xpose.msra.mxu0 0
        %5375 = vmatprep.subr.bf16.mxu0 0
        %5376 = vmatpush1.bf16.xpose.msra.mxu0 0
        %5377 = vmatprep.subr.bf16.mxu0 0
        %5378 = vmatpush1.bf16.xpose.msra.mxu0 0
        %5379 = vmatprep.subr.bf16.mxu0 0
        %5380 = vmatpush1.bf16.xpose.msra.mxu0 0
        %5381 = vmatprep.subr.bf16.mxu0 0
        %5382 = vmatpush1.bf16.xpose.msra.mxu0 0
        %5383 = vmatprep.subr.bf16.mxu0 0
        %5384 = vmatpush1.bf16.xpose.msra.mxu0 0
        %5385 = vmatprep.subr.bf16.mxu0 0
        %5386 = vmatpush1.bf16.xpose.msra.mxu0 0
        %5387 = vmatprep.subr.bf16.mxu0 0
        %5388 = vmatpush1.bf16.xpose.msra.mxu0 0
        %5389 = vmatprep.subr.bf16.mxu0 0
        %5390 = vmatpush1.bf16.xpose.msra.mxu0 0
        %5391 = vmatprep.mubr.bf16.mxu0 0
        %5392 = vmatmul.mubr.bf16.gmra.mrb[0].mxu0 %v5354
        %v5393 = vpop.f32.mrb[0].mxu0
        %v5394 = vadd.f32 0.0, %v5393
        %v5395 = vpop.f32.mrb[0].mxu0
        %v5396 = vpop.f32.mrb[0].mxu0
        %v5397 = vadd.f32 0.0, %v5396
        %v5398 = vpop.f32.mrb[0].mxu0
        %5399 = vdwg.mxu0
        %v5402 = vunpack.c.l.b16 %v5169
        %v5403 = vunpack.c.l.b16 %v5170
        %v5404 = vpack.c.b16 %v5403, %v5402
        %v5407 = vunpack.c.l.b16 %v5186
        %v5408 = vunpack.c.l.b16 %v5187
        %v5409 = vpack.c.b16 %v5408, %v5407
        %v5411 = vsel %vm1208, %v5404, 0
        %v5414 = vsel %vm1208, %v5409, 0
        %5416 = vmatprep.subr.bf16.mxu0 0
        %5417 = vmatpush1.bf16.xpose.msra.mxu0 %v5414
        %5418 = vmatprep.subr.bf16.mxu0 0
        %5419 = vmatpush1.bf16.xpose.msra.mxu0 0
        %5420 = vmatprep.subr.bf16.mxu0 0
        %5421 = vmatpush1.bf16.xpose.msra.mxu0 0
        %5422 = vmatprep.subr.bf16.mxu0 0
        %5423 = vmatpush1.bf16.xpose.msra.mxu0 0
        %5424 = vmatprep.subr.bf16.mxu0 0
        %5425 = vmatpush1.bf16.xpose.msra.mxu0 0
        %5426 = vmatprep.subr.bf16.mxu0 0
        %5427 = vmatpush1.bf16.xpose.msra.mxu0 0
        %5428 = vmatprep.subr.bf16.mxu0 0
        %5429 = vmatpush1.bf16.xpose.msra.mxu0 0
        %5430 = vmatprep.subr.bf16.mxu0 0
        %5431 = vmatpush1.bf16.xpose.msra.mxu0 0
        %5432 = vmatprep.subr.bf16.mxu0 0
        %5433 = vmatpush1.bf16.xpose.msra.mxu0 0
        %5434 = vmatprep.subr.bf16.mxu0 0
        %5435 = vmatpush1.bf16.xpose.msra.mxu0 0
        %5436 = vmatprep.subr.bf16.mxu0 0
        %5437 = vmatpush1.bf16.xpose.msra.mxu0 0
        %5438 = vmatprep.subr.bf16.mxu0 0
        %5439 = vmatpush1.bf16.xpose.msra.mxu0 0
        %5440 = vmatprep.subr.bf16.mxu0 0
        %5441 = vmatpush1.bf16.xpose.msra.mxu0 0
        %5442 = vmatprep.subr.bf16.mxu0 0
        %5443 = vmatpush1.bf16.xpose.msra.mxu0 0
        %5444 = vmatprep.subr.bf16.mxu0 0
        %5445 = vmatpush1.bf16.xpose.msra.mxu0 0
        %5446 = vmatprep.subr.bf16.mxu0 0
        %5447 = vmatpush1.bf16.xpose.msra.mxu0 0
        %5448 = vmatprep.mubr.bf16.mxu0 0
        %5449 = vmatmul.mubr.bf16.gmra.mrb[0].mxu0 %v5411
        %v5450 = vpop.f32.mrb[0].mxu0
        %v5451 = vadd.f32 0.0, %v5450
        %v5452 = vpop.f32.mrb[0].mxu0
        %v5453 = vpop.f32.mrb[0].mxu0
        %v5454 = vadd.f32 0.0, %v5453
        %v5455 = vpop.f32.mrb[0].mxu0
        %5456 = vdwg.mxu0
        %v5459 = vunpack.c.l.b16 %v5171
        %v5460 = vunpack.c.l.b16 %v5172
        %v5461 = vpack.c.b16 %v5460, %v5459
        %v5464 = vunpack.c.l.b16 %v5188
        %v5465 = vunpack.c.l.b16 %v5189
        %v5466 = vpack.c.b16 %v5465, %v5464
        %v5468 = vsel %vm1208, %v5461, 0
        %v5471 = vsel %vm1208, %v5466, 0
        %5473 = vmatprep.subr.bf16.mxu0 0
        %5474 = vmatpush1.bf16.xpose.msra.mxu0 %v5471
        %5475 = vmatprep.subr.bf16.mxu0 0
        %5476 = vmatpush1.bf16.xpose.msra.mxu0 0
        %5477 = vmatprep.subr.bf16.mxu0 0
        %5478 = vmatpush1.bf16.xpose.msra.mxu0 0
        %5479 = vmatprep.subr.bf16.mxu0 0
        %5480 = vmatpush1.bf16.xpose.msra.mxu0 0
        %5481 = vmatprep.subr.bf16.mxu0 0
        %5482 = vmatpush1.bf16.xpose.msra.mxu0 0
        %5483 = vmatprep.subr.bf16.mxu0 0
        %5484 = vmatpush1.bf16.xpose.msra.mxu0 0
        %5485 = vmatprep.subr.bf16.mxu0 0
        %5486 = vmatpush1.bf16.xpose.msra.mxu0 0
        %5487 = vmatprep.subr.bf16.mxu0 0
        %5488 = vmatpush1.bf16.xpose.msra.mxu0 0
        %5489 = vmatprep.subr.bf16.mxu0 0
        %5490 = vmatpush1.bf16.xpose.msra.mxu0 0
        %5491 = vmatprep.subr.bf16.mxu0 0
        %5492 = vmatpush1.bf16.xpose.msra.mxu0 0
        %5493 = vmatprep.subr.bf16.mxu0 0
        %5494 = vmatpush1.bf16.xpose.msra.mxu0 0
        %5495 = vmatprep.subr.bf16.mxu0 0
        %5496 = vmatpush1.bf16.xpose.msra.mxu0 0
        %5497 = vmatprep.subr.bf16.mxu0 0
        %5498 = vmatpush1.bf16.xpose.msra.mxu0 0
        %5499 = vmatprep.subr.bf16.mxu0 0
        %5500 = vmatpush1.bf16.xpose.msra.mxu0 0
        %5501 = vmatprep.subr.bf16.mxu0 0
        %5502 = vmatpush1.bf16.xpose.msra.mxu0 0
        %5503 = vmatprep.subr.bf16.mxu0 0
        %5504 = vmatpush1.bf16.xpose.msra.mxu0 0
        %5505 = vmatprep.mubr.bf16.mxu0 0
        %5506 = vmatmul.mubr.bf16.gmra.mrb[0].mxu0 %v5468
        %v5507 = vpop.f32.mrb[0].mxu0
        %v5508 = vadd.f32 0.0, %v5507
        %v5509 = vpop.f32.mrb[0].mxu0
        %v5510 = vpop.f32.mrb[0].mxu0
        %v5511 = vadd.f32 0.0, %v5510
        %v5512 = vpop.f32.mrb[0].mxu0
        %5513 = vdwg.mxu0
        %v5516 = vunpack.c.l.b16 %v5173
        %v5517 = vunpack.c.l.b16 %v5174
        %v5518 = vpack.c.b16 %v5517, %v5516
        %v5521 = vunpack.c.l.b16 %v5190
        %v5522 = vunpack.c.l.b16 %v5191
        %v5523 = vpack.c.b16 %v5522, %v5521
        %v5525 = vsel %vm1208, %v5518, 0
        %v5528 = vsel %vm1208, %v5523, 0
        %5530 = vmatprep.subr.bf16.mxu0 0
        %5531 = vmatpush1.bf16.xpose.msra.mxu0 %v5528
        %5532 = vmatprep.subr.bf16.mxu0 0
        %5533 = vmatpush1.bf16.xpose.msra.mxu0 0
        %5534 = vmatprep.subr.bf16.mxu0 0
        %5535 = vmatpush1.bf16.xpose.msra.mxu0 0
        %5536 = vmatprep.subr.bf16.mxu0 0
        %5537 = vmatpush1.bf16.xpose.msra.mxu0 0
        %5538 = vmatprep.subr.bf16.mxu0 0
        %5539 = vmatpush1.bf16.xpose.msra.mxu0 0
        %5540 = vmatprep.subr.bf16.mxu0 0
        %5541 = vmatpush1.bf16.xpose.msra.mxu0 0
        %5542 = vmatprep.subr.bf16.mxu0 0
        %5543 = vmatpush1.bf16.xpose.msra.mxu0 0
        %5544 = vmatprep.subr.bf16.mxu0 0
        %5545 = vmatpush1.bf16.xpose.msra.mxu0 0
        %5546 = vmatprep.subr.bf16.mxu0 0
        %5547 = vmatpush1.bf16.xpose.msra.mxu0 0
        %5548 = vmatprep.subr.bf16.mxu0 0
        %5549 = vmatpush1.bf16.xpose.msra.mxu0 0
        %5550 = vmatprep.subr.bf16.mxu0 0
        %5551 = vmatpush1.bf16.xpose.msra.mxu0 0
        %5552 = vmatprep.subr.bf16.mxu0 0
        %5553 = vmatpush1.bf16.xpose.msra.mxu0 0
        %5554 = vmatprep.subr.bf16.mxu0 0
        %5555 = vmatpush1.bf16.xpose.msra.mxu0 0
        %5556 = vmatprep.subr.bf16.mxu0 0
        %5557 = vmatpush1.bf16.xpose.msra.mxu0 0
        %5558 = vmatprep.subr.bf16.mxu0 0
        %5559 = vmatpush1.bf16.xpose.msra.mxu0 0
        %5560 = vmatprep.subr.bf16.mxu0 0
        %5561 = vmatpush1.bf16.xpose.msra.mxu0 0
        %5562 = vmatprep.mubr.bf16.mxu0 0
        %5563 = vmatmul.mubr.bf16.gmra.mrb[0].mxu0 %v5525
        %v5564 = vpop.f32.mrb[0].mxu0
        %v5565 = vadd.f32 0.0, %v5564
        %v5566 = vpop.f32.mrb[0].mxu0
        %v5567 = vpop.f32.mrb[0].mxu0
        %v5568 = vadd.f32 0.0, %v5567
        %v5569 = vpop.f32.mrb[0].mxu0
        %5570 = vdwg.mxu0
        %v5573 = vunpack.c.l.b16 %v5175
        %v5574 = vunpack.c.l.b16 %v5176
        %v5575 = vpack.c.b16 %v5574, %v5573
        %v5578 = vunpack.c.l.b16 %v5192
        %v5579 = vunpack.c.l.b16 %v5193
        %v5580 = vpack.c.b16 %v5579, %v5578
        %v5582 = vsel %vm1208, %v5575, 0
        %v5585 = vsel %vm1208, %v5580, 0
        %5587 = vmatprep.subr.bf16.mxu0 0
        %5588 = vmatpush1.bf16.xpose.msra.mxu0 %v5585
        %5589 = vmatprep.subr.bf16.mxu0 0
        %5590 = vmatpush1.bf16.xpose.msra.mxu0 0
        %5591 = vmatprep.subr.bf16.mxu0 0
        %5592 = vmatpush1.bf16.xpose.msra.mxu0 0
        %5593 = vmatprep.subr.bf16.mxu0 0
        %5594 = vmatpush1.bf16.xpose.msra.mxu0 0
        %5595 = vmatprep.subr.bf16.mxu0 0
        %5596 = vmatpush1.bf16.xpose.msra.mxu0 0
        %5597 = vmatprep.subr.bf16.mxu0 0
        %5598 = vmatpush1.bf16.xpose.msra.mxu0 0
        %5599 = vmatprep.subr.bf16.mxu0 0
        %5600 = vmatpush1.bf16.xpose.msra.mxu0 0
        %5601 = vmatprep.subr.bf16.mxu0 0
        %5602 = vmatpush1.bf16.xpose.msra.mxu0 0
        %5603 = vmatprep.subr.bf16.mxu0 0
        %5604 = vmatpush1.bf16.xpose.msra.mxu0 0
        %5605 = vmatprep.subr.bf16.mxu0 0
        %5606 = vmatpush1.bf16.xpose.msra.mxu0 0
        %5607 = vmatprep.subr.bf16.mxu0 0
        %5608 = vmatpush1.bf16.xpose.msra.mxu0 0
        %5609 = vmatprep.subr.bf16.mxu0 0
        %5610 = vmatpush1.bf16.xpose.msra.mxu0 0
        %5611 = vmatprep.subr.bf16.mxu0 0
        %5612 = vmatpush1.bf16.xpose.msra.mxu0 0
        %5613 = vmatprep.subr.bf16.mxu0 0
        %5614 = vmatpush1.bf16.xpose.msra.mxu0 0
        %5615 = vmatprep.subr.bf16.mxu0 0
        %5616 = vmatpush1.bf16.xpose.msra.mxu0 0
        %5617 = vmatprep.subr.bf16.mxu0 0
        %5618 = vmatpush1.bf16.xpose.msra.mxu0 0
        %5619 = vmatprep.mubr.bf16.mxu0 0
        %5620 = vmatmul.mubr.bf16.gmra.mrb[0].mxu0 %v5582
        %v5621 = vpop.f32.mrb[0].mxu0
        %v5622 = vadd.f32 0.0, %v5621
        %v5623 = vpop.f32.mrb[0].mxu0
        %v5624 = vpop.f32.mrb[0].mxu0
        %v5625 = vadd.f32 0.0, %v5624
        %v5626 = vpop.f32.mrb[0].mxu0
        %5627 = vdwg.mxu0
        %v5630 = vunpack.c.l.b16 %v5177
        %v5631 = vunpack.c.l.b16 %v5178
        %v5632 = vpack.c.b16 %v5631, %v5630
        %v5635 = vunpack.c.l.b16 %v5194
        %v5636 = vunpack.c.l.b16 %v5195
        %v5637 = vpack.c.b16 %v5636, %v5635
        %v5639 = vsel %vm1208, %v5632, 0
        %v5642 = vsel %vm1208, %v5637, 0
        %5644 = vmatprep.subr.bf16.mxu0 0
        %5645 = vmatpush1.bf16.xpose.msra.mxu0 %v5642
        %5646 = vmatprep.subr.bf16.mxu0 0
        %5647 = vmatpush1.bf16.xpose.msra.mxu0 0
        %5648 = vmatprep.subr.bf16.mxu0 0
        %5649 = vmatpush1.bf16.xpose.msra.mxu0 0
        %5650 = vmatprep.subr.bf16.mxu0 0
        %5651 = vmatpush1.bf16.xpose.msra.mxu0 0
        %5652 = vmatprep.subr.bf16.mxu0 0
        %5653 = vmatpush1.bf16.xpose.msra.mxu0 0
        %5654 = vmatprep.subr.bf16.mxu0 0
        %5655 = vmatpush1.bf16.xpose.msra.mxu0 0
        %5656 = vmatprep.subr.bf16.mxu0 0
        %5657 = vmatpush1.bf16.xpose.msra.mxu0 0
        %5658 = vmatprep.subr.bf16.mxu0 0
        %5659 = vmatpush1.bf16.xpose.msra.mxu0 0
        %5660 = vmatprep.subr.bf16.mxu0 0
        %5661 = vmatpush1.bf16.xpose.msra.mxu0 0
        %5662 = vmatprep.subr.bf16.mxu0 0
        %5663 = vmatpush1.bf16.xpose.msra.mxu0 0
        %5664 = vmatprep.subr.bf16.mxu0 0
        %5665 = vmatpush1.bf16.xpose.msra.mxu0 0
        %5666 = vmatprep.subr.bf16.mxu0 0
        %5667 = vmatpush1.bf16.xpose.msra.mxu0 0
        %5668 = vmatprep.subr.bf16.mxu0 0
        %5669 = vmatpush1.bf16.xpose.msra.mxu0 0
        %5670 = vmatprep.subr.bf16.mxu0 0
        %5671 = vmatpush1.bf16.xpose.msra.mxu0 0
        %5672 = vmatprep.subr.bf16.mxu0 0
        %5673 = vmatpush1.bf16.xpose.msra.mxu0 0
        %5674 = vmatprep.subr.bf16.mxu0 0
        %5675 = vmatpush1.bf16.xpose.msra.mxu0 0
        %5676 = vmatprep.mubr.bf16.mxu0 0
        %5677 = vmatmul.mubr.bf16.gmra.mrb[0].mxu0 %v5639
        %v5678 = vpop.f32.mrb[0].mxu0
        %v5679 = vadd.f32 0.0, %v5678
        %v5680 = vpop.f32.mrb[0].mxu0
        %v5681 = vpop.f32.mrb[0].mxu0
        %v5682 = vadd.f32 0.0, %v5681
        %v5683 = vpop.f32.mrb[0].mxu0
        %5684 = vdwg.mxu0
        %v5685 = vmul.f32 %v5280, 0.125
        %v5686 = vmul.f32 %v5283, 0.125
        %v5687 = vmul.f32 %v5337, 0.125
        %v5688 = vmul.f32 %v5340, 0.125
        %v5689 = vmul.f32 %v5394, 0.125
        %v5690 = vmul.f32 %v5397, 0.125
        %v5691 = vmul.f32 %v5451, 0.125
        %v5692 = vmul.f32 %v5454, 0.125
        %v5693 = vmul.f32 %v5508, 0.125
        %v5694 = vmul.f32 %v5511, 0.125
        %v5695 = vmul.f32 %v5565, 0.125
        %v5696 = vmul.f32 %v5568, 0.125
        %v5697 = vmul.f32 %v5622, 0.125
        %v5698 = vmul.f32 %v5625, 0.125
        %v5699 = vmul.f32 %v5679, 0.125
        %v5700 = vmul.f32 %v5682, 0.125
        %v5702 = vsel %vm1671, %v5685, 0
        %v5705 = vsel %vm1671, %v5686, 0
        %5707 = vmatprep.subr.mxu0 0.0
        %5708 = vmatpush1.msra.mxu0 %v5213
        %5709 = vmatprep.subr.mxu0 0.0
        %5710 = vmatpush1.msra.mxu0 %v5214
        %5711 = vmatprep.subr.mxu0 0.0
        %5712 = vmatpush1.msra.mxu0 0.0
        %5713 = vmatprep.subr.mxu0 0.0
        %5714 = vmatpush1.msra.mxu0 0.0
        %5715 = vmatprep.subr.mxu0 0.0
        %5716 = vmatpush1.msra.mxu0 0.0
        %5717 = vmatprep.subr.mxu0 0.0
        %5718 = vmatpush1.msra.mxu0 0.0
        %5719 = vmatprep.subr.mxu0 0.0
        %5720 = vmatpush1.msra.mxu0 0.0
        %5721 = vmatprep.subr.mxu0 0.0
        %5722 = vmatpush1.msra.mxu0 0.0
        %5723 = vmatprep.subr.mxu0 0.0
        %5724 = vmatpush1.msra.mxu0 0.0
        %5725 = vmatprep.subr.mxu0 0.0
        %5726 = vmatpush1.msra.mxu0 0.0
        %5727 = vmatprep.subr.mxu0 0.0
        %5728 = vmatpush1.msra.mxu0 0.0
        %5729 = vmatprep.subr.mxu0 0.0
        %5730 = vmatpush1.msra.mxu0 0.0
        %5731 = vmatprep.subr.mxu0 0.0
        %5732 = vmatpush1.msra.mxu0 0.0
        %5733 = vmatprep.subr.mxu0 0.0
        %5734 = vmatpush1.msra.mxu0 0.0
        %5735 = vmatprep.subr.mxu0 0.0
        %5736 = vmatpush1.msra.mxu0 0.0
        %5737 = vmatprep.subr.mxu0 0.0
        %5738 = vmatpush1.msra.mxu0 0.0
        %5739 = vmatprep.subr.mxu0 0.0
        %5740 = vmatpush1.msra.mxu0 0.0
        %5741 = vmatprep.subr.mxu0 0.0
        %5742 = vmatpush1.msra.mxu0 0.0
        %5743 = vmatprep.subr.mxu0 0.0
        %5744 = vmatpush1.msra.mxu0 0.0
        %5745 = vmatprep.subr.mxu0 0.0
        %5746 = vmatpush1.msra.mxu0 0.0
        %5747 = vmatprep.subr.mxu0 0.0
        %5748 = vmatpush1.msra.mxu0 0.0
        %5749 = vmatprep.subr.mxu0 0.0
        %5750 = vmatpush1.msra.mxu0 0.0
        %5751 = vmatprep.subr.mxu0 0.0
        %5752 = vmatpush1.msra.mxu0 0.0
        %5753 = vmatprep.subr.mxu0 0.0
        %5754 = vmatpush1.msra.mxu0 0.0
        %5755 = vmatprep.subr.mxu0 0.0
        %5756 = vmatpush1.msra.mxu0 0.0
        %5757 = vmatprep.subr.mxu0 0.0
        %5758 = vmatpush1.msra.mxu0 0.0
        %5759 = vmatprep.subr.mxu0 0.0
        %5760 = vmatpush1.msra.mxu0 0.0
        %5761 = vmatprep.subr.mxu0 0.0
        %5762 = vmatpush1.msra.mxu0 0.0
        %5763 = vmatprep.subr.mxu0 0.0
        %5764 = vmatpush1.msra.mxu0 0.0
        %5765 = vmatprep.subr.mxu0 0.0
        %5766 = vmatpush1.msra.mxu0 0.0
        %5767 = vmatprep.subr.mxu0 0.0
        %5768 = vmatpush1.msra.mxu0 0.0
        %5769 = vmatprep.subr.mxu0 0.0
        %5770 = vmatpush1.msra.mxu0 0.0
        %5771 = vmatprep.mubr.f32.mxu0 0.0
        %5772 = vmatmul.mubr.f32.gmra.mrb[0].mxu0 %v5702
        %v5773 = vpop.f32.mrb[0].mxu0
        %v5774 = vadd.f32 0.0, %v5773
        %v5775 = vpop.f32.mrb[0].mxu0
        %5776 = vmatprep.mubr.f32.mxu0 0.0
        %5777 = vmatmul.mubr.f32.gmra.mrb[0].mxu0 %v5705
        %v5778 = vpop.f32.mrb[0].mxu0
        %v5779 = vadd.f32 0.0, %v5778
        %v5780 = vpop.f32.mrb[0].mxu0
        %5781 = vdwg.mxu0
        %v5783 = vsel %vm1671, %v5687, 0
        %v5786 = vsel %vm1671, %v5688, 0
        %5788 = vmatprep.subr.mxu0 0.0
        %5789 = vmatpush1.msra.mxu0 %v5215
        %5790 = vmatprep.subr.mxu0 0.0
        %5791 = vmatpush1.msra.mxu0 %v5216
        %5792 = vmatprep.subr.mxu0 0.0
        %5793 = vmatpush1.msra.mxu0 0.0
        %5794 = vmatprep.subr.mxu0 0.0
        %5795 = vmatpush1.msra.mxu0 0.0
        %5796 = vmatprep.subr.mxu0 0.0
        %5797 = vmatpush1.msra.mxu0 0.0
        %5798 = vmatprep.subr.mxu0 0.0
        %5799 = vmatpush1.msra.mxu0 0.0
        %5800 = vmatprep.subr.mxu0 0.0
        %5801 = vmatpush1.msra.mxu0 0.0
        %5802 = vmatprep.subr.mxu0 0.0
        %5803 = vmatpush1.msra.mxu0 0.0
        %5804 = vmatprep.subr.mxu0 0.0
        %5805 = vmatpush1.msra.mxu0 0.0
        %5806 = vmatprep.subr.mxu0 0.0
        %5807 = vmatpush1.msra.mxu0 0.0
        %5808 = vmatprep.subr.mxu0 0.0
        %5809 = vmatpush1.msra.mxu0 0.0
        %5810 = vmatprep.subr.mxu0 0.0
        %5811 = vmatpush1.msra.mxu0 0.0
        %5812 = vmatprep.subr.mxu0 0.0
        %5813 = vmatpush1.msra.mxu0 0.0
        %5814 = vmatprep.subr.mxu0 0.0
        %5815 = vmatpush1.msra.mxu0 0.0
        %5816 = vmatprep.subr.mxu0 0.0
        %5817 = vmatpush1.msra.mxu0 0.0
        %5818 = vmatprep.subr.mxu0 0.0
        %5819 = vmatpush1.msra.mxu0 0.0
        %5820 = vmatprep.subr.mxu0 0.0
        %5821 = vmatpush1.msra.mxu0 0.0
        %5822 = vmatprep.subr.mxu0 0.0
        %5823 = vmatpush1.msra.mxu0 0.0
        %5824 = vmatprep.subr.mxu0 0.0
        %5825 = vmatpush1.msra.mxu0 0.0
        %5826 = vmatprep.subr.mxu0 0.0
        %5827 = vmatpush1.msra.mxu0 0.0
        %5828 = vmatprep.subr.mxu0 0.0
        %5829 = vmatpush1.msra.mxu0 0.0
        %5830 = vmatprep.subr.mxu0 0.0
        %5831 = vmatpush1.msra.mxu0 0.0
        %5832 = vmatprep.subr.mxu0 0.0
        %5833 = vmatpush1.msra.mxu0 0.0
        %5834 = vmatprep.subr.mxu0 0.0
        %5835 = vmatpush1.msra.mxu0 0.0
        %5836 = vmatprep.subr.mxu0 0.0
        %5837 = vmatpush1.msra.mxu0 0.0
        %5838 = vmatprep.subr.mxu0 0.0
        %5839 = vmatpush1.msra.mxu0 0.0
        %5840 = vmatprep.subr.mxu0 0.0
        %5841 = vmatpush1.msra.mxu0 0.0
        %5842 = vmatprep.subr.mxu0 0.0
        %5843 = vmatpush1.msra.mxu0 0.0
        %5844 = vmatprep.subr.mxu0 0.0
        %5845 = vmatpush1.msra.mxu0 0.0
        %5846 = vmatprep.subr.mxu0 0.0
        %5847 = vmatpush1.msra.mxu0 0.0
        %5848 = vmatprep.subr.mxu0 0.0
        %5849 = vmatpush1.msra.mxu0 0.0
        %5850 = vmatprep.subr.mxu0 0.0
        %5851 = vmatpush1.msra.mxu0 0.0
        %5852 = vmatprep.mubr.f32.mxu0 0.0
        %5853 = vmatmul.mubr.f32.gmra.mrb[0].mxu0 %v5783
        %v5854 = vpop.f32.mrb[0].mxu0
        %v5855 = vadd.f32 0.0, %v5854
        %v5856 = vpop.f32.mrb[0].mxu0
        %5857 = vmatprep.mubr.f32.mxu0 0.0
        %5858 = vmatmul.mubr.f32.gmra.mrb[0].mxu0 %v5786
        %v5859 = vpop.f32.mrb[0].mxu0
        %v5860 = vadd.f32 0.0, %v5859
        %v5861 = vpop.f32.mrb[0].mxu0
        %5862 = vdwg.mxu0
        %v5864 = vsel %vm1671, %v5689, 0
        %v5867 = vsel %vm1671, %v5690, 0
        %5869 = vmatprep.subr.mxu0 0.0
        %5870 = vmatpush1.msra.mxu0 %v5217
        %5871 = vmatprep.subr.mxu0 0.0
        %5872 = vmatpush1.msra.mxu0 %v5218
        %5873 = vmatprep.subr.mxu0 0.0
        %5874 = vmatpush1.msra.mxu0 0.0
        %5875 = vmatprep.subr.mxu0 0.0
        %5876 = vmatpush1.msra.mxu0 0.0
        %5877 = vmatprep.subr.mxu0 0.0
        %5878 = vmatpush1.msra.mxu0 0.0
        %5879 = vmatprep.subr.mxu0 0.0
        %5880 = vmatpush1.msra.mxu0 0.0
        %5881 = vmatprep.subr.mxu0 0.0
        %5882 = vmatpush1.msra.mxu0 0.0
        %5883 = vmatprep.subr.mxu0 0.0
        %5884 = vmatpush1.msra.mxu0 0.0
        %5885 = vmatprep.subr.mxu0 0.0
        %5886 = vmatpush1.msra.mxu0 0.0
        %5887 = vmatprep.subr.mxu0 0.0
        %5888 = vmatpush1.msra.mxu0 0.0
        %5889 = vmatprep.subr.mxu0 0.0
        %5890 = vmatpush1.msra.mxu0 0.0
        %5891 = vmatprep.subr.mxu0 0.0
        %5892 = vmatpush1.msra.mxu0 0.0
        %5893 = vmatprep.subr.mxu0 0.0
        %5894 = vmatpush1.msra.mxu0 0.0
        %5895 = vmatprep.subr.mxu0 0.0
        %5896 = vmatpush1.msra.mxu0 0.0
        %5897 = vmatprep.subr.mxu0 0.0
        %5898 = vmatpush1.msra.mxu0 0.0
        %5899 = vmatprep.subr.mxu0 0.0
        %5900 = vmatpush1.msra.mxu0 0.0
        %5901 = vmatprep.subr.mxu0 0.0
        %5902 = vmatpush1.msra.mxu0 0.0
        %5903 = vmatprep.subr.mxu0 0.0
        %5904 = vmatpush1.msra.mxu0 0.0
        %5905 = vmatprep.subr.mxu0 0.0
        %5906 = vmatpush1.msra.mxu0 0.0
        %5907 = vmatprep.subr.mxu0 0.0
        %5908 = vmatpush1.msra.mxu0 0.0
        %5909 = vmatprep.subr.mxu0 0.0
        %5910 = vmatpush1.msra.mxu0 0.0
        %5911 = vmatprep.subr.mxu0 0.0
        %5912 = vmatpush1.msra.mxu0 0.0
        %5913 = vmatprep.subr.mxu0 0.0
        %5914 = vmatpush1.msra.mxu0 0.0
        %5915 = vmatprep.subr.mxu0 0.0
        %5916 = vmatpush1.msra.mxu0 0.0
        %5917 = vmatprep.subr.mxu0 0.0
        %5918 = vmatpush1.msra.mxu0 0.0
        %5919 = vmatprep.subr.mxu0 0.0
        %5920 = vmatpush1.msra.mxu0 0.0
        %5921 = vmatprep.subr.mxu0 0.0
        %5922 = vmatpush1.msra.mxu0 0.0
        %5923 = vmatprep.subr.mxu0 0.0
        %5924 = vmatpush1.msra.mxu0 0.0
        %5925 = vmatprep.subr.mxu0 0.0
        %5926 = vmatpush1.msra.mxu0 0.0
        %5927 = vmatprep.subr.mxu0 0.0
        %5928 = vmatpush1.msra.mxu0 0.0
        %5929 = vmatprep.subr.mxu0 0.0
        %5930 = vmatpush1.msra.mxu0 0.0
        %5931 = vmatprep.subr.mxu0 0.0
        %5932 = vmatpush1.msra.mxu0 0.0
        %5933 = vmatprep.mubr.f32.mxu0 0.0
        %5934 = vmatmul.mubr.f32.gmra.mrb[0].mxu0 %v5864
        %v5935 = vpop.f32.mrb[0].mxu0
        %v5936 = vadd.f32 0.0, %v5935
        %v5937 = vpop.f32.mrb[0].mxu0
        %5938 = vmatprep.mubr.f32.mxu0 0.0
        %5939 = vmatmul.mubr.f32.gmra.mrb[0].mxu0 %v5867
        %v5940 = vpop.f32.mrb[0].mxu0
        %v5941 = vadd.f32 0.0, %v5940
        %v5942 = vpop.f32.mrb[0].mxu0
        %5943 = vdwg.mxu0
        %v5945 = vsel %vm1671, %v5691, 0
        %v5948 = vsel %vm1671, %v5692, 0
        %5950 = vmatprep.subr.mxu0 0.0
        %5951 = vmatpush1.msra.mxu0 %v5219
        %5952 = vmatprep.subr.mxu0 0.0
        %5953 = vmatpush1.msra.mxu0 %v5220
        %5954 = vmatprep.subr.mxu0 0.0
        %5955 = vmatpush1.msra.mxu0 0.0
        %5956 = vmatprep.subr.mxu0 0.0
        %5957 = vmatpush1.msra.mxu0 0.0
        %5958 = vmatprep.subr.mxu0 0.0
        %5959 = vmatpush1.msra.mxu0 0.0
        %5960 = vmatprep.subr.mxu0 0.0
        %5961 = vmatpush1.msra.mxu0 0.0
        %5962 = vmatprep.subr.mxu0 0.0
        %5963 = vmatpush1.msra.mxu0 0.0
        %5964 = vmatprep.subr.mxu0 0.0
        %5965 = vmatpush1.msra.mxu0 0.0
        %5966 = vmatprep.subr.mxu0 0.0
        %5967 = vmatpush1.msra.mxu0 0.0
        %5968 = vmatprep.subr.mxu0 0.0
        %5969 = vmatpush1.msra.mxu0 0.0
        %5970 = vmatprep.subr.mxu0 0.0
        %5971 = vmatpush1.msra.mxu0 0.0
        %5972 = vmatprep.subr.mxu0 0.0
        %5973 = vmatpush1.msra.mxu0 0.0
        %5974 = vmatprep.subr.mxu0 0.0
        %5975 = vmatpush1.msra.mxu0 0.0
        %5976 = vmatprep.subr.mxu0 0.0
        %5977 = vmatpush1.msra.mxu0 0.0
        %5978 = vmatprep.subr.mxu0 0.0
        %5979 = vmatpush1.msra.mxu0 0.0
        %5980 = vmatprep.subr.mxu0 0.0
        %5981 = vmatpush1.msra.mxu0 0.0
        %5982 = vmatprep.subr.mxu0 0.0
        %5983 = vmatpush1.msra.mxu0 0.0
        %5984 = vmatprep.subr.mxu0 0.0
        %5985 = vmatpush1.msra.mxu0 0.0
        %5986 = vmatprep.subr.mxu0 0.0
        %5987 = vmatpush1.msra.mxu0 0.0
        %5988 = vmatprep.subr.mxu0 0.0
        %5989 = vmatpush1.msra.mxu0 0.0
        %5990 = vmatprep.subr.mxu0 0.0
        %5991 = vmatpush1.msra.mxu0 0.0
        %5992 = vmatprep.subr.mxu0 0.0
        %5993 = vmatpush1.msra.mxu0 0.0
        %5994 = vmatprep.subr.mxu0 0.0
        %5995 = vmatpush1.msra.mxu0 0.0
        %5996 = vmatprep.subr.mxu0 0.0
        %5997 = vmatpush1.msra.mxu0 0.0
        %5998 = vmatprep.subr.mxu0 0.0
        %5999 = vmatpush1.msra.mxu0 0.0
        %6000 = vmatprep.subr.mxu0 0.0
        %6001 = vmatpush1.msra.mxu0 0.0
        %6002 = vmatprep.subr.mxu0 0.0
        %6003 = vmatpush1.msra.mxu0 0.0
        %6004 = vmatprep.subr.mxu0 0.0
        %6005 = vmatpush1.msra.mxu0 0.0
        %6006 = vmatprep.subr.mxu0 0.0
        %6007 = vmatpush1.msra.mxu0 0.0
        %6008 = vmatprep.subr.mxu0 0.0
        %6009 = vmatpush1.msra.mxu0 0.0
        %6010 = vmatprep.subr.mxu0 0.0
        %6011 = vmatpush1.msra.mxu0 0.0
        %6012 = vmatprep.subr.mxu0 0.0
        %6013 = vmatpush1.msra.mxu0 0.0
        %6014 = vmatprep.mubr.f32.mxu0 0.0
        %6015 = vmatmul.mubr.f32.gmra.mrb[0].mxu0 %v5945
        %v6016 = vpop.f32.mrb[0].mxu0
        %v6017 = vadd.f32 0.0, %v6016
        %v6018 = vpop.f32.mrb[0].mxu0
        %6019 = vmatprep.mubr.f32.mxu0 0.0
        %6020 = vmatmul.mubr.f32.gmra.mrb[0].mxu0 %v5948
        %v6021 = vpop.f32.mrb[0].mxu0
        %v6022 = vadd.f32 0.0, %v6021
        %v6023 = vpop.f32.mrb[0].mxu0
        %6024 = vdwg.mxu0
        %v6026 = vsel %vm1671, %v5693, 0
        %v6029 = vsel %vm1671, %v5694, 0
        %6031 = vmatprep.subr.mxu0 0.0
        %6032 = vmatpush1.msra.mxu0 %v5221
        %6033 = vmatprep.subr.mxu0 0.0
        %6034 = vmatpush1.msra.mxu0 %v5222
        %6035 = vmatprep.subr.mxu0 0.0
        %6036 = vmatpush1.msra.mxu0 0.0
        %6037 = vmatprep.subr.mxu0 0.0
        %6038 = vmatpush1.msra.mxu0 0.0
        %6039 = vmatprep.subr.mxu0 0.0
        %6040 = vmatpush1.msra.mxu0 0.0
        %6041 = vmatprep.subr.mxu0 0.0
        %6042 = vmatpush1.msra.mxu0 0.0
        %6043 = vmatprep.subr.mxu0 0.0
        %6044 = vmatpush1.msra.mxu0 0.0
        %6045 = vmatprep.subr.mxu0 0.0
        %6046 = vmatpush1.msra.mxu0 0.0
        %6047 = vmatprep.subr.mxu0 0.0
        %6048 = vmatpush1.msra.mxu0 0.0
        %6049 = vmatprep.subr.mxu0 0.0
        %6050 = vmatpush1.msra.mxu0 0.0
        %6051 = vmatprep.subr.mxu0 0.0
        %6052 = vmatpush1.msra.mxu0 0.0
        %6053 = vmatprep.subr.mxu0 0.0
        %6054 = vmatpush1.msra.mxu0 0.0
        %6055 = vmatprep.subr.mxu0 0.0
        %6056 = vmatpush1.msra.mxu0 0.0
        %6057 = vmatprep.subr.mxu0 0.0
        %6058 = vmatpush1.msra.mxu0 0.0
        %6059 = vmatprep.subr.mxu0 0.0
        %6060 = vmatpush1.msra.mxu0 0.0
        %6061 = vmatprep.subr.mxu0 0.0
        %6062 = vmatpush1.msra.mxu0 0.0
        %6063 = vmatprep.subr.mxu0 0.0
        %6064 = vmatpush1.msra.mxu0 0.0
        %6065 = vmatprep.subr.mxu0 0.0
        %6066 = vmatpush1.msra.mxu0 0.0
        %6067 = vmatprep.subr.mxu0 0.0
        %6068 = vmatpush1.msra.mxu0 0.0
        %6069 = vmatprep.subr.mxu0 0.0
        %6070 = vmatpush1.msra.mxu0 0.0
        %6071 = vmatprep.subr.mxu0 0.0
        %6072 = vmatpush1.msra.mxu0 0.0
        %6073 = vmatprep.subr.mxu0 0.0
        %6074 = vmatpush1.msra.mxu0 0.0
        %6075 = vmatprep.subr.mxu0 0.0
        %6076 = vmatpush1.msra.mxu0 0.0
        %6077 = vmatprep.subr.mxu0 0.0
        %6078 = vmatpush1.msra.mxu0 0.0
        %6079 = vmatprep.subr.mxu0 0.0
        %6080 = vmatpush1.msra.mxu0 0.0
        %6081 = vmatprep.subr.mxu0 0.0
        %6082 = vmatpush1.msra.mxu0 0.0
        %6083 = vmatprep.subr.mxu0 0.0
        %6084 = vmatpush1.msra.mxu0 0.0
        %6085 = vmatprep.subr.mxu0 0.0
        %6086 = vmatpush1.msra.mxu0 0.0
        %6087 = vmatprep.subr.mxu0 0.0
        %6088 = vmatpush1.msra.mxu0 0.0
        %6089 = vmatprep.subr.mxu0 0.0
        %6090 = vmatpush1.msra.mxu0 0.0
        %6091 = vmatprep.subr.mxu0 0.0
        %6092 = vmatpush1.msra.mxu0 0.0
        %6093 = vmatprep.subr.mxu0 0.0
        %6094 = vmatpush1.msra.mxu0 0.0
        %6095 = vmatprep.mubr.f32.mxu0 0.0
        %6096 = vmatmul.mubr.f32.gmra.mrb[0].mxu0 %v6026
        %v6097 = vpop.f32.mrb[0].mxu0
        %v6098 = vadd.f32 0.0, %v6097
        %v6099 = vpop.f32.mrb[0].mxu0
        %6100 = vmatprep.mubr.f32.mxu0 0.0
        %6101 = vmatmul.mubr.f32.gmra.mrb[0].mxu0 %v6029
        %v6102 = vpop.f32.mrb[0].mxu0
        %v6103 = vadd.f32 0.0, %v6102
        %v6104 = vpop.f32.mrb[0].mxu0
        %6105 = vdwg.mxu0
        %v6107 = vsel %vm1671, %v5695, 0
        %v6110 = vsel %vm1671, %v5696, 0
        %6112 = vmatprep.subr.mxu0 0.0
        %6113 = vmatpush1.msra.mxu0 %v5223
        %6114 = vmatprep.subr.mxu0 0.0
        %6115 = vmatpush1.msra.mxu0 %v5224
        %6116 = vmatprep.subr.mxu0 0.0
        %6117 = vmatpush1.msra.mxu0 0.0
        %6118 = vmatprep.subr.mxu0 0.0
        %6119 = vmatpush1.msra.mxu0 0.0
        %6120 = vmatprep.subr.mxu0 0.0
        %6121 = vmatpush1.msra.mxu0 0.0
        %6122 = vmatprep.subr.mxu0 0.0
        %6123 = vmatpush1.msra.mxu0 0.0
        %6124 = vmatprep.subr.mxu0 0.0
        %6125 = vmatpush1.msra.mxu0 0.0
        %6126 = vmatprep.subr.mxu0 0.0
        %6127 = vmatpush1.msra.mxu0 0.0
        %6128 = vmatprep.subr.mxu0 0.0
        %6129 = vmatpush1.msra.mxu0 0.0
        %6130 = vmatprep.subr.mxu0 0.0
        %6131 = vmatpush1.msra.mxu0 0.0
        %6132 = vmatprep.subr.mxu0 0.0
        %6133 = vmatpush1.msra.mxu0 0.0
        %6134 = vmatprep.subr.mxu0 0.0
        %6135 = vmatpush1.msra.mxu0 0.0
        %6136 = vmatprep.subr.mxu0 0.0
        %6137 = vmatpush1.msra.mxu0 0.0
        %6138 = vmatprep.subr.mxu0 0.0
        %6139 = vmatpush1.msra.mxu0 0.0
        %6140 = vmatprep.subr.mxu0 0.0
        %6141 = vmatpush1.msra.mxu0 0.0
        %6142 = vmatprep.subr.mxu0 0.0
        %6143 = vmatpush1.msra.mxu0 0.0
        %6144 = vmatprep.subr.mxu0 0.0
        %6145 = vmatpush1.msra.mxu0 0.0
        %6146 = vmatprep.subr.mxu0 0.0
        %6147 = vmatpush1.msra.mxu0 0.0
        %6148 = vmatprep.subr.mxu0 0.0
        %6149 = vmatpush1.msra.mxu0 0.0
        %6150 = vmatprep.subr.mxu0 0.0
        %6151 = vmatpush1.msra.mxu0 0.0
        %6152 = vmatprep.subr.mxu0 0.0
        %6153 = vmatpush1.msra.mxu0 0.0
        %6154 = vmatprep.subr.mxu0 0.0
        %6155 = vmatpush1.msra.mxu0 0.0
        %6156 = vmatprep.subr.mxu0 0.0
        %6157 = vmatpush1.msra.mxu0 0.0
        %6158 = vmatprep.subr.mxu0 0.0
        %6159 = vmatpush1.msra.mxu0 0.0
        %6160 = vmatprep.subr.mxu0 0.0
        %6161 = vmatpush1.msra.mxu0 0.0
        %6162 = vmatprep.subr.mxu0 0.0
        %6163 = vmatpush1.msra.mxu0 0.0
        %6164 = vmatprep.subr.mxu0 0.0
        %6165 = vmatpush1.msra.mxu0 0.0
        %6166 = vmatprep.subr.mxu0 0.0
        %6167 = vmatpush1.msra.mxu0 0.0
        %6168 = vmatprep.subr.mxu0 0.0
        %6169 = vmatpush1.msra.mxu0 0.0
        %6170 = vmatprep.subr.mxu0 0.0
        %6171 = vmatpush1.msra.mxu0 0.0
        %6172 = vmatprep.subr.mxu0 0.0
        %6173 = vmatpush1.msra.mxu0 0.0
        %6174 = vmatprep.subr.mxu0 0.0
        %6175 = vmatpush1.msra.mxu0 0.0
        %6176 = vmatprep.mubr.f32.mxu0 0.0
        %6177 = vmatmul.mubr.f32.gmra.mrb[0].mxu0 %v6107
        %v6178 = vpop.f32.mrb[0].mxu0
        %v6179 = vadd.f32 0.0, %v6178
        %v6180 = vpop.f32.mrb[0].mxu0
        %6181 = vmatprep.mubr.f32.mxu0 0.0
        %6182 = vmatmul.mubr.f32.gmra.mrb[0].mxu0 %v6110
        %v6183 = vpop.f32.mrb[0].mxu0
        %v6184 = vadd.f32 0.0, %v6183
        %v6185 = vpop.f32.mrb[0].mxu0
        %6186 = vdwg.mxu0
        %v6188 = vsel %vm1671, %v5697, 0
        %v6191 = vsel %vm1671, %v5698, 0
        %6193 = vmatprep.subr.mxu0 0.0
        %6194 = vmatpush1.msra.mxu0 %v5225
        %6195 = vmatprep.subr.mxu0 0.0
        %6196 = vmatpush1.msra.mxu0 %v5226
        %6197 = vmatprep.subr.mxu0 0.0
        %6198 = vmatpush1.msra.mxu0 0.0
        %6199 = vmatprep.subr.mxu0 0.0
        %6200 = vmatpush1.msra.mxu0 0.0
        %6201 = vmatprep.subr.mxu0 0.0
        %6202 = vmatpush1.msra.mxu0 0.0
        %6203 = vmatprep.subr.mxu0 0.0
        %6204 = vmatpush1.msra.mxu0 0.0
        %6205 = vmatprep.subr.mxu0 0.0
        %6206 = vmatpush1.msra.mxu0 0.0
        %6207 = vmatprep.subr.mxu0 0.0
        %6208 = vmatpush1.msra.mxu0 0.0
        %6209 = vmatprep.subr.mxu0 0.0
        %6210 = vmatpush1.msra.mxu0 0.0
        %6211 = vmatprep.subr.mxu0 0.0
        %6212 = vmatpush1.msra.mxu0 0.0
        %6213 = vmatprep.subr.mxu0 0.0
        %6214 = vmatpush1.msra.mxu0 0.0
        %6215 = vmatprep.subr.mxu0 0.0
        %6216 = vmatpush1.msra.mxu0 0.0
        %6217 = vmatprep.subr.mxu0 0.0
        %6218 = vmatpush1.msra.mxu0 0.0
        %6219 = vmatprep.subr.mxu0 0.0
        %6220 = vmatpush1.msra.mxu0 0.0
        %6221 = vmatprep.subr.mxu0 0.0
        %6222 = vmatpush1.msra.mxu0 0.0
        %6223 = vmatprep.subr.mxu0 0.0
        %6224 = vmatpush1.msra.mxu0 0.0
        %6225 = vmatprep.subr.mxu0 0.0
        %6226 = vmatpush1.msra.mxu0 0.0
        %6227 = vmatprep.subr.mxu0 0.0
        %6228 = vmatpush1.msra.mxu0 0.0
        %6229 = vmatprep.subr.mxu0 0.0
        %6230 = vmatpush1.msra.mxu0 0.0
        %6231 = vmatprep.subr.mxu0 0.0
        %6232 = vmatpush1.msra.mxu0 0.0
        %6233 = vmatprep.subr.mxu0 0.0
        %6234 = vmatpush1.msra.mxu0 0.0
        %6235 = vmatprep.subr.mxu0 0.0
        %6236 = vmatpush1.msra.mxu0 0.0
        %6237 = vmatprep.subr.mxu0 0.0
        %6238 = vmatpush1.msra.mxu0 0.0
        %6239 = vmatprep.subr.mxu0 0.0
        %6240 = vmatpush1.msra.mxu0 0.0
        %6241 = vmatprep.subr.mxu0 0.0
        %6242 = vmatpush1.msra.mxu0 0.0
        %6243 = vmatprep.subr.mxu0 0.0
        %6244 = vmatpush1.msra.mxu0 0.0
        %6245 = vmatprep.subr.mxu0 0.0
        %6246 = vmatpush1.msra.mxu0 0.0
        %6247 = vmatprep.subr.mxu0 0.0
        %6248 = vmatpush1.msra.mxu0 0.0
        %6249 = vmatprep.subr.mxu0 0.0
        %6250 = vmatpush1.msra.mxu0 0.0
        %6251 = vmatprep.subr.mxu0 0.0
        %6252 = vmatpush1.msra.mxu0 0.0
        %6253 = vmatprep.subr.mxu0 0.0
        %6254 = vmatpush1.msra.mxu0 0.0
        %6255 = vmatprep.subr.mxu0 0.0
        %6256 = vmatpush1.msra.mxu0 0.0
        %6257 = vmatprep.mubr.f32.mxu0 0.0
        %6258 = vmatmul.mubr.f32.gmra.mrb[0].mxu0 %v6188
        %v6259 = vpop.f32.mrb[0].mxu0
        %v6260 = vadd.f32 0.0, %v6259
        %v6261 = vpop.f32.mrb[0].mxu0
        %6262 = vmatprep.mubr.f32.mxu0 0.0
        %6263 = vmatmul.mubr.f32.gmra.mrb[0].mxu0 %v6191
        %v6264 = vpop.f32.mrb[0].mxu0
        %v6265 = vadd.f32 0.0, %v6264
        %v6266 = vpop.f32.mrb[0].mxu0
        %6267 = vdwg.mxu0
        %v6269 = vsel %vm1671, %v5699, 0
        %v6272 = vsel %vm1671, %v5700, 0
        %6274 = vmatprep.subr.mxu0 0.0
        %6275 = vmatpush1.msra.mxu0 %v5227
        %6276 = vmatprep.subr.mxu0 0.0
        %6277 = vmatpush1.msra.mxu0 %v5228
        %6278 = vmatprep.subr.mxu0 0.0
        %6279 = vmatpush1.msra.mxu0 0.0
        %6280 = vmatprep.subr.mxu0 0.0
        %6281 = vmatpush1.msra.mxu0 0.0
        %6282 = vmatprep.subr.mxu0 0.0
        %6283 = vmatpush1.msra.mxu0 0.0
        %6284 = vmatprep.subr.mxu0 0.0
        %6285 = vmatpush1.msra.mxu0 0.0
        %6286 = vmatprep.subr.mxu0 0.0
        %6287 = vmatpush1.msra.mxu0 0.0
        %6288 = vmatprep.subr.mxu0 0.0
        %6289 = vmatpush1.msra.mxu0 0.0
        %6290 = vmatprep.subr.mxu0 0.0
        %6291 = vmatpush1.msra.mxu0 0.0
        %6292 = vmatprep.subr.mxu0 0.0
        %6293 = vmatpush1.msra.mxu0 0.0
        %6294 = vmatprep.subr.mxu0 0.0
        %6295 = vmatpush1.msra.mxu0 0.0
        %6296 = vmatprep.subr.mxu0 0.0
        %6297 = vmatpush1.msra.mxu0 0.0
        %6298 = vmatprep.subr.mxu0 0.0
        %6299 = vmatpush1.msra.mxu0 0.0
        %6300 = vmatprep.subr.mxu0 0.0
        %6301 = vmatpush1.msra.mxu0 0.0
        %6302 = vmatprep.subr.mxu0 0.0
        %6303 = vmatpush1.msra.mxu0 0.0
        %6304 = vmatprep.subr.mxu0 0.0
        %6305 = vmatpush1.msra.mxu0 0.0
        %6306 = vmatprep.subr.mxu0 0.0
        %6307 = vmatpush1.msra.mxu0 0.0
        %6308 = vmatprep.subr.mxu0 0.0
        %6309 = vmatpush1.msra.mxu0 0.0
        %6310 = vmatprep.subr.mxu0 0.0
        %6311 = vmatpush1.msra.mxu0 0.0
        %6312 = vmatprep.subr.mxu0 0.0
        %6313 = vmatpush1.msra.mxu0 0.0
        %6314 = vmatprep.subr.mxu0 0.0
        %6315 = vmatpush1.msra.mxu0 0.0
        %6316 = vmatprep.subr.mxu0 0.0
        %6317 = vmatpush1.msra.mxu0 0.0
        %6318 = vmatprep.subr.mxu0 0.0
        %6319 = vmatpush1.msra.mxu0 0.0
        %6320 = vmatprep.subr.mxu0 0.0
        %6321 = vmatpush1.msra.mxu0 0.0
        %6322 = vmatprep.subr.mxu0 0.0
        %6323 = vmatpush1.msra.mxu0 0.0
        %6324 = vmatprep.subr.mxu0 0.0
        %6325 = vmatpush1.msra.mxu0 0.0
        %6326 = vmatprep.subr.mxu0 0.0
        %6327 = vmatpush1.msra.mxu0 0.0
        %6328 = vmatprep.subr.mxu0 0.0
        %6329 = vmatpush1.msra.mxu0 0.0
        %6330 = vmatprep.subr.mxu0 0.0
        %6331 = vmatpush1.msra.mxu0 0.0
        %6332 = vmatprep.subr.mxu0 0.0
        %6333 = vmatpush1.msra.mxu0 0.0
        %6334 = vmatprep.subr.mxu0 0.0
        %6335 = vmatpush1.msra.mxu0 0.0
        %6336 = vmatprep.subr.mxu0 0.0
        %6337 = vmatpush1.msra.mxu0 0.0
        %6338 = vmatprep.mubr.f32.mxu0 0.0
        %6339 = vmatmul.mubr.f32.gmra.mrb[0].mxu0 %v6269
        %v6340 = vpop.f32.mrb[0].mxu0
        %v6341 = vadd.f32 0.0, %v6340
        %v6342 = vpop.f32.mrb[0].mxu0
        %6343 = vmatprep.mubr.f32.mxu0 0.0
        %6344 = vmatmul.mubr.f32.gmra.mrb[0].mxu0 %v6272
        %v6345 = vpop.f32.mrb[0].mxu0
        %v6346 = vadd.f32 0.0, %v6345
        %v6347 = vpop.f32.mrb[0].mxu0
        %6348 = vdwg.mxu0
        %s6349 = scalar_lea.vmem %s1121, 384 [#allocation5]
        %6350 = vst.msk [vmem:[%s6349] sm:$0xff] %vm1671, %v5685
        %6351 = vst.msk [vmem:[%s6349 + $0x8] sm:$0xff] %vm1671, %v5686
        %6352 = vst.msk [vmem:[%s6349 + $0x10] sm:$0xff] %vm1671, %v5687
        %6353 = vst.msk [vmem:[%s6349 + $0x18] sm:$0xff] %vm1671, %v5688
        %6354 = vst.msk [vmem:[%s6349 + $0x20] sm:$0xff] %vm1671, %v5689
        %6355 = vst.msk [vmem:[%s6349 + $0x28] sm:$0xff] %vm1671, %v5690
        %6356 = vst.msk [vmem:[%s6349 + $0x30] sm:$0xff] %vm1671, %v5691
        %6357 = vst.msk [vmem:[%s6349 + $0x38] sm:$0xff] %vm1671, %v5692
        %6358 = vst.msk [vmem:[%s6349 + $0x40] sm:$0xff] %vm1671, %v5693
        %6359 = vst.msk [vmem:[%s6349 + $0x48] sm:$0xff] %vm1671, %v5694
        %6360 = vst.msk [vmem:[%s6349 + $0x50] sm:$0xff] %vm1671, %v5695
        %6361 = vst.msk [vmem:[%s6349 + $0x58] sm:$0xff] %vm1671, %v5696
        %6362 = vst.msk [vmem:[%s6349 + $0x60] sm:$0xff] %vm1671, %v5697
        %6363 = vst.msk [vmem:[%s6349 + $0x68] sm:$0xff] %vm1671, %v5698
        %6364 = vst.msk [vmem:[%s6349 + $0x70] sm:$0xff] %vm1671, %v5699
        %6365 = vst.msk [vmem:[%s6349 + $0x78] sm:$0xff] %vm1671, %v5700
        %v6366 = vsub.f32 %v5774, %v5146
        %v6367 = vsub.f32 %v5779, %v5147
        %v6368 = vsub.f32 %v5855, %v5148
        %v6369 = vsub.f32 %v5860, %v5149
        %v6370 = vsub.f32 %v5936, %v5150
        %v6371 = vsub.f32 %v5941, %v5151
        %v6372 = vsub.f32 %v6017, %v5152
        %v6373 = vsub.f32 %v6022, %v5153
        %v6374 = vsub.f32 %v6098, %v5154
        %v6375 = vsub.f32 %v6103, %v5155
        %v6376 = vsub.f32 %v6179, %v5156
        %v6377 = vsub.f32 %v6184, %v5157
        %v6378 = vsub.f32 %v6260, %v5158
        %v6379 = vsub.f32 %v6265, %v5159
        %v6380 = vsub.f32 %v6341, %v5160
        %v6381 = vsub.f32 %v6346, %v5161
        %v6382 = vmul.f32 %v6366, 0.5
        %v6383 = vmul.f32 %v6367, 0.5
        %v6384 = vmul.f32 %v6368, 0.5
        %v6385 = vmul.f32 %v6369, 0.5
        %v6386 = vmul.f32 %v6370, 0.5
        %v6387 = vmul.f32 %v6371, 0.5
        %v6388 = vmul.f32 %v6372, 0.5
        %v6389 = vmul.f32 %v6373, 0.5
        %v6390 = vmul.f32 %v6374, 0.5
        %v6391 = vmul.f32 %v6375, 0.5
        %v6392 = vmul.f32 %v6376, 0.5
        %v6393 = vmul.f32 %v6377, 0.5
        %v6394 = vmul.f32 %v6378, 0.5
        %v6395 = vmul.f32 %v6379, 0.5
        %v6396 = vmul.f32 %v6380, 0.5
        %v6397 = vmul.f32 %v6381, 0.5
        %v6398 = vadd.f32 %v5146, %v6382
        %v6399 = vadd.f32 %v5147, %v6383
        %v6400 = vadd.f32 %v5148, %v6384
        %v6401 = vadd.f32 %v5149, %v6385
        %v6402 = vadd.f32 %v5150, %v6386
        %v6403 = vadd.f32 %v5151, %v6387
        %v6404 = vadd.f32 %v5152, %v6388
        %v6405 = vadd.f32 %v5153, %v6389
        %v6406 = vadd.f32 %v5154, %v6390
        %v6407 = vadd.f32 %v5155, %v6391
        %v6408 = vadd.f32 %v5156, %v6392
        %v6409 = vadd.f32 %v5157, %v6393
        %v6410 = vadd.f32 %v5158, %v6394
        %v6411 = vadd.f32 %v5159, %v6395
        %v6412 = vadd.f32 %v5160, %v6396
        %v6413 = vadd.f32 %v5161, %v6397
        %vm6414 = vcmp.ge.f32.partialorder %v6398, 0.5
        %vm6415 = vcmp.ge.f32.partialorder %v6399, 0.5
        %vm6416 = vcmp.ge.f32.partialorder %v6400, 0.5
        %vm6417 = vcmp.ge.f32.partialorder %v6401, 0.5
        %vm6418 = vcmp.ge.f32.partialorder %v6402, 0.5
        %vm6419 = vcmp.ge.f32.partialorder %v6403, 0.5
        %vm6420 = vcmp.ge.f32.partialorder %v6404, 0.5
        %vm6421 = vcmp.ge.f32.partialorder %v6405, 0.5
        %vm6422 = vcmp.ge.f32.partialorder %v6406, 0.5
        %vm6423 = vcmp.ge.f32.partialorder %v6407, 0.5
        %vm6424 = vcmp.ge.f32.partialorder %v6408, 0.5
        %vm6425 = vcmp.ge.f32.partialorder %v6409, 0.5
        %vm6426 = vcmp.ge.f32.partialorder %v6410, 0.5
        %vm6427 = vcmp.ge.f32.partialorder %v6411, 0.5
        %vm6428 = vcmp.ge.f32.partialorder %v6412, 0.5
        %vm6429 = vcmp.ge.f32.partialorder %v6413, 0.5
        %v6430 = vsel %vm6414, 1, 0
        %v6431 = vsel %vm6415, 1, 0
        %v6432 = vsel %vm6416, 1, 0
        %v6433 = vsel %vm6417, 1, 0
        %v6434 = vsel %vm6418, 1, 0
        %v6435 = vsel %vm6419, 1, 0
        %v6436 = vsel %vm6420, 1, 0
        %v6437 = vsel %vm6421, 1, 0
        %v6438 = vsel %vm6422, 1, 0
        %v6439 = vsel %vm6423, 1, 0
        %v6440 = vsel %vm6424, 1, 0
        %v6441 = vsel %vm6425, 1, 0
        %v6442 = vsel %vm6426, 1, 0
        %v6443 = vsel %vm6427, 1, 0
        %v6444 = vsel %vm6428, 1, 0
        %v6445 = vsel %vm6429, 1, 0
        %v6446 = vcvt.s32.f32 %v6430
        %v6447 = vcvt.s32.f32 %v6431
        %v6448 = vcvt.s32.f32 %v6432
        %v6449 = vcvt.s32.f32 %v6433
        %v6450 = vcvt.s32.f32 %v6434
        %v6451 = vcvt.s32.f32 %v6435
        %v6452 = vcvt.s32.f32 %v6436
        %v6453 = vcvt.s32.f32 %v6437
        %v6454 = vcvt.s32.f32 %v6438
        %v6455 = vcvt.s32.f32 %v6439
        %v6456 = vcvt.s32.f32 %v6440
        %v6457 = vcvt.s32.f32 %v6441
        %v6458 = vcvt.s32.f32 %v6442
        %v6459 = vcvt.s32.f32 %v6443
        %v6460 = vcvt.s32.f32 %v6444
        %v6461 = vcvt.s32.f32 %v6445
        %s6462 = scalar_lea.vmem %s1127, 384 [#allocation7]
        %6463 = vst.msk [vmem:[%s6462] sm:$0xff] %vm1208, %v6446
        %6464 = vst.msk [vmem:[%s6462 + $0x8] sm:$0xff] %vm1208, %v6447
        %6465 = vst.msk [vmem:[%s6462 + $0x10] sm:$0xff] %vm1208, %v6448
        %6466 = vst.msk [vmem:[%s6462 + $0x18] sm:$0xff] %vm1208, %v6449
        %6467 = vst.msk [vmem:[%s6462 + $0x20] sm:$0xff] %vm1208, %v6450
        %6468 = vst.msk [vmem:[%s6462 + $0x28] sm:$0xff] %vm1208, %v6451
        %6469 = vst.msk [vmem:[%s6462 + $0x30] sm:$0xff] %vm1208, %v6452
        %6470 = vst.msk [vmem:[%s6462 + $0x38] sm:$0xff] %vm1208, %v6453
        %6471 = vst.msk [vmem:[%s6462 + $0x40] sm:$0xff] %vm1208, %v6454
        %6472 = vst.msk [vmem:[%s6462 + $0x48] sm:$0xff] %vm1208, %v6455
        %6473 = vst.msk [vmem:[%s6462 + $0x50] sm:$0xff] %vm1208, %v6456
        %6474 = vst.msk [vmem:[%s6462 + $0x58] sm:$0xff] %vm1208, %v6457
        %6475 = vst.msk [vmem:[%s6462 + $0x60] sm:$0xff] %vm1208, %v6458
        %6476 = vst.msk [vmem:[%s6462 + $0x68] sm:$0xff] %vm1208, %v6459
        %6477 = vst.msk [vmem:[%s6462 + $0x70] sm:$0xff] %vm1208, %v6460
        %6478 = vst.msk [vmem:[%s6462 + $0x78] sm:$0xff] %vm1208, %v6461
        %s6479 = sand.u32 %s105, 1
        %s6480 = scalar_lea.sflag [#allocation6], %s6479
        %s6481 = sand.u32 %s105, 1
        %s6482 = smul.addr %s6481, 512
        %s6483 = scalar_lea.vmem [#allocation5], %s6482
        %s6484 = sand.u32 %s131, 1
        %s6485 = sand.u32 %s131, 1
        %s6486 = smul.addr %s6485, 512
        %s6487 = scalar_lea.vmem [#allocation7], %s6486
        // Predicated region
        $region156: #{ssa_forward.4} parent=142 // pred_check
          %p6488 = pneg %p115
        $region157: #{ssa_forward.4} parent=142 // pred_check_branch
          %6490 = sbr.rel (%p6488) target = $region159
        $region158: #{ssa_forward.4} parent=142 // pred_region
          #allocation9 [shape = 'u32[6]{0}', space=smem, size = 0x18, scoped, tag = 'DMA stride descriptor']
          %s6491 = smul.u32 8, %s19
          %s6493 = ssub.s32 8192, 8192
          %6494 = vsyncadd %s6480, %s6493
          %s6495 = smul.addr %s6491, 2
          %s6496 = smul.addr %s6495, 128
          %s6497 = scalar_lea.hbm %s3, %s6496
          %s6499 = sshll.u32 1, 14
          %s6500 = sxor.u32 4294967295, %s6499
          %s6503 = sshll.u32 7, 18
          %s6504 = sxor.u32 4294967295, %s6503
          %s6505 = sand.u32 0, %s6504
          %s6507 = sor.u32 %s6505, 0
          %s6509 = sshll.u32 3, 24
          %s6510 = sxor.u32 4294967295, %s6509
          %s6511 = sand.u32 %s6507, %s6510
          %s6513 = sor.u32 %s6511, 0
          %s6514 = sshll.u32 %s6483, 4
          %s6515 = int_to_ptr.vmem [resolvable:$true] %s6514
          %6521 = sst [smem:[#allocation9]] 2048
          %s6522 = scalar_lea.smem [#allocation9], 1
          %6523 = sst [smem:[%s6522]] 4096
          %s6524 = scalar_lea.smem [#allocation9], 2
          %6525 = sst [smem:[%s6524]] 16
          %s6526 = scalar_lea.smem [#allocation9], 3
          %6527 = sst [smem:[%s6526]] 128
          %s6528 = scalar_lea.smem [#allocation9], 4
          %6529 = sst [smem:[%s6528]] 128
          %s6530 = scalar_lea.smem [#allocation9], 5
          %6531 = sst [smem:[%s6530]] 8
          %6533 = dma.general %s6515, 8192, %s6497, %s6480, [#allocation8], [#allocation9], %s6513, 0
        $region159: #{ssa_forward.4} parent=142 // pred_fallthru
          _
        // Predicated region
        $region160: #{ssa_forward.4} parent=142 // pred_check
          %p6534 = pneg %p141
        $region161: #{ssa_forward.4} parent=142 // pred_check_branch
          %6536 = sbr.rel (%p6534) target = $region163
        $region162: #{ssa_forward.4} parent=142 // pred_region
          %s6537 = smul.u32 8, %s19
          %s6538 = smul.addr %s6537, 2
          %s6539 = smul.addr %s6538, 8
          %s6540 = scalar_lea.vmem %s4, %s6539
          // Predicated region
          $region164: #{ssa_forward.4} parent=162 // pred_check
            _
          $region165: #{ssa_forward.4} parent=162 // pred_check_branch
            %6542 = sbr.rel (0) target = $region167
          $region166: #{ssa_forward.4} parent=162 // pred_region
            // Predicated region
            $region168: #{ssa_forward.4} parent=166 // pred_check
              _
            $region169: #{ssa_forward.4} parent=166 // pred_check_branch
              %6544 = sbr.rel (0) target = $region171
            $region170: #{ssa_forward.4} parent=166 // pred_region
              // Predicated region
              $region183: #{ssa_forward.4} parent=170 // pred_check
                _
              $region184: #{ssa_forward.4} parent=170 // pred_check_branch
                %6685 = sbr.rel (0) target = $region186
              $region185: #{ssa_forward.4} parent=170 // pred_region
                loop: start=0, step=1, limit=1
                $region187: #{ssa_forward.4} parent=185 // loop_pre_header
                  _
                $region188: #{ssa_forward.4} parent=185 // loop_header
                  %s6687 = sphi 0, %s6691
                  %p6688 = scmp.ge.s32.totalorder %s6687, 1
                  %s6692 = sphi %s6487, %s6487
                  %s6693 = sphi %s6540, %s6540
                $region189: #{ssa_forward.4} parent=185 // loop_header_branch
                  %6690 = sbr.rel (%p6688) target = $region193
                $region190: #{ssa_forward.4} parent=185 // loop_body
                  %v6694 = vld [vmem:[%s6692] sm:$0xff]
                  %6695 = vst [vmem:[%s6693] sm:$0xff] %v6694
                  %v6696 = vld [vmem:[%s6692 + $0x8] sm:$0xff]
                  %6697 = vst [vmem:[%s6693 + $0x8] sm:$0xff] %v6696
                  %v6698 = vld [vmem:[%s6692 + $0x10] sm:$0xff]
                  %6699 = vst [vmem:[%s6693 + $0x10] sm:$0xff] %v6698
                  %v6700 = vld [vmem:[%s6692 + $0x18] sm:$0xff]
                  %6701 = vst [vmem:[%s6693 + $0x18] sm:$0xff] %v6700
                  %v6702 = vld [vmem:[%s6692 + $0x20] sm:$0xff]
                  %6703 = vst [vmem:[%s6693 + $0x20] sm:$0xff] %v6702
                  %v6704 = vld [vmem:[%s6692 + $0x28] sm:$0xff]
                  %6705 = vst [vmem:[%s6693 + $0x28] sm:$0xff] %v6704
                  %v6706 = vld [vmem:[%s6692 + $0x30] sm:$0xff]
                  %6707 = vst [vmem:[%s6693 + $0x30] sm:$0xff] %v6706
                  %v6708 = vld [vmem:[%s6692 + $0x38] sm:$0xff]
                  %6709 = vst [vmem:[%s6693 + $0x38] sm:$0xff] %v6708
                  %v6710 = vld [vmem:[%s6692 + $0x40] sm:$0xff]
                  %6711 = vst [vmem:[%s6693 + $0x40] sm:$0xff] %v6710
                  %v6712 = vld [vmem:[%s6692 + $0x48] sm:$0xff]
                  %6713 = vst [vmem:[%s6693 + $0x48] sm:$0xff] %v6712
                  %v6714 = vld [vmem:[%s6692 + $0x50] sm:$0xff]
                  %6715 = vst [vmem:[%s6693 + $0x50] sm:$0xff] %v6714
                  %v6716 = vld [vmem:[%s6692 + $0x58] sm:$0xff]
                  %6717 = vst [vmem:[%s6693 + $0x58] sm:$0xff] %v6716
                  %v6718 = vld [vmem:[%s6692 + $0x60] sm:$0xff]
                  %6719 = vst [vmem:[%s6693 + $0x60] sm:$0xff] %v6718
                  %v6720 = vld [vmem:[%s6692 + $0x68] sm:$0xff]
                  %6721 = vst [vmem:[%s6693 + $0x68] sm:$0xff] %v6720
                  %v6722 = vld [vmem:[%s6692 + $0x70] sm:$0xff]
                  %6723 = vst [vmem:[%s6693 + $0x70] sm:$0xff] %v6722
                  %v6724 = vld [vmem:[%s6692 + $0x78] sm:$0xff]
                  %6725 = vst [vmem:[%s6693 + $0x78] sm:$0xff] %v6724
                  %v6726 = vld [vmem:[%s6692 + $0x80] sm:$0xff]
                  %6727 = vst [vmem:[%s6693 + $0x100] sm:$0xff] %v6726
                  %v6728 = vld [vmem:[%s6692 + $0x88] sm:$0xff]
                  %6729 = vst [vmem:[%s6693 + $0x108] sm:$0xff] %v6728
                  %v6730 = vld [vmem:[%s6692 + $0x90] sm:$0xff]
                  %6731 = vst [vmem:[%s6693 + $0x110] sm:$0xff] %v6730
                  %v6732 = vld [vmem:[%s6692 + $0x98] sm:$0xff]
                  %6733 = vst [vmem:[%s6693 + $0x118] sm:$0xff] %v6732
                  %v6734 = vld [vmem:[%s6692 + $0xa0] sm:$0xff]
                  %6735 = vst [vmem:[%s6693 + $0x120] sm:$0xff] %v6734
                  %v6736 = vld [vmem:[%s6692 + $0xa8] sm:$0xff]
                  %6737 = vst [vmem:[%s6693 + $0x128] sm:$0xff] %v6736
                  %v6738 = vld [vmem:[%s6692 + $0xb0] sm:$0xff]
                  %6739 = vst [vmem:[%s6693 + $0x130] sm:$0xff] %v6738
                  %v6740 = vld [vmem:[%s6692 + $0xb8] sm:$0xff]
                  %6741 = vst [vmem:[%s6693 + $0x138] sm:$0xff] %v6740
                  %v6742 = vld [vmem:[%s6692 + $0xc0] sm:$0xff]
                  %6743 = vst [vmem:[%s6693 + $0x140] sm:$0xff] %v6742
                  %v6744 = vld [vmem:[%s6692 + $0xc8] sm:$0xff]
                  %6745 = vst [vmem:[%s6693 + $0x148] sm:$0xff] %v6744
                  %v6746 = vld [vmem:[%s6692 + $0xd0] sm:$0xff]
                  %6747 = vst [vmem:[%s6693 + $0x150] sm:$0xff] %v6746
                  %v6748 = vld [vmem:[%s6692 + $0xd8] sm:$0xff]
                  %6749 = vst [vmem:[%s6693 + $0x158] sm:$0xff] %v6748
                  %v6750 = vld [vmem:[%s6692 + $0xe0] sm:$0xff]
                  %6751 = vst [vmem:[%s6693 + $0x160] sm:$0xff] %v6750
                  %v6752 = vld [vmem:[%s6692 + $0xe8] sm:$0xff]
                  %6753 = vst [vmem:[%s6693 + $0x168] sm:$0xff] %v6752
                  %v6754 = vld [vmem:[%s6692 + $0xf0] sm:$0xff]
                  %6755 = vst [vmem:[%s6693 + $0x170] sm:$0xff] %v6754
                  %v6756 = vld [vmem:[%s6692 + $0xf8] sm:$0xff]
                  %6757 = vst [vmem:[%s6693 + $0x178] sm:$0xff] %v6756
                  %v6758 = vld [vmem:[%s6692 + $0x100] sm:$0xff]
                  %6759 = vst [vmem:[%s6693 + $0x200] sm:$0xff] %v6758
                  %v6760 = vld [vmem:[%s6692 + $0x108] sm:$0xff]
                  %6761 = vst [vmem:[%s6693 + $0x208] sm:$0xff] %v6760
                  %v6762 = vld [vmem:[%s6692 + $0x110] sm:$0xff]
                  %6763 = vst [vmem:[%s6693 + $0x210] sm:$0xff] %v6762
                  %v6764 = vld [vmem:[%s6692 + $0x118] sm:$0xff]
                  %6765 = vst [vmem:[%s6693 + $0x218] sm:$0xff] %v6764
                  %v6766 = vld [vmem:[%s6692 + $0x120] sm:$0xff]
                  %6767 = vst [vmem:[%s6693 + $0x220] sm:$0xff] %v6766
                  %v6768 = vld [vmem:[%s6692 + $0x128] sm:$0xff]
                  %6769 = vst [vmem:[%s6693 + $0x228] sm:$0xff] %v6768
                  %v6770 = vld [vmem:[%s6692 + $0x130] sm:$0xff]
                  %6771 = vst [vmem:[%s6693 + $0x230] sm:$0xff] %v6770
                  %v6772 = vld [vmem:[%s6692 + $0x138] sm:$0xff]
                  %6773 = vst [vmem:[%s6693 + $0x238] sm:$0xff] %v6772
                  %v6774 = vld [vmem:[%s6692 + $0x140] sm:$0xff]
                  %6775 = vst [vmem:[%s6693 + $0x240] sm:$0xff] %v6774
                  %v6776 = vld [vmem:[%s6692 + $0x148] sm:$0xff]
                  %6777 = vst [vmem:[%s6693 + $0x248] sm:$0xff] %v6776
                  %v6778 = vld [vmem:[%s6692 + $0x150] sm:$0xff]
                  %6779 = vst [vmem:[%s6693 + $0x250] sm:$0xff] %v6778
                  %v6780 = vld [vmem:[%s6692 + $0x158] sm:$0xff]
                  %6781 = vst [vmem:[%s6693 + $0x258] sm:$0xff] %v6780
                  %v6782 = vld [vmem:[%s6692 + $0x160] sm:$0xff]
                  %6783 = vst [vmem:[%s6693 + $0x260] sm:$0xff] %v6782
                  %v6784 = vld [vmem:[%s6692 + $0x168] sm:$0xff]
                  %6785 = vst [vmem:[%s6693 + $0x268] sm:$0xff] %v6784
                  %v6786 = vld [vmem:[%s6692 + $0x170] sm:$0xff]
                  %6787 = vst [vmem:[%s6693 + $0x270] sm:$0xff] %v6786
                  %v6788 = vld [vmem:[%s6692 + $0x178] sm:$0xff]
                  %6789 = vst [vmem:[%s6693 + $0x278] sm:$0xff] %v6788
                  %v6790 = vld [vmem:[%s6692 + $0x180] sm:$0xff]
                  %6791 = vst [vmem:[%s6693 + $0x300] sm:$0xff] %v6790
                  %v6792 = vld [vmem:[%s6692 + $0x188] sm:$0xff]
                  %6793 = vst [vmem:[%s6693 + $0x308] sm:$0xff] %v6792
                  %v6794 = vld [vmem:[%s6692 + $0x190] sm:$0xff]
                  %6795 = vst [vmem:[%s6693 + $0x310] sm:$0xff] %v6794
                  %v6796 = vld [vmem:[%s6692 + $0x198] sm:$0xff]
                  %6797 = vst [vmem:[%s6693 + $0x318] sm:$0xff] %v6796
                  %v6798 = vld [vmem:[%s6692 + $0x1a0] sm:$0xff]
                  %6799 = vst [vmem:[%s6693 + $0x320] sm:$0xff] %v6798
                  %v6800 = vld [vmem:[%s6692 + $0x1a8] sm:$0xff]
                  %6801 = vst [vmem:[%s6693 + $0x328] sm:$0xff] %v6800
                  %v6802 = vld [vmem:[%s6692 + $0x1b0] sm:$0xff]
                  %6803 = vst [vmem:[%s6693 + $0x330] sm:$0xff] %v6802
                  %v6804 = vld [vmem:[%s6692 + $0x1b8] sm:$0xff]
                  %6805 = vst [vmem:[%s6693 + $0x338] sm:$0xff] %v6804
                  %v6806 = vld [vmem:[%s6692 + $0x1c0] sm:$0xff]
                  %6807 = vst [vmem:[%s6693 + $0x340] sm:$0xff] %v6806
                  %v6808 = vld [vmem:[%s6692 + $0x1c8] sm:$0xff]
                  %6809 = vst [vmem:[%s6693 + $0x348] sm:$0xff] %v6808
                  %v6810 = vld [vmem:[%s6692 + $0x1d0] sm:$0xff]
                  %6811 = vst [vmem:[%s6693 + $0x350] sm:$0xff] %v6810
                  %v6812 = vld [vmem:[%s6692 + $0x1d8] sm:$0xff]
                  %6813 = vst [vmem:[%s6693 + $0x358] sm:$0xff] %v6812
                  %v6814 = vld [vmem:[%s6692 + $0x1e0] sm:$0xff]
                  %6815 = vst [vmem:[%s6693 + $0x360] sm:$0xff] %v6814
                  %v6816 = vld [vmem:[%s6692 + $0x1e8] sm:$0xff]
                  %6817 = vst [vmem:[%s6693 + $0x368] sm:$0xff] %v6816
                  %v6818 = vld [vmem:[%s6692 + $0x1f0] sm:$0xff]
                  %6819 = vst [vmem:[%s6693 + $0x370] sm:$0xff] %v6818
                  %v6820 = vld [vmem:[%s6692 + $0x1f8] sm:$0xff]
                  %6821 = vst [vmem:[%s6693 + $0x378] sm:$0xff] %v6820
                $region191: #{ssa_forward.4} parent=185 // loop_footer
                  %s6691 = sadd.s32 1, %s6687
                $region192: #{ssa_forward.4} parent=185 // loop_footer_branch
                  %6686 = sbr.rel target = $region188
                $region193: #{ssa_forward.4} parent=185 // loop_exit
                  _
              $region186: #{ssa_forward.4} parent=170 // pred_fallthru
                _
              // Predicated region
              $region194: #{ssa_forward.4} parent=170 // pred_check
                _
              $region195: #{ssa_forward.4} parent=170 // pred_check_branch
                %6823 = sbr.rel target = $region197
              $region196: #{ssa_forward.4} parent=170 // pred_region
                _
              $region197: #{ssa_forward.4} parent=170 // pred_fallthru
                _
            $region171: #{ssa_forward.4} parent=166 // pred_fallthru
              _
            // Predicated region
            $region172: #{ssa_forward.4} parent=166 // pred_check
              _
            $region173: #{ssa_forward.4} parent=166 // pred_check_branch
              %6546 = sbr.rel target = $region175
            $region174: #{ssa_forward.4} parent=166 // pred_region
              loop: start=0, step=1, limit=1
              $region176: #{ssa_forward.4} parent=174 // loop_pre_header
                _
              $region177: #{ssa_forward.4} parent=174 // loop_header
                %s6549 = sphi 0, %s6553
                %p6550 = scmp.ge.s32.totalorder %s6549, 1
                %s6554 = sphi %s6487, %s6487
                %s6555 = sphi %s6540, %s6540
              $region178: #{ssa_forward.4} parent=174 // loop_header_branch
                %6552 = sbr.rel (%p6550) target = $region182
              $region179: #{ssa_forward.4} parent=174 // loop_body
                %v6556 = vld [vmem:[%s6554] sm:$0xff]
                %6557 = vst [vmem:[%s6555] sm:$0xff] %v6556
                %v6558 = vld [vmem:[%s6554 + $0x8] sm:$0xff]
                %6559 = vst [vmem:[%s6555 + $0x8] sm:$0xff] %v6558
                %v6560 = vld [vmem:[%s6554 + $0x10] sm:$0xff]
                %6561 = vst [vmem:[%s6555 + $0x10] sm:$0xff] %v6560
                %v6562 = vld [vmem:[%s6554 + $0x18] sm:$0xff]
                %6563 = vst [vmem:[%s6555 + $0x18] sm:$0xff] %v6562
                %v6564 = vld [vmem:[%s6554 + $0x20] sm:$0xff]
                %6565 = vst [vmem:[%s6555 + $0x20] sm:$0xff] %v6564
                %v6566 = vld [vmem:[%s6554 + $0x28] sm:$0xff]
                %6567 = vst [vmem:[%s6555 + $0x28] sm:$0xff] %v6566
                %v6568 = vld [vmem:[%s6554 + $0x30] sm:$0xff]
                %6569 = vst [vmem:[%s6555 + $0x30] sm:$0xff] %v6568
                %v6570 = vld [vmem:[%s6554 + $0x38] sm:$0xff]
                %6571 = vst [vmem:[%s6555 + $0x38] sm:$0xff] %v6570
                %v6572 = vld [vmem:[%s6554 + $0x40] sm:$0xff]
                %6573 = vst [vmem:[%s6555 + $0x40] sm:$0xff] %v6572
                %v6574 = vld [vmem:[%s6554 + $0x48] sm:$0xff]
                %6575 = vst [vmem:[%s6555 + $0x48] sm:$0xff] %v6574
                %v6576 = vld [vmem:[%s6554 + $0x50] sm:$0xff]
                %6577 = vst [vmem:[%s6555 + $0x50] sm:$0xff] %v6576
                %v6578 = vld [vmem:[%s6554 + $0x58] sm:$0xff]
                %6579 = vst [vmem:[%s6555 + $0x58] sm:$0xff] %v6578
                %v6580 = vld [vmem:[%s6554 + $0x60] sm:$0xff]
                %6581 = vst [vmem:[%s6555 + $0x60] sm:$0xff] %v6580
                %v6582 = vld [vmem:[%s6554 + $0x68] sm:$0xff]
                %6583 = vst [vmem:[%s6555 + $0x68] sm:$0xff] %v6582
                %v6584 = vld [vmem:[%s6554 + $0x70] sm:$0xff]
                %6585 = vst [vmem:[%s6555 + $0x70] sm:$0xff] %v6584
                %v6586 = vld [vmem:[%s6554 + $0x78] sm:$0xff]
                %6587 = vst [vmem:[%s6555 + $0x78] sm:$0xff] %v6586
                %v6588 = vld [vmem:[%s6554 + $0x80] sm:$0xff]
                %6589 = vst [vmem:[%s6555 + $0x100] sm:$0xff] %v6588
                %v6590 = vld [vmem:[%s6554 + $0x88] sm:$0xff]
                %6591 = vst [vmem:[%s6555 + $0x108] sm:$0xff] %v6590
                %v6592 = vld [vmem:[%s6554 + $0x90] sm:$0xff]
                %6593 = vst [vmem:[%s6555 + $0x110] sm:$0xff] %v6592
                %v6594 = vld [vmem:[%s6554 + $0x98] sm:$0xff]
                %6595 = vst [vmem:[%s6555 + $0x118] sm:$0xff] %v6594
                %v6596 = vld [vmem:[%s6554 + $0xa0] sm:$0xff]
                %6597 = vst [vmem:[%s6555 + $0x120] sm:$0xff] %v6596
                %v6598 = vld [vmem:[%s6554 + $0xa8] sm:$0xff]
                %6599 = vst [vmem:[%s6555 + $0x128] sm:$0xff] %v6598
                %v6600 = vld [vmem:[%s6554 + $0xb0] sm:$0xff]
                %6601 = vst [vmem:[%s6555 + $0x130] sm:$0xff] %v6600
                %v6602 = vld [vmem:[%s6554 + $0xb8] sm:$0xff]
                %6603 = vst [vmem:[%s6555 + $0x138] sm:$0xff] %v6602
                %v6604 = vld [vmem:[%s6554 + $0xc0] sm:$0xff]
                %6605 = vst [vmem:[%s6555 + $0x140] sm:$0xff] %v6604
                %v6606 = vld [vmem:[%s6554 + $0xc8] sm:$0xff]
                %6607 = vst [vmem:[%s6555 + $0x148] sm:$0xff] %v6606
                %v6608 = vld [vmem:[%s6554 + $0xd0] sm:$0xff]
                %6609 = vst [vmem:[%s6555 + $0x150] sm:$0xff] %v6608
                %v6610 = vld [vmem:[%s6554 + $0xd8] sm:$0xff]
                %6611 = vst [vmem:[%s6555 + $0x158] sm:$0xff] %v6610
                %v6612 = vld [vmem:[%s6554 + $0xe0] sm:$0xff]
                %6613 = vst [vmem:[%s6555 + $0x160] sm:$0xff] %v6612
                %v6614 = vld [vmem:[%s6554 + $0xe8] sm:$0xff]
                %6615 = vst [vmem:[%s6555 + $0x168] sm:$0xff] %v6614
                %v6616 = vld [vmem:[%s6554 + $0xf0] sm:$0xff]
                %6617 = vst [vmem:[%s6555 + $0x170] sm:$0xff] %v6616
                %v6618 = vld [vmem:[%s6554 + $0xf8] sm:$0xff]
                %6619 = vst [vmem:[%s6555 + $0x178] sm:$0xff] %v6618
                %v6620 = vld [vmem:[%s6554 + $0x100] sm:$0xff]
                %6621 = vst [vmem:[%s6555 + $0x200] sm:$0xff] %v6620
                %v6622 = vld [vmem:[%s6554 + $0x108] sm:$0xff]
                %6623 = vst [vmem:[%s6555 + $0x208] sm:$0xff] %v6622
                %v6624 = vld [vmem:[%s6554 + $0x110] sm:$0xff]
                %6625 = vst [vmem:[%s6555 + $0x210] sm:$0xff] %v6624
                %v6626 = vld [vmem:[%s6554 + $0x118] sm:$0xff]
                %6627 = vst [vmem:[%s6555 + $0x218] sm:$0xff] %v6626
                %v6628 = vld [vmem:[%s6554 + $0x120] sm:$0xff]
                %6629 = vst [vmem:[%s6555 + $0x220] sm:$0xff] %v6628
                %v6630 = vld [vmem:[%s6554 + $0x128] sm:$0xff]
                %6631 = vst [vmem:[%s6555 + $0x228] sm:$0xff] %v6630
                %v6632 = vld [vmem:[%s6554 + $0x130] sm:$0xff]
                %6633 = vst [vmem:[%s6555 + $0x230] sm:$0xff] %v6632
                %v6634 = vld [vmem:[%s6554 + $0x138] sm:$0xff]
                %6635 = vst [vmem:[%s6555 + $0x238] sm:$0xff] %v6634
                %v6636 = vld [vmem:[%s6554 + $0x140] sm:$0xff]
                %6637 = vst [vmem:[%s6555 + $0x240] sm:$0xff] %v6636
                %v6638 = vld [vmem:[%s6554 + $0x148] sm:$0xff]
                %6639 = vst [vmem:[%s6555 + $0x248] sm:$0xff] %v6638
                %v6640 = vld [vmem:[%s6554 + $0x150] sm:$0xff]
                %6641 = vst [vmem:[%s6555 + $0x250] sm:$0xff] %v6640
                %v6642 = vld [vmem:[%s6554 + $0x158] sm:$0xff]
                %6643 = vst [vmem:[%s6555 + $0x258] sm:$0xff] %v6642
                %v6644 = vld [vmem:[%s6554 + $0x160] sm:$0xff]
                %6645 = vst [vmem:[%s6555 + $0x260] sm:$0xff] %v6644
                %v6646 = vld [vmem:[%s6554 + $0x168] sm:$0xff]
                %6647 = vst [vmem:[%s6555 + $0x268] sm:$0xff] %v6646
                %v6648 = vld [vmem:[%s6554 + $0x170] sm:$0xff]
                %6649 = vst [vmem:[%s6555 + $0x270] sm:$0xff] %v6648
                %v6650 = vld [vmem:[%s6554 + $0x178] sm:$0xff]
                %6651 = vst [vmem:[%s6555 + $0x278] sm:$0xff] %v6650
                %v6652 = vld [vmem:[%s6554 + $0x180] sm:$0xff]
                %6653 = vst [vmem:[%s6555 + $0x300] sm:$0xff] %v6652
                %v6654 = vld [vmem:[%s6554 + $0x188] sm:$0xff]
                %6655 = vst [vmem:[%s6555 + $0x308] sm:$0xff] %v6654
                %v6656 = vld [vmem:[%s6554 + $0x190] sm:$0xff]
                %6657 = vst [vmem:[%s6555 + $0x310] sm:$0xff] %v6656
                %v6658 = vld [vmem:[%s6554 + $0x198] sm:$0xff]
                %6659 = vst [vmem:[%s6555 + $0x318] sm:$0xff] %v6658
                %v6660 = vld [vmem:[%s6554 + $0x1a0] sm:$0xff]
                %6661 = vst [vmem:[%s6555 + $0x320] sm:$0xff] %v6660
                %v6662 = vld [vmem:[%s6554 + $0x1a8] sm:$0xff]
                %6663 = vst [vmem:[%s6555 + $0x328] sm:$0xff] %v6662
                %v6664 = vld [vmem:[%s6554 + $0x1b0] sm:$0xff]
                %6665 = vst [vmem:[%s6555 + $0x330] sm:$0xff] %v6664
                %v6666 = vld [vmem:[%s6554 + $0x1b8] sm:$0xff]
                %6667 = vst [vmem:[%s6555 + $0x338] sm:$0xff] %v6666
                %v6668 = vld [vmem:[%s6554 + $0x1c0] sm:$0xff]
                %6669 = vst [vmem:[%s6555 + $0x340] sm:$0xff] %v6668
                %v6670 = vld [vmem:[%s6554 + $0x1c8] sm:$0xff]
                %6671 = vst [vmem:[%s6555 + $0x348] sm:$0xff] %v6670
                %v6672 = vld [vmem:[%s6554 + $0x1d0] sm:$0xff]
                %6673 = vst [vmem:[%s6555 + $0x350] sm:$0xff] %v6672
                %v6674 = vld [vmem:[%s6554 + $0x1d8] sm:$0xff]
                %6675 = vst [vmem:[%s6555 + $0x358] sm:$0xff] %v6674
                %v6676 = vld [vmem:[%s6554 + $0x1e0] sm:$0xff]
                %6677 = vst [vmem:[%s6555 + $0x360] sm:$0xff] %v6676
                %v6678 = vld [vmem:[%s6554 + $0x1e8] sm:$0xff]
                %6679 = vst [vmem:[%s6555 + $0x368] sm:$0xff] %v6678
                %v6680 = vld [vmem:[%s6554 + $0x1f0] sm:$0xff]
                %6681 = vst [vmem:[%s6555 + $0x370] sm:$0xff] %v6680
                %v6682 = vld [vmem:[%s6554 + $0x1f8] sm:$0xff]
                %6683 = vst [vmem:[%s6555 + $0x378] sm:$0xff] %v6682
              $region180: #{ssa_forward.4} parent=174 // loop_footer
                %s6553 = sadd.s32 1, %s6549
              $region181: #{ssa_forward.4} parent=174 // loop_footer_branch
                %6548 = sbr.rel target = $region177
              $region182: #{ssa_forward.4} parent=174 // loop_exit
                _
            $region175: #{ssa_forward.4} parent=166 // pred_fallthru
              _
          $region167: #{ssa_forward.4} parent=162 // pred_fallthru
            _
          %6824 = vnop
        $region163: #{ssa_forward.4} parent=142 // pred_fallthru
          _
      $region143: #{ssa_forward.4} parent=5 // pred_fallthru
        _
      %p6825 = scmp.le.s32.totalorder 2, %s14
      // Predicated region
      $region198: #{ssa_forward.4} parent=5 // pred_check
        %p6826 = pneg %p6825
      $region199: #{ssa_forward.4} parent=5 // pred_check_branch
        %6828 = sbr.rel (%p6826) target = $region201
      $region200: #{ssa_forward.4} parent=5 // pred_region
        %s6829 = ssub.s32 %s14, 2
        // Predicated region
        $region202: #{ssa_forward.4} parent=200 // pred_check
          %p6830 = pneg %p121
        $region203: #{ssa_forward.4} parent=200 // pred_check_branch
          %6832 = sbr.rel (%p6830) target = $region205
        $region204: #{ssa_forward.4} parent=200 // pred_region
          %s6833 = sand.u32 %s106, 1
          %s6834 = scalar_lea.sflag [#allocation6], %s6833
          %s6835 = sand.u32 %s106, 1
          %s6836 = smul.addr %s6835, 512
          %s6837 = scalar_lea.vmem [#allocation5], %s6836
          %6838 = dma.done %s6834, 8192
        $region205: #{ssa_forward.4} parent=200 // pred_fallthru
          _
        // Predicated region
        $region206: #{ssa_forward.4} parent=200 // pred_check
          %p6839 = pneg %p147
        $region207: #{ssa_forward.4} parent=200 // pred_check_branch
          %6841 = sbr.rel (%p6839) target = $region209
        $region208: #{ssa_forward.4} parent=200 // pred_region
          %s6842 = sand.u32 %s132, 1
          %s6843 = sand.u32 %s132, 1
          %s6844 = smul.addr %s6843, 512
          %s6845 = scalar_lea.vmem [#allocation7], %s6844
        $region209: #{ssa_forward.4} parent=200 // pred_fallthru
          _
      $region201: #{ssa_forward.4} parent=5 // pred_fallthru
        _
    $region6: #{ssa_forward.4} parent=1 // loop_footer
      %s18 = sadd.s32 1, %s14
    $region7: #{ssa_forward.4} parent=1 // loop_footer_branch
      %13 = sbr.rel target = $region3
    $region8: #{ssa_forward.4} parent=1 // loop_exit
      _
    %6846 = vsyncpa [#allocation6], 1
    %s6847 = scalar_lea.sflag [#allocation6], 1
    %6848 = vsyncpa %s6847, 1

</llo_original>
